<compile_context>
chip_gen: v5e
topology: v5e:2x2
jax: 0.10.0
libtpu: 0.0.40
codegen_flags: <defaults>
</compile_context>

<pallas_src>
import functools
import math

import jax
import jax.numpy as jnp
from jax.experimental import pallas as pl
from jax.experimental.pallas import tpu as pltpu


def _yolov2_bbox_loss_kernel(
    scal_ref, pred_ref, o_ref, *,
    object_scale, no_object_scale, coord_scale, sil_thresh, grid_size,
):
    R = scal_ref.shape[0]            # TB * na rows in this slab
    ss = pred_ref.shape[2]           # S * S cells (lane axis)

    # ---- per-row scalars, (R, 1), broadcast along lanes ----
    gx = scal_ref[:, 0:1]            # scaled gt cx
    gy = scal_ref[:, 1:2]
    gw = scal_ref[:, 2:3]
    gh = scal_ref[:, 3:4]
    txt = scal_ref[:, 4:5]           # gx - gi (in-cell x target)
    tyt = scal_ref[:, 5:6]           # gy - gj
    tbw = scal_ref[:, 6:7]           # log(gw / anc_w_best)
    tbh = scal_ref[:, 7:8]           # log(gh / anc_h_best)
    tcv = scal_ref[:, 8:9]           # IoU(gt, pred box at target location)
    loc_marker = scal_ref[:, 9:10].astype(jnp.int32)   # lin cell idx or -1
    aw = scal_ref[:, 10:11]          # this row's anchor width
    ah = scal_ref[:, 11:12]
    valid = scal_ref[:, 12:13]       # 1.0 real batch row, 0.0 padding

    # ---- raw predictions for this slab, channel slices are (R, ss) ----
    tx = pred_ref[:, 0, :].astype(jnp.float32)
    ty = pred_ref[:, 1, :].astype(jnp.float32)
    tw = pred_ref[:, 2, :].astype(jnp.float32)
    th = pred_ref[:, 3, :].astype(jnp.float32)
    tc = pred_ref[:, 4, :].astype(jnp.float32)

    # ---- cell indices (flattened) ----
    lin_i = jax.lax.broadcasted_iota(jnp.int32, (R, ss), 1)
    lin_f = lin_i.astype(jnp.float32)
    row = jnp.floor(lin_f / float(grid_size))          # grid_y (exact for ints)
    col = lin_f - row * float(grid_size)                # grid_x

    # one-hot target location: exact integer compare against per-row marker
    loc = lin_i == loc_marker                            # (R, ss) bool

    sx = jax.nn.sigmoid(tx)
    sy = jax.nn.sigmoid(ty)
    pconf = jax.nn.sigmoid(tc)

    # pred boxes with grid / anchor offsets
    ofs_x = sx + col
    ofs_y = sy + row
    ofs_w = jnp.exp(tw) * aw
    ofs_h = jnp.exp(th) * ah

    # ---- get_conf_mask: IoU of (per-row broadcast) gt box vs every pred box ----
    mnx = jnp.minimum(gx - 0.5 * gw, ofs_x - 0.5 * ofs_w)
    mxx = jnp.maximum(gx + 0.5 * gw, ofs_x + 0.5 * ofs_w)
    mny = jnp.minimum(gy - 0.5 * gh, ofs_y - 0.5 * ofs_h)
    mxy = jnp.maximum(gy + 0.5 * gh, ofs_y + 0.5 * ofs_h)
    uw = mxx - mnx
    uh = mxy - mny
    cw = gw + ofs_w - uw
    ch = gh + ofs_h - uh
    carea = jnp.where((cw <= 0.0) | (ch <= 0.0), 0.0, cw * ch)
    uarea = gw * gh + ofs_w * ofs_h - carea
    iou = jnp.maximum(carea / uarea, 0.0)               # exact divide (parity)

    # conf_mask: no_object_scale, 0 where iou > sil_thresh, object_scale at loc
    conf_mask = jnp.where(
        loc, object_scale, jnp.where(iou > sil_thresh, 0.0, no_object_scale))
    conf_mask = conf_mask * valid                       # kill padded rows
    tconf = jnp.where(loc, tcv, 0.0)

    # targets (epoch < 1 branch); coord_mask == 1 everywhere so it is dropped.
    dx = sx - jnp.where(loc, txt, 0.5)
    dy = sy - jnp.where(loc, tyt, 0.5)
    dw = tw - jnp.where(loc, tbw, 0.0)
    dh = th - jnp.where(loc, tbh, 0.0)
    dc = pconf - tconf

    half_cs = 0.5 * coord_scale
    lx = half_cs * jnp.sum(valid * dx * dx)
    ly = half_cs * jnp.sum(valid * dy * dy)
    lw = half_cs * jnp.sum(valid * dw * dw)
    lh = half_cs * jnp.sum(valid * dh * dh)
    # sqrt(conf_mask) then squaring == weighting by conf_mask
    lc = 0.5 * jnp.sum(conf_mask * (dc * dc))

    # pack 5 per-step partial losses into the (1, 1, 8) output block
    lane = jax.lax.broadcasted_iota(jnp.int32, (1, 1, 8), 2)
    o_ref[...] = (jnp.where(lane == 0, lx, 0.0)
                  + jnp.where(lane == 1, ly, 0.0)
                  + jnp.where(lane == 2, lw, 0.0)
                  + jnp.where(lane == 3, lh, 0.0)
                  + jnp.where(lane == 4, lc, 0.0))


def yolov2_bbox_loss(pred, target, cfg):
    """Returns (loss, loss_x, loss_y, loss_w, loss_h, loss_conf) as f32 scalars."""
    anchors = jnp.asarray(
        [float(v) for v in cfg["anchors"].split(",")], dtype=jnp.float32
    ).reshape(-1, 2)
    na = int(anchors.shape[0])
    bs = pred.shape[0]
    S = pred.shape[2]
    assert pred.shape[2] == pred.shape[3], "module requires a square grid"
    assert pred.shape[1] == na * 5
    ss = S * S

    # Batch elements per grid step: smallest TB >= 8 with TB*na % 8 == 0.
    step = 8 // math.gcd(na, 8)
    tb = step * ((8 + step - 1) // step)
    bs_pad = ((bs + tb - 1) // tb) * tb
    n_blocks = bs_pad // tb
    rows_per_block = tb * na

    # ---- pad batch (padded rows are masked out via a valid flag) ----
    tgt = target.astype(jnp.float32)
    if bs_pad > bs:
        tgt = jnp.concatenate(
            [tgt, jnp.full((bs_pad - bs, 4), 0.5, dtype=jnp.float32)], axis=0)
        pred = jnp.concatenate(
            [pred, jnp.zeros((bs_pad - bs,) + pred.shape[1:], dtype=pred.dtype)],
            axis=0)
    valid_b = (jnp.arange(bs_pad) < bs).astype(jnp.float32)

    # Free reshape: (bs, na*5, S, S) -> (bs*na, 5, S*S). Native dtype; cast in kernel.
    pred_rows = pred.reshape(bs_pad * na, 5, ss)
    pred_r = pred.reshape(bs_pad, na, 5, ss)

    # ---- plain-JAX glue: O(bs * na) per-batch scalar prep ----
    gx = tgt[:, 0] * S
    gy = tgt[:, 1] * S
    gw = tgt[:, 2] * S
    gh = tgt[:, 3] * S
    gi = jnp.floor(gx)          # == int() truncation for non-negative coords
    gj = jnp.floor(gy)

    aw = anchors[:, 0]
    ah = anchors[:, 1]
    # anchor-matching IoU of (0,0,gw,gh) vs (0,0,aw,ah): min(w)*min(h)/union
    inter = (jnp.minimum(gw[:, None], aw[None, :])
             * jnp.minimum(gh[:, None], ah[None, :]))
    union = gw[:, None] * gh[:, None] + aw[None, :] * ah[None, :] - inter
    best = jnp.argmax(inter / union, axis=1)
    aw_b = aw[best]
    ah_b = ah[best]
    tbw = jnp.log(gw / aw_b)
    tbh = jnp.log(gh / ah_b)

    # Target-conf IoU: gather the raw prediction at (b, best, gj, gi) — O(bs).
    # NOTE: if the gt center sits exactly on the grid edge (gi == S) the location
    # mask in the kernel is all-false (PyTorch would index out of bounds there).
    lin = (gj * S + gi).astype(jnp.int32)
    lin_safe = jnp.clip(lin, 0, ss - 1)
    bidx = jnp.arange(bs_pad)
    at_loc = pred_r[bidx, best, :, lin_safe].astype(jnp.float32)   # (bs_pad, 5)
    px = jax.nn.sigmoid(at_loc[:, 0]) + gi
    py = jax.nn.sigmoid(at_loc[:, 1]) + gj
    pw = jnp.exp(at_loc[:, 2]) * aw_b
    ph = jnp.exp(at_loc[:, 3]) * ah_b

    mnx = jnp.minimum(gx - 0.5 * gw, px - 0.5 * pw)
    mxx = jnp.maximum(gx + 0.5 * gw, px + 0.5 * pw)
    mny = jnp.minimum(gy - 0.5 * gh, py - 0.5 * ph)
    mxy = jnp.maximum(gy + 0.5 * gh, py + 0.5 * ph)
    uw = mxx - mnx
    uh = mxy - mny
    cw = gw + pw - uw
    ch = gh + ph - uh
    carea = jnp.where((cw <= 0.0) | (ch <= 0.0), 0.0, cw * ch)
    uarea = gw * gh + pw * ph - carea
    iou_loc = carea / uarea

    # ---- expand per-batch scalars to per-row (bs_pad*na) table ----
    def rep(x):
        return jnp.repeat(x, na)

    aw_row = jnp.tile(aw, bs_pad)
    ah_row = jnp.tile(ah, bs_pad)
    arow = jnp.tile(jnp.arange(na), bs_pad)
    best_row = jnp.repeat(best, na)
    valid_row = jnp.repeat(valid_b, na)
    in_bounds = jnp.repeat(((gi < S) & (gj < S)).astype(jnp.float32), na)
    loc_marker = jnp.where(
        (arow == best_row) & (valid_row > 0.0) & (in_bounds > 0.0),
        jnp.repeat(lin, na), -1).astype(jnp.float32)
    zeros_row = jnp.zeros((bs_pad * na,), dtype=jnp.float32)

    scal = jnp.stack(
        [rep(gx), rep(gy), rep(gw), rep(gh),
         rep(gx - gi), rep(gy - gj), rep(tbw), rep(tbh),
         rep(iou_loc), loc_marker, aw_row, ah_row, valid_row,
         zeros_row, zeros_row, zeros_row],
        axis=1,
    ).astype(jnp.float32)                      # (bs_pad*na, 16) -> VMEM blocks

    kern = functools.partial(
        _yolov2_bbox_loss_kernel,
        object_scale=float(cfg["object_scale"]),
        no_object_scale=float(cfg["no_object_scale"]),
        coord_scale=float(cfg["coord_scale"]),
        sil_thresh=float(cfg["sil_thresh"]),
        grid_size=S,
    )

    out = pl.pallas_call(
        kern,
        out_shape=jax.ShapeDtypeStruct((n_blocks, 1, 8), jnp.float32),
        grid=(n_blocks,),
        in_specs=[
            pl.BlockSpec((rows_per_block, 16), lambda i: (i, 0)),       # scalars
            pl.BlockSpec((rows_per_block, 5, ss), lambda i: (i, 0, 0)),  # pred slab
        ],
        out_specs=pl.BlockSpec((1, 1, 8), lambda i: (i, 0, 0)),
        compiler_params=pltpu.CompilerParams(
            dimension_semantics=("parallel",)),
    )(scal, pred_rows)

    sums = jnp.sum(out[:, 0, :], axis=0)       # per-step partials -> full losses
    loss_x, loss_y, loss_w, loss_h, loss_conf = (
        sums[0], sums[1], sums[2], sums[3], sums[4])
    loss = loss_x + loss_y + loss_w + loss_h + loss_conf
    return loss, loss_x, loss_y, loss_w, loss_h, loss_conf


if __name__ == "__main__":
    cfg = {
        "object_scale": 5.0,
        "no_object_scale": 1.0,
        "coord_scale": 1.0,
        "sil_thresh": 0.6,
        "anchors": "1.3221,1.73145,3.19275,4.00944,5.05587,"
                   "8.09892,9.47112,4.84053,11.2364,10.0071",
    }
    na = 5
    bs, S = 2, 13   # small YOLOv2-style shapes: pred (2, 25, 13, 13), target (2, 4)

    key = jax.random.PRNGKey(0)
    k1, k2, k3 = jax.random.split(key, 3)
    pred = 0.5 * jax.random.normal(k1, (bs, na * 5, S, S), dtype=jnp.float32)
    txy = jax.random.uniform(k2, (bs, 2), minval=0.2, maxval=0.8)
    twh = jax.random.uniform(k3, (bs, 2), minval=0.1, maxval=0.5)
    target = jnp.concatenate([txy, twh], axis=1).astype(jnp.float32)

    losses = yolov2_bbox_loss(pred, target, cfg)
    losses = jax.block_until_ready(losses)
    print("KERNEL_OK")
</pallas_src>

<mosaic_0001>
module attributes {stable_mosaic.version = 11 : i64} {
  func.func @_yolov2_bbox_loss_kernel(%arg0: i32, %arg1: memref<40x16xf32, #tpu.memory_space<vmem>>, %arg2: memref<40x5x169xf32, #tpu.memory_space<vmem>>, %arg3: memref<1x1x8xf32, #tpu.memory_space<vmem>>) attributes {dimension_semantics = [#tpu.dimension_semantics<parallel>], iteration_bounds = array<i64: 1>, scalar_prefetch = 0 : i64, scratch_operands = 0 : i64, tpu.core_type = #tpu.core_type<tc>, window_params = [{transform_indices = @transform_0, window_bounds = array<i64: 40, 16>}, {transform_indices = @transform_1, window_bounds = array<i64: 40, 5, 169>}, {transform_indices = @transform_2, window_bounds = array<i64: 1, 1, 8>}]} {
    %c0 = arith.constant 0 : index
    %c0_0 = arith.constant 0 : index
    %0 = vector.load %arg1[%c0, %c0_0] : memref<40x16xf32, #tpu.memory_space<vmem>>, vector<40x1xf32>
    %c0_1 = arith.constant 0 : index
    %c1 = arith.constant 1 : index
    %1 = vector.load %arg1[%c0_1, %c1] : memref<40x16xf32, #tpu.memory_space<vmem>>, vector<40x1xf32>
    %c0_2 = arith.constant 0 : index
    %c2 = arith.constant 2 : index
    %2 = vector.load %arg1[%c0_2, %c2] : memref<40x16xf32, #tpu.memory_space<vmem>>, vector<40x1xf32>
    %c0_3 = arith.constant 0 : index
    %c3 = arith.constant 3 : index
    %3 = vector.load %arg1[%c0_3, %c3] : memref<40x16xf32, #tpu.memory_space<vmem>>, vector<40x1xf32>
    %c0_4 = arith.constant 0 : index
    %c4 = arith.constant 4 : index
    %4 = vector.load %arg1[%c0_4, %c4] : memref<40x16xf32, #tpu.memory_space<vmem>>, vector<40x1xf32>
    %c0_5 = arith.constant 0 : index
    %c5 = arith.constant 5 : index
    %5 = vector.load %arg1[%c0_5, %c5] : memref<40x16xf32, #tpu.memory_space<vmem>>, vector<40x1xf32>
    %c0_6 = arith.constant 0 : index
    %c6 = arith.constant 6 : index
    %6 = vector.load %arg1[%c0_6, %c6] : memref<40x16xf32, #tpu.memory_space<vmem>>, vector<40x1xf32>
    %c0_7 = arith.constant 0 : index
    %c7 = arith.constant 7 : index
    %7 = vector.load %arg1[%c0_7, %c7] : memref<40x16xf32, #tpu.memory_space<vmem>>, vector<40x1xf32>
    %c0_8 = arith.constant 0 : index
    %c8 = arith.constant 8 : index
    %8 = vector.load %arg1[%c0_8, %c8] : memref<40x16xf32, #tpu.memory_space<vmem>>, vector<40x1xf32>
    %c0_9 = arith.constant 0 : index
    %c9 = arith.constant 9 : index
    %9 = vector.load %arg1[%c0_9, %c9] : memref<40x16xf32, #tpu.memory_space<vmem>>, vector<40x1xf32>
    %10 = arith.fptosi %9 : vector<40x1xf32> to vector<40x1xi32>
    %c0_10 = arith.constant 0 : index
    %c10 = arith.constant 10 : index
    %11 = vector.load %arg1[%c0_10, %c10] : memref<40x16xf32, #tpu.memory_space<vmem>>, vector<40x1xf32>
    %c0_11 = arith.constant 0 : index
    %c11 = arith.constant 11 : index
    %12 = vector.load %arg1[%c0_11, %c11] : memref<40x16xf32, #tpu.memory_space<vmem>>, vector<40x1xf32>
    %c0_12 = arith.constant 0 : index
    %c12 = arith.constant 12 : index
    %13 = vector.load %arg1[%c0_12, %c12] : memref<40x16xf32, #tpu.memory_space<vmem>>, vector<40x1xf32>
    %c0_13 = arith.constant 0 : index
    %c0_14 = arith.constant 0 : index
    %c0_15 = arith.constant 0 : index
    %14 = vector.load %arg2[%c0_13, %c0_14, %c0_15] : memref<40x5x169xf32, #tpu.memory_space<vmem>>, vector<40x1x169xf32>
    %15 = vector.shape_cast %14 : vector<40x1x169xf32> to vector<40x169xf32>
    %c0_16 = arith.constant 0 : index
    %c1_17 = arith.constant 1 : index
    %c0_18 = arith.constant 0 : index
    %16 = vector.load %arg2[%c0_16, %c1_17, %c0_18] : memref<40x5x169xf32, #tpu.memory_space<vmem>>, vector<40x1x169xf32>
    %17 = vector.shape_cast %16 : vector<40x1x169xf32> to vector<40x169xf32>
    %c0_19 = arith.constant 0 : index
    %c2_20 = arith.constant 2 : index
    %c0_21 = arith.constant 0 : index
    %18 = vector.load %arg2[%c0_19, %c2_20, %c0_21] : memref<40x5x169xf32, #tpu.memory_space<vmem>>, vector<40x1x169xf32>
    %19 = vector.shape_cast %18 : vector<40x1x169xf32> to vector<40x169xf32>
    %c0_22 = arith.constant 0 : index
    %c3_23 = arith.constant 3 : index
    %c0_24 = arith.constant 0 : index
    %20 = vector.load %arg2[%c0_22, %c3_23, %c0_24] : memref<40x5x169xf32, #tpu.memory_space<vmem>>, vector<40x1x169xf32>
    %21 = vector.shape_cast %20 : vector<40x1x169xf32> to vector<40x169xf32>
    %c0_25 = arith.constant 0 : index
    %c4_26 = arith.constant 4 : index
    %c0_27 = arith.constant 0 : index
    %22 = vector.load %arg2[%c0_25, %c4_26, %c0_27] : memref<40x5x169xf32, #tpu.memory_space<vmem>>, vector<40x1x169xf32>
    %23 = vector.shape_cast %22 : vector<40x1x169xf32> to vector<40x169xf32>
    %24 = tpu.iota {dimensions = array<i32: 1>} : vector<40x169xi32>
    %25 = arith.sitofp %24 : vector<40x169xi32> to vector<40x169xf32>
    %cst = arith.constant 1.300000e+01 : f32
    %26 = vector.broadcast %cst : f32 to vector<40x169xf32>
    %27 = arith.divf %25, %26 : vector<40x169xf32>
    %28 = math.floor %27 : vector<40x169xf32>
    %cst_28 = arith.constant 1.300000e+01 : f32
    %29 = vector.broadcast %cst_28 : f32 to vector<40x169xf32>
    %30 = arith.mulf %28, %29 : vector<40x169xf32>
    %31 = arith.subf %25, %30 : vector<40x169xf32>
    %32 = vector.broadcast %10 : vector<40x1xi32> to vector<40x169xi32>
    %33 = arith.cmpi eq, %24, %32 : vector<40x169xi32>
    %34 = arith.negf %15 : vector<40x169xf32>
    %35 = math.exp %34 : vector<40x169xf32>
    %cst_29 = arith.constant 1.000000e+00 : f32
    %36 = vector.broadcast %cst_29 : f32 to vector<40x169xf32>
    %37 = arith.addf %36, %35 : vector<40x169xf32>
    %38 = arith.divf %36, %37 : vector<40x169xf32>
    %39 = arith.negf %17 : vector<40x169xf32>
    %40 = math.exp %39 : vector<40x169xf32>
    %cst_30 = arith.constant 1.000000e+00 : f32
    %41 = vector.broadcast %cst_30 : f32 to vector<40x169xf32>
    %42 = arith.addf %41, %40 : vector<40x169xf32>
    %43 = arith.divf %41, %42 : vector<40x169xf32>
    %44 = arith.negf %23 : vector<40x169xf32>
    %45 = math.exp %44 : vector<40x169xf32>
    %cst_31 = arith.constant 1.000000e+00 : f32
    %46 = vector.broadcast %cst_31 : f32 to vector<40x169xf32>
    %47 = arith.addf %46, %45 : vector<40x169xf32>
    %48 = arith.divf %46, %47 : vector<40x169xf32>
    %49 = arith.addf %38, %31 : vector<40x169xf32>
    %50 = arith.addf %43, %28 : vector<40x169xf32>
    %51 = math.exp %19 : vector<40x169xf32>
    %52 = vector.broadcast %11 : vector<40x1xf32> to vector<40x169xf32>
    %53 = arith.mulf %51, %52 : vector<40x169xf32>
    %54 = math.exp %21 : vector<40x169xf32>
    %55 = vector.broadcast %12 : vector<40x1xf32> to vector<40x169xf32>
    %56 = arith.mulf %54, %55 : vector<40x169xf32>
    %cst_32 = arith.constant 5.000000e-01 : f32
    %57 = vector.broadcast %cst_32 : f32 to vector<40x1xf32>
    %58 = arith.mulf %57, %2 : vector<40x1xf32>
    %59 = arith.subf %0, %58 : vector<40x1xf32>
    %cst_33 = arith.constant 5.000000e-01 : f32
    %60 = vector.broadcast %cst_33 : f32 to vector<40x169xf32>
    %61 = arith.mulf %60, %53 : vector<40x169xf32>
    %62 = arith.subf %49, %61 : vector<40x169xf32>
    %63 = vector.broadcast %59 : vector<40x1xf32> to vector<40x169xf32>
    %64 = arith.minimumf %63, %62 : vector<40x169xf32>
    %cst_34 = arith.constant 5.000000e-01 : f32
    %65 = vector.broadcast %cst_34 : f32 to vector<40x1xf32>
    %66 = arith.mulf %65, %2 : vector<40x1xf32>
    %67 = arith.addf %0, %66 : vector<40x1xf32>
    %cst_35 = arith.constant 5.000000e-01 : f32
    %68 = vector.broadcast %cst_35 : f32 to vector<40x169xf32>
    %69 = arith.mulf %68, %53 : vector<40x169xf32>
    %70 = arith.addf %49, %69 : vector<40x169xf32>
    %71 = vector.broadcast %67 : vector<40x1xf32> to vector<40x169xf32>
    %72 = arith.maximumf %71, %70 : vector<40x169xf32>
    %cst_36 = arith.constant 5.000000e-01 : f32
    %73 = vector.broadcast %cst_36 : f32 to vector<40x1xf32>
    %74 = arith.mulf %73, %3 : vector<40x1xf32>
    %75 = arith.subf %1, %74 : vector<40x1xf32>
    %cst_37 = arith.constant 5.000000e-01 : f32
    %76 = vector.broadcast %cst_37 : f32 to vector<40x169xf32>
    %77 = arith.mulf %76, %56 : vector<40x169xf32>
    %78 = arith.subf %50, %77 : vector<40x169xf32>
    %79 = vector.broadcast %75 : vector<40x1xf32> to vector<40x169xf32>
    %80 = arith.minimumf %79, %78 : vector<40x169xf32>
    %cst_38 = arith.constant 5.000000e-01 : f32
    %81 = vector.broadcast %cst_38 : f32 to vector<40x1xf32>
    %82 = arith.mulf %81, %3 : vector<40x1xf32>
    %83 = arith.addf %1, %82 : vector<40x1xf32>
    %cst_39 = arith.constant 5.000000e-01 : f32
    %84 = vector.broadcast %cst_39 : f32 to vector<40x169xf32>
    %85 = arith.mulf %84, %56 : vector<40x169xf32>
    %86 = arith.addf %50, %85 : vector<40x169xf32>
    %87 = vector.broadcast %83 : vector<40x1xf32> to vector<40x169xf32>
    %88 = arith.maximumf %87, %86 : vector<40x169xf32>
    %89 = arith.subf %72, %64 : vector<40x169xf32>
    %90 = arith.subf %88, %80 : vector<40x169xf32>
    %91 = vector.broadcast %2 : vector<40x1xf32> to vector<40x169xf32>
    %92 = arith.addf %91, %53 : vector<40x169xf32>
    %93 = arith.subf %92, %89 : vector<40x169xf32>
    %94 = vector.broadcast %3 : vector<40x1xf32> to vector<40x169xf32>
    %95 = arith.addf %94, %56 : vector<40x169xf32>
    %96 = arith.subf %95, %90 : vector<40x169xf32>
    %cst_40 = arith.constant 0.000000e+00 : f32
    %97 = vector.broadcast %cst_40 : f32 to vector<40x169xf32>
    %98 = arith.cmpf ole, %93, %97 : vector<40x169xf32>
    %cst_41 = arith.constant 0.000000e+00 : f32
    %99 = vector.broadcast %cst_41 : f32 to vector<40x169xf32>
    %100 = arith.cmpf ole, %96, %99 : vector<40x169xf32>
    %101 = arith.ori %98, %100 : vector<40x169xi1>
    %102 = arith.mulf %93, %96 : vector<40x169xf32>
    %cst_42 = arith.constant 0.000000e+00 : f32
    %103 = vector.broadcast %cst_42 : f32 to vector<40x169xf32>
    %104 = arith.select %101, %103, %102 : vector<40x169xi1>, vector<40x169xf32>
    %105 = arith.mulf %2, %3 : vector<40x1xf32>
    %106 = arith.mulf %53, %56 : vector<40x169xf32>
    %107 = vector.broadcast %105 : vector<40x1xf32> to vector<40x169xf32>
    %108 = arith.addf %107, %106 : vector<40x169xf32>
    %109 = arith.subf %108, %104 : vector<40x169xf32>
    %110 = arith.divf %104, %109 : vector<40x169xf32>
    %cst_43 = arith.constant 0.000000e+00 : f32
    %111 = vector.broadcast %cst_43 : f32 to vector<40x169xf32>
    %112 = arith.maximumf %110, %111 : vector<40x169xf32>
    %cst_44 = arith.constant 6.000000e-01 : f32
    %113 = vector.broadcast %cst_44 : f32 to vector<40x169xf32>
    %114 = arith.cmpf ogt, %112, %113 : vector<40x169xf32>
    %cst_45 = arith.constant 0.000000e+00 : f32
    %cst_46 = arith.constant 1.000000e+00 : f32
    %115 = vector.broadcast %cst_45 : f32 to vector<40x169xf32>
    %116 = vector.broadcast %cst_46 : f32 to vector<40x169xf32>
    %117 = arith.select %114, %115, %116 : vector<40x169xi1>, vector<40x169xf32>
    %cst_47 = arith.constant 5.000000e+00 : f32
    %118 = vector.broadcast %cst_47 : f32 to vector<40x169xf32>
    %119 = arith.select %33, %118, %117 : vector<40x169xi1>, vector<40x169xf32>
    %120 = vector.broadcast %13 : vector<40x1xf32> to vector<40x169xf32>
    %121 = arith.mulf %119, %120 : vector<40x169xf32>
    %cst_48 = arith.constant 0.000000e+00 : f32
    %122 = vector.shape_cast %8 : vector<40x1xf32> to vector<40x1xf32>
    %123 = vector.broadcast %122 : vector<40x1xf32> to vector<40x169xf32>
    %124 = vector.broadcast %cst_48 : f32 to vector<40x169xf32>
    %125 = arith.select %33, %123, %124 : vector<40x169xi1>, vector<40x169xf32>
    %cst_49 = arith.constant 5.000000e-01 : f32
    %126 = vector.shape_cast %4 : vector<40x1xf32> to vector<40x1xf32>
    %127 = vector.broadcast %126 : vector<40x1xf32> to vector<40x169xf32>
    %128 = vector.broadcast %cst_49 : f32 to vector<40x169xf32>
    %129 = arith.select %33, %127, %128 : vector<40x169xi1>, vector<40x169xf32>
    %130 = arith.subf %38, %129 : vector<40x169xf32>
    %cst_50 = arith.constant 5.000000e-01 : f32
    %131 = vector.shape_cast %5 : vector<40x1xf32> to vector<40x1xf32>
    %132 = vector.broadcast %131 : vector<40x1xf32> to vector<40x169xf32>
    %133 = vector.broadcast %cst_50 : f32 to vector<40x169xf32>
    %134 = arith.select %33, %132, %133 : vector<40x169xi1>, vector<40x169xf32>
    %135 = arith.subf %43, %134 : vector<40x169xf32>
    %cst_51 = arith.constant 0.000000e+00 : f32
    %136 = vector.shape_cast %6 : vector<40x1xf32> to vector<40x1xf32>
    %137 = vector.broadcast %136 : vector<40x1xf32> to vector<40x169xf32>
    %138 = vector.broadcast %cst_51 : f32 to vector<40x169xf32>
    %139 = arith.select %33, %137, %138 : vector<40x169xi1>, vector<40x169xf32>
    %140 = arith.subf %19, %139 : vector<40x169xf32>
    %cst_52 = arith.constant 0.000000e+00 : f32
    %141 = vector.shape_cast %7 : vector<40x1xf32> to vector<40x1xf32>
    %142 = vector.broadcast %141 : vector<40x1xf32> to vector<40x169xf32>
    %143 = vector.broadcast %cst_52 : f32 to vector<40x169xf32>
    %144 = arith.select %33, %142, %143 : vector<40x169xi1>, vector<40x169xf32>
    %145 = arith.subf %21, %144 : vector<40x169xf32>
    %146 = arith.subf %48, %125 : vector<40x169xf32>
    %147 = vector.broadcast %13 : vector<40x1xf32> to vector<40x169xf32>
    %148 = arith.mulf %147, %130 : vector<40x169xf32>
    %149 = arith.mulf %148, %130 : vector<40x169xf32>
    %150 = vector.shape_cast %149 : vector<40x169xf32> to vector<1x40x169xf32>
    %cst_53 = arith.constant dense<0.000000e+00> : vector<1xf32>
    %151 = vector.multi_reduction <add>, %150, %cst_53 [1, 2] : vector<1x40x169xf32> to vector<1xf32>
    %152 = vector.shape_cast %151 : vector<1xf32> to vector<1x1x1xf32>
    %153 = vector.extract %152[0, 0, 0] : f32 from vector<1x1x1xf32>
    %cst_54 = arith.constant 5.000000e-01 : f32
    %154 = arith.mulf %cst_54, %153 : f32
    %155 = vector.broadcast %13 : vector<40x1xf32> to vector<40x169xf32>
    %156 = arith.mulf %155, %135 : vector<40x169xf32>
    %157 = arith.mulf %156, %135 : vector<40x169xf32>
    %158 = vector.shape_cast %157 : vector<40x169xf32> to vector<1x40x169xf32>
    %cst_55 = arith.constant dense<0.000000e+00> : vector<1xf32>
    %159 = vector.multi_reduction <add>, %158, %cst_55 [1, 2] : vector<1x40x169xf32> to vector<1xf32>
    %160 = vector.shape_cast %159 : vector<1xf32> to vector<1x1x1xf32>
    %161 = vector.extract %160[0, 0, 0] : f32 from vector<1x1x1xf32>
    %cst_56 = arith.constant 5.000000e-01 : f32
    %162 = arith.mulf %cst_56, %161 : f32
    %163 = vector.broadcast %13 : vector<40x1xf32> to vector<40x169xf32>
    %164 = arith.mulf %163, %140 : vector<40x169xf32>
    %165 = arith.mulf %164, %140 : vector<40x169xf32>
    %166 = vector.shape_cast %165 : vector<40x169xf32> to vector<1x40x169xf32>
    %cst_57 = arith.constant dense<0.000000e+00> : vector<1xf32>
    %167 = vector.multi_reduction <add>, %166, %cst_57 [1, 2] : vector<1x40x169xf32> to vector<1xf32>
    %168 = vector.shape_cast %167 : vector<1xf32> to vector<1x1x1xf32>
    %169 = vector.extract %168[0, 0, 0] : f32 from vector<1x1x1xf32>
    %cst_58 = arith.constant 5.000000e-01 : f32
    %170 = arith.mulf %cst_58, %169 : f32
    %171 = vector.broadcast %13 : vector<40x1xf32> to vector<40x169xf32>
    %172 = arith.mulf %171, %145 : vector<40x169xf32>
    %173 = arith.mulf %172, %145 : vector<40x169xf32>
    %174 = vector.shape_cast %173 : vector<40x169xf32> to vector<1x40x169xf32>
    %cst_59 = arith.constant dense<0.000000e+00> : vector<1xf32>
    %175 = vector.multi_reduction <add>, %174, %cst_59 [1, 2] : vector<1x40x169xf32> to vector<1xf32>
    %176 = vector.shape_cast %175 : vector<1xf32> to vector<1x1x1xf32>
    %177 = vector.extract %176[0, 0, 0] : f32 from vector<1x1x1xf32>
    %cst_60 = arith.constant 5.000000e-01 : f32
    %178 = arith.mulf %cst_60, %177 : f32
    %179 = arith.mulf %146, %146 : vector<40x169xf32>
    %180 = arith.mulf %121, %179 : vector<40x169xf32>
    %181 = vector.shape_cast %180 : vector<40x169xf32> to vector<1x40x169xf32>
    %cst_61 = arith.constant dense<0.000000e+00> : vector<1xf32>
    %182 = vector.multi_reduction <add>, %181, %cst_61 [1, 2] : vector<1x40x169xf32> to vector<1xf32>
    %183 = vector.shape_cast %182 : vector<1xf32> to vector<1x1x1xf32>
    %184 = vector.extract %183[0, 0, 0] : f32 from vector<1x1x1xf32>
    %cst_62 = arith.constant 5.000000e-01 : f32
    %185 = arith.mulf %cst_62, %184 : f32
    %186 = tpu.iota {dimensions = array<i32: 2>} : vector<1x1x8xi32>
    %c0_i32 = arith.constant 0 : i32
    %187 = vector.broadcast %c0_i32 : i32 to vector<1x1x8xi32>
    %188 = arith.cmpi eq, %186, %187 : vector<1x1x8xi32>
    %cst_63 = arith.constant 0.000000e+00 : f32
    %189 = vector.broadcast %154 : f32 to vector<1x1x8xf32>
    %190 = vector.broadcast %cst_63 : f32 to vector<1x1x8xf32>
    %191 = arith.select %188, %189, %190 : vector<1x1x8xi1>, vector<1x1x8xf32>
    %c1_i32 = arith.constant 1 : i32
    %192 = vector.broadcast %c1_i32 : i32 to vector<1x1x8xi32>
    %193 = arith.cmpi eq, %186, %192 : vector<1x1x8xi32>
    %cst_64 = arith.constant 0.000000e+00 : f32
    %194 = vector.broadcast %162 : f32 to vector<1x1x8xf32>
    %195 = vector.broadcast %cst_64 : f32 to vector<1x1x8xf32>
    %196 = arith.select %193, %194, %195 : vector<1x1x8xi1>, vector<1x1x8xf32>
    %197 = arith.addf %191, %196 : vector<1x1x8xf32>
    %c2_i32 = arith.constant 2 : i32
    %198 = vector.broadcast %c2_i32 : i32 to vector<1x1x8xi32>
    %199 = arith.cmpi eq, %186, %198 : vector<1x1x8xi32>
    %cst_65 = arith.constant 0.000000e+00 : f32
    %200 = vector.broadcast %170 : f32 to vector<1x1x8xf32>
    %201 = vector.broadcast %cst_65 : f32 to vector<1x1x8xf32>
    %202 = arith.select %199, %200, %201 : vector<1x1x8xi1>, vector<1x1x8xf32>
    %203 = arith.addf %197, %202 : vector<1x1x8xf32>
    %c3_i32 = arith.constant 3 : i32
    %204 = vector.broadcast %c3_i32 : i32 to vector<1x1x8xi32>
    %205 = arith.cmpi eq, %186, %204 : vector<1x1x8xi32>
    %cst_66 = arith.constant 0.000000e+00 : f32
    %206 = vector.broadcast %178 : f32 to vector<1x1x8xf32>
    %207 = vector.broadcast %cst_66 : f32 to vector<1x1x8xf32>
    %208 = arith.select %205, %206, %207 : vector<1x1x8xi1>, vector<1x1x8xf32>
    %209 = arith.addf %203, %208 : vector<1x1x8xf32>
    %c4_i32 = arith.constant 4 : i32
    %210 = vector.broadcast %c4_i32 : i32 to vector<1x1x8xi32>
    %211 = arith.cmpi eq, %186, %210 : vector<1x1x8xi32>
    %cst_67 = arith.constant 0.000000e+00 : f32
    %212 = vector.broadcast %185 : f32 to vector<1x1x8xf32>
    %213 = vector.broadcast %cst_67 : f32 to vector<1x1x8xf32>
    %214 = arith.select %211, %212, %213 : vector<1x1x8xi1>, vector<1x1x8xf32>
    %215 = arith.addf %209, %214 : vector<1x1x8xf32>
    %c0_68 = arith.constant 0 : index
    %c0_69 = arith.constant 0 : index
    %c0_70 = arith.constant 0 : index
    %216 = vector.load %arg3[%c0_68, %c0_69, %c0_70] : memref<1x1x8xf32, #tpu.memory_space<vmem>>, vector<1x1x8xf32>
    tpu.vector_store %arg3[%c0_68, %c0_69, %c0_70], %215 {strides = array<i32>} : memref<1x1x8xf32, #tpu.memory_space<vmem>>, vector<1x1x8xf32>,
    return
  }
  func.func @transform_0(%arg0: i32) -> (i32, i32) {
    %c0_i32 = arith.constant 0 : i32
    %c0_i32_0 = arith.constant 0 : i32
    return %arg0, %c0_i32 : i32, i32
  }
  func.func @transform_1(%arg0: i32) -> (i32, i32, i32) {
    %c0_i32 = arith.constant 0 : i32
    %c0_i32_0 = arith.constant 0 : i32
    %c0_i32_1 = arith.constant 0 : i32
    return %arg0, %c0_i32, %c0_i32_0 : i32, i32, i32
  }
  func.func @transform_2(%arg0: i32) -> (i32, i32, i32) {
    %c0_i32 = arith.constant 0 : i32
    %c0_i32_0 = arith.constant 0 : i32
    %c0_i32_1 = arith.constant 0 : i32
    return %arg0, %c0_i32, %c0_i32_0 : i32, i32, i32
  }
}

</mosaic_0001>

<llo_original>
// kernel: tpu_custom_call.1
$region0: #{tpu_custom_call.1}
  #allocation0 [shape = 'u32[]', space=smem, size = 0x4, offset = 0x4, fixed_abs, tag = 'smem constant byte address 0x4 - core index']
  #allocation1 [shape = 'u32[72,128]{1,0:T(1,128)}', space=vmem, size = 0x9000, scoped, tag = 'internal scratch']
  %s0 = inlined_call_operand.vmem [shape: f32[40,16], index: 0, kind: input, shape index: {}]
  %s1 = inlined_call_operand.vmem [shape: f32[40,5,169], index: 1, kind: input, shape index: {}]
  %s2 = inlined_call_operand.hbm [shape: f32[1,1,8], index: 2, kind: output, shape index: {}]
  %s3 = sld [smem:[#allocation0]]
  $region18: #{tpu_custom_call.1} parent=0
    _
  %s5 = ssub.s32 1, %s3
  %s6 = scalar_select 0, %s5, %s3
  $region1: #{tpu_custom_call.1} parent=0
    #allocation2 [shape = 'u8[512]{0}', space=vmem, size = 0x400, scoped, tag = 'output window, operand 0, single buffered']
    #allocation3 [shape = 's32[1]{0}', space=sflag, size = 0x4, scoped, tag = 'scoped memory for tpu_custom_call.1']
    %7 = vsyncpa [#allocation3], 0
    // Predicated region
    $region2: #{tpu_custom_call.1} parent=1 // pred_check
      _
    $region3: #{tpu_custom_call.1} parent=1 // pred_check_branch
      %9 = sbr.rel (0) target = $region5
    $region4: #{tpu_custom_call.1} parent=1 // pred_region
      _
    $region5: #{tpu_custom_call.1} parent=1 // pred_fallthru
      _
    // Predicated region
    $region6: #{tpu_custom_call.1} parent=1 // pred_check
      _
    $region7: #{tpu_custom_call.1} parent=1 // pred_check_branch
      %11 = sbr.rel (0) target = $region9
    $region8: #{tpu_custom_call.1} parent=1 // pred_region
      _
    $region9: #{tpu_custom_call.1} parent=1 // pred_fallthru
      _
    %v12 = vld [vmem:[%s0] sm:$0xff]
    %v13 = vld [vmem:[%s0 + $0x8] sm:$0xff]
    %v14 = vld [vmem:[%s0 + $0x10] sm:$0xff]
    %v15 = vld [vmem:[%s0 + $0x18] sm:$0xff]
    %v16 = vld [vmem:[%s0 + $0x20] sm:$0xff]
    %v17 = vcvt.f32.s32.to.zero.pseudo %v12
    %v18 = vcvt.f32.s32.to.zero.pseudo %v13
    %v19 = vcvt.f32.s32.to.zero.pseudo %v14
    %v20 = vcvt.f32.s32.to.zero.pseudo %v15
    %v21 = vcvt.f32.s32.to.zero.pseudo %v16
    %v22 = vld [vmem:[%s1] ss:$8 sm:$0x3]
    %s23 = scalar_lea.vmem %s1, 16
    %v24 = vld [vmem:[%s23] ss:$8 sm:$0x3]
    %s25 = scalar_lea.vmem %s1, 32
    %v26 = vld [vmem:[%s25] ss:$8 sm:$0x3]
    %s27 = scalar_lea.vmem %s1, 48
    %v28 = vld [vmem:[%s27] ss:$8 sm:$0x3]
    %s29 = scalar_lea.vmem %s1, 64
    %v30 = vld [vmem:[%s29] ss:$8 sm:$0x3]
    %s31 = scalar_lea.vmem %s1, 80
    %v32 = vld [vmem:[%s31] ss:$8 sm:$0x3]
    %s33 = scalar_lea.vmem %s1, 96
    %v34 = vld [vmem:[%s33] ss:$8 sm:$0x3]
    %s35 = scalar_lea.vmem %s1, 112
    %v36 = vld [vmem:[%s35] ss:$8 sm:$0x3]
    %s37 = scalar_lea.vmem %s1, 128
    %v38 = vld [vmem:[%s37] ss:$8 sm:$0x3]
    %s39 = scalar_lea.vmem %s1, 144
    %v40 = vld [vmem:[%s39] ss:$8 sm:$0x3]
    %s41 = scalar_lea.vmem %s1, 160
    %v42 = vld [vmem:[%s41] ss:$8 sm:$0x3]
    %s43 = scalar_lea.vmem %s1, 176
    %v44 = vld [vmem:[%s43] ss:$8 sm:$0x3]
    %s45 = scalar_lea.vmem %s1, 192
    %v46 = vld [vmem:[%s45] ss:$8 sm:$0x3]
    %s47 = scalar_lea.vmem %s1, 208
    %v48 = vld [vmem:[%s47] ss:$8 sm:$0x3]
    %s49 = scalar_lea.vmem %s1, 224
    %v50 = vld [vmem:[%s49] ss:$8 sm:$0x3]
    %s51 = scalar_lea.vmem %s1, 240
    %v52 = vld [vmem:[%s51] ss:$8 sm:$0x3]
    %s53 = scalar_lea.vmem %s1, 256
    %v54 = vld [vmem:[%s53] ss:$8 sm:$0x3]
    %s55 = scalar_lea.vmem %s1, 272
    %v56 = vld [vmem:[%s55] ss:$8 sm:$0x3]
    %s57 = scalar_lea.vmem %s1, 288
    %v58 = vld [vmem:[%s57] ss:$8 sm:$0x3]
    %s59 = scalar_lea.vmem %s1, 304
    %v60 = vld [vmem:[%s59] ss:$8 sm:$0x3]
    %s61 = scalar_lea.vmem %s1, 320
    %v62 = vld [vmem:[%s61] ss:$8 sm:$0x3]
    %s63 = scalar_lea.vmem %s1, 336
    %v64 = vld [vmem:[%s63] ss:$8 sm:$0x3]
    %s65 = scalar_lea.vmem %s1, 352
    %v66 = vld [vmem:[%s65] ss:$8 sm:$0x3]
    %s67 = scalar_lea.vmem %s1, 368
    %v68 = vld [vmem:[%s67] ss:$8 sm:$0x3]
    %s69 = scalar_lea.vmem %s1, 384
    %v70 = vld [vmem:[%s69] ss:$8 sm:$0x3]
    %s71 = scalar_lea.vmem %s1, 400
    %v72 = vld [vmem:[%s71] ss:$8 sm:$0x3]
    %s73 = scalar_lea.vmem %s1, 416
    %v74 = vld [vmem:[%s73] ss:$8 sm:$0x3]
    %s75 = scalar_lea.vmem %s1, 432
    %v76 = vld [vmem:[%s75] ss:$8 sm:$0x3]
    %s77 = scalar_lea.vmem %s1, 448
    %v78 = vld [vmem:[%s77] ss:$8 sm:$0x3]
    %s79 = scalar_lea.vmem %s1, 464
    %v80 = vld [vmem:[%s79] ss:$8 sm:$0x3]
    %s81 = scalar_lea.vmem %s1, 480
    %v82 = vld [vmem:[%s81] ss:$8 sm:$0x3]
    %s83 = scalar_lea.vmem %s1, 496
    %v84 = vld [vmem:[%s83] ss:$8 sm:$0x3]
    %s85 = scalar_lea.vmem %s1, 512
    %v86 = vld [vmem:[%s85] ss:$8 sm:$0x3]
    %s87 = scalar_lea.vmem %s1, 528
    %v88 = vld [vmem:[%s87] ss:$8 sm:$0x3]
    %s89 = scalar_lea.vmem %s1, 544
    %v90 = vld [vmem:[%s89] ss:$8 sm:$0x3]
    %s91 = scalar_lea.vmem %s1, 560
    %v92 = vld [vmem:[%s91] ss:$8 sm:$0x3]
    %s93 = scalar_lea.vmem %s1, 576
    %v94 = vld [vmem:[%s93] ss:$8 sm:$0x3]
    %s95 = scalar_lea.vmem %s1, 592
    %v96 = vld [vmem:[%s95] ss:$8 sm:$0x3]
    %s97 = scalar_lea.vmem %s1, 608
    %v98 = vld [vmem:[%s97] ss:$8 sm:$0x3]
    %s99 = scalar_lea.vmem %s1, 624
    %v100 = vld [vmem:[%s99] ss:$8 sm:$0x3]
    %s101 = scalar_lea.vmem %s1, 1
    %v102 = vld [vmem:[%s101] ss:$8 sm:$0x3]
    %s103 = scalar_lea.vmem %s1, 17
    %v104 = vld [vmem:[%s103] ss:$8 sm:$0x3]
    %s105 = scalar_lea.vmem %s1, 33
    %v106 = vld [vmem:[%s105] ss:$8 sm:$0x3]
    %s107 = scalar_lea.vmem %s1, 49
    %v108 = vld [vmem:[%s107] ss:$8 sm:$0x3]
    %s109 = scalar_lea.vmem %s1, 65
    %v110 = vld [vmem:[%s109] ss:$8 sm:$0x3]
    %s111 = scalar_lea.vmem %s1, 81
    %v112 = vld [vmem:[%s111] ss:$8 sm:$0x3]
    %s113 = scalar_lea.vmem %s1, 97
    %v114 = vld [vmem:[%s113] ss:$8 sm:$0x3]
    %s115 = scalar_lea.vmem %s1, 113
    %v116 = vld [vmem:[%s115] ss:$8 sm:$0x3]
    %s117 = scalar_lea.vmem %s1, 129
    %v118 = vld [vmem:[%s117] ss:$8 sm:$0x3]
    %s119 = scalar_lea.vmem %s1, 145
    %v120 = vld [vmem:[%s119] ss:$8 sm:$0x3]
    %s121 = scalar_lea.vmem %s1, 161
    %v122 = vld [vmem:[%s121] ss:$8 sm:$0x3]
    %s123 = scalar_lea.vmem %s1, 177
    %v124 = vld [vmem:[%s123] ss:$8 sm:$0x3]
    %s125 = scalar_lea.vmem %s1, 193
    %v126 = vld [vmem:[%s125] ss:$8 sm:$0x3]
    %s127 = scalar_lea.vmem %s1, 209
    %v128 = vld [vmem:[%s127] ss:$8 sm:$0x3]
    %s129 = scalar_lea.vmem %s1, 225
    %v130 = vld [vmem:[%s129] ss:$8 sm:$0x3]
    %s131 = scalar_lea.vmem %s1, 241
    %v132 = vld [vmem:[%s131] ss:$8 sm:$0x3]
    %s133 = scalar_lea.vmem %s1, 257
    %v134 = vld [vmem:[%s133] ss:$8 sm:$0x3]
    %s135 = scalar_lea.vmem %s1, 273
    %v136 = vld [vmem:[%s135] ss:$8 sm:$0x3]
    %s137 = scalar_lea.vmem %s1, 289
    %v138 = vld [vmem:[%s137] ss:$8 sm:$0x3]
    %s139 = scalar_lea.vmem %s1, 305
    %v140 = vld [vmem:[%s139] ss:$8 sm:$0x3]
    %s141 = scalar_lea.vmem %s1, 321
    %v142 = vld [vmem:[%s141] ss:$8 sm:$0x3]
    %s143 = scalar_lea.vmem %s1, 337
    %v144 = vld [vmem:[%s143] ss:$8 sm:$0x3]
    %s145 = scalar_lea.vmem %s1, 353
    %v146 = vld [vmem:[%s145] ss:$8 sm:$0x3]
    %s147 = scalar_lea.vmem %s1, 369
    %v148 = vld [vmem:[%s147] ss:$8 sm:$0x3]
    %s149 = scalar_lea.vmem %s1, 385
    %v150 = vld [vmem:[%s149] ss:$8 sm:$0x3]
    %s151 = scalar_lea.vmem %s1, 401
    %v152 = vld [vmem:[%s151] ss:$8 sm:$0x3]
    %s153 = scalar_lea.vmem %s1, 417
    %v154 = vld [vmem:[%s153] ss:$8 sm:$0x3]
    %s155 = scalar_lea.vmem %s1, 433
    %v156 = vld [vmem:[%s155] ss:$8 sm:$0x3]
    %s157 = scalar_lea.vmem %s1, 449
    %v158 = vld [vmem:[%s157] ss:$8 sm:$0x3]
    %s159 = scalar_lea.vmem %s1, 465
    %v160 = vld [vmem:[%s159] ss:$8 sm:$0x3]
    %s161 = scalar_lea.vmem %s1, 481
    %v162 = vld [vmem:[%s161] ss:$8 sm:$0x3]
    %s163 = scalar_lea.vmem %s1, 497
    %v164 = vld [vmem:[%s163] ss:$8 sm:$0x3]
    %s165 = scalar_lea.vmem %s1, 513
    %v166 = vld [vmem:[%s165] ss:$8 sm:$0x3]
    %s167 = scalar_lea.vmem %s1, 529
    %v168 = vld [vmem:[%s167] ss:$8 sm:$0x3]
    %s169 = scalar_lea.vmem %s1, 545
    %v170 = vld [vmem:[%s169] ss:$8 sm:$0x3]
    %s171 = scalar_lea.vmem %s1, 561
    %v172 = vld [vmem:[%s171] ss:$8 sm:$0x3]
    %s173 = scalar_lea.vmem %s1, 577
    %v174 = vld [vmem:[%s173] ss:$8 sm:$0x3]
    %s175 = scalar_lea.vmem %s1, 593
    %v176 = vld [vmem:[%s175] ss:$8 sm:$0x3]
    %s177 = scalar_lea.vmem %s1, 609
    %v178 = vld [vmem:[%s177] ss:$8 sm:$0x3]
    %s179 = scalar_lea.vmem %s1, 625
    %v180 = vld [vmem:[%s179] ss:$8 sm:$0x3]
    %s181 = scalar_lea.vmem %s1, 2
    %v182 = vld [vmem:[%s181] ss:$8 sm:$0x3]
    %s183 = scalar_lea.vmem %s1, 18
    %v184 = vld [vmem:[%s183] ss:$8 sm:$0x3]
    %s185 = scalar_lea.vmem %s1, 34
    %v186 = vld [vmem:[%s185] ss:$8 sm:$0x3]
    %s187 = scalar_lea.vmem %s1, 50
    %v188 = vld [vmem:[%s187] ss:$8 sm:$0x3]
    %s189 = scalar_lea.vmem %s1, 66
    %v190 = vld [vmem:[%s189] ss:$8 sm:$0x3]
    %s191 = scalar_lea.vmem %s1, 82
    %v192 = vld [vmem:[%s191] ss:$8 sm:$0x3]
    %s193 = scalar_lea.vmem %s1, 98
    %v194 = vld [vmem:[%s193] ss:$8 sm:$0x3]
    %s195 = scalar_lea.vmem %s1, 114
    %v196 = vld [vmem:[%s195] ss:$8 sm:$0x3]
    %s197 = scalar_lea.vmem %s1, 130
    %v198 = vld [vmem:[%s197] ss:$8 sm:$0x3]
    %s199 = scalar_lea.vmem %s1, 146
    %v200 = vld [vmem:[%s199] ss:$8 sm:$0x3]
    %s201 = scalar_lea.vmem %s1, 162
    %v202 = vld [vmem:[%s201] ss:$8 sm:$0x3]
    %s203 = scalar_lea.vmem %s1, 178
    %v204 = vld [vmem:[%s203] ss:$8 sm:$0x3]
    %s205 = scalar_lea.vmem %s1, 194
    %v206 = vld [vmem:[%s205] ss:$8 sm:$0x3]
    %s207 = scalar_lea.vmem %s1, 210
    %v208 = vld [vmem:[%s207] ss:$8 sm:$0x3]
    %s209 = scalar_lea.vmem %s1, 226
    %v210 = vld [vmem:[%s209] ss:$8 sm:$0x3]
    %s211 = scalar_lea.vmem %s1, 242
    %v212 = vld [vmem:[%s211] ss:$8 sm:$0x3]
    %s213 = scalar_lea.vmem %s1, 258
    %v214 = vld [vmem:[%s213] ss:$8 sm:$0x3]
    %s215 = scalar_lea.vmem %s1, 274
    %v216 = vld [vmem:[%s215] ss:$8 sm:$0x3]
    %s217 = scalar_lea.vmem %s1, 290
    %v218 = vld [vmem:[%s217] ss:$8 sm:$0x3]
    %s219 = scalar_lea.vmem %s1, 306
    %v220 = vld [vmem:[%s219] ss:$8 sm:$0x3]
    %s221 = scalar_lea.vmem %s1, 322
    %v222 = vld [vmem:[%s221] ss:$8 sm:$0x3]
    %s223 = scalar_lea.vmem %s1, 338
    %v224 = vld [vmem:[%s223] ss:$8 sm:$0x3]
    %s225 = scalar_lea.vmem %s1, 354
    %v226 = vld [vmem:[%s225] ss:$8 sm:$0x3]
    %s227 = scalar_lea.vmem %s1, 370
    %v228 = vld [vmem:[%s227] ss:$8 sm:$0x3]
    %s229 = scalar_lea.vmem %s1, 386
    %v230 = vld [vmem:[%s229] ss:$8 sm:$0x3]
    %s231 = scalar_lea.vmem %s1, 402
    %v232 = vld [vmem:[%s231] ss:$8 sm:$0x3]
    %s233 = scalar_lea.vmem %s1, 418
    %v234 = vld [vmem:[%s233] ss:$8 sm:$0x3]
    %s235 = scalar_lea.vmem %s1, 434
    %v236 = vld [vmem:[%s235] ss:$8 sm:$0x3]
    %s237 = scalar_lea.vmem %s1, 450
    %v238 = vld [vmem:[%s237] ss:$8 sm:$0x3]
    %s239 = scalar_lea.vmem %s1, 466
    %v240 = vld [vmem:[%s239] ss:$8 sm:$0x3]
    %s241 = scalar_lea.vmem %s1, 482
    %v242 = vld [vmem:[%s241] ss:$8 sm:$0x3]
    %s243 = scalar_lea.vmem %s1, 498
    %v244 = vld [vmem:[%s243] ss:$8 sm:$0x3]
    %s245 = scalar_lea.vmem %s1, 514
    %v246 = vld [vmem:[%s245] ss:$8 sm:$0x3]
    %s247 = scalar_lea.vmem %s1, 530
    %v248 = vld [vmem:[%s247] ss:$8 sm:$0x3]
    %s249 = scalar_lea.vmem %s1, 546
    %v250 = vld [vmem:[%s249] ss:$8 sm:$0x3]
    %s251 = scalar_lea.vmem %s1, 562
    %v252 = vld [vmem:[%s251] ss:$8 sm:$0x3]
    %s253 = scalar_lea.vmem %s1, 578
    %v254 = vld [vmem:[%s253] ss:$8 sm:$0x3]
    %s255 = scalar_lea.vmem %s1, 594
    %v256 = vld [vmem:[%s255] ss:$8 sm:$0x3]
    %s257 = scalar_lea.vmem %s1, 610
    %v258 = vld [vmem:[%s257] ss:$8 sm:$0x3]
    %s259 = scalar_lea.vmem %s1, 626
    %v260 = vld [vmem:[%s259] ss:$8 sm:$0x3]
    %s261 = scalar_lea.vmem %s1, 3
    %v262 = vld [vmem:[%s261] ss:$8 sm:$0x3]
    %s263 = scalar_lea.vmem %s1, 19
    %v264 = vld [vmem:[%s263] ss:$8 sm:$0x3]
    %s265 = scalar_lea.vmem %s1, 35
    %v266 = vld [vmem:[%s265] ss:$8 sm:$0x3]
    %s267 = scalar_lea.vmem %s1, 51
    %v268 = vld [vmem:[%s267] ss:$8 sm:$0x3]
    %s269 = scalar_lea.vmem %s1, 67
    %v270 = vld [vmem:[%s269] ss:$8 sm:$0x3]
    %s271 = scalar_lea.vmem %s1, 83
    %v272 = vld [vmem:[%s271] ss:$8 sm:$0x3]
    %s273 = scalar_lea.vmem %s1, 99
    %v274 = vld [vmem:[%s273] ss:$8 sm:$0x3]
    %s275 = scalar_lea.vmem %s1, 115
    %v276 = vld [vmem:[%s275] ss:$8 sm:$0x3]
    %s277 = scalar_lea.vmem %s1, 131
    %v278 = vld [vmem:[%s277] ss:$8 sm:$0x3]
    %s279 = scalar_lea.vmem %s1, 147
    %v280 = vld [vmem:[%s279] ss:$8 sm:$0x3]
    %s281 = scalar_lea.vmem %s1, 163
    %v282 = vld [vmem:[%s281] ss:$8 sm:$0x3]
    %s283 = scalar_lea.vmem %s1, 179
    %v284 = vld [vmem:[%s283] ss:$8 sm:$0x3]
    %s285 = scalar_lea.vmem %s1, 195
    %v286 = vld [vmem:[%s285] ss:$8 sm:$0x3]
    %s287 = scalar_lea.vmem %s1, 211
    %v288 = vld [vmem:[%s287] ss:$8 sm:$0x3]
    %s289 = scalar_lea.vmem %s1, 227
    %v290 = vld [vmem:[%s289] ss:$8 sm:$0x3]
    %s291 = scalar_lea.vmem %s1, 243
    %v292 = vld [vmem:[%s291] ss:$8 sm:$0x3]
    %s293 = scalar_lea.vmem %s1, 259
    %v294 = vld [vmem:[%s293] ss:$8 sm:$0x3]
    %s295 = scalar_lea.vmem %s1, 275
    %v296 = vld [vmem:[%s295] ss:$8 sm:$0x3]
    %s297 = scalar_lea.vmem %s1, 291
    %v298 = vld [vmem:[%s297] ss:$8 sm:$0x3]
    %s299 = scalar_lea.vmem %s1, 307
    %v300 = vld [vmem:[%s299] ss:$8 sm:$0x3]
    %s301 = scalar_lea.vmem %s1, 323
    %v302 = vld [vmem:[%s301] ss:$8 sm:$0x3]
    %s303 = scalar_lea.vmem %s1, 339
    %v304 = vld [vmem:[%s303] ss:$8 sm:$0x3]
    %s305 = scalar_lea.vmem %s1, 355
    %v306 = vld [vmem:[%s305] ss:$8 sm:$0x3]
    %s307 = scalar_lea.vmem %s1, 371
    %v308 = vld [vmem:[%s307] ss:$8 sm:$0x3]
    %s309 = scalar_lea.vmem %s1, 387
    %v310 = vld [vmem:[%s309] ss:$8 sm:$0x3]
    %s311 = scalar_lea.vmem %s1, 403
    %v312 = vld [vmem:[%s311] ss:$8 sm:$0x3]
    %s313 = scalar_lea.vmem %s1, 419
    %v314 = vld [vmem:[%s313] ss:$8 sm:$0x3]
    %s315 = scalar_lea.vmem %s1, 435
    %v316 = vld [vmem:[%s315] ss:$8 sm:$0x3]
    %s317 = scalar_lea.vmem %s1, 451
    %v318 = vld [vmem:[%s317] ss:$8 sm:$0x3]
    %s319 = scalar_lea.vmem %s1, 467
    %v320 = vld [vmem:[%s319] ss:$8 sm:$0x3]
    %s321 = scalar_lea.vmem %s1, 483
    %v322 = vld [vmem:[%s321] ss:$8 sm:$0x3]
    %s323 = scalar_lea.vmem %s1, 499
    %v324 = vld [vmem:[%s323] ss:$8 sm:$0x3]
    %s325 = scalar_lea.vmem %s1, 515
    %v326 = vld [vmem:[%s325] ss:$8 sm:$0x3]
    %s327 = scalar_lea.vmem %s1, 531
    %v328 = vld [vmem:[%s327] ss:$8 sm:$0x3]
    %s329 = scalar_lea.vmem %s1, 547
    %v330 = vld [vmem:[%s329] ss:$8 sm:$0x3]
    %s331 = scalar_lea.vmem %s1, 563
    %v332 = vld [vmem:[%s331] ss:$8 sm:$0x3]
    %s333 = scalar_lea.vmem %s1, 579
    %v334 = vld [vmem:[%s333] ss:$8 sm:$0x3]
    %s335 = scalar_lea.vmem %s1, 595
    %v336 = vld [vmem:[%s335] ss:$8 sm:$0x3]
    %s337 = scalar_lea.vmem %s1, 611
    %v338 = vld [vmem:[%s337] ss:$8 sm:$0x3]
    %s339 = scalar_lea.vmem %s1, 627
    %v340 = vld [vmem:[%s339] ss:$8 sm:$0x3]
    %s341 = scalar_lea.vmem %s1, 4
    %v342 = vld [vmem:[%s341] ss:$8 sm:$0x3]
    %s343 = scalar_lea.vmem %s1, 20
    %v344 = vld [vmem:[%s343] ss:$8 sm:$0x3]
    %s345 = scalar_lea.vmem %s1, 36
    %v346 = vld [vmem:[%s345] ss:$8 sm:$0x3]
    %s347 = scalar_lea.vmem %s1, 52
    %v348 = vld [vmem:[%s347] ss:$8 sm:$0x3]
    %s349 = scalar_lea.vmem %s1, 68
    %v350 = vld [vmem:[%s349] ss:$8 sm:$0x3]
    %s351 = scalar_lea.vmem %s1, 84
    %v352 = vld [vmem:[%s351] ss:$8 sm:$0x3]
    %s353 = scalar_lea.vmem %s1, 100
    %v354 = vld [vmem:[%s353] ss:$8 sm:$0x3]
    %s355 = scalar_lea.vmem %s1, 116
    %v356 = vld [vmem:[%s355] ss:$8 sm:$0x3]
    %s357 = scalar_lea.vmem %s1, 132
    %v358 = vld [vmem:[%s357] ss:$8 sm:$0x3]
    %s359 = scalar_lea.vmem %s1, 148
    %v360 = vld [vmem:[%s359] ss:$8 sm:$0x3]
    %s361 = scalar_lea.vmem %s1, 164
    %v362 = vld [vmem:[%s361] ss:$8 sm:$0x3]
    %s363 = scalar_lea.vmem %s1, 180
    %v364 = vld [vmem:[%s363] ss:$8 sm:$0x3]
    %s365 = scalar_lea.vmem %s1, 196
    %v366 = vld [vmem:[%s365] ss:$8 sm:$0x3]
    %s367 = scalar_lea.vmem %s1, 212
    %v368 = vld [vmem:[%s367] ss:$8 sm:$0x3]
    %s369 = scalar_lea.vmem %s1, 228
    %v370 = vld [vmem:[%s369] ss:$8 sm:$0x3]
    %s371 = scalar_lea.vmem %s1, 244
    %v372 = vld [vmem:[%s371] ss:$8 sm:$0x3]
    %s373 = scalar_lea.vmem %s1, 260
    %v374 = vld [vmem:[%s373] ss:$8 sm:$0x3]
    %s375 = scalar_lea.vmem %s1, 276
    %v376 = vld [vmem:[%s375] ss:$8 sm:$0x3]
    %s377 = scalar_lea.vmem %s1, 292
    %v378 = vld [vmem:[%s377] ss:$8 sm:$0x3]
    %s379 = scalar_lea.vmem %s1, 308
    %v380 = vld [vmem:[%s379] ss:$8 sm:$0x3]
    %s381 = scalar_lea.vmem %s1, 324
    %v382 = vld [vmem:[%s381] ss:$8 sm:$0x3]
    %s383 = scalar_lea.vmem %s1, 340
    %v384 = vld [vmem:[%s383] ss:$8 sm:$0x3]
    %s385 = scalar_lea.vmem %s1, 356
    %v386 = vld [vmem:[%s385] ss:$8 sm:$0x3]
    %s387 = scalar_lea.vmem %s1, 372
    %v388 = vld [vmem:[%s387] ss:$8 sm:$0x3]
    %s389 = scalar_lea.vmem %s1, 388
    %v390 = vld [vmem:[%s389] ss:$8 sm:$0x3]
    %s391 = scalar_lea.vmem %s1, 404
    %v392 = vld [vmem:[%s391] ss:$8 sm:$0x3]
    %s393 = scalar_lea.vmem %s1, 420
    %v394 = vld [vmem:[%s393] ss:$8 sm:$0x3]
    %s395 = scalar_lea.vmem %s1, 436
    %v396 = vld [vmem:[%s395] ss:$8 sm:$0x3]
    %s397 = scalar_lea.vmem %s1, 452
    %v398 = vld [vmem:[%s397] ss:$8 sm:$0x3]
    %s399 = scalar_lea.vmem %s1, 468
    %v400 = vld [vmem:[%s399] ss:$8 sm:$0x3]
    %s401 = scalar_lea.vmem %s1, 484
    %v402 = vld [vmem:[%s401] ss:$8 sm:$0x3]
    %s403 = scalar_lea.vmem %s1, 500
    %v404 = vld [vmem:[%s403] ss:$8 sm:$0x3]
    %s405 = scalar_lea.vmem %s1, 516
    %v406 = vld [vmem:[%s405] ss:$8 sm:$0x3]
    %s407 = scalar_lea.vmem %s1, 532
    %v408 = vld [vmem:[%s407] ss:$8 sm:$0x3]
    %s409 = scalar_lea.vmem %s1, 548
    %v410 = vld [vmem:[%s409] ss:$8 sm:$0x3]
    %s411 = scalar_lea.vmem %s1, 564
    %v412 = vld [vmem:[%s411] ss:$8 sm:$0x3]
    %s413 = scalar_lea.vmem %s1, 580
    %v414 = vld [vmem:[%s413] ss:$8 sm:$0x3]
    %s415 = scalar_lea.vmem %s1, 596
    %v416 = vld [vmem:[%s415] ss:$8 sm:$0x3]
    %s417 = scalar_lea.vmem %s1, 612
    %v418 = vld [vmem:[%s417] ss:$8 sm:$0x3]
    %s419 = scalar_lea.vmem %s1, 628
    %v420 = vld [vmem:[%s419] ss:$8 sm:$0x3]
    %v421 = vlaneseq
    %v422 = vand.u32 %v421, 127
    %v423 = vadd.s32 %v422, 128
    %v424 = vcvt.s32.f32 %v422
    %v425 = vcvt.s32.f32 %v423
    %v426 = vrcp.pop 13.0
    %v427 = vmul.f32 13.0, %v426
    %v428 = vsub.f32 1.0, %v427
    %v429 = vmul.f32 %v426, %v428
    %v430 = vadd.f32 %v426, %v429
    %vm431 = vweird.f32 %v426
    %v432 = vsel %vm431, %v426, %v430
    %v433 = vmul.f32 %v424, %v432
    %v434 = vmul.f32 %v425, %v432
    %v435 = vfloor.f32 %v433
    %v436 = vfloor.f32 %v434
    %v437 = vmul.f32 %v435, 13.0
    %v438 = vmul.f32 %v436, 13.0
    %v439 = vsub.f32 %v424, %v437
    %v440 = vsub.f32 %v425, %v438
    %441 = vset.pattern.permute.xlu0 9
    %442 = vperm.xlu0 %441, %v17
    %v443 = vpop.permute.xlu0 %442
    %444 = vset.pattern.permute.xlu0 9
    %445 = vperm.xlu0 %444, %v18
    %v446 = vpop.permute.xlu0 %445
    %447 = vset.pattern.permute.xlu0 9
    %448 = vperm.xlu0 %447, %v19
    %v449 = vpop.permute.xlu0 %448
    %450 = vset.pattern.permute.xlu0 9
    %451 = vperm.xlu0 %450, %v20
    %v452 = vpop.permute.xlu0 %451
    %453 = vset.pattern.permute.xlu0 9
    %454 = vperm.xlu0 %453, %v21
    %v455 = vpop.permute.xlu0 %454
    %vm456 = vcmp.eq.s32.totalorder %v422, %v443
    %vm457 = vcmp.eq.s32.totalorder %v423, %v443
    %vm458 = vcmp.eq.s32.totalorder %v422, %v446
    %vm459 = vcmp.eq.s32.totalorder %v423, %v446
    %vm460 = vcmp.eq.s32.totalorder %v422, %v449
    %vm461 = vcmp.eq.s32.totalorder %v423, %v449
    %vm462 = vcmp.eq.s32.totalorder %v422, %v452
    %vm463 = vcmp.eq.s32.totalorder %v423, %v452
    %vm464 = vcmp.eq.s32.totalorder %v422, %v455
    %vm465 = vcmp.eq.s32.totalorder %v423, %v455
    %v466 = vxor.u32 %v22, 2147483648
    %v467 = vxor.u32 %v24, 2147483648
    %v468 = vxor.u32 %v26, 2147483648
    %v469 = vxor.u32 %v28, 2147483648
    %v470 = vxor.u32 %v30, 2147483648
    %v471 = vxor.u32 %v32, 2147483648
    %v472 = vxor.u32 %v34, 2147483648
    %v473 = vxor.u32 %v36, 2147483648
    %v474 = vxor.u32 %v38, 2147483648
    %v475 = vxor.u32 %v40, 2147483648
    %v476 = vxor.u32 %v42, 2147483648
    %v477 = vxor.u32 %v44, 2147483648
    %v478 = vxor.u32 %v46, 2147483648
    %v479 = vxor.u32 %v48, 2147483648
    %v480 = vxor.u32 %v50, 2147483648
    %v481 = vxor.u32 %v52, 2147483648
    %v482 = vxor.u32 %v54, 2147483648
    %v483 = vxor.u32 %v56, 2147483648
    %v484 = vxor.u32 %v58, 2147483648
    %v485 = vxor.u32 %v60, 2147483648
    %v486 = vxor.u32 %v62, 2147483648
    %v487 = vxor.u32 %v64, 2147483648
    %v488 = vxor.u32 %v66, 2147483648
    %v489 = vxor.u32 %v68, 2147483648
    %v490 = vxor.u32 %v70, 2147483648
    %v491 = vxor.u32 %v72, 2147483648
    %v492 = vxor.u32 %v74, 2147483648
    %v493 = vxor.u32 %v76, 2147483648
    %v494 = vxor.u32 %v78, 2147483648
    %v495 = vxor.u32 %v80, 2147483648
    %v496 = vxor.u32 %v82, 2147483648
    %v497 = vxor.u32 %v84, 2147483648
    %v498 = vxor.u32 %v86, 2147483648
    %v499 = vxor.u32 %v88, 2147483648
    %v500 = vxor.u32 %v90, 2147483648
    %v501 = vxor.u32 %v92, 2147483648
    %v502 = vxor.u32 %v94, 2147483648
    %v503 = vxor.u32 %v96, 2147483648
    %v504 = vxor.u32 %v98, 2147483648
    %v505 = vxor.u32 %v100, 2147483648
    %v506 = vmul.f32 %v466, 1.442695
    %v507 = vpow.pop %v506
    %v508 = vmul.f32 %v467, 1.442695
    %v509 = vpow.pop %v508
    %v510 = vmul.f32 %v468, 1.442695
    %v511 = vpow.pop %v510
    %v512 = vmul.f32 %v469, 1.442695
    %v513 = vpow.pop %v512
    %v514 = vmul.f32 %v470, 1.442695
    %v515 = vpow.pop %v514
    %v516 = vmul.f32 %v471, 1.442695
    %v517 = vpow.pop %v516
    %v518 = vmul.f32 %v472, 1.442695
    %v519 = vpow.pop %v518
    %v520 = vmul.f32 %v473, 1.442695
    %v521 = vpow.pop %v520
    %v522 = vmul.f32 %v474, 1.442695
    %v523 = vpow.pop %v522
    %v524 = vmul.f32 %v475, 1.442695
    %v525 = vpow.pop %v524
    %v526 = vmul.f32 %v476, 1.442695
    %v527 = vpow.pop %v526
    %v528 = vmul.f32 %v477, 1.442695
    %v529 = vpow.pop %v528
    %v530 = vmul.f32 %v478, 1.442695
    %v531 = vpow.pop %v530
    %v532 = vmul.f32 %v479, 1.442695
    %v533 = vpow.pop %v532
    %v534 = vmul.f32 %v480, 1.442695
    %v535 = vpow.pop %v534
    %v536 = vmul.f32 %v481, 1.442695
    %v537 = vpow.pop %v536
    %v538 = vmul.f32 %v482, 1.442695
    %v539 = vpow.pop %v538
    %v540 = vmul.f32 %v483, 1.442695
    %v541 = vpow.pop %v540
    %v542 = vmul.f32 %v484, 1.442695
    %v543 = vpow.pop %v542
    %v544 = vmul.f32 %v485, 1.442695
    %v545 = vpow.pop %v544
    %v546 = vmul.f32 %v486, 1.442695
    %v547 = vpow.pop %v546
    %v548 = vmul.f32 %v487, 1.442695
    %v549 = vpow.pop %v548
    %v550 = vmul.f32 %v488, 1.442695
    %v551 = vpow.pop %v550
    %v552 = vmul.f32 %v489, 1.442695
    %v553 = vpow.pop %v552
    %v554 = vmul.f32 %v490, 1.442695
    %v555 = vpow.pop %v554
    %v556 = vmul.f32 %v491, 1.442695
    %v557 = vpow.pop %v556
    %v558 = vmul.f32 %v492, 1.442695
    %v559 = vpow.pop %v558
    %v560 = vmul.f32 %v493, 1.442695
    %v561 = vpow.pop %v560
    %v562 = vmul.f32 %v494, 1.442695
    %v563 = vpow.pop %v562
    %v564 = vmul.f32 %v495, 1.442695
    %v565 = vpow.pop %v564
    %v566 = vmul.f32 %v496, 1.442695
    %v567 = vpow.pop %v566
    %v568 = vmul.f32 %v497, 1.442695
    %v569 = vpow.pop %v568
    %v570 = vmul.f32 %v498, 1.442695
    %v571 = vpow.pop %v570
    %v572 = vmul.f32 %v499, 1.442695
    %v573 = vpow.pop %v572
    %v574 = vmul.f32 %v500, 1.442695
    %v575 = vpow.pop %v574
    %v576 = vmul.f32 %v501, 1.442695
    %v577 = vpow.pop %v576
    %v578 = vmul.f32 %v502, 1.442695
    %v579 = vpow.pop %v578
    %v580 = vmul.f32 %v503, 1.442695
    %v581 = vpow.pop %v580
    %v582 = vmul.f32 %v504, 1.442695
    %v583 = vpow.pop %v582
    %v584 = vmul.f32 %v505, 1.442695
    %v585 = vpow.pop %v584
    %v586 = vadd.f32 %v507, 1.0
    %v587 = vadd.f32 %v509, 1.0
    %v588 = vadd.f32 %v511, 1.0
    %v589 = vadd.f32 %v513, 1.0
    %v590 = vadd.f32 %v515, 1.0
    %v591 = vadd.f32 %v517, 1.0
    %v592 = vadd.f32 %v519, 1.0
    %v593 = vadd.f32 %v521, 1.0
    %v594 = vadd.f32 %v523, 1.0
    %v595 = vadd.f32 %v525, 1.0
    %v596 = vadd.f32 %v527, 1.0
    %v597 = vadd.f32 %v529, 1.0
    %v598 = vadd.f32 %v531, 1.0
    %v599 = vadd.f32 %v533, 1.0
    %v600 = vadd.f32 %v535, 1.0
    %v601 = vadd.f32 %v537, 1.0
    %v602 = vadd.f32 %v539, 1.0
    %v603 = vadd.f32 %v541, 1.0
    %v604 = vadd.f32 %v543, 1.0
    %v605 = vadd.f32 %v545, 1.0
    %v606 = vadd.f32 %v547, 1.0
    %v607 = vadd.f32 %v549, 1.0
    %v608 = vadd.f32 %v551, 1.0
    %v609 = vadd.f32 %v553, 1.0
    %v610 = vadd.f32 %v555, 1.0
    %v611 = vadd.f32 %v557, 1.0
    %v612 = vadd.f32 %v559, 1.0
    %v613 = vadd.f32 %v561, 1.0
    %v614 = vadd.f32 %v563, 1.0
    %v615 = vadd.f32 %v565, 1.0
    %v616 = vadd.f32 %v567, 1.0
    %v617 = vadd.f32 %v569, 1.0
    %v618 = vadd.f32 %v571, 1.0
    %v619 = vadd.f32 %v573, 1.0
    %v620 = vadd.f32 %v575, 1.0
    %v621 = vadd.f32 %v577, 1.0
    %v622 = vadd.f32 %v579, 1.0
    %v623 = vadd.f32 %v581, 1.0
    %v624 = vadd.f32 %v583, 1.0
    %v625 = vadd.f32 %v585, 1.0
    %v626 = vrcp.pop %v586
    %v627 = vmul.f32 %v586, %v626
    %v628 = vsub.f32 1.0, %v627
    %v629 = vmul.f32 %v626, %v628
    %v630 = vadd.f32 %v626, %v629
    %vm631 = vweird.f32 %v586
    %vm632 = vweird.f32 %v626
    %vm633 = vmor %vm631, %vm632
    %v634 = vsel %vm633, %v626, %v630
    %v635 = vand.u32 2147483647, %v586
    %vm636 = vcmp.eq.f32.partialorder %v635, 8.507059e+37
    %v637 = vand.u32 %v586, 2147483648
    %v638 = vor.u32 1.1754944e-38, %v637
    %v639 = vsel %vm636, %v638, %v634
    %v640 = vmul.f32 1.0, %v639
    %v641 = vrcp.pop %v587
    %v642 = vmul.f32 %v587, %v641
    %v643 = vsub.f32 1.0, %v642
    %v644 = vmul.f32 %v641, %v643
    %v645 = vadd.f32 %v641, %v644
    %vm646 = vweird.f32 %v587
    %vm647 = vweird.f32 %v641
    %vm648 = vmor %vm646, %vm647
    %v649 = vsel %vm648, %v641, %v645
    %v650 = vand.u32 2147483647, %v587
    %vm651 = vcmp.eq.f32.partialorder %v650, 8.507059e+37
    %v652 = vand.u32 %v587, 2147483648
    %v653 = vor.u32 1.1754944e-38, %v652
    %v654 = vsel %vm651, %v653, %v649
    %v655 = vmul.f32 1.0, %v654
    %v656 = vrcp.pop %v588
    %v657 = vmul.f32 %v588, %v656
    %v658 = vsub.f32 1.0, %v657
    %v659 = vmul.f32 %v656, %v658
    %v660 = vadd.f32 %v656, %v659
    %vm661 = vweird.f32 %v588
    %vm662 = vweird.f32 %v656
    %vm663 = vmor %vm661, %vm662
    %v664 = vsel %vm663, %v656, %v660
    %v665 = vand.u32 2147483647, %v588
    %vm666 = vcmp.eq.f32.partialorder %v665, 8.507059e+37
    %v667 = vand.u32 %v588, 2147483648
    %v668 = vor.u32 1.1754944e-38, %v667
    %v669 = vsel %vm666, %v668, %v664
    %v670 = vmul.f32 1.0, %v669
    %v671 = vrcp.pop %v589
    %v672 = vmul.f32 %v589, %v671
    %v673 = vsub.f32 1.0, %v672
    %v674 = vmul.f32 %v671, %v673
    %v675 = vadd.f32 %v671, %v674
    %vm676 = vweird.f32 %v589
    %vm677 = vweird.f32 %v671
    %vm678 = vmor %vm676, %vm677
    %v679 = vsel %vm678, %v671, %v675
    %v680 = vand.u32 2147483647, %v589
    %vm681 = vcmp.eq.f32.partialorder %v680, 8.507059e+37
    %v682 = vand.u32 %v589, 2147483648
    %v683 = vor.u32 1.1754944e-38, %v682
    %v684 = vsel %vm681, %v683, %v679
    %v685 = vmul.f32 1.0, %v684
    %v686 = vrcp.pop %v590
    %v687 = vmul.f32 %v590, %v686
    %v688 = vsub.f32 1.0, %v687
    %v689 = vmul.f32 %v686, %v688
    %v690 = vadd.f32 %v686, %v689
    %vm691 = vweird.f32 %v590
    %vm692 = vweird.f32 %v686
    %vm693 = vmor %vm691, %vm692
    %v694 = vsel %vm693, %v686, %v690
    %v695 = vand.u32 2147483647, %v590
    %vm696 = vcmp.eq.f32.partialorder %v695, 8.507059e+37
    %v697 = vand.u32 %v590, 2147483648
    %v698 = vor.u32 1.1754944e-38, %v697
    %v699 = vsel %vm696, %v698, %v694
    %v700 = vmul.f32 1.0, %v699
    %v701 = vrcp.pop %v591
    %v702 = vmul.f32 %v591, %v701
    %v703 = vsub.f32 1.0, %v702
    %v704 = vmul.f32 %v701, %v703
    %v705 = vadd.f32 %v701, %v704
    %vm706 = vweird.f32 %v591
    %vm707 = vweird.f32 %v701
    %vm708 = vmor %vm706, %vm707
    %v709 = vsel %vm708, %v701, %v705
    %v710 = vand.u32 2147483647, %v591
    %vm711 = vcmp.eq.f32.partialorder %v710, 8.507059e+37
    %v712 = vand.u32 %v591, 2147483648
    %v713 = vor.u32 1.1754944e-38, %v712
    %v714 = vsel %vm711, %v713, %v709
    %v715 = vmul.f32 1.0, %v714
    %v716 = vrcp.pop %v592
    %v717 = vmul.f32 %v592, %v716
    %v718 = vsub.f32 1.0, %v717
    %v719 = vmul.f32 %v716, %v718
    %v720 = vadd.f32 %v716, %v719
    %vm721 = vweird.f32 %v592
    %vm722 = vweird.f32 %v716
    %vm723 = vmor %vm721, %vm722
    %v724 = vsel %vm723, %v716, %v720
    %v725 = vand.u32 2147483647, %v592
    %vm726 = vcmp.eq.f32.partialorder %v725, 8.507059e+37
    %v727 = vand.u32 %v592, 2147483648
    %v728 = vor.u32 1.1754944e-38, %v727
    %v729 = vsel %vm726, %v728, %v724
    %v730 = vmul.f32 1.0, %v729
    %v731 = vrcp.pop %v593
    %v732 = vmul.f32 %v593, %v731
    %v733 = vsub.f32 1.0, %v732
    %v734 = vmul.f32 %v731, %v733
    %v735 = vadd.f32 %v731, %v734
    %vm736 = vweird.f32 %v593
    %vm737 = vweird.f32 %v731
    %vm738 = vmor %vm736, %vm737
    %v739 = vsel %vm738, %v731, %v735
    %v740 = vand.u32 2147483647, %v593
    %vm741 = vcmp.eq.f32.partialorder %v740, 8.507059e+37
    %v742 = vand.u32 %v593, 2147483648
    %v743 = vor.u32 1.1754944e-38, %v742
    %v744 = vsel %vm741, %v743, %v739
    %v745 = vmul.f32 1.0, %v744
    %v746 = vrcp.pop %v594
    %v747 = vmul.f32 %v594, %v746
    %v748 = vsub.f32 1.0, %v747
    %v749 = vmul.f32 %v746, %v748
    %v750 = vadd.f32 %v746, %v749
    %vm751 = vweird.f32 %v594
    %vm752 = vweird.f32 %v746
    %vm753 = vmor %vm751, %vm752
    %v754 = vsel %vm753, %v746, %v750
    %v755 = vand.u32 2147483647, %v594
    %vm756 = vcmp.eq.f32.partialorder %v755, 8.507059e+37
    %v757 = vand.u32 %v594, 2147483648
    %v758 = vor.u32 1.1754944e-38, %v757
    %v759 = vsel %vm756, %v758, %v754
    %v760 = vmul.f32 1.0, %v759
    %v761 = vrcp.pop %v595
    %v762 = vmul.f32 %v595, %v761
    %v763 = vsub.f32 1.0, %v762
    %v764 = vmul.f32 %v761, %v763
    %v765 = vadd.f32 %v761, %v764
    %vm766 = vweird.f32 %v595
    %vm767 = vweird.f32 %v761
    %vm768 = vmor %vm766, %vm767
    %v769 = vsel %vm768, %v761, %v765
    %v770 = vand.u32 2147483647, %v595
    %vm771 = vcmp.eq.f32.partialorder %v770, 8.507059e+37
    %v772 = vand.u32 %v595, 2147483648
    %v773 = vor.u32 1.1754944e-38, %v772
    %v774 = vsel %vm771, %v773, %v769
    %v775 = vmul.f32 1.0, %v774
    %v776 = vrcp.pop %v596
    %v777 = vmul.f32 %v596, %v776
    %v778 = vsub.f32 1.0, %v777
    %v779 = vmul.f32 %v776, %v778
    %v780 = vadd.f32 %v776, %v779
    %vm781 = vweird.f32 %v596
    %vm782 = vweird.f32 %v776
    %vm783 = vmor %vm781, %vm782
    %v784 = vsel %vm783, %v776, %v780
    %v785 = vand.u32 2147483647, %v596
    %vm786 = vcmp.eq.f32.partialorder %v785, 8.507059e+37
    %v787 = vand.u32 %v596, 2147483648
    %v788 = vor.u32 1.1754944e-38, %v787
    %v789 = vsel %vm786, %v788, %v784
    %v790 = vmul.f32 1.0, %v789
    %v791 = vrcp.pop %v597
    %v792 = vmul.f32 %v597, %v791
    %v793 = vsub.f32 1.0, %v792
    %v794 = vmul.f32 %v791, %v793
    %v795 = vadd.f32 %v791, %v794
    %vm796 = vweird.f32 %v597
    %vm797 = vweird.f32 %v791
    %vm798 = vmor %vm796, %vm797
    %v799 = vsel %vm798, %v791, %v795
    %v800 = vand.u32 2147483647, %v597
    %vm801 = vcmp.eq.f32.partialorder %v800, 8.507059e+37
    %v802 = vand.u32 %v597, 2147483648
    %v803 = vor.u32 1.1754944e-38, %v802
    %v804 = vsel %vm801, %v803, %v799
    %v805 = vmul.f32 1.0, %v804
    %v806 = vrcp.pop %v598
    %v807 = vmul.f32 %v598, %v806
    %v808 = vsub.f32 1.0, %v807
    %v809 = vmul.f32 %v806, %v808
    %v810 = vadd.f32 %v806, %v809
    %vm811 = vweird.f32 %v598
    %vm812 = vweird.f32 %v806
    %vm813 = vmor %vm811, %vm812
    %v814 = vsel %vm813, %v806, %v810
    %v815 = vand.u32 2147483647, %v598
    %vm816 = vcmp.eq.f32.partialorder %v815, 8.507059e+37
    %v817 = vand.u32 %v598, 2147483648
    %v818 = vor.u32 1.1754944e-38, %v817
    %v819 = vsel %vm816, %v818, %v814
    %v820 = vmul.f32 1.0, %v819
    %v821 = vrcp.pop %v599
    %v822 = vmul.f32 %v599, %v821
    %v823 = vsub.f32 1.0, %v822
    %v824 = vmul.f32 %v821, %v823
    %v825 = vadd.f32 %v821, %v824
    %vm826 = vweird.f32 %v599
    %vm827 = vweird.f32 %v821
    %vm828 = vmor %vm826, %vm827
    %v829 = vsel %vm828, %v821, %v825
    %v830 = vand.u32 2147483647, %v599
    %vm831 = vcmp.eq.f32.partialorder %v830, 8.507059e+37
    %v832 = vand.u32 %v599, 2147483648
    %v833 = vor.u32 1.1754944e-38, %v832
    %v834 = vsel %vm831, %v833, %v829
    %v835 = vmul.f32 1.0, %v834
    %v836 = vrcp.pop %v600
    %v837 = vmul.f32 %v600, %v836
    %v838 = vsub.f32 1.0, %v837
    %v839 = vmul.f32 %v836, %v838
    %v840 = vadd.f32 %v836, %v839
    %vm841 = vweird.f32 %v600
    %vm842 = vweird.f32 %v836
    %vm843 = vmor %vm841, %vm842
    %v844 = vsel %vm843, %v836, %v840
    %v845 = vand.u32 2147483647, %v600
    %vm846 = vcmp.eq.f32.partialorder %v845, 8.507059e+37
    %v847 = vand.u32 %v600, 2147483648
    %v848 = vor.u32 1.1754944e-38, %v847
    %v849 = vsel %vm846, %v848, %v844
    %v850 = vmul.f32 1.0, %v849
    %v851 = vrcp.pop %v601
    %v852 = vmul.f32 %v601, %v851
    %v853 = vsub.f32 1.0, %v852
    %v854 = vmul.f32 %v851, %v853
    %v855 = vadd.f32 %v851, %v854
    %vm856 = vweird.f32 %v601
    %vm857 = vweird.f32 %v851
    %vm858 = vmor %vm856, %vm857
    %v859 = vsel %vm858, %v851, %v855
    %v860 = vand.u32 2147483647, %v601
    %vm861 = vcmp.eq.f32.partialorder %v860, 8.507059e+37
    %v862 = vand.u32 %v601, 2147483648
    %v863 = vor.u32 1.1754944e-38, %v862
    %v864 = vsel %vm861, %v863, %v859
    %v865 = vmul.f32 1.0, %v864
    %v866 = vrcp.pop %v602
    %v867 = vmul.f32 %v602, %v866
    %v868 = vsub.f32 1.0, %v867
    %v869 = vmul.f32 %v866, %v868
    %v870 = vadd.f32 %v866, %v869
    %vm871 = vweird.f32 %v602
    %vm872 = vweird.f32 %v866
    %vm873 = vmor %vm871, %vm872
    %v874 = vsel %vm873, %v866, %v870
    %v875 = vand.u32 2147483647, %v602
    %vm876 = vcmp.eq.f32.partialorder %v875, 8.507059e+37
    %v877 = vand.u32 %v602, 2147483648
    %v878 = vor.u32 1.1754944e-38, %v877
    %v879 = vsel %vm876, %v878, %v874
    %v880 = vmul.f32 1.0, %v879
    %v881 = vrcp.pop %v603
    %v882 = vmul.f32 %v603, %v881
    %v883 = vsub.f32 1.0, %v882
    %v884 = vmul.f32 %v881, %v883
    %v885 = vadd.f32 %v881, %v884
    %vm886 = vweird.f32 %v603
    %vm887 = vweird.f32 %v881
    %vm888 = vmor %vm886, %vm887
    %v889 = vsel %vm888, %v881, %v885
    %v890 = vand.u32 2147483647, %v603
    %vm891 = vcmp.eq.f32.partialorder %v890, 8.507059e+37
    %v892 = vand.u32 %v603, 2147483648
    %v893 = vor.u32 1.1754944e-38, %v892
    %v894 = vsel %vm891, %v893, %v889
    %v895 = vmul.f32 1.0, %v894
    %v896 = vrcp.pop %v604
    %v897 = vmul.f32 %v604, %v896
    %v898 = vsub.f32 1.0, %v897
    %v899 = vmul.f32 %v896, %v898
    %v900 = vadd.f32 %v896, %v899
    %vm901 = vweird.f32 %v604
    %vm902 = vweird.f32 %v896
    %vm903 = vmor %vm901, %vm902
    %v904 = vsel %vm903, %v896, %v900
    %v905 = vand.u32 2147483647, %v604
    %vm906 = vcmp.eq.f32.partialorder %v905, 8.507059e+37
    %v907 = vand.u32 %v604, 2147483648
    %v908 = vor.u32 1.1754944e-38, %v907
    %v909 = vsel %vm906, %v908, %v904
    %v910 = vmul.f32 1.0, %v909
    %v911 = vrcp.pop %v605
    %v912 = vmul.f32 %v605, %v911
    %v913 = vsub.f32 1.0, %v912
    %v914 = vmul.f32 %v911, %v913
    %v915 = vadd.f32 %v911, %v914
    %vm916 = vweird.f32 %v605
    %vm917 = vweird.f32 %v911
    %vm918 = vmor %vm916, %vm917
    %v919 = vsel %vm918, %v911, %v915
    %v920 = vand.u32 2147483647, %v605
    %vm921 = vcmp.eq.f32.partialorder %v920, 8.507059e+37
    %v922 = vand.u32 %v605, 2147483648
    %v923 = vor.u32 1.1754944e-38, %v922
    %v924 = vsel %vm921, %v923, %v919
    %v925 = vmul.f32 1.0, %v924
    %v926 = vrcp.pop %v606
    %v927 = vmul.f32 %v606, %v926
    %v928 = vsub.f32 1.0, %v927
    %v929 = vmul.f32 %v926, %v928
    %v930 = vadd.f32 %v926, %v929
    %vm931 = vweird.f32 %v606
    %vm932 = vweird.f32 %v926
    %vm933 = vmor %vm931, %vm932
    %v934 = vsel %vm933, %v926, %v930
    %v935 = vand.u32 2147483647, %v606
    %vm936 = vcmp.eq.f32.partialorder %v935, 8.507059e+37
    %v937 = vand.u32 %v606, 2147483648
    %v938 = vor.u32 1.1754944e-38, %v937
    %v939 = vsel %vm936, %v938, %v934
    %v940 = vmul.f32 1.0, %v939
    %v941 = vrcp.pop %v607
    %v942 = vmul.f32 %v607, %v941
    %v943 = vsub.f32 1.0, %v942
    %v944 = vmul.f32 %v941, %v943
    %v945 = vadd.f32 %v941, %v944
    %vm946 = vweird.f32 %v607
    %vm947 = vweird.f32 %v941
    %vm948 = vmor %vm946, %vm947
    %v949 = vsel %vm948, %v941, %v945
    %v950 = vand.u32 2147483647, %v607
    %vm951 = vcmp.eq.f32.partialorder %v950, 8.507059e+37
    %v952 = vand.u32 %v607, 2147483648
    %v953 = vor.u32 1.1754944e-38, %v952
    %v954 = vsel %vm951, %v953, %v949
    %v955 = vmul.f32 1.0, %v954
    %v956 = vrcp.pop %v608
    %v957 = vmul.f32 %v608, %v956
    %v958 = vsub.f32 1.0, %v957
    %v959 = vmul.f32 %v956, %v958
    %v960 = vadd.f32 %v956, %v959
    %vm961 = vweird.f32 %v608
    %vm962 = vweird.f32 %v956
    %vm963 = vmor %vm961, %vm962
    %v964 = vsel %vm963, %v956, %v960
    %v965 = vand.u32 2147483647, %v608
    %vm966 = vcmp.eq.f32.partialorder %v965, 8.507059e+37
    %v967 = vand.u32 %v608, 2147483648
    %v968 = vor.u32 1.1754944e-38, %v967
    %v969 = vsel %vm966, %v968, %v964
    %v970 = vmul.f32 1.0, %v969
    %v971 = vrcp.pop %v609
    %v972 = vmul.f32 %v609, %v971
    %v973 = vsub.f32 1.0, %v972
    %v974 = vmul.f32 %v971, %v973
    %v975 = vadd.f32 %v971, %v974
    %vm976 = vweird.f32 %v609
    %vm977 = vweird.f32 %v971
    %vm978 = vmor %vm976, %vm977
    %v979 = vsel %vm978, %v971, %v975
    %v980 = vand.u32 2147483647, %v609
    %vm981 = vcmp.eq.f32.partialorder %v980, 8.507059e+37
    %v982 = vand.u32 %v609, 2147483648
    %v983 = vor.u32 1.1754944e-38, %v982
    %v984 = vsel %vm981, %v983, %v979
    %v985 = vmul.f32 1.0, %v984
    %v986 = vrcp.pop %v610
    %v987 = vmul.f32 %v610, %v986
    %v988 = vsub.f32 1.0, %v987
    %v989 = vmul.f32 %v986, %v988
    %v990 = vadd.f32 %v986, %v989
    %vm991 = vweird.f32 %v610
    %vm992 = vweird.f32 %v986
    %vm993 = vmor %vm991, %vm992
    %v994 = vsel %vm993, %v986, %v990
    %v995 = vand.u32 2147483647, %v610
    %vm996 = vcmp.eq.f32.partialorder %v995, 8.507059e+37
    %v997 = vand.u32 %v610, 2147483648
    %v998 = vor.u32 1.1754944e-38, %v997
    %v999 = vsel %vm996, %v998, %v994
    %v1000 = vmul.f32 1.0, %v999
    %v1001 = vrcp.pop %v611
    %v1002 = vmul.f32 %v611, %v1001
    %v1003 = vsub.f32 1.0, %v1002
    %v1004 = vmul.f32 %v1001, %v1003
    %v1005 = vadd.f32 %v1001, %v1004
    %vm1006 = vweird.f32 %v611
    %vm1007 = vweird.f32 %v1001
    %vm1008 = vmor %vm1006, %vm1007
    %v1009 = vsel %vm1008, %v1001, %v1005
    %v1010 = vand.u32 2147483647, %v611
    %vm1011 = vcmp.eq.f32.partialorder %v1010, 8.507059e+37
    %v1012 = vand.u32 %v611, 2147483648
    %v1013 = vor.u32 1.1754944e-38, %v1012
    %v1014 = vsel %vm1011, %v1013, %v1009
    %v1015 = vmul.f32 1.0, %v1014
    %v1016 = vrcp.pop %v612
    %v1017 = vmul.f32 %v612, %v1016
    %v1018 = vsub.f32 1.0, %v1017
    %v1019 = vmul.f32 %v1016, %v1018
    %v1020 = vadd.f32 %v1016, %v1019
    %vm1021 = vweird.f32 %v612
    %vm1022 = vweird.f32 %v1016
    %vm1023 = vmor %vm1021, %vm1022
    %v1024 = vsel %vm1023, %v1016, %v1020
    %v1025 = vand.u32 2147483647, %v612
    %vm1026 = vcmp.eq.f32.partialorder %v1025, 8.507059e+37
    %v1027 = vand.u32 %v612, 2147483648
    %v1028 = vor.u32 1.1754944e-38, %v1027
    %v1029 = vsel %vm1026, %v1028, %v1024
    %v1030 = vmul.f32 1.0, %v1029
    %v1031 = vrcp.pop %v613
    %v1032 = vmul.f32 %v613, %v1031
    %v1033 = vsub.f32 1.0, %v1032
    %v1034 = vmul.f32 %v1031, %v1033
    %v1035 = vadd.f32 %v1031, %v1034
    %vm1036 = vweird.f32 %v613
    %vm1037 = vweird.f32 %v1031
    %vm1038 = vmor %vm1036, %vm1037
    %v1039 = vsel %vm1038, %v1031, %v1035
    %v1040 = vand.u32 2147483647, %v613
    %vm1041 = vcmp.eq.f32.partialorder %v1040, 8.507059e+37
    %v1042 = vand.u32 %v613, 2147483648
    %v1043 = vor.u32 1.1754944e-38, %v1042
    %v1044 = vsel %vm1041, %v1043, %v1039
    %v1045 = vmul.f32 1.0, %v1044
    %v1046 = vrcp.pop %v614
    %v1047 = vmul.f32 %v614, %v1046
    %v1048 = vsub.f32 1.0, %v1047
    %v1049 = vmul.f32 %v1046, %v1048
    %v1050 = vadd.f32 %v1046, %v1049
    %vm1051 = vweird.f32 %v614
    %vm1052 = vweird.f32 %v1046
    %vm1053 = vmor %vm1051, %vm1052
    %v1054 = vsel %vm1053, %v1046, %v1050
    %v1055 = vand.u32 2147483647, %v614
    %vm1056 = vcmp.eq.f32.partialorder %v1055, 8.507059e+37
    %v1057 = vand.u32 %v614, 2147483648
    %v1058 = vor.u32 1.1754944e-38, %v1057
    %v1059 = vsel %vm1056, %v1058, %v1054
    %v1060 = vmul.f32 1.0, %v1059
    %v1061 = vrcp.pop %v615
    %v1062 = vmul.f32 %v615, %v1061
    %v1063 = vsub.f32 1.0, %v1062
    %v1064 = vmul.f32 %v1061, %v1063
    %v1065 = vadd.f32 %v1061, %v1064
    %vm1066 = vweird.f32 %v615
    %vm1067 = vweird.f32 %v1061
    %vm1068 = vmor %vm1066, %vm1067
    %v1069 = vsel %vm1068, %v1061, %v1065
    %v1070 = vand.u32 2147483647, %v615
    %vm1071 = vcmp.eq.f32.partialorder %v1070, 8.507059e+37
    %v1072 = vand.u32 %v615, 2147483648
    %v1073 = vor.u32 1.1754944e-38, %v1072
    %v1074 = vsel %vm1071, %v1073, %v1069
    %v1075 = vmul.f32 1.0, %v1074
    %v1076 = vrcp.pop %v616
    %v1077 = vmul.f32 %v616, %v1076
    %v1078 = vsub.f32 1.0, %v1077
    %v1079 = vmul.f32 %v1076, %v1078
    %v1080 = vadd.f32 %v1076, %v1079
    %vm1081 = vweird.f32 %v616
    %vm1082 = vweird.f32 %v1076
    %vm1083 = vmor %vm1081, %vm1082
    %v1084 = vsel %vm1083, %v1076, %v1080
    %v1085 = vand.u32 2147483647, %v616
    %vm1086 = vcmp.eq.f32.partialorder %v1085, 8.507059e+37
    %v1087 = vand.u32 %v616, 2147483648
    %v1088 = vor.u32 1.1754944e-38, %v1087
    %v1089 = vsel %vm1086, %v1088, %v1084
    %v1090 = vmul.f32 1.0, %v1089
    %v1091 = vrcp.pop %v617
    %v1092 = vmul.f32 %v617, %v1091
    %v1093 = vsub.f32 1.0, %v1092
    %v1094 = vmul.f32 %v1091, %v1093
    %v1095 = vadd.f32 %v1091, %v1094
    %vm1096 = vweird.f32 %v617
    %vm1097 = vweird.f32 %v1091
    %vm1098 = vmor %vm1096, %vm1097
    %v1099 = vsel %vm1098, %v1091, %v1095
    %v1100 = vand.u32 2147483647, %v617
    %vm1101 = vcmp.eq.f32.partialorder %v1100, 8.507059e+37
    %v1102 = vand.u32 %v617, 2147483648
    %v1103 = vor.u32 1.1754944e-38, %v1102
    %v1104 = vsel %vm1101, %v1103, %v1099
    %v1105 = vmul.f32 1.0, %v1104
    %v1106 = vrcp.pop %v618
    %v1107 = vmul.f32 %v618, %v1106
    %v1108 = vsub.f32 1.0, %v1107
    %v1109 = vmul.f32 %v1106, %v1108
    %v1110 = vadd.f32 %v1106, %v1109
    %vm1111 = vweird.f32 %v618
    %vm1112 = vweird.f32 %v1106
    %vm1113 = vmor %vm1111, %vm1112
    %v1114 = vsel %vm1113, %v1106, %v1110
    %v1115 = vand.u32 2147483647, %v618
    %vm1116 = vcmp.eq.f32.partialorder %v1115, 8.507059e+37
    %v1117 = vand.u32 %v618, 2147483648
    %v1118 = vor.u32 1.1754944e-38, %v1117
    %v1119 = vsel %vm1116, %v1118, %v1114
    %v1120 = vmul.f32 1.0, %v1119
    %v1121 = vrcp.pop %v619
    %v1122 = vmul.f32 %v619, %v1121
    %v1123 = vsub.f32 1.0, %v1122
    %v1124 = vmul.f32 %v1121, %v1123
    %v1125 = vadd.f32 %v1121, %v1124
    %vm1126 = vweird.f32 %v619
    %vm1127 = vweird.f32 %v1121
    %vm1128 = vmor %vm1126, %vm1127
    %v1129 = vsel %vm1128, %v1121, %v1125
    %v1130 = vand.u32 2147483647, %v619
    %vm1131 = vcmp.eq.f32.partialorder %v1130, 8.507059e+37
    %v1132 = vand.u32 %v619, 2147483648
    %v1133 = vor.u32 1.1754944e-38, %v1132
    %v1134 = vsel %vm1131, %v1133, %v1129
    %v1135 = vmul.f32 1.0, %v1134
    %v1136 = vrcp.pop %v620
    %v1137 = vmul.f32 %v620, %v1136
    %v1138 = vsub.f32 1.0, %v1137
    %v1139 = vmul.f32 %v1136, %v1138
    %v1140 = vadd.f32 %v1136, %v1139
    %vm1141 = vweird.f32 %v620
    %vm1142 = vweird.f32 %v1136
    %vm1143 = vmor %vm1141, %vm1142
    %v1144 = vsel %vm1143, %v1136, %v1140
    %v1145 = vand.u32 2147483647, %v620
    %vm1146 = vcmp.eq.f32.partialorder %v1145, 8.507059e+37
    %v1147 = vand.u32 %v620, 2147483648
    %v1148 = vor.u32 1.1754944e-38, %v1147
    %v1149 = vsel %vm1146, %v1148, %v1144
    %v1150 = vmul.f32 1.0, %v1149
    %v1151 = vrcp.pop %v621
    %v1152 = vmul.f32 %v621, %v1151
    %v1153 = vsub.f32 1.0, %v1152
    %v1154 = vmul.f32 %v1151, %v1153
    %v1155 = vadd.f32 %v1151, %v1154
    %vm1156 = vweird.f32 %v621
    %vm1157 = vweird.f32 %v1151
    %vm1158 = vmor %vm1156, %vm1157
    %v1159 = vsel %vm1158, %v1151, %v1155
    %v1160 = vand.u32 2147483647, %v621
    %vm1161 = vcmp.eq.f32.partialorder %v1160, 8.507059e+37
    %v1162 = vand.u32 %v621, 2147483648
    %v1163 = vor.u32 1.1754944e-38, %v1162
    %v1164 = vsel %vm1161, %v1163, %v1159
    %v1165 = vmul.f32 1.0, %v1164
    %v1166 = vrcp.pop %v622
    %v1167 = vmul.f32 %v622, %v1166
    %v1168 = vsub.f32 1.0, %v1167
    %v1169 = vmul.f32 %v1166, %v1168
    %v1170 = vadd.f32 %v1166, %v1169
    %vm1171 = vweird.f32 %v622
    %vm1172 = vweird.f32 %v1166
    %vm1173 = vmor %vm1171, %vm1172
    %v1174 = vsel %vm1173, %v1166, %v1170
    %v1175 = vand.u32 2147483647, %v622
    %vm1176 = vcmp.eq.f32.partialorder %v1175, 8.507059e+37
    %v1177 = vand.u32 %v622, 2147483648
    %v1178 = vor.u32 1.1754944e-38, %v1177
    %v1179 = vsel %vm1176, %v1178, %v1174
    %v1180 = vmul.f32 1.0, %v1179
    %v1181 = vrcp.pop %v623
    %v1182 = vmul.f32 %v623, %v1181
    %v1183 = vsub.f32 1.0, %v1182
    %v1184 = vmul.f32 %v1181, %v1183
    %v1185 = vadd.f32 %v1181, %v1184
    %vm1186 = vweird.f32 %v623
    %vm1187 = vweird.f32 %v1181
    %vm1188 = vmor %vm1186, %vm1187
    %v1189 = vsel %vm1188, %v1181, %v1185
    %v1190 = vand.u32 2147483647, %v623
    %vm1191 = vcmp.eq.f32.partialorder %v1190, 8.507059e+37
    %v1192 = vand.u32 %v623, 2147483648
    %v1193 = vor.u32 1.1754944e-38, %v1192
    %v1194 = vsel %vm1191, %v1193, %v1189
    %v1195 = vmul.f32 1.0, %v1194
    %v1196 = vrcp.pop %v624
    %v1197 = vmul.f32 %v624, %v1196
    %v1198 = vsub.f32 1.0, %v1197
    %v1199 = vmul.f32 %v1196, %v1198
    %v1200 = vadd.f32 %v1196, %v1199
    %vm1201 = vweird.f32 %v624
    %vm1202 = vweird.f32 %v1196
    %vm1203 = vmor %vm1201, %vm1202
    %v1204 = vsel %vm1203, %v1196, %v1200
    %v1205 = vand.u32 2147483647, %v624
    %vm1206 = vcmp.eq.f32.partialorder %v1205, 8.507059e+37
    %v1207 = vand.u32 %v624, 2147483648
    %v1208 = vor.u32 1.1754944e-38, %v1207
    %v1209 = vsel %vm1206, %v1208, %v1204
    %v1210 = vmul.f32 1.0, %v1209
    %v1211 = vrcp.pop %v625
    %v1212 = vmul.f32 %v625, %v1211
    %v1213 = vsub.f32 1.0, %v1212
    %v1214 = vmul.f32 %v1211, %v1213
    %v1215 = vadd.f32 %v1211, %v1214
    %vm1216 = vweird.f32 %v625
    %vm1217 = vweird.f32 %v1211
    %vm1218 = vmor %vm1216, %vm1217
    %v1219 = vsel %vm1218, %v1211, %v1215
    %v1220 = vand.u32 2147483647, %v625
    %vm1221 = vcmp.eq.f32.partialorder %v1220, 8.507059e+37
    %v1222 = vand.u32 %v625, 2147483648
    %v1223 = vor.u32 1.1754944e-38, %v1222
    %v1224 = vsel %vm1221, %v1223, %v1219
    %v1225 = vmul.f32 1.0, %v1224
    %v1226 = vxor.u32 %v102, 2147483648
    %v1227 = vxor.u32 %v104, 2147483648
    %v1228 = vxor.u32 %v106, 2147483648
    %v1229 = vxor.u32 %v108, 2147483648
    %v1230 = vxor.u32 %v110, 2147483648
    %v1231 = vxor.u32 %v112, 2147483648
    %v1232 = vxor.u32 %v114, 2147483648
    %v1233 = vxor.u32 %v116, 2147483648
    %v1234 = vxor.u32 %v118, 2147483648
    %v1235 = vxor.u32 %v120, 2147483648
    %v1236 = vxor.u32 %v122, 2147483648
    %v1237 = vxor.u32 %v124, 2147483648
    %v1238 = vxor.u32 %v126, 2147483648
    %v1239 = vxor.u32 %v128, 2147483648
    %v1240 = vxor.u32 %v130, 2147483648
    %v1241 = vxor.u32 %v132, 2147483648
    %v1242 = vxor.u32 %v134, 2147483648
    %v1243 = vxor.u32 %v136, 2147483648
    %v1244 = vxor.u32 %v138, 2147483648
    %v1245 = vxor.u32 %v140, 2147483648
    %v1246 = vxor.u32 %v142, 2147483648
    %v1247 = vxor.u32 %v144, 2147483648
    %v1248 = vxor.u32 %v146, 2147483648
    %v1249 = vxor.u32 %v148, 2147483648
    %v1250 = vxor.u32 %v150, 2147483648
    %v1251 = vxor.u32 %v152, 2147483648
    %v1252 = vxor.u32 %v154, 2147483648
    %v1253 = vxor.u32 %v156, 2147483648
    %v1254 = vxor.u32 %v158, 2147483648
    %v1255 = vxor.u32 %v160, 2147483648
    %v1256 = vxor.u32 %v162, 2147483648
    %v1257 = vxor.u32 %v164, 2147483648
    %v1258 = vxor.u32 %v166, 2147483648
    %v1259 = vxor.u32 %v168, 2147483648
    %v1260 = vxor.u32 %v170, 2147483648
    %v1261 = vxor.u32 %v172, 2147483648
    %v1262 = vxor.u32 %v174, 2147483648
    %v1263 = vxor.u32 %v176, 2147483648
    %v1264 = vxor.u32 %v178, 2147483648
    %v1265 = vxor.u32 %v180, 2147483648
    %v1266 = vmul.f32 %v1226, 1.442695
    %v1267 = vpow.pop %v1266
    %v1268 = vmul.f32 %v1227, 1.442695
    %v1269 = vpow.pop %v1268
    %v1270 = vmul.f32 %v1228, 1.442695
    %v1271 = vpow.pop %v1270
    %v1272 = vmul.f32 %v1229, 1.442695
    %v1273 = vpow.pop %v1272
    %v1274 = vmul.f32 %v1230, 1.442695
    %v1275 = vpow.pop %v1274
    %v1276 = vmul.f32 %v1231, 1.442695
    %v1277 = vpow.pop %v1276
    %v1278 = vmul.f32 %v1232, 1.442695
    %v1279 = vpow.pop %v1278
    %v1280 = vmul.f32 %v1233, 1.442695
    %v1281 = vpow.pop %v1280
    %v1282 = vmul.f32 %v1234, 1.442695
    %v1283 = vpow.pop %v1282
    %v1284 = vmul.f32 %v1235, 1.442695
    %v1285 = vpow.pop %v1284
    %v1286 = vmul.f32 %v1236, 1.442695
    %v1287 = vpow.pop %v1286
    %v1288 = vmul.f32 %v1237, 1.442695
    %v1289 = vpow.pop %v1288
    %v1290 = vmul.f32 %v1238, 1.442695
    %v1291 = vpow.pop %v1290
    %v1292 = vmul.f32 %v1239, 1.442695
    %v1293 = vpow.pop %v1292
    %v1294 = vmul.f32 %v1240, 1.442695
    %v1295 = vpow.pop %v1294
    %v1296 = vmul.f32 %v1241, 1.442695
    %v1297 = vpow.pop %v1296
    %v1298 = vmul.f32 %v1242, 1.442695
    %v1299 = vpow.pop %v1298
    %v1300 = vmul.f32 %v1243, 1.442695
    %v1301 = vpow.pop %v1300
    %v1302 = vmul.f32 %v1244, 1.442695
    %v1303 = vpow.pop %v1302
    %v1304 = vmul.f32 %v1245, 1.442695
    %v1305 = vpow.pop %v1304
    %v1306 = vmul.f32 %v1246, 1.442695
    %v1307 = vpow.pop %v1306
    %v1308 = vmul.f32 %v1247, 1.442695
    %v1309 = vpow.pop %v1308
    %v1310 = vmul.f32 %v1248, 1.442695
    %v1311 = vpow.pop %v1310
    %v1312 = vmul.f32 %v1249, 1.442695
    %v1313 = vpow.pop %v1312
    %v1314 = vmul.f32 %v1250, 1.442695
    %v1315 = vpow.pop %v1314
    %v1316 = vmul.f32 %v1251, 1.442695
    %v1317 = vpow.pop %v1316
    %v1318 = vmul.f32 %v1252, 1.442695
    %v1319 = vpow.pop %v1318
    %v1320 = vmul.f32 %v1253, 1.442695
    %v1321 = vpow.pop %v1320
    %v1322 = vmul.f32 %v1254, 1.442695
    %v1323 = vpow.pop %v1322
    %v1324 = vmul.f32 %v1255, 1.442695
    %v1325 = vpow.pop %v1324
    %v1326 = vmul.f32 %v1256, 1.442695
    %v1327 = vpow.pop %v1326
    %v1328 = vmul.f32 %v1257, 1.442695
    %v1329 = vpow.pop %v1328
    %v1330 = vmul.f32 %v1258, 1.442695
    %v1331 = vpow.pop %v1330
    %v1332 = vmul.f32 %v1259, 1.442695
    %v1333 = vpow.pop %v1332
    %v1334 = vmul.f32 %v1260, 1.442695
    %v1335 = vpow.pop %v1334
    %v1336 = vmul.f32 %v1261, 1.442695
    %v1337 = vpow.pop %v1336
    %v1338 = vmul.f32 %v1262, 1.442695
    %v1339 = vpow.pop %v1338
    %v1340 = vmul.f32 %v1263, 1.442695
    %v1341 = vpow.pop %v1340
    %v1342 = vmul.f32 %v1264, 1.442695
    %v1343 = vpow.pop %v1342
    %v1344 = vmul.f32 %v1265, 1.442695
    %v1345 = vpow.pop %v1344
    %v1346 = vadd.f32 %v1267, 1.0
    %v1347 = vadd.f32 %v1269, 1.0
    %v1348 = vadd.f32 %v1271, 1.0
    %v1349 = vadd.f32 %v1273, 1.0
    %v1350 = vadd.f32 %v1275, 1.0
    %v1351 = vadd.f32 %v1277, 1.0
    %v1352 = vadd.f32 %v1279, 1.0
    %v1353 = vadd.f32 %v1281, 1.0
    %v1354 = vadd.f32 %v1283, 1.0
    %v1355 = vadd.f32 %v1285, 1.0
    %v1356 = vadd.f32 %v1287, 1.0
    %v1357 = vadd.f32 %v1289, 1.0
    %v1358 = vadd.f32 %v1291, 1.0
    %v1359 = vadd.f32 %v1293, 1.0
    %v1360 = vadd.f32 %v1295, 1.0
    %v1361 = vadd.f32 %v1297, 1.0
    %v1362 = vadd.f32 %v1299, 1.0
    %v1363 = vadd.f32 %v1301, 1.0
    %v1364 = vadd.f32 %v1303, 1.0
    %v1365 = vadd.f32 %v1305, 1.0
    %v1366 = vadd.f32 %v1307, 1.0
    %v1367 = vadd.f32 %v1309, 1.0
    %v1368 = vadd.f32 %v1311, 1.0
    %v1369 = vadd.f32 %v1313, 1.0
    %v1370 = vadd.f32 %v1315, 1.0
    %v1371 = vadd.f32 %v1317, 1.0
    %v1372 = vadd.f32 %v1319, 1.0
    %v1373 = vadd.f32 %v1321, 1.0
    %v1374 = vadd.f32 %v1323, 1.0
    %v1375 = vadd.f32 %v1325, 1.0
    %v1376 = vadd.f32 %v1327, 1.0
    %v1377 = vadd.f32 %v1329, 1.0
    %v1378 = vadd.f32 %v1331, 1.0
    %v1379 = vadd.f32 %v1333, 1.0
    %v1380 = vadd.f32 %v1335, 1.0
    %v1381 = vadd.f32 %v1337, 1.0
    %v1382 = vadd.f32 %v1339, 1.0
    %v1383 = vadd.f32 %v1341, 1.0
    %v1384 = vadd.f32 %v1343, 1.0
    %v1385 = vadd.f32 %v1345, 1.0
    %v1386 = vrcp.pop %v1346
    %v1387 = vmul.f32 %v1346, %v1386
    %v1388 = vsub.f32 1.0, %v1387
    %v1389 = vmul.f32 %v1386, %v1388
    %v1390 = vadd.f32 %v1386, %v1389
    %vm1391 = vweird.f32 %v1346
    %vm1392 = vweird.f32 %v1386
    %vm1393 = vmor %vm1391, %vm1392
    %v1394 = vsel %vm1393, %v1386, %v1390
    %v1395 = vand.u32 2147483647, %v1346
    %vm1396 = vcmp.eq.f32.partialorder %v1395, 8.507059e+37
    %v1397 = vand.u32 %v1346, 2147483648
    %v1398 = vor.u32 1.1754944e-38, %v1397
    %v1399 = vsel %vm1396, %v1398, %v1394
    %v1400 = vmul.f32 1.0, %v1399
    %v1401 = vrcp.pop %v1347
    %v1402 = vmul.f32 %v1347, %v1401
    %v1403 = vsub.f32 1.0, %v1402
    %v1404 = vmul.f32 %v1401, %v1403
    %v1405 = vadd.f32 %v1401, %v1404
    %vm1406 = vweird.f32 %v1347
    %vm1407 = vweird.f32 %v1401
    %vm1408 = vmor %vm1406, %vm1407
    %v1409 = vsel %vm1408, %v1401, %v1405
    %v1410 = vand.u32 2147483647, %v1347
    %vm1411 = vcmp.eq.f32.partialorder %v1410, 8.507059e+37
    %v1412 = vand.u32 %v1347, 2147483648
    %v1413 = vor.u32 1.1754944e-38, %v1412
    %v1414 = vsel %vm1411, %v1413, %v1409
    %v1415 = vmul.f32 1.0, %v1414
    %v1416 = vrcp.pop %v1348
    %v1417 = vmul.f32 %v1348, %v1416
    %v1418 = vsub.f32 1.0, %v1417
    %v1419 = vmul.f32 %v1416, %v1418
    %v1420 = vadd.f32 %v1416, %v1419
    %vm1421 = vweird.f32 %v1348
    %vm1422 = vweird.f32 %v1416
    %vm1423 = vmor %vm1421, %vm1422
    %v1424 = vsel %vm1423, %v1416, %v1420
    %v1425 = vand.u32 2147483647, %v1348
    %vm1426 = vcmp.eq.f32.partialorder %v1425, 8.507059e+37
    %v1427 = vand.u32 %v1348, 2147483648
    %v1428 = vor.u32 1.1754944e-38, %v1427
    %v1429 = vsel %vm1426, %v1428, %v1424
    %v1430 = vmul.f32 1.0, %v1429
    %v1431 = vrcp.pop %v1349
    %v1432 = vmul.f32 %v1349, %v1431
    %v1433 = vsub.f32 1.0, %v1432
    %v1434 = vmul.f32 %v1431, %v1433
    %v1435 = vadd.f32 %v1431, %v1434
    %vm1436 = vweird.f32 %v1349
    %vm1437 = vweird.f32 %v1431
    %vm1438 = vmor %vm1436, %vm1437
    %v1439 = vsel %vm1438, %v1431, %v1435
    %v1440 = vand.u32 2147483647, %v1349
    %vm1441 = vcmp.eq.f32.partialorder %v1440, 8.507059e+37
    %v1442 = vand.u32 %v1349, 2147483648
    %v1443 = vor.u32 1.1754944e-38, %v1442
    %v1444 = vsel %vm1441, %v1443, %v1439
    %v1445 = vmul.f32 1.0, %v1444
    %v1446 = vrcp.pop %v1350
    %v1447 = vmul.f32 %v1350, %v1446
    %v1448 = vsub.f32 1.0, %v1447
    %v1449 = vmul.f32 %v1446, %v1448
    %v1450 = vadd.f32 %v1446, %v1449
    %vm1451 = vweird.f32 %v1350
    %vm1452 = vweird.f32 %v1446
    %vm1453 = vmor %vm1451, %vm1452
    %v1454 = vsel %vm1453, %v1446, %v1450
    %v1455 = vand.u32 2147483647, %v1350
    %vm1456 = vcmp.eq.f32.partialorder %v1455, 8.507059e+37
    %v1457 = vand.u32 %v1350, 2147483648
    %v1458 = vor.u32 1.1754944e-38, %v1457
    %v1459 = vsel %vm1456, %v1458, %v1454
    %v1460 = vmul.f32 1.0, %v1459
    %v1461 = vrcp.pop %v1351
    %v1462 = vmul.f32 %v1351, %v1461
    %v1463 = vsub.f32 1.0, %v1462
    %v1464 = vmul.f32 %v1461, %v1463
    %v1465 = vadd.f32 %v1461, %v1464
    %vm1466 = vweird.f32 %v1351
    %vm1467 = vweird.f32 %v1461
    %vm1468 = vmor %vm1466, %vm1467
    %v1469 = vsel %vm1468, %v1461, %v1465
    %v1470 = vand.u32 2147483647, %v1351
    %vm1471 = vcmp.eq.f32.partialorder %v1470, 8.507059e+37
    %v1472 = vand.u32 %v1351, 2147483648
    %v1473 = vor.u32 1.1754944e-38, %v1472
    %v1474 = vsel %vm1471, %v1473, %v1469
    %v1475 = vmul.f32 1.0, %v1474
    %v1476 = vrcp.pop %v1352
    %v1477 = vmul.f32 %v1352, %v1476
    %v1478 = vsub.f32 1.0, %v1477
    %v1479 = vmul.f32 %v1476, %v1478
    %v1480 = vadd.f32 %v1476, %v1479
    %vm1481 = vweird.f32 %v1352
    %vm1482 = vweird.f32 %v1476
    %vm1483 = vmor %vm1481, %vm1482
    %v1484 = vsel %vm1483, %v1476, %v1480
    %v1485 = vand.u32 2147483647, %v1352
    %vm1486 = vcmp.eq.f32.partialorder %v1485, 8.507059e+37
    %v1487 = vand.u32 %v1352, 2147483648
    %v1488 = vor.u32 1.1754944e-38, %v1487
    %v1489 = vsel %vm1486, %v1488, %v1484
    %v1490 = vmul.f32 1.0, %v1489
    %v1491 = vrcp.pop %v1353
    %v1492 = vmul.f32 %v1353, %v1491
    %v1493 = vsub.f32 1.0, %v1492
    %v1494 = vmul.f32 %v1491, %v1493
    %v1495 = vadd.f32 %v1491, %v1494
    %vm1496 = vweird.f32 %v1353
    %vm1497 = vweird.f32 %v1491
    %vm1498 = vmor %vm1496, %vm1497
    %v1499 = vsel %vm1498, %v1491, %v1495
    %v1500 = vand.u32 2147483647, %v1353
    %vm1501 = vcmp.eq.f32.partialorder %v1500, 8.507059e+37
    %v1502 = vand.u32 %v1353, 2147483648
    %v1503 = vor.u32 1.1754944e-38, %v1502
    %v1504 = vsel %vm1501, %v1503, %v1499
    %v1505 = vmul.f32 1.0, %v1504
    %v1506 = vrcp.pop %v1354
    %v1507 = vmul.f32 %v1354, %v1506
    %v1508 = vsub.f32 1.0, %v1507
    %v1509 = vmul.f32 %v1506, %v1508
    %v1510 = vadd.f32 %v1506, %v1509
    %vm1511 = vweird.f32 %v1354
    %vm1512 = vweird.f32 %v1506
    %vm1513 = vmor %vm1511, %vm1512
    %v1514 = vsel %vm1513, %v1506, %v1510
    %v1515 = vand.u32 2147483647, %v1354
    %vm1516 = vcmp.eq.f32.partialorder %v1515, 8.507059e+37
    %v1517 = vand.u32 %v1354, 2147483648
    %v1518 = vor.u32 1.1754944e-38, %v1517
    %v1519 = vsel %vm1516, %v1518, %v1514
    %v1520 = vmul.f32 1.0, %v1519
    %v1521 = vrcp.pop %v1355
    %v1522 = vmul.f32 %v1355, %v1521
    %v1523 = vsub.f32 1.0, %v1522
    %v1524 = vmul.f32 %v1521, %v1523
    %v1525 = vadd.f32 %v1521, %v1524
    %vm1526 = vweird.f32 %v1355
    %vm1527 = vweird.f32 %v1521
    %vm1528 = vmor %vm1526, %vm1527
    %v1529 = vsel %vm1528, %v1521, %v1525
    %v1530 = vand.u32 2147483647, %v1355
    %vm1531 = vcmp.eq.f32.partialorder %v1530, 8.507059e+37
    %v1532 = vand.u32 %v1355, 2147483648
    %v1533 = vor.u32 1.1754944e-38, %v1532
    %v1534 = vsel %vm1531, %v1533, %v1529
    %v1535 = vmul.f32 1.0, %v1534
    %v1536 = vrcp.pop %v1356
    %v1537 = vmul.f32 %v1356, %v1536
    %v1538 = vsub.f32 1.0, %v1537
    %v1539 = vmul.f32 %v1536, %v1538
    %v1540 = vadd.f32 %v1536, %v1539
    %vm1541 = vweird.f32 %v1356
    %vm1542 = vweird.f32 %v1536
    %vm1543 = vmor %vm1541, %vm1542
    %v1544 = vsel %vm1543, %v1536, %v1540
    %v1545 = vand.u32 2147483647, %v1356
    %vm1546 = vcmp.eq.f32.partialorder %v1545, 8.507059e+37
    %v1547 = vand.u32 %v1356, 2147483648
    %v1548 = vor.u32 1.1754944e-38, %v1547
    %v1549 = vsel %vm1546, %v1548, %v1544
    %v1550 = vmul.f32 1.0, %v1549
    %v1551 = vrcp.pop %v1357
    %v1552 = vmul.f32 %v1357, %v1551
    %v1553 = vsub.f32 1.0, %v1552
    %v1554 = vmul.f32 %v1551, %v1553
    %v1555 = vadd.f32 %v1551, %v1554
    %vm1556 = vweird.f32 %v1357
    %vm1557 = vweird.f32 %v1551
    %vm1558 = vmor %vm1556, %vm1557
    %v1559 = vsel %vm1558, %v1551, %v1555
    %v1560 = vand.u32 2147483647, %v1357
    %vm1561 = vcmp.eq.f32.partialorder %v1560, 8.507059e+37
    %v1562 = vand.u32 %v1357, 2147483648
    %v1563 = vor.u32 1.1754944e-38, %v1562
    %v1564 = vsel %vm1561, %v1563, %v1559
    %v1565 = vmul.f32 1.0, %v1564
    %v1566 = vrcp.pop %v1358
    %v1567 = vmul.f32 %v1358, %v1566
    %v1568 = vsub.f32 1.0, %v1567
    %v1569 = vmul.f32 %v1566, %v1568
    %v1570 = vadd.f32 %v1566, %v1569
    %vm1571 = vweird.f32 %v1358
    %vm1572 = vweird.f32 %v1566
    %vm1573 = vmor %vm1571, %vm1572
    %v1574 = vsel %vm1573, %v1566, %v1570
    %v1575 = vand.u32 2147483647, %v1358
    %vm1576 = vcmp.eq.f32.partialorder %v1575, 8.507059e+37
    %v1577 = vand.u32 %v1358, 2147483648
    %v1578 = vor.u32 1.1754944e-38, %v1577
    %v1579 = vsel %vm1576, %v1578, %v1574
    %v1580 = vmul.f32 1.0, %v1579
    %v1581 = vrcp.pop %v1359
    %v1582 = vmul.f32 %v1359, %v1581
    %v1583 = vsub.f32 1.0, %v1582
    %v1584 = vmul.f32 %v1581, %v1583
    %v1585 = vadd.f32 %v1581, %v1584
    %vm1586 = vweird.f32 %v1359
    %vm1587 = vweird.f32 %v1581
    %vm1588 = vmor %vm1586, %vm1587
    %v1589 = vsel %vm1588, %v1581, %v1585
    %v1590 = vand.u32 2147483647, %v1359
    %vm1591 = vcmp.eq.f32.partialorder %v1590, 8.507059e+37
    %v1592 = vand.u32 %v1359, 2147483648
    %v1593 = vor.u32 1.1754944e-38, %v1592
    %v1594 = vsel %vm1591, %v1593, %v1589
    %v1595 = vmul.f32 1.0, %v1594
    %v1596 = vrcp.pop %v1360
    %v1597 = vmul.f32 %v1360, %v1596
    %v1598 = vsub.f32 1.0, %v1597
    %v1599 = vmul.f32 %v1596, %v1598
    %v1600 = vadd.f32 %v1596, %v1599
    %vm1601 = vweird.f32 %v1360
    %vm1602 = vweird.f32 %v1596
    %vm1603 = vmor %vm1601, %vm1602
    %v1604 = vsel %vm1603, %v1596, %v1600
    %v1605 = vand.u32 2147483647, %v1360
    %vm1606 = vcmp.eq.f32.partialorder %v1605, 8.507059e+37
    %v1607 = vand.u32 %v1360, 2147483648
    %v1608 = vor.u32 1.1754944e-38, %v1607
    %v1609 = vsel %vm1606, %v1608, %v1604
    %v1610 = vmul.f32 1.0, %v1609
    %v1611 = vrcp.pop %v1361
    %v1612 = vmul.f32 %v1361, %v1611
    %v1613 = vsub.f32 1.0, %v1612
    %v1614 = vmul.f32 %v1611, %v1613
    %v1615 = vadd.f32 %v1611, %v1614
    %vm1616 = vweird.f32 %v1361
    %vm1617 = vweird.f32 %v1611
    %vm1618 = vmor %vm1616, %vm1617
    %v1619 = vsel %vm1618, %v1611, %v1615
    %v1620 = vand.u32 2147483647, %v1361
    %vm1621 = vcmp.eq.f32.partialorder %v1620, 8.507059e+37
    %v1622 = vand.u32 %v1361, 2147483648
    %v1623 = vor.u32 1.1754944e-38, %v1622
    %v1624 = vsel %vm1621, %v1623, %v1619
    %v1625 = vmul.f32 1.0, %v1624
    %v1626 = vrcp.pop %v1362
    %v1627 = vmul.f32 %v1362, %v1626
    %v1628 = vsub.f32 1.0, %v1627
    %v1629 = vmul.f32 %v1626, %v1628
    %v1630 = vadd.f32 %v1626, %v1629
    %vm1631 = vweird.f32 %v1362
    %vm1632 = vweird.f32 %v1626
    %vm1633 = vmor %vm1631, %vm1632
    %v1634 = vsel %vm1633, %v1626, %v1630
    %v1635 = vand.u32 2147483647, %v1362
    %vm1636 = vcmp.eq.f32.partialorder %v1635, 8.507059e+37
    %v1637 = vand.u32 %v1362, 2147483648
    %v1638 = vor.u32 1.1754944e-38, %v1637
    %v1639 = vsel %vm1636, %v1638, %v1634
    %v1640 = vmul.f32 1.0, %v1639
    %v1641 = vrcp.pop %v1363
    %v1642 = vmul.f32 %v1363, %v1641
    %v1643 = vsub.f32 1.0, %v1642
    %v1644 = vmul.f32 %v1641, %v1643
    %v1645 = vadd.f32 %v1641, %v1644
    %vm1646 = vweird.f32 %v1363
    %vm1647 = vweird.f32 %v1641
    %vm1648 = vmor %vm1646, %vm1647
    %v1649 = vsel %vm1648, %v1641, %v1645
    %v1650 = vand.u32 2147483647, %v1363
    %vm1651 = vcmp.eq.f32.partialorder %v1650, 8.507059e+37
    %v1652 = vand.u32 %v1363, 2147483648
    %v1653 = vor.u32 1.1754944e-38, %v1652
    %v1654 = vsel %vm1651, %v1653, %v1649
    %v1655 = vmul.f32 1.0, %v1654
    %v1656 = vrcp.pop %v1364
    %v1657 = vmul.f32 %v1364, %v1656
    %v1658 = vsub.f32 1.0, %v1657
    %v1659 = vmul.f32 %v1656, %v1658
    %v1660 = vadd.f32 %v1656, %v1659
    %vm1661 = vweird.f32 %v1364
    %vm1662 = vweird.f32 %v1656
    %vm1663 = vmor %vm1661, %vm1662
    %v1664 = vsel %vm1663, %v1656, %v1660
    %v1665 = vand.u32 2147483647, %v1364
    %vm1666 = vcmp.eq.f32.partialorder %v1665, 8.507059e+37
    %v1667 = vand.u32 %v1364, 2147483648
    %v1668 = vor.u32 1.1754944e-38, %v1667
    %v1669 = vsel %vm1666, %v1668, %v1664
    %v1670 = vmul.f32 1.0, %v1669
    %v1671 = vrcp.pop %v1365
    %v1672 = vmul.f32 %v1365, %v1671
    %v1673 = vsub.f32 1.0, %v1672
    %v1674 = vmul.f32 %v1671, %v1673
    %v1675 = vadd.f32 %v1671, %v1674
    %vm1676 = vweird.f32 %v1365
    %vm1677 = vweird.f32 %v1671
    %vm1678 = vmor %vm1676, %vm1677
    %v1679 = vsel %vm1678, %v1671, %v1675
    %v1680 = vand.u32 2147483647, %v1365
    %vm1681 = vcmp.eq.f32.partialorder %v1680, 8.507059e+37
    %v1682 = vand.u32 %v1365, 2147483648
    %v1683 = vor.u32 1.1754944e-38, %v1682
    %v1684 = vsel %vm1681, %v1683, %v1679
    %v1685 = vmul.f32 1.0, %v1684
    %v1686 = vrcp.pop %v1366
    %v1687 = vmul.f32 %v1366, %v1686
    %v1688 = vsub.f32 1.0, %v1687
    %v1689 = vmul.f32 %v1686, %v1688
    %v1690 = vadd.f32 %v1686, %v1689
    %vm1691 = vweird.f32 %v1366
    %vm1692 = vweird.f32 %v1686
    %vm1693 = vmor %vm1691, %vm1692
    %v1694 = vsel %vm1693, %v1686, %v1690
    %v1695 = vand.u32 2147483647, %v1366
    %vm1696 = vcmp.eq.f32.partialorder %v1695, 8.507059e+37
    %v1697 = vand.u32 %v1366, 2147483648
    %v1698 = vor.u32 1.1754944e-38, %v1697
    %v1699 = vsel %vm1696, %v1698, %v1694
    %v1700 = vmul.f32 1.0, %v1699
    %v1701 = vrcp.pop %v1367
    %v1702 = vmul.f32 %v1367, %v1701
    %v1703 = vsub.f32 1.0, %v1702
    %v1704 = vmul.f32 %v1701, %v1703
    %v1705 = vadd.f32 %v1701, %v1704
    %vm1706 = vweird.f32 %v1367
    %vm1707 = vweird.f32 %v1701
    %vm1708 = vmor %vm1706, %vm1707
    %v1709 = vsel %vm1708, %v1701, %v1705
    %v1710 = vand.u32 2147483647, %v1367
    %vm1711 = vcmp.eq.f32.partialorder %v1710, 8.507059e+37
    %v1712 = vand.u32 %v1367, 2147483648
    %v1713 = vor.u32 1.1754944e-38, %v1712
    %v1714 = vsel %vm1711, %v1713, %v1709
    %v1715 = vmul.f32 1.0, %v1714
    %v1716 = vrcp.pop %v1368
    %v1717 = vmul.f32 %v1368, %v1716
    %v1718 = vsub.f32 1.0, %v1717
    %v1719 = vmul.f32 %v1716, %v1718
    %v1720 = vadd.f32 %v1716, %v1719
    %vm1721 = vweird.f32 %v1368
    %vm1722 = vweird.f32 %v1716
    %vm1723 = vmor %vm1721, %vm1722
    %v1724 = vsel %vm1723, %v1716, %v1720
    %v1725 = vand.u32 2147483647, %v1368
    %vm1726 = vcmp.eq.f32.partialorder %v1725, 8.507059e+37
    %v1727 = vand.u32 %v1368, 2147483648
    %v1728 = vor.u32 1.1754944e-38, %v1727
    %v1729 = vsel %vm1726, %v1728, %v1724
    %v1730 = vmul.f32 1.0, %v1729
    %v1731 = vrcp.pop %v1369
    %v1732 = vmul.f32 %v1369, %v1731
    %v1733 = vsub.f32 1.0, %v1732
    %v1734 = vmul.f32 %v1731, %v1733
    %v1735 = vadd.f32 %v1731, %v1734
    %vm1736 = vweird.f32 %v1369
    %vm1737 = vweird.f32 %v1731
    %vm1738 = vmor %vm1736, %vm1737
    %v1739 = vsel %vm1738, %v1731, %v1735
    %v1740 = vand.u32 2147483647, %v1369
    %vm1741 = vcmp.eq.f32.partialorder %v1740, 8.507059e+37
    %v1742 = vand.u32 %v1369, 2147483648
    %v1743 = vor.u32 1.1754944e-38, %v1742
    %v1744 = vsel %vm1741, %v1743, %v1739
    %v1745 = vmul.f32 1.0, %v1744
    %v1746 = vrcp.pop %v1370
    %v1747 = vmul.f32 %v1370, %v1746
    %v1748 = vsub.f32 1.0, %v1747
    %v1749 = vmul.f32 %v1746, %v1748
    %v1750 = vadd.f32 %v1746, %v1749
    %vm1751 = vweird.f32 %v1370
    %vm1752 = vweird.f32 %v1746
    %vm1753 = vmor %vm1751, %vm1752
    %v1754 = vsel %vm1753, %v1746, %v1750
    %v1755 = vand.u32 2147483647, %v1370
    %vm1756 = vcmp.eq.f32.partialorder %v1755, 8.507059e+37
    %v1757 = vand.u32 %v1370, 2147483648
    %v1758 = vor.u32 1.1754944e-38, %v1757
    %v1759 = vsel %vm1756, %v1758, %v1754
    %v1760 = vmul.f32 1.0, %v1759
    %v1761 = vrcp.pop %v1371
    %v1762 = vmul.f32 %v1371, %v1761
    %v1763 = vsub.f32 1.0, %v1762
    %v1764 = vmul.f32 %v1761, %v1763
    %v1765 = vadd.f32 %v1761, %v1764
    %vm1766 = vweird.f32 %v1371
    %vm1767 = vweird.f32 %v1761
    %vm1768 = vmor %vm1766, %vm1767
    %v1769 = vsel %vm1768, %v1761, %v1765
    %v1770 = vand.u32 2147483647, %v1371
    %vm1771 = vcmp.eq.f32.partialorder %v1770, 8.507059e+37
    %v1772 = vand.u32 %v1371, 2147483648
    %v1773 = vor.u32 1.1754944e-38, %v1772
    %v1774 = vsel %vm1771, %v1773, %v1769
    %v1775 = vmul.f32 1.0, %v1774
    %v1776 = vrcp.pop %v1372
    %v1777 = vmul.f32 %v1372, %v1776
    %v1778 = vsub.f32 1.0, %v1777
    %v1779 = vmul.f32 %v1776, %v1778
    %v1780 = vadd.f32 %v1776, %v1779
    %vm1781 = vweird.f32 %v1372
    %vm1782 = vweird.f32 %v1776
    %vm1783 = vmor %vm1781, %vm1782
    %v1784 = vsel %vm1783, %v1776, %v1780
    %v1785 = vand.u32 2147483647, %v1372
    %vm1786 = vcmp.eq.f32.partialorder %v1785, 8.507059e+37
    %v1787 = vand.u32 %v1372, 2147483648
    %v1788 = vor.u32 1.1754944e-38, %v1787
    %v1789 = vsel %vm1786, %v1788, %v1784
    %v1790 = vmul.f32 1.0, %v1789
    %v1791 = vrcp.pop %v1373
    %v1792 = vmul.f32 %v1373, %v1791
    %v1793 = vsub.f32 1.0, %v1792
    %v1794 = vmul.f32 %v1791, %v1793
    %v1795 = vadd.f32 %v1791, %v1794
    %vm1796 = vweird.f32 %v1373
    %vm1797 = vweird.f32 %v1791
    %vm1798 = vmor %vm1796, %vm1797
    %v1799 = vsel %vm1798, %v1791, %v1795
    %v1800 = vand.u32 2147483647, %v1373
    %vm1801 = vcmp.eq.f32.partialorder %v1800, 8.507059e+37
    %v1802 = vand.u32 %v1373, 2147483648
    %v1803 = vor.u32 1.1754944e-38, %v1802
    %v1804 = vsel %vm1801, %v1803, %v1799
    %v1805 = vmul.f32 1.0, %v1804
    %v1806 = vrcp.pop %v1374
    %v1807 = vmul.f32 %v1374, %v1806
    %v1808 = vsub.f32 1.0, %v1807
    %v1809 = vmul.f32 %v1806, %v1808
    %v1810 = vadd.f32 %v1806, %v1809
    %vm1811 = vweird.f32 %v1374
    %vm1812 = vweird.f32 %v1806
    %vm1813 = vmor %vm1811, %vm1812
    %v1814 = vsel %vm1813, %v1806, %v1810
    %v1815 = vand.u32 2147483647, %v1374
    %vm1816 = vcmp.eq.f32.partialorder %v1815, 8.507059e+37
    %v1817 = vand.u32 %v1374, 2147483648
    %v1818 = vor.u32 1.1754944e-38, %v1817
    %v1819 = vsel %vm1816, %v1818, %v1814
    %v1820 = vmul.f32 1.0, %v1819
    %v1821 = vrcp.pop %v1375
    %v1822 = vmul.f32 %v1375, %v1821
    %v1823 = vsub.f32 1.0, %v1822
    %v1824 = vmul.f32 %v1821, %v1823
    %v1825 = vadd.f32 %v1821, %v1824
    %vm1826 = vweird.f32 %v1375
    %vm1827 = vweird.f32 %v1821
    %vm1828 = vmor %vm1826, %vm1827
    %v1829 = vsel %vm1828, %v1821, %v1825
    %v1830 = vand.u32 2147483647, %v1375
    %vm1831 = vcmp.eq.f32.partialorder %v1830, 8.507059e+37
    %v1832 = vand.u32 %v1375, 2147483648
    %v1833 = vor.u32 1.1754944e-38, %v1832
    %v1834 = vsel %vm1831, %v1833, %v1829
    %v1835 = vmul.f32 1.0, %v1834
    %v1836 = vrcp.pop %v1376
    %v1837 = vmul.f32 %v1376, %v1836
    %v1838 = vsub.f32 1.0, %v1837
    %v1839 = vmul.f32 %v1836, %v1838
    %v1840 = vadd.f32 %v1836, %v1839
    %vm1841 = vweird.f32 %v1376
    %vm1842 = vweird.f32 %v1836
    %vm1843 = vmor %vm1841, %vm1842
    %v1844 = vsel %vm1843, %v1836, %v1840
    %v1845 = vand.u32 2147483647, %v1376
    %vm1846 = vcmp.eq.f32.partialorder %v1845, 8.507059e+37
    %v1847 = vand.u32 %v1376, 2147483648
    %v1848 = vor.u32 1.1754944e-38, %v1847
    %v1849 = vsel %vm1846, %v1848, %v1844
    %v1850 = vmul.f32 1.0, %v1849
    %v1851 = vrcp.pop %v1377
    %v1852 = vmul.f32 %v1377, %v1851
    %v1853 = vsub.f32 1.0, %v1852
    %v1854 = vmul.f32 %v1851, %v1853
    %v1855 = vadd.f32 %v1851, %v1854
    %vm1856 = vweird.f32 %v1377
    %vm1857 = vweird.f32 %v1851
    %vm1858 = vmor %vm1856, %vm1857
    %v1859 = vsel %vm1858, %v1851, %v1855
    %v1860 = vand.u32 2147483647, %v1377
    %vm1861 = vcmp.eq.f32.partialorder %v1860, 8.507059e+37
    %v1862 = vand.u32 %v1377, 2147483648
    %v1863 = vor.u32 1.1754944e-38, %v1862
    %v1864 = vsel %vm1861, %v1863, %v1859
    %v1865 = vmul.f32 1.0, %v1864
    %v1866 = vrcp.pop %v1378
    %v1867 = vmul.f32 %v1378, %v1866
    %v1868 = vsub.f32 1.0, %v1867
    %v1869 = vmul.f32 %v1866, %v1868
    %v1870 = vadd.f32 %v1866, %v1869
    %vm1871 = vweird.f32 %v1378
    %vm1872 = vweird.f32 %v1866
    %vm1873 = vmor %vm1871, %vm1872
    %v1874 = vsel %vm1873, %v1866, %v1870
    %v1875 = vand.u32 2147483647, %v1378
    %vm1876 = vcmp.eq.f32.partialorder %v1875, 8.507059e+37
    %v1877 = vand.u32 %v1378, 2147483648
    %v1878 = vor.u32 1.1754944e-38, %v1877
    %v1879 = vsel %vm1876, %v1878, %v1874
    %v1880 = vmul.f32 1.0, %v1879
    %v1881 = vrcp.pop %v1379
    %v1882 = vmul.f32 %v1379, %v1881
    %v1883 = vsub.f32 1.0, %v1882
    %v1884 = vmul.f32 %v1881, %v1883
    %v1885 = vadd.f32 %v1881, %v1884
    %vm1886 = vweird.f32 %v1379
    %vm1887 = vweird.f32 %v1881
    %vm1888 = vmor %vm1886, %vm1887
    %v1889 = vsel %vm1888, %v1881, %v1885
    %v1890 = vand.u32 2147483647, %v1379
    %vm1891 = vcmp.eq.f32.partialorder %v1890, 8.507059e+37
    %v1892 = vand.u32 %v1379, 2147483648
    %v1893 = vor.u32 1.1754944e-38, %v1892
    %v1894 = vsel %vm1891, %v1893, %v1889
    %v1895 = vmul.f32 1.0, %v1894
    %v1896 = vrcp.pop %v1380
    %v1897 = vmul.f32 %v1380, %v1896
    %v1898 = vsub.f32 1.0, %v1897
    %v1899 = vmul.f32 %v1896, %v1898
    %v1900 = vadd.f32 %v1896, %v1899
    %vm1901 = vweird.f32 %v1380
    %vm1902 = vweird.f32 %v1896
    %vm1903 = vmor %vm1901, %vm1902
    %v1904 = vsel %vm1903, %v1896, %v1900
    %v1905 = vand.u32 2147483647, %v1380
    %vm1906 = vcmp.eq.f32.partialorder %v1905, 8.507059e+37
    %v1907 = vand.u32 %v1380, 2147483648
    %v1908 = vor.u32 1.1754944e-38, %v1907
    %v1909 = vsel %vm1906, %v1908, %v1904
    %v1910 = vmul.f32 1.0, %v1909
    %v1911 = vrcp.pop %v1381
    %v1912 = vmul.f32 %v1381, %v1911
    %v1913 = vsub.f32 1.0, %v1912
    %v1914 = vmul.f32 %v1911, %v1913
    %v1915 = vadd.f32 %v1911, %v1914
    %vm1916 = vweird.f32 %v1381
    %vm1917 = vweird.f32 %v1911
    %vm1918 = vmor %vm1916, %vm1917
    %v1919 = vsel %vm1918, %v1911, %v1915
    %v1920 = vand.u32 2147483647, %v1381
    %vm1921 = vcmp.eq.f32.partialorder %v1920, 8.507059e+37
    %v1922 = vand.u32 %v1381, 2147483648
    %v1923 = vor.u32 1.1754944e-38, %v1922
    %v1924 = vsel %vm1921, %v1923, %v1919
    %v1925 = vmul.f32 1.0, %v1924
    %v1926 = vrcp.pop %v1382
    %v1927 = vmul.f32 %v1382, %v1926
    %v1928 = vsub.f32 1.0, %v1927
    %v1929 = vmul.f32 %v1926, %v1928
    %v1930 = vadd.f32 %v1926, %v1929
    %vm1931 = vweird.f32 %v1382
    %vm1932 = vweird.f32 %v1926
    %vm1933 = vmor %vm1931, %vm1932
    %v1934 = vsel %vm1933, %v1926, %v1930
    %v1935 = vand.u32 2147483647, %v1382
    %vm1936 = vcmp.eq.f32.partialorder %v1935, 8.507059e+37
    %v1937 = vand.u32 %v1382, 2147483648
    %v1938 = vor.u32 1.1754944e-38, %v1937
    %v1939 = vsel %vm1936, %v1938, %v1934
    %v1940 = vmul.f32 1.0, %v1939
    %v1941 = vrcp.pop %v1383
    %v1942 = vmul.f32 %v1383, %v1941
    %v1943 = vsub.f32 1.0, %v1942
    %v1944 = vmul.f32 %v1941, %v1943
    %v1945 = vadd.f32 %v1941, %v1944
    %vm1946 = vweird.f32 %v1383
    %vm1947 = vweird.f32 %v1941
    %vm1948 = vmor %vm1946, %vm1947
    %v1949 = vsel %vm1948, %v1941, %v1945
    %v1950 = vand.u32 2147483647, %v1383
    %vm1951 = vcmp.eq.f32.partialorder %v1950, 8.507059e+37
    %v1952 = vand.u32 %v1383, 2147483648
    %v1953 = vor.u32 1.1754944e-38, %v1952
    %v1954 = vsel %vm1951, %v1953, %v1949
    %v1955 = vmul.f32 1.0, %v1954
    %v1956 = vrcp.pop %v1384
    %v1957 = vmul.f32 %v1384, %v1956
    %v1958 = vsub.f32 1.0, %v1957
    %v1959 = vmul.f32 %v1956, %v1958
    %v1960 = vadd.f32 %v1956, %v1959
    %vm1961 = vweird.f32 %v1384
    %vm1962 = vweird.f32 %v1956
    %vm1963 = vmor %vm1961, %vm1962
    %v1964 = vsel %vm1963, %v1956, %v1960
    %v1965 = vand.u32 2147483647, %v1384
    %vm1966 = vcmp.eq.f32.partialorder %v1965, 8.507059e+37
    %v1967 = vand.u32 %v1384, 2147483648
    %v1968 = vor.u32 1.1754944e-38, %v1967
    %v1969 = vsel %vm1966, %v1968, %v1964
    %v1970 = vmul.f32 1.0, %v1969
    %v1971 = vrcp.pop %v1385
    %v1972 = vmul.f32 %v1385, %v1971
    %v1973 = vsub.f32 1.0, %v1972
    %v1974 = vmul.f32 %v1971, %v1973
    %v1975 = vadd.f32 %v1971, %v1974
    %vm1976 = vweird.f32 %v1385
    %vm1977 = vweird.f32 %v1971
    %vm1978 = vmor %vm1976, %vm1977
    %v1979 = vsel %vm1978, %v1971, %v1975
    %v1980 = vand.u32 2147483647, %v1385
    %vm1981 = vcmp.eq.f32.partialorder %v1980, 8.507059e+37
    %v1982 = vand.u32 %v1385, 2147483648
    %v1983 = vor.u32 1.1754944e-38, %v1982
    %v1984 = vsel %vm1981, %v1983, %v1979
    %v1985 = vmul.f32 1.0, %v1984
    %v1986 = vxor.u32 %v342, 2147483648
    %v1987 = vxor.u32 %v344, 2147483648
    %v1988 = vxor.u32 %v346, 2147483648
    %v1989 = vxor.u32 %v348, 2147483648
    %v1990 = vxor.u32 %v350, 2147483648
    %v1991 = vxor.u32 %v352, 2147483648
    %v1992 = vxor.u32 %v354, 2147483648
    %v1993 = vxor.u32 %v356, 2147483648
    %v1994 = vxor.u32 %v358, 2147483648
    %v1995 = vxor.u32 %v360, 2147483648
    %v1996 = vxor.u32 %v362, 2147483648
    %v1997 = vxor.u32 %v364, 2147483648
    %v1998 = vxor.u32 %v366, 2147483648
    %v1999 = vxor.u32 %v368, 2147483648
    %v2000 = vxor.u32 %v370, 2147483648
    %v2001 = vxor.u32 %v372, 2147483648
    %v2002 = vxor.u32 %v374, 2147483648
    %v2003 = vxor.u32 %v376, 2147483648
    %v2004 = vxor.u32 %v378, 2147483648
    %v2005 = vxor.u32 %v380, 2147483648
    %v2006 = vxor.u32 %v382, 2147483648
    %v2007 = vxor.u32 %v384, 2147483648
    %v2008 = vxor.u32 %v386, 2147483648
    %v2009 = vxor.u32 %v388, 2147483648
    %v2010 = vxor.u32 %v390, 2147483648
    %v2011 = vxor.u32 %v392, 2147483648
    %v2012 = vxor.u32 %v394, 2147483648
    %v2013 = vxor.u32 %v396, 2147483648
    %v2014 = vxor.u32 %v398, 2147483648
    %v2015 = vxor.u32 %v400, 2147483648
    %v2016 = vxor.u32 %v402, 2147483648
    %v2017 = vxor.u32 %v404, 2147483648
    %v2018 = vxor.u32 %v406, 2147483648
    %v2019 = vxor.u32 %v408, 2147483648
    %v2020 = vxor.u32 %v410, 2147483648
    %v2021 = vxor.u32 %v412, 2147483648
    %v2022 = vxor.u32 %v414, 2147483648
    %v2023 = vxor.u32 %v416, 2147483648
    %v2024 = vxor.u32 %v418, 2147483648
    %v2025 = vxor.u32 %v420, 2147483648
    %v2026 = vmul.f32 %v1986, 1.442695
    %v2027 = vpow.pop %v2026
    %v2028 = vmul.f32 %v1987, 1.442695
    %v2029 = vpow.pop %v2028
    %v2030 = vmul.f32 %v1988, 1.442695
    %v2031 = vpow.pop %v2030
    %v2032 = vmul.f32 %v1989, 1.442695
    %v2033 = vpow.pop %v2032
    %v2034 = vmul.f32 %v1990, 1.442695
    %v2035 = vpow.pop %v2034
    %v2036 = vmul.f32 %v1991, 1.442695
    %v2037 = vpow.pop %v2036
    %v2038 = vmul.f32 %v1992, 1.442695
    %v2039 = vpow.pop %v2038
    %v2040 = vmul.f32 %v1993, 1.442695
    %v2041 = vpow.pop %v2040
    %v2042 = vmul.f32 %v1994, 1.442695
    %v2043 = vpow.pop %v2042
    %v2044 = vmul.f32 %v1995, 1.442695
    %v2045 = vpow.pop %v2044
    %v2046 = vmul.f32 %v1996, 1.442695
    %v2047 = vpow.pop %v2046
    %v2048 = vmul.f32 %v1997, 1.442695
    %v2049 = vpow.pop %v2048
    %v2050 = vmul.f32 %v1998, 1.442695
    %v2051 = vpow.pop %v2050
    %v2052 = vmul.f32 %v1999, 1.442695
    %v2053 = vpow.pop %v2052
    %v2054 = vmul.f32 %v2000, 1.442695
    %v2055 = vpow.pop %v2054
    %v2056 = vmul.f32 %v2001, 1.442695
    %v2057 = vpow.pop %v2056
    %v2058 = vmul.f32 %v2002, 1.442695
    %v2059 = vpow.pop %v2058
    %v2060 = vmul.f32 %v2003, 1.442695
    %v2061 = vpow.pop %v2060
    %v2062 = vmul.f32 %v2004, 1.442695
    %v2063 = vpow.pop %v2062
    %v2064 = vmul.f32 %v2005, 1.442695
    %v2065 = vpow.pop %v2064
    %v2066 = vmul.f32 %v2006, 1.442695
    %v2067 = vpow.pop %v2066
    %v2068 = vmul.f32 %v2007, 1.442695
    %v2069 = vpow.pop %v2068
    %v2070 = vmul.f32 %v2008, 1.442695
    %v2071 = vpow.pop %v2070
    %v2072 = vmul.f32 %v2009, 1.442695
    %v2073 = vpow.pop %v2072
    %v2074 = vmul.f32 %v2010, 1.442695
    %v2075 = vpow.pop %v2074
    %v2076 = vmul.f32 %v2011, 1.442695
    %v2077 = vpow.pop %v2076
    %v2078 = vmul.f32 %v2012, 1.442695
    %v2079 = vpow.pop %v2078
    %v2080 = vmul.f32 %v2013, 1.442695
    %v2081 = vpow.pop %v2080
    %v2082 = vmul.f32 %v2014, 1.442695
    %v2083 = vpow.pop %v2082
    %v2084 = vmul.f32 %v2015, 1.442695
    %v2085 = vpow.pop %v2084
    %v2086 = vmul.f32 %v2016, 1.442695
    %v2087 = vpow.pop %v2086
    %v2088 = vmul.f32 %v2017, 1.442695
    %v2089 = vpow.pop %v2088
    %v2090 = vmul.f32 %v2018, 1.442695
    %v2091 = vpow.pop %v2090
    %v2092 = vmul.f32 %v2019, 1.442695
    %v2093 = vpow.pop %v2092
    %v2094 = vmul.f32 %v2020, 1.442695
    %v2095 = vpow.pop %v2094
    %v2096 = vmul.f32 %v2021, 1.442695
    %v2097 = vpow.pop %v2096
    %v2098 = vmul.f32 %v2022, 1.442695
    %v2099 = vpow.pop %v2098
    %v2100 = vmul.f32 %v2023, 1.442695
    %v2101 = vpow.pop %v2100
    %v2102 = vmul.f32 %v2024, 1.442695
    %v2103 = vpow.pop %v2102
    %v2104 = vmul.f32 %v2025, 1.442695
    %v2105 = vpow.pop %v2104
    %v2106 = vadd.f32 %v2027, 1.0
    %v2107 = vadd.f32 %v2029, 1.0
    %v2108 = vadd.f32 %v2031, 1.0
    %v2109 = vadd.f32 %v2033, 1.0
    %v2110 = vadd.f32 %v2035, 1.0
    %v2111 = vadd.f32 %v2037, 1.0
    %v2112 = vadd.f32 %v2039, 1.0
    %v2113 = vadd.f32 %v2041, 1.0
    %v2114 = vadd.f32 %v2043, 1.0
    %v2115 = vadd.f32 %v2045, 1.0
    %v2116 = vadd.f32 %v2047, 1.0
    %v2117 = vadd.f32 %v2049, 1.0
    %v2118 = vadd.f32 %v2051, 1.0
    %v2119 = vadd.f32 %v2053, 1.0
    %v2120 = vadd.f32 %v2055, 1.0
    %v2121 = vadd.f32 %v2057, 1.0
    %v2122 = vadd.f32 %v2059, 1.0
    %v2123 = vadd.f32 %v2061, 1.0
    %v2124 = vadd.f32 %v2063, 1.0
    %v2125 = vadd.f32 %v2065, 1.0
    %v2126 = vadd.f32 %v2067, 1.0
    %v2127 = vadd.f32 %v2069, 1.0
    %v2128 = vadd.f32 %v2071, 1.0
    %v2129 = vadd.f32 %v2073, 1.0
    %v2130 = vadd.f32 %v2075, 1.0
    %v2131 = vadd.f32 %v2077, 1.0
    %v2132 = vadd.f32 %v2079, 1.0
    %v2133 = vadd.f32 %v2081, 1.0
    %v2134 = vadd.f32 %v2083, 1.0
    %v2135 = vadd.f32 %v2085, 1.0
    %v2136 = vadd.f32 %v2087, 1.0
    %v2137 = vadd.f32 %v2089, 1.0
    %v2138 = vadd.f32 %v2091, 1.0
    %v2139 = vadd.f32 %v2093, 1.0
    %v2140 = vadd.f32 %v2095, 1.0
    %v2141 = vadd.f32 %v2097, 1.0
    %v2142 = vadd.f32 %v2099, 1.0
    %v2143 = vadd.f32 %v2101, 1.0
    %v2144 = vadd.f32 %v2103, 1.0
    %v2145 = vadd.f32 %v2105, 1.0
    %v2146 = vrcp.pop %v2106
    %v2147 = vmul.f32 %v2106, %v2146
    %v2148 = vsub.f32 1.0, %v2147
    %v2149 = vmul.f32 %v2146, %v2148
    %v2150 = vadd.f32 %v2146, %v2149
    %vm2151 = vweird.f32 %v2106
    %vm2152 = vweird.f32 %v2146
    %vm2153 = vmor %vm2151, %vm2152
    %v2154 = vsel %vm2153, %v2146, %v2150
    %v2155 = vand.u32 2147483647, %v2106
    %vm2156 = vcmp.eq.f32.partialorder %v2155, 8.507059e+37
    %v2157 = vand.u32 %v2106, 2147483648
    %v2158 = vor.u32 1.1754944e-38, %v2157
    %v2159 = vsel %vm2156, %v2158, %v2154
    %v2160 = vmul.f32 1.0, %v2159
    %v2161 = vrcp.pop %v2107
    %v2162 = vmul.f32 %v2107, %v2161
    %v2163 = vsub.f32 1.0, %v2162
    %v2164 = vmul.f32 %v2161, %v2163
    %v2165 = vadd.f32 %v2161, %v2164
    %vm2166 = vweird.f32 %v2107
    %vm2167 = vweird.f32 %v2161
    %vm2168 = vmor %vm2166, %vm2167
    %v2169 = vsel %vm2168, %v2161, %v2165
    %v2170 = vand.u32 2147483647, %v2107
    %vm2171 = vcmp.eq.f32.partialorder %v2170, 8.507059e+37
    %v2172 = vand.u32 %v2107, 2147483648
    %v2173 = vor.u32 1.1754944e-38, %v2172
    %v2174 = vsel %vm2171, %v2173, %v2169
    %v2175 = vmul.f32 1.0, %v2174
    %v2176 = vrcp.pop %v2108
    %v2177 = vmul.f32 %v2108, %v2176
    %v2178 = vsub.f32 1.0, %v2177
    %v2179 = vmul.f32 %v2176, %v2178
    %v2180 = vadd.f32 %v2176, %v2179
    %vm2181 = vweird.f32 %v2108
    %vm2182 = vweird.f32 %v2176
    %vm2183 = vmor %vm2181, %vm2182
    %v2184 = vsel %vm2183, %v2176, %v2180
    %v2185 = vand.u32 2147483647, %v2108
    %vm2186 = vcmp.eq.f32.partialorder %v2185, 8.507059e+37
    %v2187 = vand.u32 %v2108, 2147483648
    %v2188 = vor.u32 1.1754944e-38, %v2187
    %v2189 = vsel %vm2186, %v2188, %v2184
    %v2190 = vmul.f32 1.0, %v2189
    %v2191 = vrcp.pop %v2109
    %v2192 = vmul.f32 %v2109, %v2191
    %v2193 = vsub.f32 1.0, %v2192
    %v2194 = vmul.f32 %v2191, %v2193
    %v2195 = vadd.f32 %v2191, %v2194
    %vm2196 = vweird.f32 %v2109
    %vm2197 = vweird.f32 %v2191
    %vm2198 = vmor %vm2196, %vm2197
    %v2199 = vsel %vm2198, %v2191, %v2195
    %v2200 = vand.u32 2147483647, %v2109
    %vm2201 = vcmp.eq.f32.partialorder %v2200, 8.507059e+37
    %v2202 = vand.u32 %v2109, 2147483648
    %v2203 = vor.u32 1.1754944e-38, %v2202
    %v2204 = vsel %vm2201, %v2203, %v2199
    %v2205 = vmul.f32 1.0, %v2204
    %v2206 = vrcp.pop %v2110
    %v2207 = vmul.f32 %v2110, %v2206
    %v2208 = vsub.f32 1.0, %v2207
    %v2209 = vmul.f32 %v2206, %v2208
    %v2210 = vadd.f32 %v2206, %v2209
    %vm2211 = vweird.f32 %v2110
    %vm2212 = vweird.f32 %v2206
    %vm2213 = vmor %vm2211, %vm2212
    %v2214 = vsel %vm2213, %v2206, %v2210
    %v2215 = vand.u32 2147483647, %v2110
    %vm2216 = vcmp.eq.f32.partialorder %v2215, 8.507059e+37
    %v2217 = vand.u32 %v2110, 2147483648
    %v2218 = vor.u32 1.1754944e-38, %v2217
    %v2219 = vsel %vm2216, %v2218, %v2214
    %v2220 = vmul.f32 1.0, %v2219
    %v2221 = vrcp.pop %v2111
    %v2222 = vmul.f32 %v2111, %v2221
    %v2223 = vsub.f32 1.0, %v2222
    %v2224 = vmul.f32 %v2221, %v2223
    %v2225 = vadd.f32 %v2221, %v2224
    %vm2226 = vweird.f32 %v2111
    %vm2227 = vweird.f32 %v2221
    %vm2228 = vmor %vm2226, %vm2227
    %v2229 = vsel %vm2228, %v2221, %v2225
    %v2230 = vand.u32 2147483647, %v2111
    %vm2231 = vcmp.eq.f32.partialorder %v2230, 8.507059e+37
    %v2232 = vand.u32 %v2111, 2147483648
    %v2233 = vor.u32 1.1754944e-38, %v2232
    %v2234 = vsel %vm2231, %v2233, %v2229
    %v2235 = vmul.f32 1.0, %v2234
    %v2236 = vrcp.pop %v2112
    %v2237 = vmul.f32 %v2112, %v2236
    %v2238 = vsub.f32 1.0, %v2237
    %v2239 = vmul.f32 %v2236, %v2238
    %v2240 = vadd.f32 %v2236, %v2239
    %vm2241 = vweird.f32 %v2112
    %vm2242 = vweird.f32 %v2236
    %vm2243 = vmor %vm2241, %vm2242
    %v2244 = vsel %vm2243, %v2236, %v2240
    %v2245 = vand.u32 2147483647, %v2112
    %vm2246 = vcmp.eq.f32.partialorder %v2245, 8.507059e+37
    %v2247 = vand.u32 %v2112, 2147483648
    %v2248 = vor.u32 1.1754944e-38, %v2247
    %v2249 = vsel %vm2246, %v2248, %v2244
    %v2250 = vmul.f32 1.0, %v2249
    %v2251 = vrcp.pop %v2113
    %v2252 = vmul.f32 %v2113, %v2251
    %v2253 = vsub.f32 1.0, %v2252
    %v2254 = vmul.f32 %v2251, %v2253
    %v2255 = vadd.f32 %v2251, %v2254
    %vm2256 = vweird.f32 %v2113
    %vm2257 = vweird.f32 %v2251
    %vm2258 = vmor %vm2256, %vm2257
    %v2259 = vsel %vm2258, %v2251, %v2255
    %v2260 = vand.u32 2147483647, %v2113
    %vm2261 = vcmp.eq.f32.partialorder %v2260, 8.507059e+37
    %v2262 = vand.u32 %v2113, 2147483648
    %v2263 = vor.u32 1.1754944e-38, %v2262
    %v2264 = vsel %vm2261, %v2263, %v2259
    %v2265 = vmul.f32 1.0, %v2264
    %v2266 = vrcp.pop %v2114
    %v2267 = vmul.f32 %v2114, %v2266
    %v2268 = vsub.f32 1.0, %v2267
    %v2269 = vmul.f32 %v2266, %v2268
    %v2270 = vadd.f32 %v2266, %v2269
    %vm2271 = vweird.f32 %v2114
    %vm2272 = vweird.f32 %v2266
    %vm2273 = vmor %vm2271, %vm2272
    %v2274 = vsel %vm2273, %v2266, %v2270
    %v2275 = vand.u32 2147483647, %v2114
    %vm2276 = vcmp.eq.f32.partialorder %v2275, 8.507059e+37
    %v2277 = vand.u32 %v2114, 2147483648
    %v2278 = vor.u32 1.1754944e-38, %v2277
    %v2279 = vsel %vm2276, %v2278, %v2274
    %v2280 = vmul.f32 1.0, %v2279
    %v2281 = vrcp.pop %v2115
    %v2282 = vmul.f32 %v2115, %v2281
    %v2283 = vsub.f32 1.0, %v2282
    %v2284 = vmul.f32 %v2281, %v2283
    %v2285 = vadd.f32 %v2281, %v2284
    %vm2286 = vweird.f32 %v2115
    %vm2287 = vweird.f32 %v2281
    %vm2288 = vmor %vm2286, %vm2287
    %v2289 = vsel %vm2288, %v2281, %v2285
    %v2290 = vand.u32 2147483647, %v2115
    %vm2291 = vcmp.eq.f32.partialorder %v2290, 8.507059e+37
    %v2292 = vand.u32 %v2115, 2147483648
    %v2293 = vor.u32 1.1754944e-38, %v2292
    %v2294 = vsel %vm2291, %v2293, %v2289
    %v2295 = vmul.f32 1.0, %v2294
    %v2296 = vrcp.pop %v2116
    %v2297 = vmul.f32 %v2116, %v2296
    %v2298 = vsub.f32 1.0, %v2297
    %v2299 = vmul.f32 %v2296, %v2298
    %v2300 = vadd.f32 %v2296, %v2299
    %vm2301 = vweird.f32 %v2116
    %vm2302 = vweird.f32 %v2296
    %vm2303 = vmor %vm2301, %vm2302
    %v2304 = vsel %vm2303, %v2296, %v2300
    %v2305 = vand.u32 2147483647, %v2116
    %vm2306 = vcmp.eq.f32.partialorder %v2305, 8.507059e+37
    %v2307 = vand.u32 %v2116, 2147483648
    %v2308 = vor.u32 1.1754944e-38, %v2307
    %v2309 = vsel %vm2306, %v2308, %v2304
    %v2310 = vmul.f32 1.0, %v2309
    %v2311 = vrcp.pop %v2117
    %v2312 = vmul.f32 %v2117, %v2311
    %v2313 = vsub.f32 1.0, %v2312
    %v2314 = vmul.f32 %v2311, %v2313
    %v2315 = vadd.f32 %v2311, %v2314
    %vm2316 = vweird.f32 %v2117
    %vm2317 = vweird.f32 %v2311
    %vm2318 = vmor %vm2316, %vm2317
    %v2319 = vsel %vm2318, %v2311, %v2315
    %v2320 = vand.u32 2147483647, %v2117
    %vm2321 = vcmp.eq.f32.partialorder %v2320, 8.507059e+37
    %v2322 = vand.u32 %v2117, 2147483648
    %v2323 = vor.u32 1.1754944e-38, %v2322
    %v2324 = vsel %vm2321, %v2323, %v2319
    %v2325 = vmul.f32 1.0, %v2324
    %v2326 = vrcp.pop %v2118
    %v2327 = vmul.f32 %v2118, %v2326
    %v2328 = vsub.f32 1.0, %v2327
    %v2329 = vmul.f32 %v2326, %v2328
    %v2330 = vadd.f32 %v2326, %v2329
    %vm2331 = vweird.f32 %v2118
    %vm2332 = vweird.f32 %v2326
    %vm2333 = vmor %vm2331, %vm2332
    %v2334 = vsel %vm2333, %v2326, %v2330
    %v2335 = vand.u32 2147483647, %v2118
    %vm2336 = vcmp.eq.f32.partialorder %v2335, 8.507059e+37
    %v2337 = vand.u32 %v2118, 2147483648
    %v2338 = vor.u32 1.1754944e-38, %v2337
    %v2339 = vsel %vm2336, %v2338, %v2334
    %v2340 = vmul.f32 1.0, %v2339
    %v2341 = vrcp.pop %v2119
    %v2342 = vmul.f32 %v2119, %v2341
    %v2343 = vsub.f32 1.0, %v2342
    %v2344 = vmul.f32 %v2341, %v2343
    %v2345 = vadd.f32 %v2341, %v2344
    %vm2346 = vweird.f32 %v2119
    %vm2347 = vweird.f32 %v2341
    %vm2348 = vmor %vm2346, %vm2347
    %v2349 = vsel %vm2348, %v2341, %v2345
    %v2350 = vand.u32 2147483647, %v2119
    %vm2351 = vcmp.eq.f32.partialorder %v2350, 8.507059e+37
    %v2352 = vand.u32 %v2119, 2147483648
    %v2353 = vor.u32 1.1754944e-38, %v2352
    %v2354 = vsel %vm2351, %v2353, %v2349
    %v2355 = vmul.f32 1.0, %v2354
    %v2356 = vrcp.pop %v2120
    %v2357 = vmul.f32 %v2120, %v2356
    %v2358 = vsub.f32 1.0, %v2357
    %v2359 = vmul.f32 %v2356, %v2358
    %v2360 = vadd.f32 %v2356, %v2359
    %vm2361 = vweird.f32 %v2120
    %vm2362 = vweird.f32 %v2356
    %vm2363 = vmor %vm2361, %vm2362
    %v2364 = vsel %vm2363, %v2356, %v2360
    %v2365 = vand.u32 2147483647, %v2120
    %vm2366 = vcmp.eq.f32.partialorder %v2365, 8.507059e+37
    %v2367 = vand.u32 %v2120, 2147483648
    %v2368 = vor.u32 1.1754944e-38, %v2367
    %v2369 = vsel %vm2366, %v2368, %v2364
    %v2370 = vmul.f32 1.0, %v2369
    %v2371 = vrcp.pop %v2121
    %v2372 = vmul.f32 %v2121, %v2371
    %v2373 = vsub.f32 1.0, %v2372
    %v2374 = vmul.f32 %v2371, %v2373
    %v2375 = vadd.f32 %v2371, %v2374
    %vm2376 = vweird.f32 %v2121
    %vm2377 = vweird.f32 %v2371
    %vm2378 = vmor %vm2376, %vm2377
    %v2379 = vsel %vm2378, %v2371, %v2375
    %v2380 = vand.u32 2147483647, %v2121
    %vm2381 = vcmp.eq.f32.partialorder %v2380, 8.507059e+37
    %v2382 = vand.u32 %v2121, 2147483648
    %v2383 = vor.u32 1.1754944e-38, %v2382
    %v2384 = vsel %vm2381, %v2383, %v2379
    %v2385 = vmul.f32 1.0, %v2384
    %v2386 = vrcp.pop %v2122
    %v2387 = vmul.f32 %v2122, %v2386
    %v2388 = vsub.f32 1.0, %v2387
    %v2389 = vmul.f32 %v2386, %v2388
    %v2390 = vadd.f32 %v2386, %v2389
    %vm2391 = vweird.f32 %v2122
    %vm2392 = vweird.f32 %v2386
    %vm2393 = vmor %vm2391, %vm2392
    %v2394 = vsel %vm2393, %v2386, %v2390
    %v2395 = vand.u32 2147483647, %v2122
    %vm2396 = vcmp.eq.f32.partialorder %v2395, 8.507059e+37
    %v2397 = vand.u32 %v2122, 2147483648
    %v2398 = vor.u32 1.1754944e-38, %v2397
    %v2399 = vsel %vm2396, %v2398, %v2394
    %v2400 = vmul.f32 1.0, %v2399
    %v2401 = vrcp.pop %v2123
    %v2402 = vmul.f32 %v2123, %v2401
    %v2403 = vsub.f32 1.0, %v2402
    %v2404 = vmul.f32 %v2401, %v2403
    %v2405 = vadd.f32 %v2401, %v2404
    %vm2406 = vweird.f32 %v2123
    %vm2407 = vweird.f32 %v2401
    %vm2408 = vmor %vm2406, %vm2407
    %v2409 = vsel %vm2408, %v2401, %v2405
    %v2410 = vand.u32 2147483647, %v2123
    %vm2411 = vcmp.eq.f32.partialorder %v2410, 8.507059e+37
    %v2412 = vand.u32 %v2123, 2147483648
    %v2413 = vor.u32 1.1754944e-38, %v2412
    %v2414 = vsel %vm2411, %v2413, %v2409
    %v2415 = vmul.f32 1.0, %v2414
    %v2416 = vrcp.pop %v2124
    %v2417 = vmul.f32 %v2124, %v2416
    %v2418 = vsub.f32 1.0, %v2417
    %v2419 = vmul.f32 %v2416, %v2418
    %v2420 = vadd.f32 %v2416, %v2419
    %vm2421 = vweird.f32 %v2124
    %vm2422 = vweird.f32 %v2416
    %vm2423 = vmor %vm2421, %vm2422
    %v2424 = vsel %vm2423, %v2416, %v2420
    %v2425 = vand.u32 2147483647, %v2124
    %vm2426 = vcmp.eq.f32.partialorder %v2425, 8.507059e+37
    %v2427 = vand.u32 %v2124, 2147483648
    %v2428 = vor.u32 1.1754944e-38, %v2427
    %v2429 = vsel %vm2426, %v2428, %v2424
    %v2430 = vmul.f32 1.0, %v2429
    %v2431 = vrcp.pop %v2125
    %v2432 = vmul.f32 %v2125, %v2431
    %v2433 = vsub.f32 1.0, %v2432
    %v2434 = vmul.f32 %v2431, %v2433
    %v2435 = vadd.f32 %v2431, %v2434
    %vm2436 = vweird.f32 %v2125
    %vm2437 = vweird.f32 %v2431
    %vm2438 = vmor %vm2436, %vm2437
    %v2439 = vsel %vm2438, %v2431, %v2435
    %v2440 = vand.u32 2147483647, %v2125
    %vm2441 = vcmp.eq.f32.partialorder %v2440, 8.507059e+37
    %v2442 = vand.u32 %v2125, 2147483648
    %v2443 = vor.u32 1.1754944e-38, %v2442
    %v2444 = vsel %vm2441, %v2443, %v2439
    %v2445 = vmul.f32 1.0, %v2444
    %v2446 = vrcp.pop %v2126
    %v2447 = vmul.f32 %v2126, %v2446
    %v2448 = vsub.f32 1.0, %v2447
    %v2449 = vmul.f32 %v2446, %v2448
    %v2450 = vadd.f32 %v2446, %v2449
    %vm2451 = vweird.f32 %v2126
    %vm2452 = vweird.f32 %v2446
    %vm2453 = vmor %vm2451, %vm2452
    %v2454 = vsel %vm2453, %v2446, %v2450
    %v2455 = vand.u32 2147483647, %v2126
    %vm2456 = vcmp.eq.f32.partialorder %v2455, 8.507059e+37
    %v2457 = vand.u32 %v2126, 2147483648
    %v2458 = vor.u32 1.1754944e-38, %v2457
    %v2459 = vsel %vm2456, %v2458, %v2454
    %v2460 = vmul.f32 1.0, %v2459
    %v2461 = vrcp.pop %v2127
    %v2462 = vmul.f32 %v2127, %v2461
    %v2463 = vsub.f32 1.0, %v2462
    %v2464 = vmul.f32 %v2461, %v2463
    %v2465 = vadd.f32 %v2461, %v2464
    %vm2466 = vweird.f32 %v2127
    %vm2467 = vweird.f32 %v2461
    %vm2468 = vmor %vm2466, %vm2467
    %v2469 = vsel %vm2468, %v2461, %v2465
    %v2470 = vand.u32 2147483647, %v2127
    %vm2471 = vcmp.eq.f32.partialorder %v2470, 8.507059e+37
    %v2472 = vand.u32 %v2127, 2147483648
    %v2473 = vor.u32 1.1754944e-38, %v2472
    %v2474 = vsel %vm2471, %v2473, %v2469
    %v2475 = vmul.f32 1.0, %v2474
    %v2476 = vrcp.pop %v2128
    %v2477 = vmul.f32 %v2128, %v2476
    %v2478 = vsub.f32 1.0, %v2477
    %v2479 = vmul.f32 %v2476, %v2478
    %v2480 = vadd.f32 %v2476, %v2479
    %vm2481 = vweird.f32 %v2128
    %vm2482 = vweird.f32 %v2476
    %vm2483 = vmor %vm2481, %vm2482
    %v2484 = vsel %vm2483, %v2476, %v2480
    %v2485 = vand.u32 2147483647, %v2128
    %vm2486 = vcmp.eq.f32.partialorder %v2485, 8.507059e+37
    %v2487 = vand.u32 %v2128, 2147483648
    %v2488 = vor.u32 1.1754944e-38, %v2487
    %v2489 = vsel %vm2486, %v2488, %v2484
    %v2490 = vmul.f32 1.0, %v2489
    %v2491 = vrcp.pop %v2129
    %v2492 = vmul.f32 %v2129, %v2491
    %v2493 = vsub.f32 1.0, %v2492
    %v2494 = vmul.f32 %v2491, %v2493
    %v2495 = vadd.f32 %v2491, %v2494
    %vm2496 = vweird.f32 %v2129
    %vm2497 = vweird.f32 %v2491
    %vm2498 = vmor %vm2496, %vm2497
    %v2499 = vsel %vm2498, %v2491, %v2495
    %v2500 = vand.u32 2147483647, %v2129
    %vm2501 = vcmp.eq.f32.partialorder %v2500, 8.507059e+37
    %v2502 = vand.u32 %v2129, 2147483648
    %v2503 = vor.u32 1.1754944e-38, %v2502
    %v2504 = vsel %vm2501, %v2503, %v2499
    %v2505 = vmul.f32 1.0, %v2504
    %v2506 = vrcp.pop %v2130
    %v2507 = vmul.f32 %v2130, %v2506
    %v2508 = vsub.f32 1.0, %v2507
    %v2509 = vmul.f32 %v2506, %v2508
    %v2510 = vadd.f32 %v2506, %v2509
    %vm2511 = vweird.f32 %v2130
    %vm2512 = vweird.f32 %v2506
    %vm2513 = vmor %vm2511, %vm2512
    %v2514 = vsel %vm2513, %v2506, %v2510
    %v2515 = vand.u32 2147483647, %v2130
    %vm2516 = vcmp.eq.f32.partialorder %v2515, 8.507059e+37
    %v2517 = vand.u32 %v2130, 2147483648
    %v2518 = vor.u32 1.1754944e-38, %v2517
    %v2519 = vsel %vm2516, %v2518, %v2514
    %v2520 = vmul.f32 1.0, %v2519
    %v2521 = vrcp.pop %v2131
    %v2522 = vmul.f32 %v2131, %v2521
    %v2523 = vsub.f32 1.0, %v2522
    %v2524 = vmul.f32 %v2521, %v2523
    %v2525 = vadd.f32 %v2521, %v2524
    %vm2526 = vweird.f32 %v2131
    %vm2527 = vweird.f32 %v2521
    %vm2528 = vmor %vm2526, %vm2527
    %v2529 = vsel %vm2528, %v2521, %v2525
    %v2530 = vand.u32 2147483647, %v2131
    %vm2531 = vcmp.eq.f32.partialorder %v2530, 8.507059e+37
    %v2532 = vand.u32 %v2131, 2147483648
    %v2533 = vor.u32 1.1754944e-38, %v2532
    %v2534 = vsel %vm2531, %v2533, %v2529
    %v2535 = vmul.f32 1.0, %v2534
    %v2536 = vrcp.pop %v2132
    %v2537 = vmul.f32 %v2132, %v2536
    %v2538 = vsub.f32 1.0, %v2537
    %v2539 = vmul.f32 %v2536, %v2538
    %v2540 = vadd.f32 %v2536, %v2539
    %vm2541 = vweird.f32 %v2132
    %vm2542 = vweird.f32 %v2536
    %vm2543 = vmor %vm2541, %vm2542
    %v2544 = vsel %vm2543, %v2536, %v2540
    %v2545 = vand.u32 2147483647, %v2132
    %vm2546 = vcmp.eq.f32.partialorder %v2545, 8.507059e+37
    %v2547 = vand.u32 %v2132, 2147483648
    %v2548 = vor.u32 1.1754944e-38, %v2547
    %v2549 = vsel %vm2546, %v2548, %v2544
    %v2550 = vmul.f32 1.0, %v2549
    %v2551 = vrcp.pop %v2133
    %v2552 = vmul.f32 %v2133, %v2551
    %v2553 = vsub.f32 1.0, %v2552
    %v2554 = vmul.f32 %v2551, %v2553
    %v2555 = vadd.f32 %v2551, %v2554
    %vm2556 = vweird.f32 %v2133
    %vm2557 = vweird.f32 %v2551
    %vm2558 = vmor %vm2556, %vm2557
    %v2559 = vsel %vm2558, %v2551, %v2555
    %v2560 = vand.u32 2147483647, %v2133
    %vm2561 = vcmp.eq.f32.partialorder %v2560, 8.507059e+37
    %v2562 = vand.u32 %v2133, 2147483648
    %v2563 = vor.u32 1.1754944e-38, %v2562
    %v2564 = vsel %vm2561, %v2563, %v2559
    %v2565 = vmul.f32 1.0, %v2564
    %v2566 = vrcp.pop %v2134
    %v2567 = vmul.f32 %v2134, %v2566
    %v2568 = vsub.f32 1.0, %v2567
    %v2569 = vmul.f32 %v2566, %v2568
    %v2570 = vadd.f32 %v2566, %v2569
    %vm2571 = vweird.f32 %v2134
    %vm2572 = vweird.f32 %v2566
    %vm2573 = vmor %vm2571, %vm2572
    %v2574 = vsel %vm2573, %v2566, %v2570
    %v2575 = vand.u32 2147483647, %v2134
    %vm2576 = vcmp.eq.f32.partialorder %v2575, 8.507059e+37
    %v2577 = vand.u32 %v2134, 2147483648
    %v2578 = vor.u32 1.1754944e-38, %v2577
    %v2579 = vsel %vm2576, %v2578, %v2574
    %v2580 = vmul.f32 1.0, %v2579
    %v2581 = vrcp.pop %v2135
    %v2582 = vmul.f32 %v2135, %v2581
    %v2583 = vsub.f32 1.0, %v2582
    %v2584 = vmul.f32 %v2581, %v2583
    %v2585 = vadd.f32 %v2581, %v2584
    %vm2586 = vweird.f32 %v2135
    %vm2587 = vweird.f32 %v2581
    %vm2588 = vmor %vm2586, %vm2587
    %v2589 = vsel %vm2588, %v2581, %v2585
    %v2590 = vand.u32 2147483647, %v2135
    %vm2591 = vcmp.eq.f32.partialorder %v2590, 8.507059e+37
    %v2592 = vand.u32 %v2135, 2147483648
    %v2593 = vor.u32 1.1754944e-38, %v2592
    %v2594 = vsel %vm2591, %v2593, %v2589
    %v2595 = vmul.f32 1.0, %v2594
    %v2596 = vrcp.pop %v2136
    %v2597 = vmul.f32 %v2136, %v2596
    %v2598 = vsub.f32 1.0, %v2597
    %v2599 = vmul.f32 %v2596, %v2598
    %v2600 = vadd.f32 %v2596, %v2599
    %vm2601 = vweird.f32 %v2136
    %vm2602 = vweird.f32 %v2596
    %vm2603 = vmor %vm2601, %vm2602
    %v2604 = vsel %vm2603, %v2596, %v2600
    %v2605 = vand.u32 2147483647, %v2136
    %vm2606 = vcmp.eq.f32.partialorder %v2605, 8.507059e+37
    %v2607 = vand.u32 %v2136, 2147483648
    %v2608 = vor.u32 1.1754944e-38, %v2607
    %v2609 = vsel %vm2606, %v2608, %v2604
    %v2610 = vmul.f32 1.0, %v2609
    %v2611 = vrcp.pop %v2137
    %v2612 = vmul.f32 %v2137, %v2611
    %v2613 = vsub.f32 1.0, %v2612
    %v2614 = vmul.f32 %v2611, %v2613
    %v2615 = vadd.f32 %v2611, %v2614
    %vm2616 = vweird.f32 %v2137
    %vm2617 = vweird.f32 %v2611
    %vm2618 = vmor %vm2616, %vm2617
    %v2619 = vsel %vm2618, %v2611, %v2615
    %v2620 = vand.u32 2147483647, %v2137
    %vm2621 = vcmp.eq.f32.partialorder %v2620, 8.507059e+37
    %v2622 = vand.u32 %v2137, 2147483648
    %v2623 = vor.u32 1.1754944e-38, %v2622
    %v2624 = vsel %vm2621, %v2623, %v2619
    %v2625 = vmul.f32 1.0, %v2624
    %v2626 = vrcp.pop %v2138
    %v2627 = vmul.f32 %v2138, %v2626
    %v2628 = vsub.f32 1.0, %v2627
    %v2629 = vmul.f32 %v2626, %v2628
    %v2630 = vadd.f32 %v2626, %v2629
    %vm2631 = vweird.f32 %v2138
    %vm2632 = vweird.f32 %v2626
    %vm2633 = vmor %vm2631, %vm2632
    %v2634 = vsel %vm2633, %v2626, %v2630
    %v2635 = vand.u32 2147483647, %v2138
    %vm2636 = vcmp.eq.f32.partialorder %v2635, 8.507059e+37
    %v2637 = vand.u32 %v2138, 2147483648
    %v2638 = vor.u32 1.1754944e-38, %v2637
    %v2639 = vsel %vm2636, %v2638, %v2634
    %v2640 = vmul.f32 1.0, %v2639
    %v2641 = vrcp.pop %v2139
    %v2642 = vmul.f32 %v2139, %v2641
    %v2643 = vsub.f32 1.0, %v2642
    %v2644 = vmul.f32 %v2641, %v2643
    %v2645 = vadd.f32 %v2641, %v2644
    %vm2646 = vweird.f32 %v2139
    %vm2647 = vweird.f32 %v2641
    %vm2648 = vmor %vm2646, %vm2647
    %v2649 = vsel %vm2648, %v2641, %v2645
    %v2650 = vand.u32 2147483647, %v2139
    %vm2651 = vcmp.eq.f32.partialorder %v2650, 8.507059e+37
    %v2652 = vand.u32 %v2139, 2147483648
    %v2653 = vor.u32 1.1754944e-38, %v2652
    %v2654 = vsel %vm2651, %v2653, %v2649
    %v2655 = vmul.f32 1.0, %v2654
    %v2656 = vrcp.pop %v2140
    %v2657 = vmul.f32 %v2140, %v2656
    %v2658 = vsub.f32 1.0, %v2657
    %v2659 = vmul.f32 %v2656, %v2658
    %v2660 = vadd.f32 %v2656, %v2659
    %vm2661 = vweird.f32 %v2140
    %vm2662 = vweird.f32 %v2656
    %vm2663 = vmor %vm2661, %vm2662
    %v2664 = vsel %vm2663, %v2656, %v2660
    %v2665 = vand.u32 2147483647, %v2140
    %vm2666 = vcmp.eq.f32.partialorder %v2665, 8.507059e+37
    %v2667 = vand.u32 %v2140, 2147483648
    %v2668 = vor.u32 1.1754944e-38, %v2667
    %v2669 = vsel %vm2666, %v2668, %v2664
    %v2670 = vmul.f32 1.0, %v2669
    %v2671 = vrcp.pop %v2141
    %v2672 = vmul.f32 %v2141, %v2671
    %v2673 = vsub.f32 1.0, %v2672
    %v2674 = vmul.f32 %v2671, %v2673
    %v2675 = vadd.f32 %v2671, %v2674
    %vm2676 = vweird.f32 %v2141
    %vm2677 = vweird.f32 %v2671
    %vm2678 = vmor %vm2676, %vm2677
    %v2679 = vsel %vm2678, %v2671, %v2675
    %v2680 = vand.u32 2147483647, %v2141
    %vm2681 = vcmp.eq.f32.partialorder %v2680, 8.507059e+37
    %v2682 = vand.u32 %v2141, 2147483648
    %v2683 = vor.u32 1.1754944e-38, %v2682
    %v2684 = vsel %vm2681, %v2683, %v2679
    %v2685 = vmul.f32 1.0, %v2684
    %v2686 = vrcp.pop %v2142
    %v2687 = vmul.f32 %v2142, %v2686
    %v2688 = vsub.f32 1.0, %v2687
    %v2689 = vmul.f32 %v2686, %v2688
    %v2690 = vadd.f32 %v2686, %v2689
    %vm2691 = vweird.f32 %v2142
    %vm2692 = vweird.f32 %v2686
    %vm2693 = vmor %vm2691, %vm2692
    %v2694 = vsel %vm2693, %v2686, %v2690
    %v2695 = vand.u32 2147483647, %v2142
    %vm2696 = vcmp.eq.f32.partialorder %v2695, 8.507059e+37
    %v2697 = vand.u32 %v2142, 2147483648
    %v2698 = vor.u32 1.1754944e-38, %v2697
    %v2699 = vsel %vm2696, %v2698, %v2694
    %v2700 = vmul.f32 1.0, %v2699
    %v2701 = vrcp.pop %v2143
    %v2702 = vmul.f32 %v2143, %v2701
    %v2703 = vsub.f32 1.0, %v2702
    %v2704 = vmul.f32 %v2701, %v2703
    %v2705 = vadd.f32 %v2701, %v2704
    %vm2706 = vweird.f32 %v2143
    %vm2707 = vweird.f32 %v2701
    %vm2708 = vmor %vm2706, %vm2707
    %v2709 = vsel %vm2708, %v2701, %v2705
    %v2710 = vand.u32 2147483647, %v2143
    %vm2711 = vcmp.eq.f32.partialorder %v2710, 8.507059e+37
    %v2712 = vand.u32 %v2143, 2147483648
    %v2713 = vor.u32 1.1754944e-38, %v2712
    %v2714 = vsel %vm2711, %v2713, %v2709
    %v2715 = vmul.f32 1.0, %v2714
    %v2716 = vrcp.pop %v2144
    %v2717 = vmul.f32 %v2144, %v2716
    %v2718 = vsub.f32 1.0, %v2717
    %v2719 = vmul.f32 %v2716, %v2718
    %v2720 = vadd.f32 %v2716, %v2719
    %vm2721 = vweird.f32 %v2144
    %vm2722 = vweird.f32 %v2716
    %vm2723 = vmor %vm2721, %vm2722
    %v2724 = vsel %vm2723, %v2716, %v2720
    %v2725 = vand.u32 2147483647, %v2144
    %vm2726 = vcmp.eq.f32.partialorder %v2725, 8.507059e+37
    %v2727 = vand.u32 %v2144, 2147483648
    %v2728 = vor.u32 1.1754944e-38, %v2727
    %v2729 = vsel %vm2726, %v2728, %v2724
    %v2730 = vmul.f32 1.0, %v2729
    %v2731 = vrcp.pop %v2145
    %v2732 = vmul.f32 %v2145, %v2731
    %v2733 = vsub.f32 1.0, %v2732
    %v2734 = vmul.f32 %v2731, %v2733
    %v2735 = vadd.f32 %v2731, %v2734
    %vm2736 = vweird.f32 %v2145
    %vm2737 = vweird.f32 %v2731
    %vm2738 = vmor %vm2736, %vm2737
    %v2739 = vsel %vm2738, %v2731, %v2735
    %v2740 = vand.u32 2147483647, %v2145
    %vm2741 = vcmp.eq.f32.partialorder %v2740, 8.507059e+37
    %v2742 = vand.u32 %v2145, 2147483648
    %v2743 = vor.u32 1.1754944e-38, %v2742
    %v2744 = vsel %vm2741, %v2743, %v2739
    %v2745 = vmul.f32 1.0, %v2744
    %v2748 = vrot.slane %v440, 7
    %vm2749 = vcmask 1040384
    %v2750 = vsel %vm2749, %v439, %v2748
    %vm2751 = vcmask 1041409
    %v2752 = vsel %vm2751, %v439, %v2748
    %v2753 = vrot.slane %v2752, 1
    %vm2754 = vcmask 1042434
    %v2755 = vsel %vm2754, %v439, %v2748
    %v2756 = vrot.slane %v2755, 2
    %vm2757 = vcmask 1043459
    %v2758 = vsel %vm2757, %v439, %v2748
    %v2759 = vrot.slane %v2758, 3
    %vm2760 = vcmask 1044484
    %v2761 = vsel %vm2760, %v439, %v2748
    %v2762 = vrot.slane %v2761, 4
    %vm2763 = vcmask 1045509
    %v2764 = vsel %vm2763, %v439, %v2748
    %v2765 = vrot.slane %v2764, 5
    %vm2766 = vcmask 1046534
    %v2767 = vsel %vm2766, %v439, %v2748
    %v2768 = vrot.slane %v2767, 6
    %vm2769 = vcmask 1046528
    %v2770 = vsel %vm2769, %v2748, %v439
    %v2771 = vrot.slane %v2770, 7
    %v2780 = vadd.f32 %v640, %v2750
    %v2781 = vadd.f32 %v655, %v2753
    %v2782 = vadd.f32 %v670, %v2756
    %v2783 = vadd.f32 %v685, %v2759
    %v2784 = vadd.f32 %v700, %v2762
    %v2785 = vadd.f32 %v715, %v2765
    %v2786 = vadd.f32 %v730, %v2768
    %v2787 = vadd.f32 %v745, %v2771
    %v2788 = vadd.f32 %v760, %v2750
    %v2789 = vadd.f32 %v775, %v2753
    %v2790 = vadd.f32 %v790, %v2756
    %v2791 = vadd.f32 %v805, %v2759
    %v2792 = vadd.f32 %v820, %v2762
    %v2793 = vadd.f32 %v835, %v2765
    %v2794 = vadd.f32 %v850, %v2768
    %v2795 = vadd.f32 %v865, %v2771
    %v2796 = vadd.f32 %v880, %v2750
    %v2797 = vadd.f32 %v895, %v2753
    %v2798 = vadd.f32 %v910, %v2756
    %v2799 = vadd.f32 %v925, %v2759
    %v2800 = vadd.f32 %v940, %v2762
    %v2801 = vadd.f32 %v955, %v2765
    %v2802 = vadd.f32 %v970, %v2768
    %v2803 = vadd.f32 %v985, %v2771
    %v2804 = vadd.f32 %v1000, %v2750
    %v2805 = vadd.f32 %v1015, %v2753
    %v2806 = vadd.f32 %v1030, %v2756
    %v2807 = vadd.f32 %v1045, %v2759
    %v2808 = vadd.f32 %v1060, %v2762
    %v2809 = vadd.f32 %v1075, %v2765
    %v2810 = vadd.f32 %v1090, %v2768
    %v2811 = vadd.f32 %v1105, %v2771
    %v2812 = vadd.f32 %v1120, %v2750
    %v2813 = vadd.f32 %v1135, %v2753
    %v2814 = vadd.f32 %v1150, %v2756
    %v2815 = vadd.f32 %v1165, %v2759
    %v2816 = vadd.f32 %v1180, %v2762
    %v2817 = vadd.f32 %v1195, %v2765
    %v2818 = vadd.f32 %v1210, %v2768
    %v2819 = vadd.f32 %v1225, %v2771
    %v2822 = vrot.slane %v436, 7
    %v2823 = vsel %vm2749, %v435, %v2822
    %v2824 = vsel %vm2751, %v435, %v2822
    %v2825 = vrot.slane %v2824, 1
    %v2826 = vsel %vm2754, %v435, %v2822
    %v2827 = vrot.slane %v2826, 2
    %v2828 = vsel %vm2757, %v435, %v2822
    %v2829 = vrot.slane %v2828, 3
    %v2830 = vsel %vm2760, %v435, %v2822
    %v2831 = vrot.slane %v2830, 4
    %v2832 = vsel %vm2763, %v435, %v2822
    %v2833 = vrot.slane %v2832, 5
    %v2834 = vsel %vm2766, %v435, %v2822
    %v2835 = vrot.slane %v2834, 6
    %v2836 = vsel %vm2769, %v2822, %v435
    %v2837 = vrot.slane %v2836, 7
    %v2846 = vadd.f32 %v1400, %v2823
    %v2847 = vadd.f32 %v1415, %v2825
    %v2848 = vadd.f32 %v1430, %v2827
    %v2849 = vadd.f32 %v1445, %v2829
    %v2850 = vadd.f32 %v1460, %v2831
    %v2851 = vadd.f32 %v1475, %v2833
    %v2852 = vadd.f32 %v1490, %v2835
    %v2853 = vadd.f32 %v1505, %v2837
    %v2854 = vadd.f32 %v1520, %v2823
    %v2855 = vadd.f32 %v1535, %v2825
    %v2856 = vadd.f32 %v1550, %v2827
    %v2857 = vadd.f32 %v1565, %v2829
    %v2858 = vadd.f32 %v1580, %v2831
    %v2859 = vadd.f32 %v1595, %v2833
    %v2860 = vadd.f32 %v1610, %v2835
    %v2861 = vadd.f32 %v1625, %v2837
    %v2862 = vadd.f32 %v1640, %v2823
    %v2863 = vadd.f32 %v1655, %v2825
    %v2864 = vadd.f32 %v1670, %v2827
    %v2865 = vadd.f32 %v1685, %v2829
    %v2866 = vadd.f32 %v1700, %v2831
    %v2867 = vadd.f32 %v1715, %v2833
    %v2868 = vadd.f32 %v1730, %v2835
    %v2869 = vadd.f32 %v1745, %v2837
    %v2870 = vadd.f32 %v1760, %v2823
    %v2871 = vadd.f32 %v1775, %v2825
    %v2872 = vadd.f32 %v1790, %v2827
    %v2873 = vadd.f32 %v1805, %v2829
    %v2874 = vadd.f32 %v1820, %v2831
    %v2875 = vadd.f32 %v1835, %v2833
    %v2876 = vadd.f32 %v1850, %v2835
    %v2877 = vadd.f32 %v1865, %v2837
    %v2878 = vadd.f32 %v1880, %v2823
    %v2879 = vadd.f32 %v1895, %v2825
    %v2880 = vadd.f32 %v1910, %v2827
    %v2881 = vadd.f32 %v1925, %v2829
    %v2882 = vadd.f32 %v1940, %v2831
    %v2883 = vadd.f32 %v1955, %v2833
    %v2884 = vadd.f32 %v1970, %v2835
    %v2885 = vadd.f32 %v1985, %v2837
    %v2886 = vmul.f32 %v182, 1.442695
    %v2887 = vpow.pop %v2886
    %v2888 = vmul.f32 %v184, 1.442695
    %v2889 = vpow.pop %v2888
    %v2890 = vmul.f32 %v186, 1.442695
    %v2891 = vpow.pop %v2890
    %v2892 = vmul.f32 %v188, 1.442695
    %v2893 = vpow.pop %v2892
    %v2894 = vmul.f32 %v190, 1.442695
    %v2895 = vpow.pop %v2894
    %v2896 = vmul.f32 %v192, 1.442695
    %v2897 = vpow.pop %v2896
    %v2898 = vmul.f32 %v194, 1.442695
    %v2899 = vpow.pop %v2898
    %v2900 = vmul.f32 %v196, 1.442695
    %v2901 = vpow.pop %v2900
    %v2902 = vmul.f32 %v198, 1.442695
    %v2903 = vpow.pop %v2902
    %v2904 = vmul.f32 %v200, 1.442695
    %v2905 = vpow.pop %v2904
    %v2906 = vmul.f32 %v202, 1.442695
    %v2907 = vpow.pop %v2906
    %v2908 = vmul.f32 %v204, 1.442695
    %v2909 = vpow.pop %v2908
    %v2910 = vmul.f32 %v206, 1.442695
    %v2911 = vpow.pop %v2910
    %v2912 = vmul.f32 %v208, 1.442695
    %v2913 = vpow.pop %v2912
    %v2914 = vmul.f32 %v210, 1.442695
    %v2915 = vpow.pop %v2914
    %v2916 = vmul.f32 %v212, 1.442695
    %v2917 = vpow.pop %v2916
    %v2918 = vmul.f32 %v214, 1.442695
    %v2919 = vpow.pop %v2918
    %v2920 = vmul.f32 %v216, 1.442695
    %v2921 = vpow.pop %v2920
    %v2922 = vmul.f32 %v218, 1.442695
    %v2923 = vpow.pop %v2922
    %v2924 = vmul.f32 %v220, 1.442695
    %v2925 = vpow.pop %v2924
    %v2926 = vmul.f32 %v222, 1.442695
    %v2927 = vpow.pop %v2926
    %v2928 = vmul.f32 %v224, 1.442695
    %v2929 = vpow.pop %v2928
    %v2930 = vmul.f32 %v226, 1.442695
    %v2931 = vpow.pop %v2930
    %v2932 = vmul.f32 %v228, 1.442695
    %v2933 = vpow.pop %v2932
    %v2934 = vmul.f32 %v230, 1.442695
    %v2935 = vpow.pop %v2934
    %v2936 = vmul.f32 %v232, 1.442695
    %v2937 = vpow.pop %v2936
    %v2938 = vmul.f32 %v234, 1.442695
    %v2939 = vpow.pop %v2938
    %v2940 = vmul.f32 %v236, 1.442695
    %v2941 = vpow.pop %v2940
    %v2942 = vmul.f32 %v238, 1.442695
    %v2943 = vpow.pop %v2942
    %v2944 = vmul.f32 %v240, 1.442695
    %v2945 = vpow.pop %v2944
    %v2946 = vmul.f32 %v242, 1.442695
    %v2947 = vpow.pop %v2946
    %v2948 = vmul.f32 %v244, 1.442695
    %v2949 = vpow.pop %v2948
    %v2950 = vmul.f32 %v246, 1.442695
    %v2951 = vpow.pop %v2950
    %v2952 = vmul.f32 %v248, 1.442695
    %v2953 = vpow.pop %v2952
    %v2954 = vmul.f32 %v250, 1.442695
    %v2955 = vpow.pop %v2954
    %v2956 = vmul.f32 %v252, 1.442695
    %v2957 = vpow.pop %v2956
    %v2958 = vmul.f32 %v254, 1.442695
    %v2959 = vpow.pop %v2958
    %v2960 = vmul.f32 %v256, 1.442695
    %v2961 = vpow.pop %v2960
    %v2962 = vmul.f32 %v258, 1.442695
    %v2963 = vpow.pop %v2962
    %v2964 = vmul.f32 %v260, 1.442695
    %v2965 = vpow.pop %v2964
    %2967 = vset.pattern.permute.xlu0 10
    %2968 = vperm.xlu0 %2967, %v12
    %v2969 = vpop.permute.xlu0 %2968
    %2971 = vset.pattern.permute.xlu0 10
    %2972 = vperm.xlu0 %2971, %v13
    %v2973 = vpop.permute.xlu0 %2972
    %2975 = vset.pattern.permute.xlu0 10
    %2976 = vperm.xlu0 %2975, %v14
    %v2977 = vpop.permute.xlu0 %2976
    %2979 = vset.pattern.permute.xlu0 10
    %2980 = vperm.xlu0 %2979, %v15
    %v2981 = vpop.permute.xlu0 %2980
    %2983 = vset.pattern.permute.xlu0 10
    %2984 = vperm.xlu0 %2983, %v16
    %v2985 = vpop.permute.xlu0 %2984
    %v2986 = vperm.slane %v2969, 0
    %v2987 = vperm.slane %v2969, 1
    %v2988 = vperm.slane %v2969, 2
    %v2989 = vperm.slane %v2969, 3
    %v2990 = vperm.slane %v2969, 4
    %v2991 = vperm.slane %v2969, 5
    %v2992 = vperm.slane %v2969, 6
    %v2993 = vperm.slane %v2969, 7
    %v2994 = vperm.slane %v2973, 0
    %v2995 = vperm.slane %v2973, 1
    %v2996 = vperm.slane %v2973, 2
    %v2997 = vperm.slane %v2973, 3
    %v2998 = vperm.slane %v2973, 4
    %v2999 = vperm.slane %v2973, 5
    %v3000 = vperm.slane %v2973, 6
    %v3001 = vperm.slane %v2973, 7
    %v3002 = vperm.slane %v2977, 0
    %v3003 = vperm.slane %v2977, 1
    %v3004 = vperm.slane %v2977, 2
    %v3005 = vperm.slane %v2977, 3
    %v3006 = vperm.slane %v2977, 4
    %v3007 = vperm.slane %v2977, 5
    %v3008 = vperm.slane %v2977, 6
    %v3009 = vperm.slane %v2977, 7
    %v3010 = vperm.slane %v2981, 0
    %v3011 = vperm.slane %v2981, 1
    %v3012 = vperm.slane %v2981, 2
    %v3013 = vperm.slane %v2981, 3
    %v3014 = vperm.slane %v2981, 4
    %v3015 = vperm.slane %v2981, 5
    %v3016 = vperm.slane %v2981, 6
    %v3017 = vperm.slane %v2981, 7
    %v3018 = vperm.slane %v2985, 0
    %v3019 = vperm.slane %v2985, 1
    %v3020 = vperm.slane %v2985, 2
    %v3021 = vperm.slane %v2985, 3
    %v3022 = vperm.slane %v2985, 4
    %v3023 = vperm.slane %v2985, 5
    %v3024 = vperm.slane %v2985, 6
    %v3025 = vperm.slane %v2985, 7
    %v3066 = vmul.f32 %v2887, %v2986
    %v3067 = vmul.f32 %v2889, %v2987
    %v3068 = vmul.f32 %v2891, %v2988
    %v3069 = vmul.f32 %v2893, %v2989
    %v3070 = vmul.f32 %v2895, %v2990
    %v3071 = vmul.f32 %v2897, %v2991
    %v3072 = vmul.f32 %v2899, %v2992
    %v3073 = vmul.f32 %v2901, %v2993
    %v3074 = vmul.f32 %v2903, %v2994
    %v3075 = vmul.f32 %v2905, %v2995
    %v3076 = vmul.f32 %v2907, %v2996
    %v3077 = vmul.f32 %v2909, %v2997
    %v3078 = vmul.f32 %v2911, %v2998
    %v3079 = vmul.f32 %v2913, %v2999
    %v3080 = vmul.f32 %v2915, %v3000
    %v3081 = vmul.f32 %v2917, %v3001
    %v3082 = vmul.f32 %v2919, %v3002
    %v3083 = vmul.f32 %v2921, %v3003
    %v3084 = vmul.f32 %v2923, %v3004
    %v3085 = vmul.f32 %v2925, %v3005
    %v3086 = vmul.f32 %v2927, %v3006
    %v3087 = vmul.f32 %v2929, %v3007
    %v3088 = vmul.f32 %v2931, %v3008
    %v3089 = vmul.f32 %v2933, %v3009
    %v3090 = vmul.f32 %v2935, %v3010
    %v3091 = vmul.f32 %v2937, %v3011
    %v3092 = vmul.f32 %v2939, %v3012
    %v3093 = vmul.f32 %v2941, %v3013
    %v3094 = vmul.f32 %v2943, %v3014
    %v3095 = vmul.f32 %v2945, %v3015
    %v3096 = vmul.f32 %v2947, %v3016
    %v3097 = vmul.f32 %v2949, %v3017
    %v3098 = vmul.f32 %v2951, %v3018
    %v3099 = vmul.f32 %v2953, %v3019
    %v3100 = vmul.f32 %v2955, %v3020
    %v3101 = vmul.f32 %v2957, %v3021
    %v3102 = vmul.f32 %v2959, %v3022
    %v3103 = vmul.f32 %v2961, %v3023
    %v3104 = vmul.f32 %v2963, %v3024
    %v3105 = vmul.f32 %v2965, %v3025
    %v3106 = vmul.f32 %v262, 1.442695
    %v3107 = vpow.pop %v3106
    %v3108 = vmul.f32 %v264, 1.442695
    %v3109 = vpow.pop %v3108
    %v3110 = vmul.f32 %v266, 1.442695
    %v3111 = vpow.pop %v3110
    %v3112 = vmul.f32 %v268, 1.442695
    %v3113 = vpow.pop %v3112
    %v3114 = vmul.f32 %v270, 1.442695
    %v3115 = vpow.pop %v3114
    %v3116 = vmul.f32 %v272, 1.442695
    %v3117 = vpow.pop %v3116
    %v3118 = vmul.f32 %v274, 1.442695
    %v3119 = vpow.pop %v3118
    %v3120 = vmul.f32 %v276, 1.442695
    %v3121 = vpow.pop %v3120
    %v3122 = vmul.f32 %v278, 1.442695
    %v3123 = vpow.pop %v3122
    %v3124 = vmul.f32 %v280, 1.442695
    %v3125 = vpow.pop %v3124
    %v3126 = vmul.f32 %v282, 1.442695
    %v3127 = vpow.pop %v3126
    %v3128 = vmul.f32 %v284, 1.442695
    %v3129 = vpow.pop %v3128
    %v3130 = vmul.f32 %v286, 1.442695
    %v3131 = vpow.pop %v3130
    %v3132 = vmul.f32 %v288, 1.442695
    %v3133 = vpow.pop %v3132
    %v3134 = vmul.f32 %v290, 1.442695
    %v3135 = vpow.pop %v3134
    %v3136 = vmul.f32 %v292, 1.442695
    %v3137 = vpow.pop %v3136
    %v3138 = vmul.f32 %v294, 1.442695
    %v3139 = vpow.pop %v3138
    %v3140 = vmul.f32 %v296, 1.442695
    %v3141 = vpow.pop %v3140
    %v3142 = vmul.f32 %v298, 1.442695
    %v3143 = vpow.pop %v3142
    %v3144 = vmul.f32 %v300, 1.442695
    %v3145 = vpow.pop %v3144
    %v3146 = vmul.f32 %v302, 1.442695
    %v3147 = vpow.pop %v3146
    %v3148 = vmul.f32 %v304, 1.442695
    %v3149 = vpow.pop %v3148
    %v3150 = vmul.f32 %v306, 1.442695
    %v3151 = vpow.pop %v3150
    %v3152 = vmul.f32 %v308, 1.442695
    %v3153 = vpow.pop %v3152
    %v3154 = vmul.f32 %v310, 1.442695
    %v3155 = vpow.pop %v3154
    %v3156 = vmul.f32 %v312, 1.442695
    %v3157 = vpow.pop %v3156
    %v3158 = vmul.f32 %v314, 1.442695
    %v3159 = vpow.pop %v3158
    %v3160 = vmul.f32 %v316, 1.442695
    %v3161 = vpow.pop %v3160
    %v3162 = vmul.f32 %v318, 1.442695
    %v3163 = vpow.pop %v3162
    %v3164 = vmul.f32 %v320, 1.442695
    %v3165 = vpow.pop %v3164
    %v3166 = vmul.f32 %v322, 1.442695
    %v3167 = vpow.pop %v3166
    %v3168 = vmul.f32 %v324, 1.442695
    %v3169 = vpow.pop %v3168
    %v3170 = vmul.f32 %v326, 1.442695
    %v3171 = vpow.pop %v3170
    %v3172 = vmul.f32 %v328, 1.442695
    %v3173 = vpow.pop %v3172
    %v3174 = vmul.f32 %v330, 1.442695
    %v3175 = vpow.pop %v3174
    %v3176 = vmul.f32 %v332, 1.442695
    %v3177 = vpow.pop %v3176
    %v3178 = vmul.f32 %v334, 1.442695
    %v3179 = vpow.pop %v3178
    %v3180 = vmul.f32 %v336, 1.442695
    %v3181 = vpow.pop %v3180
    %v3182 = vmul.f32 %v338, 1.442695
    %v3183 = vpow.pop %v3182
    %v3184 = vmul.f32 %v340, 1.442695
    %v3185 = vpow.pop %v3184
    %3186 = vset.pattern.permute.xlu0 11
    %3187 = vperm.xlu0 %3186, %v12
    %v3188 = vpop.permute.xlu0 %3187
    %3189 = vset.pattern.permute.xlu0 11
    %3190 = vperm.xlu0 %3189, %v13
    %v3191 = vpop.permute.xlu0 %3190
    %3192 = vset.pattern.permute.xlu0 11
    %3193 = vperm.xlu0 %3192, %v14
    %v3194 = vpop.permute.xlu0 %3193
    %3195 = vset.pattern.permute.xlu0 11
    %3196 = vperm.xlu0 %3195, %v15
    %v3197 = vpop.permute.xlu0 %3196
    %3198 = vset.pattern.permute.xlu0 11
    %3199 = vperm.xlu0 %3198, %v16
    %v3200 = vpop.permute.xlu0 %3199
    %v3201 = vperm.slane %v3188, 0
    %v3202 = vperm.slane %v3188, 1
    %v3203 = vperm.slane %v3188, 2
    %v3204 = vperm.slane %v3188, 3
    %v3205 = vperm.slane %v3188, 4
    %v3206 = vperm.slane %v3188, 5
    %v3207 = vperm.slane %v3188, 6
    %v3208 = vperm.slane %v3188, 7
    %v3209 = vperm.slane %v3191, 0
    %v3210 = vperm.slane %v3191, 1
    %v3211 = vperm.slane %v3191, 2
    %v3212 = vperm.slane %v3191, 3
    %v3213 = vperm.slane %v3191, 4
    %v3214 = vperm.slane %v3191, 5
    %v3215 = vperm.slane %v3191, 6
    %v3216 = vperm.slane %v3191, 7
    %v3217 = vperm.slane %v3194, 0
    %v3218 = vperm.slane %v3194, 1
    %v3219 = vperm.slane %v3194, 2
    %v3220 = vperm.slane %v3194, 3
    %v3221 = vperm.slane %v3194, 4
    %v3222 = vperm.slane %v3194, 5
    %v3223 = vperm.slane %v3194, 6
    %v3224 = vperm.slane %v3194, 7
    %v3225 = vperm.slane %v3197, 0
    %v3226 = vperm.slane %v3197, 1
    %v3227 = vperm.slane %v3197, 2
    %v3228 = vperm.slane %v3197, 3
    %v3229 = vperm.slane %v3197, 4
    %v3230 = vperm.slane %v3197, 5
    %v3231 = vperm.slane %v3197, 6
    %v3232 = vperm.slane %v3197, 7
    %v3233 = vperm.slane %v3200, 0
    %v3234 = vperm.slane %v3200, 1
    %v3235 = vperm.slane %v3200, 2
    %v3236 = vperm.slane %v3200, 3
    %v3237 = vperm.slane %v3200, 4
    %v3238 = vperm.slane %v3200, 5
    %v3239 = vperm.slane %v3200, 6
    %v3240 = vperm.slane %v3200, 7
    %v3281 = vmul.f32 %v3107, %v3201
    %v3282 = vmul.f32 %v3109, %v3202
    %v3283 = vmul.f32 %v3111, %v3203
    %v3284 = vmul.f32 %v3113, %v3204
    %v3285 = vmul.f32 %v3115, %v3205
    %v3286 = vmul.f32 %v3117, %v3206
    %v3287 = vmul.f32 %v3119, %v3207
    %v3288 = vmul.f32 %v3121, %v3208
    %v3289 = vmul.f32 %v3123, %v3209
    %v3290 = vmul.f32 %v3125, %v3210
    %v3291 = vmul.f32 %v3127, %v3211
    %v3292 = vmul.f32 %v3129, %v3212
    %v3293 = vmul.f32 %v3131, %v3213
    %v3294 = vmul.f32 %v3133, %v3214
    %v3295 = vmul.f32 %v3135, %v3215
    %v3296 = vmul.f32 %v3137, %v3216
    %v3297 = vmul.f32 %v3139, %v3217
    %v3298 = vmul.f32 %v3141, %v3218
    %v3299 = vmul.f32 %v3143, %v3219
    %v3300 = vmul.f32 %v3145, %v3220
    %v3301 = vmul.f32 %v3147, %v3221
    %v3302 = vmul.f32 %v3149, %v3222
    %v3303 = vmul.f32 %v3151, %v3223
    %v3304 = vmul.f32 %v3153, %v3224
    %v3305 = vmul.f32 %v3155, %v3225
    %v3306 = vmul.f32 %v3157, %v3226
    %v3307 = vmul.f32 %v3159, %v3227
    %v3308 = vmul.f32 %v3161, %v3228
    %v3309 = vmul.f32 %v3163, %v3229
    %v3310 = vmul.f32 %v3165, %v3230
    %v3311 = vmul.f32 %v3167, %v3231
    %v3312 = vmul.f32 %v3169, %v3232
    %v3313 = vmul.f32 %v3171, %v3233
    %v3314 = vmul.f32 %v3173, %v3234
    %v3315 = vmul.f32 %v3175, %v3235
    %v3316 = vmul.f32 %v3177, %v3236
    %v3317 = vmul.f32 %v3179, %v3237
    %v3318 = vmul.f32 %v3181, %v3238
    %v3319 = vmul.f32 %v3183, %v3239
    %v3320 = vmul.f32 %v3185, %v3240
    %v3321 = vmul.f32 %v12, 0.5
    %v3322 = vmul.f32 %v13, 0.5
    %v3323 = vmul.f32 %v14, 0.5
    %v3324 = vmul.f32 %v15, 0.5
    %v3325 = vmul.f32 %v16, 0.5
    %3331 = vrot.lane.b32.xlu0 %v3321, 126
    %v3332 = vpop.permute.xlu0 %3331
    %3333 = vrot.lane.b32.xlu0 %v3322, 126
    %v3334 = vpop.permute.xlu0 %3333
    %3335 = vrot.lane.b32.xlu0 %v3323, 126
    %v3336 = vpop.permute.xlu0 %3335
    %3337 = vrot.lane.b32.xlu0 %v3324, 126
    %v3338 = vpop.permute.xlu0 %3337
    %3339 = vrot.lane.b32.xlu0 %v3325, 126
    %v3340 = vpop.permute.xlu0 %3339
    %v3346 = vsub.f32 %v12, %v3332
    %v3347 = vsub.f32 %v13, %v3334
    %v3348 = vsub.f32 %v14, %v3336
    %v3349 = vsub.f32 %v15, %v3338
    %v3350 = vsub.f32 %v16, %v3340
    %v3351 = vmul.f32 %v3066, 0.5
    %v3352 = vmul.f32 %v3067, 0.5
    %v3353 = vmul.f32 %v3068, 0.5
    %v3354 = vmul.f32 %v3069, 0.5
    %v3355 = vmul.f32 %v3070, 0.5
    %v3356 = vmul.f32 %v3071, 0.5
    %v3357 = vmul.f32 %v3072, 0.5
    %v3358 = vmul.f32 %v3073, 0.5
    %v3359 = vmul.f32 %v3074, 0.5
    %v3360 = vmul.f32 %v3075, 0.5
    %v3361 = vmul.f32 %v3076, 0.5
    %v3362 = vmul.f32 %v3077, 0.5
    %v3363 = vmul.f32 %v3078, 0.5
    %v3364 = vmul.f32 %v3079, 0.5
    %v3365 = vmul.f32 %v3080, 0.5
    %v3366 = vmul.f32 %v3081, 0.5
    %v3367 = vmul.f32 %v3082, 0.5
    %v3368 = vmul.f32 %v3083, 0.5
    %v3369 = vmul.f32 %v3084, 0.5
    %v3370 = vmul.f32 %v3085, 0.5
    %v3371 = vmul.f32 %v3086, 0.5
    %v3372 = vmul.f32 %v3087, 0.5
    %v3373 = vmul.f32 %v3088, 0.5
    %v3374 = vmul.f32 %v3089, 0.5
    %v3375 = vmul.f32 %v3090, 0.5
    %v3376 = vmul.f32 %v3091, 0.5
    %v3377 = vmul.f32 %v3092, 0.5
    %v3378 = vmul.f32 %v3093, 0.5
    %v3379 = vmul.f32 %v3094, 0.5
    %v3380 = vmul.f32 %v3095, 0.5
    %v3381 = vmul.f32 %v3096, 0.5
    %v3382 = vmul.f32 %v3097, 0.5
    %v3383 = vmul.f32 %v3098, 0.5
    %v3384 = vmul.f32 %v3099, 0.5
    %v3385 = vmul.f32 %v3100, 0.5
    %v3386 = vmul.f32 %v3101, 0.5
    %v3387 = vmul.f32 %v3102, 0.5
    %v3388 = vmul.f32 %v3103, 0.5
    %v3389 = vmul.f32 %v3104, 0.5
    %v3390 = vmul.f32 %v3105, 0.5
    %v3391 = vsub.f32 %v2780, %v3351
    %v3392 = vsub.f32 %v2781, %v3352
    %v3393 = vsub.f32 %v2782, %v3353
    %v3394 = vsub.f32 %v2783, %v3354
    %v3395 = vsub.f32 %v2784, %v3355
    %v3396 = vsub.f32 %v2785, %v3356
    %v3397 = vsub.f32 %v2786, %v3357
    %v3398 = vsub.f32 %v2787, %v3358
    %v3399 = vsub.f32 %v2788, %v3359
    %v3400 = vsub.f32 %v2789, %v3360
    %v3401 = vsub.f32 %v2790, %v3361
    %v3402 = vsub.f32 %v2791, %v3362
    %v3403 = vsub.f32 %v2792, %v3363
    %v3404 = vsub.f32 %v2793, %v3364
    %v3405 = vsub.f32 %v2794, %v3365
    %v3406 = vsub.f32 %v2795, %v3366
    %v3407 = vsub.f32 %v2796, %v3367
    %v3408 = vsub.f32 %v2797, %v3368
    %v3409 = vsub.f32 %v2798, %v3369
    %v3410 = vsub.f32 %v2799, %v3370
    %v3411 = vsub.f32 %v2800, %v3371
    %v3412 = vsub.f32 %v2801, %v3372
    %v3413 = vsub.f32 %v2802, %v3373
    %v3414 = vsub.f32 %v2803, %v3374
    %v3415 = vsub.f32 %v2804, %v3375
    %v3416 = vsub.f32 %v2805, %v3376
    %v3417 = vsub.f32 %v2806, %v3377
    %v3418 = vsub.f32 %v2807, %v3378
    %v3419 = vsub.f32 %v2808, %v3379
    %v3420 = vsub.f32 %v2809, %v3380
    %v3421 = vsub.f32 %v2810, %v3381
    %v3422 = vsub.f32 %v2811, %v3382
    %v3423 = vsub.f32 %v2812, %v3383
    %v3424 = vsub.f32 %v2813, %v3384
    %v3425 = vsub.f32 %v2814, %v3385
    %v3426 = vsub.f32 %v2815, %v3386
    %v3427 = vsub.f32 %v2816, %v3387
    %v3428 = vsub.f32 %v2817, %v3388
    %v3429 = vsub.f32 %v2818, %v3389
    %v3430 = vsub.f32 %v2819, %v3390
    %3432 = vset.pattern.permute.xlu0 0
    %3433 = vperm.xlu0 %3432, %v3346
    %v3434 = vpop.permute.xlu0 %3433
    %3437 = vset.pattern.permute.xlu0 0
    %3438 = vperm.xlu0 %3437, %v3347
    %v3439 = vpop.permute.xlu0 %3438
    %3442 = vset.pattern.permute.xlu0 0
    %3443 = vperm.xlu0 %3442, %v3348
    %v3444 = vpop.permute.xlu0 %3443
    %3447 = vset.pattern.permute.xlu0 0
    %3448 = vperm.xlu0 %3447, %v3349
    %v3449 = vpop.permute.xlu0 %3448
    %3452 = vset.pattern.permute.xlu0 0
    %3453 = vperm.xlu0 %3452, %v3350
    %v3454 = vpop.permute.xlu0 %3453
    %3496 = vst [vmem:[#allocation1] ss:$9 sm:$0xff] %v3391
    %s3497 = scalar_lea.vmem [#allocation1], 1
    %3498 = vst [vmem:[%s3497] ss:$9 sm:$0xff] %v3392
    %s3499 = scalar_lea.vmem [#allocation1], 2
    %3500 = vst [vmem:[%s3499] ss:$9 sm:$0xff] %v3393
    %s3501 = scalar_lea.vmem [#allocation1], 3
    %3502 = vst [vmem:[%s3501] ss:$9 sm:$0xff] %v3394
    %s3503 = scalar_lea.vmem [#allocation1], 4
    %3504 = vst [vmem:[%s3503] ss:$9 sm:$0xff] %v3395
    %s3505 = scalar_lea.vmem [#allocation1], 5
    %3506 = vst [vmem:[%s3505] ss:$9 sm:$0xff] %v3396
    %s3507 = scalar_lea.vmem [#allocation1], 6
    %3508 = vst [vmem:[%s3507] ss:$9 sm:$0xff] %v3397
    %s3509 = scalar_lea.vmem [#allocation1], 7
    %3510 = vst [vmem:[%s3509] ss:$9 sm:$0xff] %v3398
    %v3511 = vld [vmem:[#allocation1] sm:$0xff]
    %v3512 = vld [vmem:[#allocation1 + $0x9] sm:$0xff]
    %3513 = vst [vmem:[#allocation1] ss:$9 sm:$0xff] %v3399
    %3514 = vst [vmem:[%s3497] ss:$9 sm:$0xff] %v3400
    %3515 = vst [vmem:[%s3499] ss:$9 sm:$0xff] %v3401
    %3516 = vst [vmem:[%s3501] ss:$9 sm:$0xff] %v3402
    %3517 = vst [vmem:[%s3503] ss:$9 sm:$0xff] %v3403
    %3518 = vst [vmem:[%s3505] ss:$9 sm:$0xff] %v3404
    %3519 = vst [vmem:[%s3507] ss:$9 sm:$0xff] %v3405
    %3520 = vst [vmem:[%s3509] ss:$9 sm:$0xff] %v3406
    %v3521 = vld [vmem:[#allocation1] sm:$0xff]
    %v3522 = vld [vmem:[#allocation1 + $0x9] sm:$0xff]
    %3523 = vst [vmem:[#allocation1] ss:$9 sm:$0xff] %v3407
    %3524 = vst [vmem:[%s3497] ss:$9 sm:$0xff] %v3408
    %3525 = vst [vmem:[%s3499] ss:$9 sm:$0xff] %v3409
    %3526 = vst [vmem:[%s3501] ss:$9 sm:$0xff] %v3410
    %3527 = vst [vmem:[%s3503] ss:$9 sm:$0xff] %v3411
    %3528 = vst [vmem:[%s3505] ss:$9 sm:$0xff] %v3412
    %3529 = vst [vmem:[%s3507] ss:$9 sm:$0xff] %v3413
    %3530 = vst [vmem:[%s3509] ss:$9 sm:$0xff] %v3414
    %v3531 = vld [vmem:[#allocation1] sm:$0xff]
    %v3532 = vld [vmem:[#allocation1 + $0x9] sm:$0xff]
    %3533 = vst [vmem:[#allocation1] ss:$9 sm:$0xff] %v3415
    %3534 = vst [vmem:[%s3497] ss:$9 sm:$0xff] %v3416
    %3535 = vst [vmem:[%s3499] ss:$9 sm:$0xff] %v3417
    %3536 = vst [vmem:[%s3501] ss:$9 sm:$0xff] %v3418
    %3537 = vst [vmem:[%s3503] ss:$9 sm:$0xff] %v3419
    %3538 = vst [vmem:[%s3505] ss:$9 sm:$0xff] %v3420
    %3539 = vst [vmem:[%s3507] ss:$9 sm:$0xff] %v3421
    %3540 = vst [vmem:[%s3509] ss:$9 sm:$0xff] %v3422
    %v3541 = vld [vmem:[#allocation1] sm:$0xff]
    %v3542 = vld [vmem:[#allocation1 + $0x9] sm:$0xff]
    %3543 = vst [vmem:[#allocation1] ss:$9 sm:$0xff] %v3423
    %3544 = vst [vmem:[%s3497] ss:$9 sm:$0xff] %v3424
    %3545 = vst [vmem:[%s3499] ss:$9 sm:$0xff] %v3425
    %3546 = vst [vmem:[%s3501] ss:$9 sm:$0xff] %v3426
    %3547 = vst [vmem:[%s3503] ss:$9 sm:$0xff] %v3427
    %3548 = vst [vmem:[%s3505] ss:$9 sm:$0xff] %v3428
    %3549 = vst [vmem:[%s3507] ss:$9 sm:$0xff] %v3429
    %3550 = vst [vmem:[%s3509] ss:$9 sm:$0xff] %v3430
    %v3551 = vld [vmem:[#allocation1] sm:$0xff]
    %v3552 = vld [vmem:[#allocation1 + $0x9] sm:$0xff]
    %v3563 = vmin.f32 %v3434, %v3511
    %v3564 = vmin.f32 %v3434, %v3512
    %v3565 = vmin.f32 %v3439, %v3521
    %v3566 = vmin.f32 %v3439, %v3522
    %v3567 = vmin.f32 %v3444, %v3531
    %v3568 = vmin.f32 %v3444, %v3532
    %v3569 = vmin.f32 %v3449, %v3541
    %v3570 = vmin.f32 %v3449, %v3542
    %v3571 = vmin.f32 %v3454, %v3551
    %v3572 = vmin.f32 %v3454, %v3552
    %v3573 = vadd.f32 %v12, %v3332
    %v3574 = vadd.f32 %v13, %v3334
    %v3575 = vadd.f32 %v14, %v3336
    %v3576 = vadd.f32 %v15, %v3338
    %v3577 = vadd.f32 %v16, %v3340
    %v3578 = vadd.f32 %v2780, %v3351
    %v3579 = vadd.f32 %v2781, %v3352
    %v3580 = vadd.f32 %v2782, %v3353
    %v3581 = vadd.f32 %v2783, %v3354
    %v3582 = vadd.f32 %v2784, %v3355
    %v3583 = vadd.f32 %v2785, %v3356
    %v3584 = vadd.f32 %v2786, %v3357
    %v3585 = vadd.f32 %v2787, %v3358
    %v3586 = vadd.f32 %v2788, %v3359
    %v3587 = vadd.f32 %v2789, %v3360
    %v3588 = vadd.f32 %v2790, %v3361
    %v3589 = vadd.f32 %v2791, %v3362
    %v3590 = vadd.f32 %v2792, %v3363
    %v3591 = vadd.f32 %v2793, %v3364
    %v3592 = vadd.f32 %v2794, %v3365
    %v3593 = vadd.f32 %v2795, %v3366
    %v3594 = vadd.f32 %v2796, %v3367
    %v3595 = vadd.f32 %v2797, %v3368
    %v3596 = vadd.f32 %v2798, %v3369
    %v3597 = vadd.f32 %v2799, %v3370
    %v3598 = vadd.f32 %v2800, %v3371
    %v3599 = vadd.f32 %v2801, %v3372
    %v3600 = vadd.f32 %v2802, %v3373
    %v3601 = vadd.f32 %v2803, %v3374
    %v3602 = vadd.f32 %v2804, %v3375
    %v3603 = vadd.f32 %v2805, %v3376
    %v3604 = vadd.f32 %v2806, %v3377
    %v3605 = vadd.f32 %v2807, %v3378
    %v3606 = vadd.f32 %v2808, %v3379
    %v3607 = vadd.f32 %v2809, %v3380
    %v3608 = vadd.f32 %v2810, %v3381
    %v3609 = vadd.f32 %v2811, %v3382
    %v3610 = vadd.f32 %v2812, %v3383
    %v3611 = vadd.f32 %v2813, %v3384
    %v3612 = vadd.f32 %v2814, %v3385
    %v3613 = vadd.f32 %v2815, %v3386
    %v3614 = vadd.f32 %v2816, %v3387
    %v3615 = vadd.f32 %v2817, %v3388
    %v3616 = vadd.f32 %v2818, %v3389
    %v3617 = vadd.f32 %v2819, %v3390
    %3619 = vset.pattern.permute.xlu0 0
    %3620 = vperm.xlu0 %3619, %v3573
    %v3621 = vpop.permute.xlu0 %3620
    %3624 = vset.pattern.permute.xlu0 0
    %3625 = vperm.xlu0 %3624, %v3574
    %v3626 = vpop.permute.xlu0 %3625
    %3629 = vset.pattern.permute.xlu0 0
    %3630 = vperm.xlu0 %3629, %v3575
    %v3631 = vpop.permute.xlu0 %3630
    %3634 = vset.pattern.permute.xlu0 0
    %3635 = vperm.xlu0 %3634, %v3576
    %v3636 = vpop.permute.xlu0 %3635
    %3639 = vset.pattern.permute.xlu0 0
    %3640 = vperm.xlu0 %3639, %v3577
    %v3641 = vpop.permute.xlu0 %3640
    %3683 = vst [vmem:[#allocation1] ss:$9 sm:$0xff] %v3578
    %s3684 = scalar_lea.vmem [#allocation1], 1
    %3685 = vst [vmem:[%s3684] ss:$9 sm:$0xff] %v3579
    %s3686 = scalar_lea.vmem [#allocation1], 2
    %3687 = vst [vmem:[%s3686] ss:$9 sm:$0xff] %v3580
    %s3688 = scalar_lea.vmem [#allocation1], 3
    %3689 = vst [vmem:[%s3688] ss:$9 sm:$0xff] %v3581
    %s3690 = scalar_lea.vmem [#allocation1], 4
    %3691 = vst [vmem:[%s3690] ss:$9 sm:$0xff] %v3582
    %s3692 = scalar_lea.vmem [#allocation1], 5
    %3693 = vst [vmem:[%s3692] ss:$9 sm:$0xff] %v3583
    %s3694 = scalar_lea.vmem [#allocation1], 6
    %3695 = vst [vmem:[%s3694] ss:$9 sm:$0xff] %v3584
    %s3696 = scalar_lea.vmem [#allocation1], 7
    %3697 = vst [vmem:[%s3696] ss:$9 sm:$0xff] %v3585
    %v3698 = vld [vmem:[#allocation1] sm:$0xff]
    %v3699 = vld [vmem:[#allocation1 + $0x9] sm:$0xff]
    %3700 = vst [vmem:[#allocation1] ss:$9 sm:$0xff] %v3586
    %3701 = vst [vmem:[%s3684] ss:$9 sm:$0xff] %v3587
    %3702 = vst [vmem:[%s3686] ss:$9 sm:$0xff] %v3588
    %3703 = vst [vmem:[%s3688] ss:$9 sm:$0xff] %v3589
    %3704 = vst [vmem:[%s3690] ss:$9 sm:$0xff] %v3590
    %3705 = vst [vmem:[%s3692] ss:$9 sm:$0xff] %v3591
    %3706 = vst [vmem:[%s3694] ss:$9 sm:$0xff] %v3592
    %3707 = vst [vmem:[%s3696] ss:$9 sm:$0xff] %v3593
    %v3708 = vld [vmem:[#allocation1] sm:$0xff]
    %v3709 = vld [vmem:[#allocation1 + $0x9] sm:$0xff]
    %3710 = vst [vmem:[#allocation1] ss:$9 sm:$0xff] %v3594
    %3711 = vst [vmem:[%s3684] ss:$9 sm:$0xff] %v3595
    %3712 = vst [vmem:[%s3686] ss:$9 sm:$0xff] %v3596
    %3713 = vst [vmem:[%s3688] ss:$9 sm:$0xff] %v3597
    %3714 = vst [vmem:[%s3690] ss:$9 sm:$0xff] %v3598
    %3715 = vst [vmem:[%s3692] ss:$9 sm:$0xff] %v3599
    %3716 = vst [vmem:[%s3694] ss:$9 sm:$0xff] %v3600
    %3717 = vst [vmem:[%s3696] ss:$9 sm:$0xff] %v3601
    %v3718 = vld [vmem:[#allocation1] sm:$0xff]
    %v3719 = vld [vmem:[#allocation1 + $0x9] sm:$0xff]
    %3720 = vst [vmem:[#allocation1] ss:$9 sm:$0xff] %v3602
    %3721 = vst [vmem:[%s3684] ss:$9 sm:$0xff] %v3603
    %3722 = vst [vmem:[%s3686] ss:$9 sm:$0xff] %v3604
    %3723 = vst [vmem:[%s3688] ss:$9 sm:$0xff] %v3605
    %3724 = vst [vmem:[%s3690] ss:$9 sm:$0xff] %v3606
    %3725 = vst [vmem:[%s3692] ss:$9 sm:$0xff] %v3607
    %3726 = vst [vmem:[%s3694] ss:$9 sm:$0xff] %v3608
    %3727 = vst [vmem:[%s3696] ss:$9 sm:$0xff] %v3609
    %v3728 = vld [vmem:[#allocation1] sm:$0xff]
    %v3729 = vld [vmem:[#allocation1 + $0x9] sm:$0xff]
    %3730 = vst [vmem:[#allocation1] ss:$9 sm:$0xff] %v3610
    %3731 = vst [vmem:[%s3684] ss:$9 sm:$0xff] %v3611
    %3732 = vst [vmem:[%s3686] ss:$9 sm:$0xff] %v3612
    %3733 = vst [vmem:[%s3688] ss:$9 sm:$0xff] %v3613
    %3734 = vst [vmem:[%s3690] ss:$9 sm:$0xff] %v3614
    %3735 = vst [vmem:[%s3692] ss:$9 sm:$0xff] %v3615
    %3736 = vst [vmem:[%s3694] ss:$9 sm:$0xff] %v3616
    %3737 = vst [vmem:[%s3696] ss:$9 sm:$0xff] %v3617
    %v3738 = vld [vmem:[#allocation1] sm:$0xff]
    %v3739 = vld [vmem:[#allocation1 + $0x9] sm:$0xff]
    %v3750 = vmax.f32 %v3621, %v3698
    %v3751 = vmax.f32 %v3621, %v3699
    %v3752 = vmax.f32 %v3626, %v3708
    %v3753 = vmax.f32 %v3626, %v3709
    %v3754 = vmax.f32 %v3631, %v3718
    %v3755 = vmax.f32 %v3631, %v3719
    %v3756 = vmax.f32 %v3636, %v3728
    %v3757 = vmax.f32 %v3636, %v3729
    %v3758 = vmax.f32 %v3641, %v3738
    %v3759 = vmax.f32 %v3641, %v3739
    %v3760 = vmul.f32 %v3281, 0.5
    %v3761 = vmul.f32 %v3282, 0.5
    %v3762 = vmul.f32 %v3283, 0.5
    %v3763 = vmul.f32 %v3284, 0.5
    %v3764 = vmul.f32 %v3285, 0.5
    %v3765 = vmul.f32 %v3286, 0.5
    %v3766 = vmul.f32 %v3287, 0.5
    %v3767 = vmul.f32 %v3288, 0.5
    %v3768 = vmul.f32 %v3289, 0.5
    %v3769 = vmul.f32 %v3290, 0.5
    %v3770 = vmul.f32 %v3291, 0.5
    %v3771 = vmul.f32 %v3292, 0.5
    %v3772 = vmul.f32 %v3293, 0.5
    %v3773 = vmul.f32 %v3294, 0.5
    %v3774 = vmul.f32 %v3295, 0.5
    %v3775 = vmul.f32 %v3296, 0.5
    %v3776 = vmul.f32 %v3297, 0.5
    %v3777 = vmul.f32 %v3298, 0.5
    %v3778 = vmul.f32 %v3299, 0.5
    %v3779 = vmul.f32 %v3300, 0.5
    %v3780 = vmul.f32 %v3301, 0.5
    %v3781 = vmul.f32 %v3302, 0.5
    %v3782 = vmul.f32 %v3303, 0.5
    %v3783 = vmul.f32 %v3304, 0.5
    %v3784 = vmul.f32 %v3305, 0.5
    %v3785 = vmul.f32 %v3306, 0.5
    %v3786 = vmul.f32 %v3307, 0.5
    %v3787 = vmul.f32 %v3308, 0.5
    %v3788 = vmul.f32 %v3309, 0.5
    %v3789 = vmul.f32 %v3310, 0.5
    %v3790 = vmul.f32 %v3311, 0.5
    %v3791 = vmul.f32 %v3312, 0.5
    %v3792 = vmul.f32 %v3313, 0.5
    %v3793 = vmul.f32 %v3314, 0.5
    %v3794 = vmul.f32 %v3315, 0.5
    %v3795 = vmul.f32 %v3316, 0.5
    %v3796 = vmul.f32 %v3317, 0.5
    %v3797 = vmul.f32 %v3318, 0.5
    %v3798 = vmul.f32 %v3319, 0.5
    %v3799 = vmul.f32 %v3320, 0.5
    %v3800 = vsub.f32 %v2846, %v3760
    %v3801 = vsub.f32 %v2847, %v3761
    %v3802 = vsub.f32 %v2848, %v3762
    %v3803 = vsub.f32 %v2849, %v3763
    %v3804 = vsub.f32 %v2850, %v3764
    %v3805 = vsub.f32 %v2851, %v3765
    %v3806 = vsub.f32 %v2852, %v3766
    %v3807 = vsub.f32 %v2853, %v3767
    %v3808 = vsub.f32 %v2854, %v3768
    %v3809 = vsub.f32 %v2855, %v3769
    %v3810 = vsub.f32 %v2856, %v3770
    %v3811 = vsub.f32 %v2857, %v3771
    %v3812 = vsub.f32 %v2858, %v3772
    %v3813 = vsub.f32 %v2859, %v3773
    %v3814 = vsub.f32 %v2860, %v3774
    %v3815 = vsub.f32 %v2861, %v3775
    %v3816 = vsub.f32 %v2862, %v3776
    %v3817 = vsub.f32 %v2863, %v3777
    %v3818 = vsub.f32 %v2864, %v3778
    %v3819 = vsub.f32 %v2865, %v3779
    %v3820 = vsub.f32 %v2866, %v3780
    %v3821 = vsub.f32 %v2867, %v3781
    %v3822 = vsub.f32 %v2868, %v3782
    %v3823 = vsub.f32 %v2869, %v3783
    %v3824 = vsub.f32 %v2870, %v3784
    %v3825 = vsub.f32 %v2871, %v3785
    %v3826 = vsub.f32 %v2872, %v3786
    %v3827 = vsub.f32 %v2873, %v3787
    %v3828 = vsub.f32 %v2874, %v3788
    %v3829 = vsub.f32 %v2875, %v3789
    %v3830 = vsub.f32 %v2876, %v3790
    %v3831 = vsub.f32 %v2877, %v3791
    %v3832 = vsub.f32 %v2878, %v3792
    %v3833 = vsub.f32 %v2879, %v3793
    %v3834 = vsub.f32 %v2880, %v3794
    %v3835 = vsub.f32 %v2881, %v3795
    %v3836 = vsub.f32 %v2882, %v3796
    %v3837 = vsub.f32 %v2883, %v3797
    %v3838 = vsub.f32 %v2884, %v3798
    %v3839 = vsub.f32 %v2885, %v3799
    %3840 = vset.pattern.permute.xlu0 1
    %3841 = vperm.xlu0 %3840, %v3346
    %v3842 = vpop.permute.xlu0 %3841
    %3844 = vset.pattern.permute.xlu0 1
    %3845 = vperm.xlu0 %3844, %v3347
    %v3846 = vpop.permute.xlu0 %3845
    %3848 = vset.pattern.permute.xlu0 1
    %3849 = vperm.xlu0 %3848, %v3348
    %v3850 = vpop.permute.xlu0 %3849
    %3852 = vset.pattern.permute.xlu0 1
    %3853 = vperm.xlu0 %3852, %v3349
    %v3854 = vpop.permute.xlu0 %3853
    %3856 = vset.pattern.permute.xlu0 1
    %3857 = vperm.xlu0 %3856, %v3350
    %v3858 = vpop.permute.xlu0 %3857
    %3900 = vst [vmem:[#allocation1] ss:$9 sm:$0xff] %v3800
    %s3901 = scalar_lea.vmem [#allocation1], 1
    %3902 = vst [vmem:[%s3901] ss:$9 sm:$0xff] %v3801
    %s3903 = scalar_lea.vmem [#allocation1], 2
    %3904 = vst [vmem:[%s3903] ss:$9 sm:$0xff] %v3802
    %s3905 = scalar_lea.vmem [#allocation1], 3
    %3906 = vst [vmem:[%s3905] ss:$9 sm:$0xff] %v3803
    %s3907 = scalar_lea.vmem [#allocation1], 4
    %3908 = vst [vmem:[%s3907] ss:$9 sm:$0xff] %v3804
    %s3909 = scalar_lea.vmem [#allocation1], 5
    %3910 = vst [vmem:[%s3909] ss:$9 sm:$0xff] %v3805
    %s3911 = scalar_lea.vmem [#allocation1], 6
    %3912 = vst [vmem:[%s3911] ss:$9 sm:$0xff] %v3806
    %s3913 = scalar_lea.vmem [#allocation1], 7
    %3914 = vst [vmem:[%s3913] ss:$9 sm:$0xff] %v3807
    %v3915 = vld [vmem:[#allocation1] sm:$0xff]
    %v3916 = vld [vmem:[#allocation1 + $0x9] sm:$0xff]
    %3917 = vst [vmem:[#allocation1] ss:$9 sm:$0xff] %v3808
    %3918 = vst [vmem:[%s3901] ss:$9 sm:$0xff] %v3809
    %3919 = vst [vmem:[%s3903] ss:$9 sm:$0xff] %v3810
    %3920 = vst [vmem:[%s3905] ss:$9 sm:$0xff] %v3811
    %3921 = vst [vmem:[%s3907] ss:$9 sm:$0xff] %v3812
    %3922 = vst [vmem:[%s3909] ss:$9 sm:$0xff] %v3813
    %3923 = vst [vmem:[%s3911] ss:$9 sm:$0xff] %v3814
    %3924 = vst [vmem:[%s3913] ss:$9 sm:$0xff] %v3815
    %v3925 = vld [vmem:[#allocation1] sm:$0xff]
    %v3926 = vld [vmem:[#allocation1 + $0x9] sm:$0xff]
    %3927 = vst [vmem:[#allocation1] ss:$9 sm:$0xff] %v3816
    %3928 = vst [vmem:[%s3901] ss:$9 sm:$0xff] %v3817
    %3929 = vst [vmem:[%s3903] ss:$9 sm:$0xff] %v3818
    %3930 = vst [vmem:[%s3905] ss:$9 sm:$0xff] %v3819
    %3931 = vst [vmem:[%s3907] ss:$9 sm:$0xff] %v3820
    %3932 = vst [vmem:[%s3909] ss:$9 sm:$0xff] %v3821
    %3933 = vst [vmem:[%s3911] ss:$9 sm:$0xff] %v3822
    %3934 = vst [vmem:[%s3913] ss:$9 sm:$0xff] %v3823
    %v3935 = vld [vmem:[#allocation1] sm:$0xff]
    %v3936 = vld [vmem:[#allocation1 + $0x9] sm:$0xff]
    %3937 = vst [vmem:[#allocation1] ss:$9 sm:$0xff] %v3824
    %3938 = vst [vmem:[%s3901] ss:$9 sm:$0xff] %v3825
    %3939 = vst [vmem:[%s3903] ss:$9 sm:$0xff] %v3826
    %3940 = vst [vmem:[%s3905] ss:$9 sm:$0xff] %v3827
    %3941 = vst [vmem:[%s3907] ss:$9 sm:$0xff] %v3828
    %3942 = vst [vmem:[%s3909] ss:$9 sm:$0xff] %v3829
    %3943 = vst [vmem:[%s3911] ss:$9 sm:$0xff] %v3830
    %3944 = vst [vmem:[%s3913] ss:$9 sm:$0xff] %v3831
    %v3945 = vld [vmem:[#allocation1] sm:$0xff]
    %v3946 = vld [vmem:[#allocation1 + $0x9] sm:$0xff]
    %3947 = vst [vmem:[#allocation1] ss:$9 sm:$0xff] %v3832
    %3948 = vst [vmem:[%s3901] ss:$9 sm:$0xff] %v3833
    %3949 = vst [vmem:[%s3903] ss:$9 sm:$0xff] %v3834
    %3950 = vst [vmem:[%s3905] ss:$9 sm:$0xff] %v3835
    %3951 = vst [vmem:[%s3907] ss:$9 sm:$0xff] %v3836
    %3952 = vst [vmem:[%s3909] ss:$9 sm:$0xff] %v3837
    %3953 = vst [vmem:[%s3911] ss:$9 sm:$0xff] %v3838
    %3954 = vst [vmem:[%s3913] ss:$9 sm:$0xff] %v3839
    %v3955 = vld [vmem:[#allocation1] sm:$0xff]
    %v3956 = vld [vmem:[#allocation1 + $0x9] sm:$0xff]
    %v3967 = vmin.f32 %v3842, %v3915
    %v3968 = vmin.f32 %v3842, %v3916
    %v3969 = vmin.f32 %v3846, %v3925
    %v3970 = vmin.f32 %v3846, %v3926
    %v3971 = vmin.f32 %v3850, %v3935
    %v3972 = vmin.f32 %v3850, %v3936
    %v3973 = vmin.f32 %v3854, %v3945
    %v3974 = vmin.f32 %v3854, %v3946
    %v3975 = vmin.f32 %v3858, %v3955
    %v3976 = vmin.f32 %v3858, %v3956
    %v3977 = vadd.f32 %v2846, %v3760
    %v3978 = vadd.f32 %v2847, %v3761
    %v3979 = vadd.f32 %v2848, %v3762
    %v3980 = vadd.f32 %v2849, %v3763
    %v3981 = vadd.f32 %v2850, %v3764
    %v3982 = vadd.f32 %v2851, %v3765
    %v3983 = vadd.f32 %v2852, %v3766
    %v3984 = vadd.f32 %v2853, %v3767
    %v3985 = vadd.f32 %v2854, %v3768
    %v3986 = vadd.f32 %v2855, %v3769
    %v3987 = vadd.f32 %v2856, %v3770
    %v3988 = vadd.f32 %v2857, %v3771
    %v3989 = vadd.f32 %v2858, %v3772
    %v3990 = vadd.f32 %v2859, %v3773
    %v3991 = vadd.f32 %v2860, %v3774
    %v3992 = vadd.f32 %v2861, %v3775
    %v3993 = vadd.f32 %v2862, %v3776
    %v3994 = vadd.f32 %v2863, %v3777
    %v3995 = vadd.f32 %v2864, %v3778
    %v3996 = vadd.f32 %v2865, %v3779
    %v3997 = vadd.f32 %v2866, %v3780
    %v3998 = vadd.f32 %v2867, %v3781
    %v3999 = vadd.f32 %v2868, %v3782
    %v4000 = vadd.f32 %v2869, %v3783
    %v4001 = vadd.f32 %v2870, %v3784
    %v4002 = vadd.f32 %v2871, %v3785
    %v4003 = vadd.f32 %v2872, %v3786
    %v4004 = vadd.f32 %v2873, %v3787
    %v4005 = vadd.f32 %v2874, %v3788
    %v4006 = vadd.f32 %v2875, %v3789
    %v4007 = vadd.f32 %v2876, %v3790
    %v4008 = vadd.f32 %v2877, %v3791
    %v4009 = vadd.f32 %v2878, %v3792
    %v4010 = vadd.f32 %v2879, %v3793
    %v4011 = vadd.f32 %v2880, %v3794
    %v4012 = vadd.f32 %v2881, %v3795
    %v4013 = vadd.f32 %v2882, %v3796
    %v4014 = vadd.f32 %v2883, %v3797
    %v4015 = vadd.f32 %v2884, %v3798
    %v4016 = vadd.f32 %v2885, %v3799
    %4017 = vset.pattern.permute.xlu0 1
    %4018 = vperm.xlu0 %4017, %v3573
    %v4019 = vpop.permute.xlu0 %4018
    %4021 = vset.pattern.permute.xlu0 1
    %4022 = vperm.xlu0 %4021, %v3574
    %v4023 = vpop.permute.xlu0 %4022
    %4025 = vset.pattern.permute.xlu0 1
    %4026 = vperm.xlu0 %4025, %v3575
    %v4027 = vpop.permute.xlu0 %4026
    %4029 = vset.pattern.permute.xlu0 1
    %4030 = vperm.xlu0 %4029, %v3576
    %v4031 = vpop.permute.xlu0 %4030
    %4033 = vset.pattern.permute.xlu0 1
    %4034 = vperm.xlu0 %4033, %v3577
    %v4035 = vpop.permute.xlu0 %4034
    %4077 = vst [vmem:[#allocation1] ss:$9 sm:$0xff] %v3977
    %s4078 = scalar_lea.vmem [#allocation1], 1
    %4079 = vst [vmem:[%s4078] ss:$9 sm:$0xff] %v3978
    %s4080 = scalar_lea.vmem [#allocation1], 2
    %4081 = vst [vmem:[%s4080] ss:$9 sm:$0xff] %v3979
    %s4082 = scalar_lea.vmem [#allocation1], 3
    %4083 = vst [vmem:[%s4082] ss:$9 sm:$0xff] %v3980
    %s4084 = scalar_lea.vmem [#allocation1], 4
    %4085 = vst [vmem:[%s4084] ss:$9 sm:$0xff] %v3981
    %s4086 = scalar_lea.vmem [#allocation1], 5
    %4087 = vst [vmem:[%s4086] ss:$9 sm:$0xff] %v3982
    %s4088 = scalar_lea.vmem [#allocation1], 6
    %4089 = vst [vmem:[%s4088] ss:$9 sm:$0xff] %v3983
    %s4090 = scalar_lea.vmem [#allocation1], 7
    %4091 = vst [vmem:[%s4090] ss:$9 sm:$0xff] %v3984
    %v4092 = vld [vmem:[#allocation1] sm:$0xff]
    %v4093 = vld [vmem:[#allocation1 + $0x9] sm:$0xff]
    %4094 = vst [vmem:[#allocation1] ss:$9 sm:$0xff] %v3985
    %4095 = vst [vmem:[%s4078] ss:$9 sm:$0xff] %v3986
    %4096 = vst [vmem:[%s4080] ss:$9 sm:$0xff] %v3987
    %4097 = vst [vmem:[%s4082] ss:$9 sm:$0xff] %v3988
    %4098 = vst [vmem:[%s4084] ss:$9 sm:$0xff] %v3989
    %4099 = vst [vmem:[%s4086] ss:$9 sm:$0xff] %v3990
    %4100 = vst [vmem:[%s4088] ss:$9 sm:$0xff] %v3991
    %4101 = vst [vmem:[%s4090] ss:$9 sm:$0xff] %v3992
    %v4102 = vld [vmem:[#allocation1] sm:$0xff]
    %v4103 = vld [vmem:[#allocation1 + $0x9] sm:$0xff]
    %4104 = vst [vmem:[#allocation1] ss:$9 sm:$0xff] %v3993
    %4105 = vst [vmem:[%s4078] ss:$9 sm:$0xff] %v3994
    %4106 = vst [vmem:[%s4080] ss:$9 sm:$0xff] %v3995
    %4107 = vst [vmem:[%s4082] ss:$9 sm:$0xff] %v3996
    %4108 = vst [vmem:[%s4084] ss:$9 sm:$0xff] %v3997
    %4109 = vst [vmem:[%s4086] ss:$9 sm:$0xff] %v3998
    %4110 = vst [vmem:[%s4088] ss:$9 sm:$0xff] %v3999
    %4111 = vst [vmem:[%s4090] ss:$9 sm:$0xff] %v4000
    %v4112 = vld [vmem:[#allocation1] sm:$0xff]
    %v4113 = vld [vmem:[#allocation1 + $0x9] sm:$0xff]
    %4114 = vst [vmem:[#allocation1] ss:$9 sm:$0xff] %v4001
    %4115 = vst [vmem:[%s4078] ss:$9 sm:$0xff] %v4002
    %4116 = vst [vmem:[%s4080] ss:$9 sm:$0xff] %v4003
    %4117 = vst [vmem:[%s4082] ss:$9 sm:$0xff] %v4004
    %4118 = vst [vmem:[%s4084] ss:$9 sm:$0xff] %v4005
    %4119 = vst [vmem:[%s4086] ss:$9 sm:$0xff] %v4006
    %4120 = vst [vmem:[%s4088] ss:$9 sm:$0xff] %v4007
    %4121 = vst [vmem:[%s4090] ss:$9 sm:$0xff] %v4008
    %v4122 = vld [vmem:[#allocation1] sm:$0xff]
    %v4123 = vld [vmem:[#allocation1 + $0x9] sm:$0xff]
    %4124 = vst [vmem:[#allocation1] ss:$9 sm:$0xff] %v4009
    %4125 = vst [vmem:[%s4078] ss:$9 sm:$0xff] %v4010
    %4126 = vst [vmem:[%s4080] ss:$9 sm:$0xff] %v4011
    %4127 = vst [vmem:[%s4082] ss:$9 sm:$0xff] %v4012
    %4128 = vst [vmem:[%s4084] ss:$9 sm:$0xff] %v4013
    %4129 = vst [vmem:[%s4086] ss:$9 sm:$0xff] %v4014
    %4130 = vst [vmem:[%s4088] ss:$9 sm:$0xff] %v4015
    %4131 = vst [vmem:[%s4090] ss:$9 sm:$0xff] %v4016
    %v4132 = vld [vmem:[#allocation1] sm:$0xff]
    %v4133 = vld [vmem:[#allocation1 + $0x9] sm:$0xff]
    %v4144 = vmax.f32 %v4019, %v4092
    %v4145 = vmax.f32 %v4019, %v4093
    %v4146 = vmax.f32 %v4023, %v4102
    %v4147 = vmax.f32 %v4023, %v4103
    %v4148 = vmax.f32 %v4027, %v4112
    %v4149 = vmax.f32 %v4027, %v4113
    %v4150 = vmax.f32 %v4031, %v4122
    %v4151 = vmax.f32 %v4031, %v4123
    %v4152 = vmax.f32 %v4035, %v4132
    %v4153 = vmax.f32 %v4035, %v4133
    %v4154 = vsub.f32 %v3750, %v3563
    %v4155 = vsub.f32 %v3751, %v3564
    %v4156 = vsub.f32 %v3752, %v3565
    %v4157 = vsub.f32 %v3753, %v3566
    %v4158 = vsub.f32 %v3754, %v3567
    %v4159 = vsub.f32 %v3755, %v3568
    %v4160 = vsub.f32 %v3756, %v3569
    %v4161 = vsub.f32 %v3757, %v3570
    %v4162 = vsub.f32 %v3758, %v3571
    %v4163 = vsub.f32 %v3759, %v3572
    %v4164 = vsub.f32 %v4144, %v3967
    %v4165 = vsub.f32 %v4145, %v3968
    %v4166 = vsub.f32 %v4146, %v3969
    %v4167 = vsub.f32 %v4147, %v3970
    %v4168 = vsub.f32 %v4148, %v3971
    %v4169 = vsub.f32 %v4149, %v3972
    %v4170 = vsub.f32 %v4150, %v3973
    %v4171 = vsub.f32 %v4151, %v3974
    %v4172 = vsub.f32 %v4152, %v3975
    %v4173 = vsub.f32 %v4153, %v3976
    %4174 = vset.pattern.permute.xlu0 2
    %4175 = vperm.xlu0 %4174, %v12
    %v4176 = vpop.permute.xlu0 %4175
    %4178 = vset.pattern.permute.xlu0 2
    %4179 = vperm.xlu0 %4178, %v13
    %v4180 = vpop.permute.xlu0 %4179
    %4182 = vset.pattern.permute.xlu0 2
    %4183 = vperm.xlu0 %4182, %v14
    %v4184 = vpop.permute.xlu0 %4183
    %4186 = vset.pattern.permute.xlu0 2
    %4187 = vperm.xlu0 %4186, %v15
    %v4188 = vpop.permute.xlu0 %4187
    %4190 = vset.pattern.permute.xlu0 2
    %4191 = vperm.xlu0 %4190, %v16
    %v4192 = vpop.permute.xlu0 %4191
    %4234 = vst [vmem:[#allocation1] ss:$9 sm:$0xff] %v3066
    %s4235 = scalar_lea.vmem [#allocation1], 1
    %4236 = vst [vmem:[%s4235] ss:$9 sm:$0xff] %v3067
    %s4237 = scalar_lea.vmem [#allocation1], 2
    %4238 = vst [vmem:[%s4237] ss:$9 sm:$0xff] %v3068
    %s4239 = scalar_lea.vmem [#allocation1], 3
    %4240 = vst [vmem:[%s4239] ss:$9 sm:$0xff] %v3069
    %s4241 = scalar_lea.vmem [#allocation1], 4
    %4242 = vst [vmem:[%s4241] ss:$9 sm:$0xff] %v3070
    %s4243 = scalar_lea.vmem [#allocation1], 5
    %4244 = vst [vmem:[%s4243] ss:$9 sm:$0xff] %v3071
    %s4245 = scalar_lea.vmem [#allocation1], 6
    %4246 = vst [vmem:[%s4245] ss:$9 sm:$0xff] %v3072
    %s4247 = scalar_lea.vmem [#allocation1], 7
    %4248 = vst [vmem:[%s4247] ss:$9 sm:$0xff] %v3073
    %v4249 = vld [vmem:[#allocation1] sm:$0xff]
    %v4250 = vld [vmem:[#allocation1 + $0x9] sm:$0xff]
    %4251 = vst [vmem:[#allocation1] ss:$9 sm:$0xff] %v3074
    %4252 = vst [vmem:[%s4235] ss:$9 sm:$0xff] %v3075
    %4253 = vst [vmem:[%s4237] ss:$9 sm:$0xff] %v3076
    %4254 = vst [vmem:[%s4239] ss:$9 sm:$0xff] %v3077
    %4255 = vst [vmem:[%s4241] ss:$9 sm:$0xff] %v3078
    %4256 = vst [vmem:[%s4243] ss:$9 sm:$0xff] %v3079
    %4257 = vst [vmem:[%s4245] ss:$9 sm:$0xff] %v3080
    %4258 = vst [vmem:[%s4247] ss:$9 sm:$0xff] %v3081
    %v4259 = vld [vmem:[#allocation1] sm:$0xff]
    %v4260 = vld [vmem:[#allocation1 + $0x9] sm:$0xff]
    %4261 = vst [vmem:[#allocation1] ss:$9 sm:$0xff] %v3082
    %4262 = vst [vmem:[%s4235] ss:$9 sm:$0xff] %v3083
    %4263 = vst [vmem:[%s4237] ss:$9 sm:$0xff] %v3084
    %4264 = vst [vmem:[%s4239] ss:$9 sm:$0xff] %v3085
    %4265 = vst [vmem:[%s4241] ss:$9 sm:$0xff] %v3086
    %4266 = vst [vmem:[%s4243] ss:$9 sm:$0xff] %v3087
    %4267 = vst [vmem:[%s4245] ss:$9 sm:$0xff] %v3088
    %4268 = vst [vmem:[%s4247] ss:$9 sm:$0xff] %v3089
    %v4269 = vld [vmem:[#allocation1] sm:$0xff]
    %v4270 = vld [vmem:[#allocation1 + $0x9] sm:$0xff]
    %4271 = vst [vmem:[#allocation1] ss:$9 sm:$0xff] %v3090
    %4272 = vst [vmem:[%s4235] ss:$9 sm:$0xff] %v3091
    %4273 = vst [vmem:[%s4237] ss:$9 sm:$0xff] %v3092
    %4274 = vst [vmem:[%s4239] ss:$9 sm:$0xff] %v3093
    %4275 = vst [vmem:[%s4241] ss:$9 sm:$0xff] %v3094
    %4276 = vst [vmem:[%s4243] ss:$9 sm:$0xff] %v3095
    %4277 = vst [vmem:[%s4245] ss:$9 sm:$0xff] %v3096
    %4278 = vst [vmem:[%s4247] ss:$9 sm:$0xff] %v3097
    %v4279 = vld [vmem:[#allocation1] sm:$0xff]
    %v4280 = vld [vmem:[#allocation1 + $0x9] sm:$0xff]
    %4281 = vst [vmem:[#allocation1] ss:$9 sm:$0xff] %v3098
    %4282 = vst [vmem:[%s4235] ss:$9 sm:$0xff] %v3099
    %4283 = vst [vmem:[%s4237] ss:$9 sm:$0xff] %v3100
    %4284 = vst [vmem:[%s4239] ss:$9 sm:$0xff] %v3101
    %4285 = vst [vmem:[%s4241] ss:$9 sm:$0xff] %v3102
    %4286 = vst [vmem:[%s4243] ss:$9 sm:$0xff] %v3103
    %4287 = vst [vmem:[%s4245] ss:$9 sm:$0xff] %v3104
    %4288 = vst [vmem:[%s4247] ss:$9 sm:$0xff] %v3105
    %v4289 = vld [vmem:[#allocation1] sm:$0xff]
    %v4290 = vld [vmem:[#allocation1 + $0x9] sm:$0xff]
    %v4301 = vadd.f32 %v4176, %v4249
    %v4302 = vadd.f32 %v4176, %v4250
    %v4303 = vadd.f32 %v4180, %v4259
    %v4304 = vadd.f32 %v4180, %v4260
    %v4305 = vadd.f32 %v4184, %v4269
    %v4306 = vadd.f32 %v4184, %v4270
    %v4307 = vadd.f32 %v4188, %v4279
    %v4308 = vadd.f32 %v4188, %v4280
    %v4309 = vadd.f32 %v4192, %v4289
    %v4310 = vadd.f32 %v4192, %v4290
    %v4311 = vsub.f32 %v4301, %v4154
    %v4312 = vsub.f32 %v4302, %v4155
    %v4313 = vsub.f32 %v4303, %v4156
    %v4314 = vsub.f32 %v4304, %v4157
    %v4315 = vsub.f32 %v4305, %v4158
    %v4316 = vsub.f32 %v4306, %v4159
    %v4317 = vsub.f32 %v4307, %v4160
    %v4318 = vsub.f32 %v4308, %v4161
    %v4319 = vsub.f32 %v4309, %v4162
    %v4320 = vsub.f32 %v4310, %v4163
    %4321 = vset.pattern.permute.xlu0 3
    %4322 = vperm.xlu0 %4321, %v12
    %v4323 = vpop.permute.xlu0 %4322
    %4325 = vset.pattern.permute.xlu0 3
    %4326 = vperm.xlu0 %4325, %v13
    %v4327 = vpop.permute.xlu0 %4326
    %4329 = vset.pattern.permute.xlu0 3
    %4330 = vperm.xlu0 %4329, %v14
    %v4331 = vpop.permute.xlu0 %4330
    %4333 = vset.pattern.permute.xlu0 3
    %4334 = vperm.xlu0 %4333, %v15
    %v4335 = vpop.permute.xlu0 %4334
    %4337 = vset.pattern.permute.xlu0 3
    %4338 = vperm.xlu0 %4337, %v16
    %v4339 = vpop.permute.xlu0 %4338
    %4381 = vst [vmem:[#allocation1] ss:$9 sm:$0xff] %v3281
    %s4382 = scalar_lea.vmem [#allocation1], 1
    %4383 = vst [vmem:[%s4382] ss:$9 sm:$0xff] %v3282
    %s4384 = scalar_lea.vmem [#allocation1], 2
    %4385 = vst [vmem:[%s4384] ss:$9 sm:$0xff] %v3283
    %s4386 = scalar_lea.vmem [#allocation1], 3
    %4387 = vst [vmem:[%s4386] ss:$9 sm:$0xff] %v3284
    %s4388 = scalar_lea.vmem [#allocation1], 4
    %4389 = vst [vmem:[%s4388] ss:$9 sm:$0xff] %v3285
    %s4390 = scalar_lea.vmem [#allocation1], 5
    %4391 = vst [vmem:[%s4390] ss:$9 sm:$0xff] %v3286
    %s4392 = scalar_lea.vmem [#allocation1], 6
    %4393 = vst [vmem:[%s4392] ss:$9 sm:$0xff] %v3287
    %s4394 = scalar_lea.vmem [#allocation1], 7
    %4395 = vst [vmem:[%s4394] ss:$9 sm:$0xff] %v3288
    %v4396 = vld [vmem:[#allocation1] sm:$0xff]
    %v4397 = vld [vmem:[#allocation1 + $0x9] sm:$0xff]
    %4398 = vst [vmem:[#allocation1] ss:$9 sm:$0xff] %v3289
    %4399 = vst [vmem:[%s4382] ss:$9 sm:$0xff] %v3290
    %4400 = vst [vmem:[%s4384] ss:$9 sm:$0xff] %v3291
    %4401 = vst [vmem:[%s4386] ss:$9 sm:$0xff] %v3292
    %4402 = vst [vmem:[%s4388] ss:$9 sm:$0xff] %v3293
    %4403 = vst [vmem:[%s4390] ss:$9 sm:$0xff] %v3294
    %4404 = vst [vmem:[%s4392] ss:$9 sm:$0xff] %v3295
    %4405 = vst [vmem:[%s4394] ss:$9 sm:$0xff] %v3296
    %v4406 = vld [vmem:[#allocation1] sm:$0xff]
    %v4407 = vld [vmem:[#allocation1 + $0x9] sm:$0xff]
    %4408 = vst [vmem:[#allocation1] ss:$9 sm:$0xff] %v3297
    %4409 = vst [vmem:[%s4382] ss:$9 sm:$0xff] %v3298
    %4410 = vst [vmem:[%s4384] ss:$9 sm:$0xff] %v3299
    %4411 = vst [vmem:[%s4386] ss:$9 sm:$0xff] %v3300
    %4412 = vst [vmem:[%s4388] ss:$9 sm:$0xff] %v3301
    %4413 = vst [vmem:[%s4390] ss:$9 sm:$0xff] %v3302
    %4414 = vst [vmem:[%s4392] ss:$9 sm:$0xff] %v3303
    %4415 = vst [vmem:[%s4394] ss:$9 sm:$0xff] %v3304
    %v4416 = vld [vmem:[#allocation1] sm:$0xff]
    %v4417 = vld [vmem:[#allocation1 + $0x9] sm:$0xff]
    %4418 = vst [vmem:[#allocation1] ss:$9 sm:$0xff] %v3305
    %4419 = vst [vmem:[%s4382] ss:$9 sm:$0xff] %v3306
    %4420 = vst [vmem:[%s4384] ss:$9 sm:$0xff] %v3307
    %4421 = vst [vmem:[%s4386] ss:$9 sm:$0xff] %v3308
    %4422 = vst [vmem:[%s4388] ss:$9 sm:$0xff] %v3309
    %4423 = vst [vmem:[%s4390] ss:$9 sm:$0xff] %v3310
    %4424 = vst [vmem:[%s4392] ss:$9 sm:$0xff] %v3311
    %4425 = vst [vmem:[%s4394] ss:$9 sm:$0xff] %v3312
    %v4426 = vld [vmem:[#allocation1] sm:$0xff]
    %v4427 = vld [vmem:[#allocation1 + $0x9] sm:$0xff]
    %4428 = vst [vmem:[#allocation1] ss:$9 sm:$0xff] %v3313
    %4429 = vst [vmem:[%s4382] ss:$9 sm:$0xff] %v3314
    %4430 = vst [vmem:[%s4384] ss:$9 sm:$0xff] %v3315
    %4431 = vst [vmem:[%s4386] ss:$9 sm:$0xff] %v3316
    %4432 = vst [vmem:[%s4388] ss:$9 sm:$0xff] %v3317
    %4433 = vst [vmem:[%s4390] ss:$9 sm:$0xff] %v3318
    %4434 = vst [vmem:[%s4392] ss:$9 sm:$0xff] %v3319
    %4435 = vst [vmem:[%s4394] ss:$9 sm:$0xff] %v3320
    %v4436 = vld [vmem:[#allocation1] sm:$0xff]
    %v4437 = vld [vmem:[#allocation1 + $0x9] sm:$0xff]
    %v4448 = vadd.f32 %v4323, %v4396
    %v4449 = vadd.f32 %v4323, %v4397
    %v4450 = vadd.f32 %v4327, %v4406
    %v4451 = vadd.f32 %v4327, %v4407
    %v4452 = vadd.f32 %v4331, %v4416
    %v4453 = vadd.f32 %v4331, %v4417
    %v4454 = vadd.f32 %v4335, %v4426
    %v4455 = vadd.f32 %v4335, %v4427
    %v4456 = vadd.f32 %v4339, %v4436
    %v4457 = vadd.f32 %v4339, %v4437
    %v4458 = vsub.f32 %v4448, %v4164
    %v4459 = vsub.f32 %v4449, %v4165
    %v4460 = vsub.f32 %v4450, %v4166
    %v4461 = vsub.f32 %v4451, %v4167
    %v4462 = vsub.f32 %v4452, %v4168
    %v4463 = vsub.f32 %v4453, %v4169
    %v4464 = vsub.f32 %v4454, %v4170
    %v4465 = vsub.f32 %v4455, %v4171
    %v4466 = vsub.f32 %v4456, %v4172
    %v4467 = vsub.f32 %v4457, %v4173
    %vm4468 = vcmp.le.f32.partialorder %v4311, 0.0
    %vm4469 = vcmp.le.f32.partialorder %v4312, 0.0
    %vm4470 = vcmp.le.f32.partialorder %v4313, 0.0
    %vm4471 = vcmp.le.f32.partialorder %v4314, 0.0
    %vm4472 = vcmp.le.f32.partialorder %v4315, 0.0
    %vm4473 = vcmp.le.f32.partialorder %v4316, 0.0
    %vm4474 = vcmp.le.f32.partialorder %v4317, 0.0
    %vm4475 = vcmp.le.f32.partialorder %v4318, 0.0
    %vm4476 = vcmp.le.f32.partialorder %v4319, 0.0
    %vm4477 = vcmp.le.f32.partialorder %v4320, 0.0
    %vm4478 = vcmp.le.f32.partialorder %v4458, 0.0
    %vm4479 = vcmp.le.f32.partialorder %v4459, 0.0
    %vm4480 = vcmp.le.f32.partialorder %v4460, 0.0
    %vm4481 = vcmp.le.f32.partialorder %v4461, 0.0
    %vm4482 = vcmp.le.f32.partialorder %v4462, 0.0
    %vm4483 = vcmp.le.f32.partialorder %v4463, 0.0
    %vm4484 = vcmp.le.f32.partialorder %v4464, 0.0
    %vm4485 = vcmp.le.f32.partialorder %v4465, 0.0
    %vm4486 = vcmp.le.f32.partialorder %v4466, 0.0
    %vm4487 = vcmp.le.f32.partialorder %v4467, 0.0
    %vm4488 = vmor %vm4468, %vm4478
    %vm4489 = vmor %vm4469, %vm4479
    %vm4490 = vmor %vm4470, %vm4480
    %vm4491 = vmor %vm4471, %vm4481
    %vm4492 = vmor %vm4472, %vm4482
    %vm4493 = vmor %vm4473, %vm4483
    %vm4494 = vmor %vm4474, %vm4484
    %vm4495 = vmor %vm4475, %vm4485
    %vm4496 = vmor %vm4476, %vm4486
    %vm4497 = vmor %vm4477, %vm4487
    %v4498 = vmul.f32 %v4311, %v4458
    %v4499 = vmul.f32 %v4312, %v4459
    %v4500 = vmul.f32 %v4313, %v4460
    %v4501 = vmul.f32 %v4314, %v4461
    %v4502 = vmul.f32 %v4315, %v4462
    %v4503 = vmul.f32 %v4316, %v4463
    %v4504 = vmul.f32 %v4317, %v4464
    %v4505 = vmul.f32 %v4318, %v4465
    %v4506 = vmul.f32 %v4319, %v4466
    %v4507 = vmul.f32 %v4320, %v4467
    %v4508 = vsel %vm4488, 0.0, %v4498
    %v4509 = vsel %vm4489, 0.0, %v4499
    %v4510 = vsel %vm4490, 0.0, %v4500
    %v4511 = vsel %vm4491, 0.0, %v4501
    %v4512 = vsel %vm4492, 0.0, %v4502
    %v4513 = vsel %vm4493, 0.0, %v4503
    %v4514 = vsel %vm4494, 0.0, %v4504
    %v4515 = vsel %vm4495, 0.0, %v4505
    %v4516 = vsel %vm4496, 0.0, %v4506
    %v4517 = vsel %vm4497, 0.0, %v4507
    %4518 = vrot.lane.b32.xlu0 %v12, 127
    %v4519 = vpop.permute.xlu0 %4518
    %4520 = vrot.lane.b32.xlu0 %v13, 127
    %v4521 = vpop.permute.xlu0 %4520
    %4522 = vrot.lane.b32.xlu0 %v14, 127
    %v4523 = vpop.permute.xlu0 %4522
    %4524 = vrot.lane.b32.xlu0 %v15, 127
    %v4525 = vpop.permute.xlu0 %4524
    %4526 = vrot.lane.b32.xlu0 %v16, 127
    %v4527 = vpop.permute.xlu0 %4526
    %v4533 = vmul.f32 %v12, %v4519
    %v4534 = vmul.f32 %v13, %v4521
    %v4535 = vmul.f32 %v14, %v4523
    %v4536 = vmul.f32 %v15, %v4525
    %v4537 = vmul.f32 %v16, %v4527
    %v4538 = vmul.f32 %v3066, %v3281
    %v4539 = vmul.f32 %v3067, %v3282
    %v4540 = vmul.f32 %v3068, %v3283
    %v4541 = vmul.f32 %v3069, %v3284
    %v4542 = vmul.f32 %v3070, %v3285
    %v4543 = vmul.f32 %v3071, %v3286
    %v4544 = vmul.f32 %v3072, %v3287
    %v4545 = vmul.f32 %v3073, %v3288
    %v4546 = vmul.f32 %v3074, %v3289
    %v4547 = vmul.f32 %v3075, %v3290
    %v4548 = vmul.f32 %v3076, %v3291
    %v4549 = vmul.f32 %v3077, %v3292
    %v4550 = vmul.f32 %v3078, %v3293
    %v4551 = vmul.f32 %v3079, %v3294
    %v4552 = vmul.f32 %v3080, %v3295
    %v4553 = vmul.f32 %v3081, %v3296
    %v4554 = vmul.f32 %v3082, %v3297
    %v4555 = vmul.f32 %v3083, %v3298
    %v4556 = vmul.f32 %v3084, %v3299
    %v4557 = vmul.f32 %v3085, %v3300
    %v4558 = vmul.f32 %v3086, %v3301
    %v4559 = vmul.f32 %v3087, %v3302
    %v4560 = vmul.f32 %v3088, %v3303
    %v4561 = vmul.f32 %v3089, %v3304
    %v4562 = vmul.f32 %v3090, %v3305
    %v4563 = vmul.f32 %v3091, %v3306
    %v4564 = vmul.f32 %v3092, %v3307
    %v4565 = vmul.f32 %v3093, %v3308
    %v4566 = vmul.f32 %v3094, %v3309
    %v4567 = vmul.f32 %v3095, %v3310
    %v4568 = vmul.f32 %v3096, %v3311
    %v4569 = vmul.f32 %v3097, %v3312
    %v4570 = vmul.f32 %v3098, %v3313
    %v4571 = vmul.f32 %v3099, %v3314
    %v4572 = vmul.f32 %v3100, %v3315
    %v4573 = vmul.f32 %v3101, %v3316
    %v4574 = vmul.f32 %v3102, %v3317
    %v4575 = vmul.f32 %v3103, %v3318
    %v4576 = vmul.f32 %v3104, %v3319
    %v4577 = vmul.f32 %v3105, %v3320
    %4579 = vset.pattern.permute.xlu0 2
    %4580 = vperm.xlu0 %4579, %v4533
    %v4581 = vpop.permute.xlu0 %4580
    %4584 = vset.pattern.permute.xlu0 2
    %4585 = vperm.xlu0 %4584, %v4534
    %v4586 = vpop.permute.xlu0 %4585
    %4589 = vset.pattern.permute.xlu0 2
    %4590 = vperm.xlu0 %4589, %v4535
    %v4591 = vpop.permute.xlu0 %4590
    %4594 = vset.pattern.permute.xlu0 2
    %4595 = vperm.xlu0 %4594, %v4536
    %v4596 = vpop.permute.xlu0 %4595
    %4599 = vset.pattern.permute.xlu0 2
    %4600 = vperm.xlu0 %4599, %v4537
    %v4601 = vpop.permute.xlu0 %4600
    %4643 = vst [vmem:[#allocation1] ss:$9 sm:$0xff] %v4538
    %s4644 = scalar_lea.vmem [#allocation1], 1
    %4645 = vst [vmem:[%s4644] ss:$9 sm:$0xff] %v4539
    %s4646 = scalar_lea.vmem [#allocation1], 2
    %4647 = vst [vmem:[%s4646] ss:$9 sm:$0xff] %v4540
    %s4648 = scalar_lea.vmem [#allocation1], 3
    %4649 = vst [vmem:[%s4648] ss:$9 sm:$0xff] %v4541
    %s4650 = scalar_lea.vmem [#allocation1], 4
    %4651 = vst [vmem:[%s4650] ss:$9 sm:$0xff] %v4542
    %s4652 = scalar_lea.vmem [#allocation1], 5
    %4653 = vst [vmem:[%s4652] ss:$9 sm:$0xff] %v4543
    %s4654 = scalar_lea.vmem [#allocation1], 6
    %4655 = vst [vmem:[%s4654] ss:$9 sm:$0xff] %v4544
    %s4656 = scalar_lea.vmem [#allocation1], 7
    %4657 = vst [vmem:[%s4656] ss:$9 sm:$0xff] %v4545
    %v4658 = vld [vmem:[#allocation1] sm:$0xff]
    %v4659 = vld [vmem:[#allocation1 + $0x9] sm:$0xff]
    %4660 = vst [vmem:[#allocation1] ss:$9 sm:$0xff] %v4546
    %4661 = vst [vmem:[%s4644] ss:$9 sm:$0xff] %v4547
    %4662 = vst [vmem:[%s4646] ss:$9 sm:$0xff] %v4548
    %4663 = vst [vmem:[%s4648] ss:$9 sm:$0xff] %v4549
    %4664 = vst [vmem:[%s4650] ss:$9 sm:$0xff] %v4550
    %4665 = vst [vmem:[%s4652] ss:$9 sm:$0xff] %v4551
    %4666 = vst [vmem:[%s4654] ss:$9 sm:$0xff] %v4552
    %4667 = vst [vmem:[%s4656] ss:$9 sm:$0xff] %v4553
    %v4668 = vld [vmem:[#allocation1] sm:$0xff]
    %v4669 = vld [vmem:[#allocation1 + $0x9] sm:$0xff]
    %4670 = vst [vmem:[#allocation1] ss:$9 sm:$0xff] %v4554
    %4671 = vst [vmem:[%s4644] ss:$9 sm:$0xff] %v4555
    %4672 = vst [vmem:[%s4646] ss:$9 sm:$0xff] %v4556
    %4673 = vst [vmem:[%s4648] ss:$9 sm:$0xff] %v4557
    %4674 = vst [vmem:[%s4650] ss:$9 sm:$0xff] %v4558
    %4675 = vst [vmem:[%s4652] ss:$9 sm:$0xff] %v4559
    %4676 = vst [vmem:[%s4654] ss:$9 sm:$0xff] %v4560
    %4677 = vst [vmem:[%s4656] ss:$9 sm:$0xff] %v4561
    %v4678 = vld [vmem:[#allocation1] sm:$0xff]
    %v4679 = vld [vmem:[#allocation1 + $0x9] sm:$0xff]
    %4680 = vst [vmem:[#allocation1] ss:$9 sm:$0xff] %v4562
    %4681 = vst [vmem:[%s4644] ss:$9 sm:$0xff] %v4563
    %4682 = vst [vmem:[%s4646] ss:$9 sm:$0xff] %v4564
    %4683 = vst [vmem:[%s4648] ss:$9 sm:$0xff] %v4565
    %4684 = vst [vmem:[%s4650] ss:$9 sm:$0xff] %v4566
    %4685 = vst [vmem:[%s4652] ss:$9 sm:$0xff] %v4567
    %4686 = vst [vmem:[%s4654] ss:$9 sm:$0xff] %v4568
    %4687 = vst [vmem:[%s4656] ss:$9 sm:$0xff] %v4569
    %v4688 = vld [vmem:[#allocation1] sm:$0xff]
    %v4689 = vld [vmem:[#allocation1 + $0x9] sm:$0xff]
    %4690 = vst [vmem:[#allocation1] ss:$9 sm:$0xff] %v4570
    %4691 = vst [vmem:[%s4644] ss:$9 sm:$0xff] %v4571
    %4692 = vst [vmem:[%s4646] ss:$9 sm:$0xff] %v4572
    %4693 = vst [vmem:[%s4648] ss:$9 sm:$0xff] %v4573
    %4694 = vst [vmem:[%s4650] ss:$9 sm:$0xff] %v4574
    %4695 = vst [vmem:[%s4652] ss:$9 sm:$0xff] %v4575
    %4696 = vst [vmem:[%s4654] ss:$9 sm:$0xff] %v4576
    %4697 = vst [vmem:[%s4656] ss:$9 sm:$0xff] %v4577
    %v4698 = vld [vmem:[#allocation1] sm:$0xff]
    %v4699 = vld [vmem:[#allocation1 + $0x9] sm:$0xff]
    %v4710 = vadd.f32 %v4581, %v4658
    %v4711 = vadd.f32 %v4581, %v4659
    %v4712 = vadd.f32 %v4586, %v4668
    %v4713 = vadd.f32 %v4586, %v4669
    %v4714 = vadd.f32 %v4591, %v4678
    %v4715 = vadd.f32 %v4591, %v4679
    %v4716 = vadd.f32 %v4596, %v4688
    %v4717 = vadd.f32 %v4596, %v4689
    %v4718 = vadd.f32 %v4601, %v4698
    %v4719 = vadd.f32 %v4601, %v4699
    %v4720 = vsub.f32 %v4710, %v4508
    %v4721 = vsub.f32 %v4711, %v4509
    %v4722 = vsub.f32 %v4712, %v4510
    %v4723 = vsub.f32 %v4713, %v4511
    %v4724 = vsub.f32 %v4714, %v4512
    %v4725 = vsub.f32 %v4715, %v4513
    %v4726 = vsub.f32 %v4716, %v4514
    %v4727 = vsub.f32 %v4717, %v4515
    %v4728 = vsub.f32 %v4718, %v4516
    %v4729 = vsub.f32 %v4719, %v4517
    %v4730 = vrcp.pop %v4720
    %v4731 = vmul.f32 %v4720, %v4730
    %v4732 = vsub.f32 1.0, %v4731
    %v4733 = vmul.f32 %v4730, %v4732
    %v4734 = vadd.f32 %v4730, %v4733
    %vm4735 = vweird.f32 %v4720
    %vm4736 = vweird.f32 %v4730
    %vm4737 = vmor %vm4735, %vm4736
    %v4738 = vsel %vm4737, %v4730, %v4734
    %v4739 = vand.u32 2147483647, %v4720
    %vm4740 = vcmp.eq.f32.partialorder %v4739, 8.507059e+37
    %v4741 = vand.u32 %v4720, 2147483648
    %v4742 = vor.u32 1.1754944e-38, %v4741
    %v4743 = vsel %vm4740, %v4742, %v4738
    %v4744 = vmul.f32 %v4508, %v4743
    %v4745 = vrcp.pop %v4721
    %v4746 = vmul.f32 %v4721, %v4745
    %v4747 = vsub.f32 1.0, %v4746
    %v4748 = vmul.f32 %v4745, %v4747
    %v4749 = vadd.f32 %v4745, %v4748
    %vm4750 = vweird.f32 %v4721
    %vm4751 = vweird.f32 %v4745
    %vm4752 = vmor %vm4750, %vm4751
    %v4753 = vsel %vm4752, %v4745, %v4749
    %v4754 = vand.u32 2147483647, %v4721
    %vm4755 = vcmp.eq.f32.partialorder %v4754, 8.507059e+37
    %v4756 = vand.u32 %v4721, 2147483648
    %v4757 = vor.u32 1.1754944e-38, %v4756
    %v4758 = vsel %vm4755, %v4757, %v4753
    %v4759 = vmul.f32 %v4509, %v4758
    %v4760 = vrcp.pop %v4722
    %v4761 = vmul.f32 %v4722, %v4760
    %v4762 = vsub.f32 1.0, %v4761
    %v4763 = vmul.f32 %v4760, %v4762
    %v4764 = vadd.f32 %v4760, %v4763
    %vm4765 = vweird.f32 %v4722
    %vm4766 = vweird.f32 %v4760
    %vm4767 = vmor %vm4765, %vm4766
    %v4768 = vsel %vm4767, %v4760, %v4764
    %v4769 = vand.u32 2147483647, %v4722
    %vm4770 = vcmp.eq.f32.partialorder %v4769, 8.507059e+37
    %v4771 = vand.u32 %v4722, 2147483648
    %v4772 = vor.u32 1.1754944e-38, %v4771
    %v4773 = vsel %vm4770, %v4772, %v4768
    %v4774 = vmul.f32 %v4510, %v4773
    %v4775 = vrcp.pop %v4723
    %v4776 = vmul.f32 %v4723, %v4775
    %v4777 = vsub.f32 1.0, %v4776
    %v4778 = vmul.f32 %v4775, %v4777
    %v4779 = vadd.f32 %v4775, %v4778
    %vm4780 = vweird.f32 %v4723
    %vm4781 = vweird.f32 %v4775
    %vm4782 = vmor %vm4780, %vm4781
    %v4783 = vsel %vm4782, %v4775, %v4779
    %v4784 = vand.u32 2147483647, %v4723
    %vm4785 = vcmp.eq.f32.partialorder %v4784, 8.507059e+37
    %v4786 = vand.u32 %v4723, 2147483648
    %v4787 = vor.u32 1.1754944e-38, %v4786
    %v4788 = vsel %vm4785, %v4787, %v4783
    %v4789 = vmul.f32 %v4511, %v4788
    %v4790 = vrcp.pop %v4724
    %v4791 = vmul.f32 %v4724, %v4790
    %v4792 = vsub.f32 1.0, %v4791
    %v4793 = vmul.f32 %v4790, %v4792
    %v4794 = vadd.f32 %v4790, %v4793
    %vm4795 = vweird.f32 %v4724
    %vm4796 = vweird.f32 %v4790
    %vm4797 = vmor %vm4795, %vm4796
    %v4798 = vsel %vm4797, %v4790, %v4794
    %v4799 = vand.u32 2147483647, %v4724
    %vm4800 = vcmp.eq.f32.partialorder %v4799, 8.507059e+37
    %v4801 = vand.u32 %v4724, 2147483648
    %v4802 = vor.u32 1.1754944e-38, %v4801
    %v4803 = vsel %vm4800, %v4802, %v4798
    %v4804 = vmul.f32 %v4512, %v4803
    %v4805 = vrcp.pop %v4725
    %v4806 = vmul.f32 %v4725, %v4805
    %v4807 = vsub.f32 1.0, %v4806
    %v4808 = vmul.f32 %v4805, %v4807
    %v4809 = vadd.f32 %v4805, %v4808
    %vm4810 = vweird.f32 %v4725
    %vm4811 = vweird.f32 %v4805
    %vm4812 = vmor %vm4810, %vm4811
    %v4813 = vsel %vm4812, %v4805, %v4809
    %v4814 = vand.u32 2147483647, %v4725
    %vm4815 = vcmp.eq.f32.partialorder %v4814, 8.507059e+37
    %v4816 = vand.u32 %v4725, 2147483648
    %v4817 = vor.u32 1.1754944e-38, %v4816
    %v4818 = vsel %vm4815, %v4817, %v4813
    %v4819 = vmul.f32 %v4513, %v4818
    %v4820 = vrcp.pop %v4726
    %v4821 = vmul.f32 %v4726, %v4820
    %v4822 = vsub.f32 1.0, %v4821
    %v4823 = vmul.f32 %v4820, %v4822
    %v4824 = vadd.f32 %v4820, %v4823
    %vm4825 = vweird.f32 %v4726
    %vm4826 = vweird.f32 %v4820
    %vm4827 = vmor %vm4825, %vm4826
    %v4828 = vsel %vm4827, %v4820, %v4824
    %v4829 = vand.u32 2147483647, %v4726
    %vm4830 = vcmp.eq.f32.partialorder %v4829, 8.507059e+37
    %v4831 = vand.u32 %v4726, 2147483648
    %v4832 = vor.u32 1.1754944e-38, %v4831
    %v4833 = vsel %vm4830, %v4832, %v4828
    %v4834 = vmul.f32 %v4514, %v4833
    %v4835 = vrcp.pop %v4727
    %v4836 = vmul.f32 %v4727, %v4835
    %v4837 = vsub.f32 1.0, %v4836
    %v4838 = vmul.f32 %v4835, %v4837
    %v4839 = vadd.f32 %v4835, %v4838
    %vm4840 = vweird.f32 %v4727
    %vm4841 = vweird.f32 %v4835
    %vm4842 = vmor %vm4840, %vm4841
    %v4843 = vsel %vm4842, %v4835, %v4839
    %v4844 = vand.u32 2147483647, %v4727
    %vm4845 = vcmp.eq.f32.partialorder %v4844, 8.507059e+37
    %v4846 = vand.u32 %v4727, 2147483648
    %v4847 = vor.u32 1.1754944e-38, %v4846
    %v4848 = vsel %vm4845, %v4847, %v4843
    %v4849 = vmul.f32 %v4515, %v4848
    %v4850 = vrcp.pop %v4728
    %v4851 = vmul.f32 %v4728, %v4850
    %v4852 = vsub.f32 1.0, %v4851
    %v4853 = vmul.f32 %v4850, %v4852
    %v4854 = vadd.f32 %v4850, %v4853
    %vm4855 = vweird.f32 %v4728
    %vm4856 = vweird.f32 %v4850
    %vm4857 = vmor %vm4855, %vm4856
    %v4858 = vsel %vm4857, %v4850, %v4854
    %v4859 = vand.u32 2147483647, %v4728
    %vm4860 = vcmp.eq.f32.partialorder %v4859, 8.507059e+37
    %v4861 = vand.u32 %v4728, 2147483648
    %v4862 = vor.u32 1.1754944e-38, %v4861
    %v4863 = vsel %vm4860, %v4862, %v4858
    %v4864 = vmul.f32 %v4516, %v4863
    %v4865 = vrcp.pop %v4729
    %v4866 = vmul.f32 %v4729, %v4865
    %v4867 = vsub.f32 1.0, %v4866
    %v4868 = vmul.f32 %v4865, %v4867
    %v4869 = vadd.f32 %v4865, %v4868
    %vm4870 = vweird.f32 %v4729
    %vm4871 = vweird.f32 %v4865
    %vm4872 = vmor %vm4870, %vm4871
    %v4873 = vsel %vm4872, %v4865, %v4869
    %v4874 = vand.u32 2147483647, %v4729
    %vm4875 = vcmp.eq.f32.partialorder %v4874, 8.507059e+37
    %v4876 = vand.u32 %v4729, 2147483648
    %v4877 = vor.u32 1.1754944e-38, %v4876
    %v4878 = vsel %vm4875, %v4877, %v4873
    %v4879 = vmul.f32 %v4517, %v4878
    %v4880 = vmax.f32 %v4744, 0.0
    %v4881 = vmax.f32 %v4759, 0.0
    %v4882 = vmax.f32 %v4774, 0.0
    %v4883 = vmax.f32 %v4789, 0.0
    %v4884 = vmax.f32 %v4804, 0.0
    %v4885 = vmax.f32 %v4819, 0.0
    %v4886 = vmax.f32 %v4834, 0.0
    %v4887 = vmax.f32 %v4849, 0.0
    %v4888 = vmax.f32 %v4864, 0.0
    %v4889 = vmax.f32 %v4879, 0.0
    %vm4890 = vcmp.gt.f32.partialorder %v4880, 0.6
    %vm4891 = vcmp.gt.f32.partialorder %v4881, 0.6
    %vm4892 = vcmp.gt.f32.partialorder %v4882, 0.6
    %vm4893 = vcmp.gt.f32.partialorder %v4883, 0.6
    %vm4894 = vcmp.gt.f32.partialorder %v4884, 0.6
    %vm4895 = vcmp.gt.f32.partialorder %v4885, 0.6
    %vm4896 = vcmp.gt.f32.partialorder %v4886, 0.6
    %vm4897 = vcmp.gt.f32.partialorder %v4887, 0.6
    %vm4898 = vcmp.gt.f32.partialorder %v4888, 0.6
    %vm4899 = vcmp.gt.f32.partialorder %v4889, 0.6
    %v4900 = vsel %vm4890, 0.0, 1.0
    %v4901 = vsel %vm4891, 0.0, 1.0
    %v4902 = vsel %vm4892, 0.0, 1.0
    %v4903 = vsel %vm4893, 0.0, 1.0
    %v4904 = vsel %vm4894, 0.0, 1.0
    %v4905 = vsel %vm4895, 0.0, 1.0
    %v4906 = vsel %vm4896, 0.0, 1.0
    %v4907 = vsel %vm4897, 0.0, 1.0
    %v4908 = vsel %vm4898, 0.0, 1.0
    %v4909 = vsel %vm4899, 0.0, 1.0
    %v4910 = vsel %vm456, 5.0, %v4900
    %v4911 = vsel %vm457, 5.0, %v4901
    %v4912 = vsel %vm458, 5.0, %v4902
    %v4913 = vsel %vm459, 5.0, %v4903
    %v4914 = vsel %vm460, 5.0, %v4904
    %v4915 = vsel %vm461, 5.0, %v4905
    %v4916 = vsel %vm462, 5.0, %v4906
    %v4917 = vsel %vm463, 5.0, %v4907
    %v4918 = vsel %vm464, 5.0, %v4908
    %v4919 = vsel %vm465, 5.0, %v4909
    %4920 = vset.pattern.permute.xlu0 12
    %4921 = vperm.xlu0 %4920, %v12
    %v4922 = vpop.permute.xlu0 %4921
    %4924 = vset.pattern.permute.xlu0 12
    %4925 = vperm.xlu0 %4924, %v13
    %v4926 = vpop.permute.xlu0 %4925
    %4928 = vset.pattern.permute.xlu0 12
    %4929 = vperm.xlu0 %4928, %v14
    %v4930 = vpop.permute.xlu0 %4929
    %4932 = vset.pattern.permute.xlu0 12
    %4933 = vperm.xlu0 %4932, %v15
    %v4934 = vpop.permute.xlu0 %4933
    %4936 = vset.pattern.permute.xlu0 12
    %4937 = vperm.xlu0 %4936, %v16
    %v4938 = vpop.permute.xlu0 %4937
    %v4940 = vmul.f32 %v4910, %v4922
    %v4941 = vmul.f32 %v4911, %v4922
    %v4942 = vmul.f32 %v4912, %v4926
    %v4943 = vmul.f32 %v4913, %v4926
    %v4944 = vmul.f32 %v4914, %v4930
    %v4945 = vmul.f32 %v4915, %v4930
    %v4946 = vmul.f32 %v4916, %v4934
    %v4947 = vmul.f32 %v4917, %v4934
    %v4948 = vmul.f32 %v4918, %v4938
    %v4949 = vmul.f32 %v4919, %v4938
    %4950 = vset.pattern.permute.xlu0 8
    %4951 = vperm.xlu0 %4950, %v12
    %v4952 = vpop.permute.xlu0 %4951
    %4954 = vset.pattern.permute.xlu0 8
    %4955 = vperm.xlu0 %4954, %v13
    %v4956 = vpop.permute.xlu0 %4955
    %4958 = vset.pattern.permute.xlu0 8
    %4959 = vperm.xlu0 %4958, %v14
    %v4960 = vpop.permute.xlu0 %4959
    %4962 = vset.pattern.permute.xlu0 8
    %4963 = vperm.xlu0 %4962, %v15
    %v4964 = vpop.permute.xlu0 %4963
    %4966 = vset.pattern.permute.xlu0 8
    %4967 = vperm.xlu0 %4966, %v16
    %v4968 = vpop.permute.xlu0 %4967
    %v4970 = vsel %vm456, %v4952, 0.0
    %v4971 = vsel %vm457, %v4952, 0.0
    %v4972 = vsel %vm458, %v4956, 0.0
    %v4973 = vsel %vm459, %v4956, 0.0
    %v4974 = vsel %vm460, %v4960, 0.0
    %v4975 = vsel %vm461, %v4960, 0.0
    %v4976 = vsel %vm462, %v4964, 0.0
    %v4977 = vsel %vm463, %v4964, 0.0
    %v4978 = vsel %vm464, %v4968, 0.0
    %v4979 = vsel %vm465, %v4968, 0.0
    %4980 = vset.pattern.permute.xlu0 4
    %4981 = vperm.xlu0 %4980, %v12
    %v4982 = vpop.permute.xlu0 %4981
    %4984 = vset.pattern.permute.xlu0 4
    %4985 = vperm.xlu0 %4984, %v13
    %v4986 = vpop.permute.xlu0 %4985
    %4988 = vset.pattern.permute.xlu0 4
    %4989 = vperm.xlu0 %4988, %v14
    %v4990 = vpop.permute.xlu0 %4989
    %4992 = vset.pattern.permute.xlu0 4
    %4993 = vperm.xlu0 %4992, %v15
    %v4994 = vpop.permute.xlu0 %4993
    %4996 = vset.pattern.permute.xlu0 4
    %4997 = vperm.xlu0 %4996, %v16
    %v4998 = vpop.permute.xlu0 %4997
    %v5000 = vsel %vm456, %v4982, 0.5
    %v5001 = vsel %vm457, %v4982, 0.5
    %v5002 = vsel %vm458, %v4986, 0.5
    %v5003 = vsel %vm459, %v4986, 0.5
    %v5004 = vsel %vm460, %v4990, 0.5
    %v5005 = vsel %vm461, %v4990, 0.5
    %v5006 = vsel %vm462, %v4994, 0.5
    %v5007 = vsel %vm463, %v4994, 0.5
    %v5008 = vsel %vm464, %v4998, 0.5
    %v5009 = vsel %vm465, %v4998, 0.5
    %v5020 = vrot.slane %v5001, 7
    %v5021 = vrot.slane %v5003, 7
    %v5022 = vrot.slane %v5005, 7
    %v5023 = vrot.slane %v5007, 7
    %v5024 = vrot.slane %v5009, 7
    %v5025 = vsel %vm2749, %v5000, %v5020
    %v5026 = vsel %vm2751, %v5000, %v5020
    %v5027 = vrot.slane %v5026, 1
    %v5028 = vsel %vm2754, %v5000, %v5020
    %v5029 = vrot.slane %v5028, 2
    %v5030 = vsel %vm2757, %v5000, %v5020
    %v5031 = vrot.slane %v5030, 3
    %v5032 = vsel %vm2760, %v5000, %v5020
    %v5033 = vrot.slane %v5032, 4
    %v5034 = vsel %vm2763, %v5000, %v5020
    %v5035 = vrot.slane %v5034, 5
    %v5036 = vsel %vm2766, %v5000, %v5020
    %v5037 = vrot.slane %v5036, 6
    %v5038 = vsel %vm2769, %v5020, %v5000
    %v5039 = vrot.slane %v5038, 7
    %v5040 = vsel %vm2749, %v5002, %v5021
    %v5041 = vsel %vm2751, %v5002, %v5021
    %v5042 = vrot.slane %v5041, 1
    %v5043 = vsel %vm2754, %v5002, %v5021
    %v5044 = vrot.slane %v5043, 2
    %v5045 = vsel %vm2757, %v5002, %v5021
    %v5046 = vrot.slane %v5045, 3
    %v5047 = vsel %vm2760, %v5002, %v5021
    %v5048 = vrot.slane %v5047, 4
    %v5049 = vsel %vm2763, %v5002, %v5021
    %v5050 = vrot.slane %v5049, 5
    %v5051 = vsel %vm2766, %v5002, %v5021
    %v5052 = vrot.slane %v5051, 6
    %v5053 = vsel %vm2769, %v5021, %v5002
    %v5054 = vrot.slane %v5053, 7
    %v5055 = vsel %vm2749, %v5004, %v5022
    %v5056 = vsel %vm2751, %v5004, %v5022
    %v5057 = vrot.slane %v5056, 1
    %v5058 = vsel %vm2754, %v5004, %v5022
    %v5059 = vrot.slane %v5058, 2
    %v5060 = vsel %vm2757, %v5004, %v5022
    %v5061 = vrot.slane %v5060, 3
    %v5062 = vsel %vm2760, %v5004, %v5022
    %v5063 = vrot.slane %v5062, 4
    %v5064 = vsel %vm2763, %v5004, %v5022
    %v5065 = vrot.slane %v5064, 5
    %v5066 = vsel %vm2766, %v5004, %v5022
    %v5067 = vrot.slane %v5066, 6
    %v5068 = vsel %vm2769, %v5022, %v5004
    %v5069 = vrot.slane %v5068, 7
    %v5070 = vsel %vm2749, %v5006, %v5023
    %v5071 = vsel %vm2751, %v5006, %v5023
    %v5072 = vrot.slane %v5071, 1
    %v5073 = vsel %vm2754, %v5006, %v5023
    %v5074 = vrot.slane %v5073, 2
    %v5075 = vsel %vm2757, %v5006, %v5023
    %v5076 = vrot.slane %v5075, 3
    %v5077 = vsel %vm2760, %v5006, %v5023
    %v5078 = vrot.slane %v5077, 4
    %v5079 = vsel %vm2763, %v5006, %v5023
    %v5080 = vrot.slane %v5079, 5
    %v5081 = vsel %vm2766, %v5006, %v5023
    %v5082 = vrot.slane %v5081, 6
    %v5083 = vsel %vm2769, %v5023, %v5006
    %v5084 = vrot.slane %v5083, 7
    %v5085 = vsel %vm2749, %v5008, %v5024
    %v5086 = vsel %vm2751, %v5008, %v5024
    %v5087 = vrot.slane %v5086, 1
    %v5088 = vsel %vm2754, %v5008, %v5024
    %v5089 = vrot.slane %v5088, 2
    %v5090 = vsel %vm2757, %v5008, %v5024
    %v5091 = vrot.slane %v5090, 3
    %v5092 = vsel %vm2760, %v5008, %v5024
    %v5093 = vrot.slane %v5092, 4
    %v5094 = vsel %vm2763, %v5008, %v5024
    %v5095 = vrot.slane %v5094, 5
    %v5096 = vsel %vm2766, %v5008, %v5024
    %v5097 = vrot.slane %v5096, 6
    %v5098 = vsel %vm2769, %v5024, %v5008
    %v5099 = vrot.slane %v5098, 7
    %v5140 = vsub.f32 %v640, %v5025
    %v5141 = vsub.f32 %v655, %v5027
    %v5142 = vsub.f32 %v670, %v5029
    %v5143 = vsub.f32 %v685, %v5031
    %v5144 = vsub.f32 %v700, %v5033
    %v5145 = vsub.f32 %v715, %v5035
    %v5146 = vsub.f32 %v730, %v5037
    %v5147 = vsub.f32 %v745, %v5039
    %v5148 = vsub.f32 %v760, %v5040
    %v5149 = vsub.f32 %v775, %v5042
    %v5150 = vsub.f32 %v790, %v5044
    %v5151 = vsub.f32 %v805, %v5046
    %v5152 = vsub.f32 %v820, %v5048
    %v5153 = vsub.f32 %v835, %v5050
    %v5154 = vsub.f32 %v850, %v5052
    %v5155 = vsub.f32 %v865, %v5054
    %v5156 = vsub.f32 %v880, %v5055
    %v5157 = vsub.f32 %v895, %v5057
    %v5158 = vsub.f32 %v910, %v5059
    %v5159 = vsub.f32 %v925, %v5061
    %v5160 = vsub.f32 %v940, %v5063
    %v5161 = vsub.f32 %v955, %v5065
    %v5162 = vsub.f32 %v970, %v5067
    %v5163 = vsub.f32 %v985, %v5069
    %v5164 = vsub.f32 %v1000, %v5070
    %v5165 = vsub.f32 %v1015, %v5072
    %v5166 = vsub.f32 %v1030, %v5074
    %v5167 = vsub.f32 %v1045, %v5076
    %v5168 = vsub.f32 %v1060, %v5078
    %v5169 = vsub.f32 %v1075, %v5080
    %v5170 = vsub.f32 %v1090, %v5082
    %v5171 = vsub.f32 %v1105, %v5084
    %v5172 = vsub.f32 %v1120, %v5085
    %v5173 = vsub.f32 %v1135, %v5087
    %v5174 = vsub.f32 %v1150, %v5089
    %v5175 = vsub.f32 %v1165, %v5091
    %v5176 = vsub.f32 %v1180, %v5093
    %v5177 = vsub.f32 %v1195, %v5095
    %v5178 = vsub.f32 %v1210, %v5097
    %v5179 = vsub.f32 %v1225, %v5099
    %5180 = vset.pattern.permute.xlu0 5
    %5181 = vperm.xlu0 %5180, %v12
    %v5182 = vpop.permute.xlu0 %5181
    %5184 = vset.pattern.permute.xlu0 5
    %5185 = vperm.xlu0 %5184, %v13
    %v5186 = vpop.permute.xlu0 %5185
    %5188 = vset.pattern.permute.xlu0 5
    %5189 = vperm.xlu0 %5188, %v14
    %v5190 = vpop.permute.xlu0 %5189
    %5192 = vset.pattern.permute.xlu0 5
    %5193 = vperm.xlu0 %5192, %v15
    %v5194 = vpop.permute.xlu0 %5193
    %5196 = vset.pattern.permute.xlu0 5
    %5197 = vperm.xlu0 %5196, %v16
    %v5198 = vpop.permute.xlu0 %5197
    %v5200 = vsel %vm456, %v5182, 0.5
    %v5201 = vsel %vm457, %v5182, 0.5
    %v5202 = vsel %vm458, %v5186, 0.5
    %v5203 = vsel %vm459, %v5186, 0.5
    %v5204 = vsel %vm460, %v5190, 0.5
    %v5205 = vsel %vm461, %v5190, 0.5
    %v5206 = vsel %vm462, %v5194, 0.5
    %v5207 = vsel %vm463, %v5194, 0.5
    %v5208 = vsel %vm464, %v5198, 0.5
    %v5209 = vsel %vm465, %v5198, 0.5
    %v5220 = vrot.slane %v5201, 7
    %v5221 = vrot.slane %v5203, 7
    %v5222 = vrot.slane %v5205, 7
    %v5223 = vrot.slane %v5207, 7
    %v5224 = vrot.slane %v5209, 7
    %v5225 = vsel %vm2749, %v5200, %v5220
    %v5226 = vsel %vm2751, %v5200, %v5220
    %v5227 = vrot.slane %v5226, 1
    %v5228 = vsel %vm2754, %v5200, %v5220
    %v5229 = vrot.slane %v5228, 2
    %v5230 = vsel %vm2757, %v5200, %v5220
    %v5231 = vrot.slane %v5230, 3
    %v5232 = vsel %vm2760, %v5200, %v5220
    %v5233 = vrot.slane %v5232, 4
    %v5234 = vsel %vm2763, %v5200, %v5220
    %v5235 = vrot.slane %v5234, 5
    %v5236 = vsel %vm2766, %v5200, %v5220
    %v5237 = vrot.slane %v5236, 6
    %v5238 = vsel %vm2769, %v5220, %v5200
    %v5239 = vrot.slane %v5238, 7
    %v5240 = vsel %vm2749, %v5202, %v5221
    %v5241 = vsel %vm2751, %v5202, %v5221
    %v5242 = vrot.slane %v5241, 1
    %v5243 = vsel %vm2754, %v5202, %v5221
    %v5244 = vrot.slane %v5243, 2
    %v5245 = vsel %vm2757, %v5202, %v5221
    %v5246 = vrot.slane %v5245, 3
    %v5247 = vsel %vm2760, %v5202, %v5221
    %v5248 = vrot.slane %v5247, 4
    %v5249 = vsel %vm2763, %v5202, %v5221
    %v5250 = vrot.slane %v5249, 5
    %v5251 = vsel %vm2766, %v5202, %v5221
    %v5252 = vrot.slane %v5251, 6
    %v5253 = vsel %vm2769, %v5221, %v5202
    %v5254 = vrot.slane %v5253, 7
    %v5255 = vsel %vm2749, %v5204, %v5222
    %v5256 = vsel %vm2751, %v5204, %v5222
    %v5257 = vrot.slane %v5256, 1
    %v5258 = vsel %vm2754, %v5204, %v5222
    %v5259 = vrot.slane %v5258, 2
    %v5260 = vsel %vm2757, %v5204, %v5222
    %v5261 = vrot.slane %v5260, 3
    %v5262 = vsel %vm2760, %v5204, %v5222
    %v5263 = vrot.slane %v5262, 4
    %v5264 = vsel %vm2763, %v5204, %v5222
    %v5265 = vrot.slane %v5264, 5
    %v5266 = vsel %vm2766, %v5204, %v5222
    %v5267 = vrot.slane %v5266, 6
    %v5268 = vsel %vm2769, %v5222, %v5204
    %v5269 = vrot.slane %v5268, 7
    %v5270 = vsel %vm2749, %v5206, %v5223
    %v5271 = vsel %vm2751, %v5206, %v5223
    %v5272 = vrot.slane %v5271, 1
    %v5273 = vsel %vm2754, %v5206, %v5223
    %v5274 = vrot.slane %v5273, 2
    %v5275 = vsel %vm2757, %v5206, %v5223
    %v5276 = vrot.slane %v5275, 3
    %v5277 = vsel %vm2760, %v5206, %v5223
    %v5278 = vrot.slane %v5277, 4
    %v5279 = vsel %vm2763, %v5206, %v5223
    %v5280 = vrot.slane %v5279, 5
    %v5281 = vsel %vm2766, %v5206, %v5223
    %v5282 = vrot.slane %v5281, 6
    %v5283 = vsel %vm2769, %v5223, %v5206
    %v5284 = vrot.slane %v5283, 7
    %v5285 = vsel %vm2749, %v5208, %v5224
    %v5286 = vsel %vm2751, %v5208, %v5224
    %v5287 = vrot.slane %v5286, 1
    %v5288 = vsel %vm2754, %v5208, %v5224
    %v5289 = vrot.slane %v5288, 2
    %v5290 = vsel %vm2757, %v5208, %v5224
    %v5291 = vrot.slane %v5290, 3
    %v5292 = vsel %vm2760, %v5208, %v5224
    %v5293 = vrot.slane %v5292, 4
    %v5294 = vsel %vm2763, %v5208, %v5224
    %v5295 = vrot.slane %v5294, 5
    %v5296 = vsel %vm2766, %v5208, %v5224
    %v5297 = vrot.slane %v5296, 6
    %v5298 = vsel %vm2769, %v5224, %v5208
    %v5299 = vrot.slane %v5298, 7
    %v5340 = vsub.f32 %v1400, %v5225
    %v5341 = vsub.f32 %v1415, %v5227
    %v5342 = vsub.f32 %v1430, %v5229
    %v5343 = vsub.f32 %v1445, %v5231
    %v5344 = vsub.f32 %v1460, %v5233
    %v5345 = vsub.f32 %v1475, %v5235
    %v5346 = vsub.f32 %v1490, %v5237
    %v5347 = vsub.f32 %v1505, %v5239
    %v5348 = vsub.f32 %v1520, %v5240
    %v5349 = vsub.f32 %v1535, %v5242
    %v5350 = vsub.f32 %v1550, %v5244
    %v5351 = vsub.f32 %v1565, %v5246
    %v5352 = vsub.f32 %v1580, %v5248
    %v5353 = vsub.f32 %v1595, %v5250
    %v5354 = vsub.f32 %v1610, %v5252
    %v5355 = vsub.f32 %v1625, %v5254
    %v5356 = vsub.f32 %v1640, %v5255
    %v5357 = vsub.f32 %v1655, %v5257
    %v5358 = vsub.f32 %v1670, %v5259
    %v5359 = vsub.f32 %v1685, %v5261
    %v5360 = vsub.f32 %v1700, %v5263
    %v5361 = vsub.f32 %v1715, %v5265
    %v5362 = vsub.f32 %v1730, %v5267
    %v5363 = vsub.f32 %v1745, %v5269
    %v5364 = vsub.f32 %v1760, %v5270
    %v5365 = vsub.f32 %v1775, %v5272
    %v5366 = vsub.f32 %v1790, %v5274
    %v5367 = vsub.f32 %v1805, %v5276
    %v5368 = vsub.f32 %v1820, %v5278
    %v5369 = vsub.f32 %v1835, %v5280
    %v5370 = vsub.f32 %v1850, %v5282
    %v5371 = vsub.f32 %v1865, %v5284
    %v5372 = vsub.f32 %v1880, %v5285
    %v5373 = vsub.f32 %v1895, %v5287
    %v5374 = vsub.f32 %v1910, %v5289
    %v5375 = vsub.f32 %v1925, %v5291
    %v5376 = vsub.f32 %v1940, %v5293
    %v5377 = vsub.f32 %v1955, %v5295
    %v5378 = vsub.f32 %v1970, %v5297
    %v5379 = vsub.f32 %v1985, %v5299
    %5380 = vset.pattern.permute.xlu0 6
    %5381 = vperm.xlu0 %5380, %v12
    %v5382 = vpop.permute.xlu0 %5381
    %5384 = vset.pattern.permute.xlu0 6
    %5385 = vperm.xlu0 %5384, %v13
    %v5386 = vpop.permute.xlu0 %5385
    %5388 = vset.pattern.permute.xlu0 6
    %5389 = vperm.xlu0 %5388, %v14
    %v5390 = vpop.permute.xlu0 %5389
    %5392 = vset.pattern.permute.xlu0 6
    %5393 = vperm.xlu0 %5392, %v15
    %v5394 = vpop.permute.xlu0 %5393
    %5396 = vset.pattern.permute.xlu0 6
    %5397 = vperm.xlu0 %5396, %v16
    %v5398 = vpop.permute.xlu0 %5397
    %v5400 = vsel %vm456, %v5382, 0.0
    %v5401 = vsel %vm457, %v5382, 0.0
    %v5402 = vsel %vm458, %v5386, 0.0
    %v5403 = vsel %vm459, %v5386, 0.0
    %v5404 = vsel %vm460, %v5390, 0.0
    %v5405 = vsel %vm461, %v5390, 0.0
    %v5406 = vsel %vm462, %v5394, 0.0
    %v5407 = vsel %vm463, %v5394, 0.0
    %v5408 = vsel %vm464, %v5398, 0.0
    %v5409 = vsel %vm465, %v5398, 0.0
    %v5420 = vrot.slane %v5401, 7
    %v5421 = vrot.slane %v5403, 7
    %v5422 = vrot.slane %v5405, 7
    %v5423 = vrot.slane %v5407, 7
    %v5424 = vrot.slane %v5409, 7
    %v5425 = vsel %vm2749, %v5400, %v5420
    %v5426 = vsel %vm2751, %v5400, %v5420
    %v5427 = vrot.slane %v5426, 1
    %v5428 = vsel %vm2754, %v5400, %v5420
    %v5429 = vrot.slane %v5428, 2
    %v5430 = vsel %vm2757, %v5400, %v5420
    %v5431 = vrot.slane %v5430, 3
    %v5432 = vsel %vm2760, %v5400, %v5420
    %v5433 = vrot.slane %v5432, 4
    %v5434 = vsel %vm2763, %v5400, %v5420
    %v5435 = vrot.slane %v5434, 5
    %v5436 = vsel %vm2766, %v5400, %v5420
    %v5437 = vrot.slane %v5436, 6
    %v5438 = vsel %vm2769, %v5420, %v5400
    %v5439 = vrot.slane %v5438, 7
    %v5440 = vsel %vm2749, %v5402, %v5421
    %v5441 = vsel %vm2751, %v5402, %v5421
    %v5442 = vrot.slane %v5441, 1
    %v5443 = vsel %vm2754, %v5402, %v5421
    %v5444 = vrot.slane %v5443, 2
    %v5445 = vsel %vm2757, %v5402, %v5421
    %v5446 = vrot.slane %v5445, 3
    %v5447 = vsel %vm2760, %v5402, %v5421
    %v5448 = vrot.slane %v5447, 4
    %v5449 = vsel %vm2763, %v5402, %v5421
    %v5450 = vrot.slane %v5449, 5
    %v5451 = vsel %vm2766, %v5402, %v5421
    %v5452 = vrot.slane %v5451, 6
    %v5453 = vsel %vm2769, %v5421, %v5402
    %v5454 = vrot.slane %v5453, 7
    %v5455 = vsel %vm2749, %v5404, %v5422
    %v5456 = vsel %vm2751, %v5404, %v5422
    %v5457 = vrot.slane %v5456, 1
    %v5458 = vsel %vm2754, %v5404, %v5422
    %v5459 = vrot.slane %v5458, 2
    %v5460 = vsel %vm2757, %v5404, %v5422
    %v5461 = vrot.slane %v5460, 3
    %v5462 = vsel %vm2760, %v5404, %v5422
    %v5463 = vrot.slane %v5462, 4
    %v5464 = vsel %vm2763, %v5404, %v5422
    %v5465 = vrot.slane %v5464, 5
    %v5466 = vsel %vm2766, %v5404, %v5422
    %v5467 = vrot.slane %v5466, 6
    %v5468 = vsel %vm2769, %v5422, %v5404
    %v5469 = vrot.slane %v5468, 7
    %v5470 = vsel %vm2749, %v5406, %v5423
    %v5471 = vsel %vm2751, %v5406, %v5423
    %v5472 = vrot.slane %v5471, 1
    %v5473 = vsel %vm2754, %v5406, %v5423
    %v5474 = vrot.slane %v5473, 2
    %v5475 = vsel %vm2757, %v5406, %v5423
    %v5476 = vrot.slane %v5475, 3
    %v5477 = vsel %vm2760, %v5406, %v5423
    %v5478 = vrot.slane %v5477, 4
    %v5479 = vsel %vm2763, %v5406, %v5423
    %v5480 = vrot.slane %v5479, 5
    %v5481 = vsel %vm2766, %v5406, %v5423
    %v5482 = vrot.slane %v5481, 6
    %v5483 = vsel %vm2769, %v5423, %v5406
    %v5484 = vrot.slane %v5483, 7
    %v5485 = vsel %vm2749, %v5408, %v5424
    %v5486 = vsel %vm2751, %v5408, %v5424
    %v5487 = vrot.slane %v5486, 1
    %v5488 = vsel %vm2754, %v5408, %v5424
    %v5489 = vrot.slane %v5488, 2
    %v5490 = vsel %vm2757, %v5408, %v5424
    %v5491 = vrot.slane %v5490, 3
    %v5492 = vsel %vm2760, %v5408, %v5424
    %v5493 = vrot.slane %v5492, 4
    %v5494 = vsel %vm2763, %v5408, %v5424
    %v5495 = vrot.slane %v5494, 5
    %v5496 = vsel %vm2766, %v5408, %v5424
    %v5497 = vrot.slane %v5496, 6
    %v5498 = vsel %vm2769, %v5424, %v5408
    %v5499 = vrot.slane %v5498, 7
    %v5540 = vsub.f32 %v182, %v5425
    %v5541 = vsub.f32 %v184, %v5427
    %v5542 = vsub.f32 %v186, %v5429
    %v5543 = vsub.f32 %v188, %v5431
    %v5544 = vsub.f32 %v190, %v5433
    %v5545 = vsub.f32 %v192, %v5435
    %v5546 = vsub.f32 %v194, %v5437
    %v5547 = vsub.f32 %v196, %v5439
    %v5548 = vsub.f32 %v198, %v5440
    %v5549 = vsub.f32 %v200, %v5442
    %v5550 = vsub.f32 %v202, %v5444
    %v5551 = vsub.f32 %v204, %v5446
    %v5552 = vsub.f32 %v206, %v5448
    %v5553 = vsub.f32 %v208, %v5450
    %v5554 = vsub.f32 %v210, %v5452
    %v5555 = vsub.f32 %v212, %v5454
    %v5556 = vsub.f32 %v214, %v5455
    %v5557 = vsub.f32 %v216, %v5457
    %v5558 = vsub.f32 %v218, %v5459
    %v5559 = vsub.f32 %v220, %v5461
    %v5560 = vsub.f32 %v222, %v5463
    %v5561 = vsub.f32 %v224, %v5465
    %v5562 = vsub.f32 %v226, %v5467
    %v5563 = vsub.f32 %v228, %v5469
    %v5564 = vsub.f32 %v230, %v5470
    %v5565 = vsub.f32 %v232, %v5472
    %v5566 = vsub.f32 %v234, %v5474
    %v5567 = vsub.f32 %v236, %v5476
    %v5568 = vsub.f32 %v238, %v5478
    %v5569 = vsub.f32 %v240, %v5480
    %v5570 = vsub.f32 %v242, %v5482
    %v5571 = vsub.f32 %v244, %v5484
    %v5572 = vsub.f32 %v246, %v5485
    %v5573 = vsub.f32 %v248, %v5487
    %v5574 = vsub.f32 %v250, %v5489
    %v5575 = vsub.f32 %v252, %v5491
    %v5576 = vsub.f32 %v254, %v5493
    %v5577 = vsub.f32 %v256, %v5495
    %v5578 = vsub.f32 %v258, %v5497
    %v5579 = vsub.f32 %v260, %v5499
    %5580 = vset.pattern.permute.xlu0 7
    %5581 = vperm.xlu0 %5580, %v12
    %v5582 = vpop.permute.xlu0 %5581
    %5584 = vset.pattern.permute.xlu0 7
    %5585 = vperm.xlu0 %5584, %v13
    %v5586 = vpop.permute.xlu0 %5585
    %5588 = vset.pattern.permute.xlu0 7
    %5589 = vperm.xlu0 %5588, %v14
    %v5590 = vpop.permute.xlu0 %5589
    %5592 = vset.pattern.permute.xlu0 7
    %5593 = vperm.xlu0 %5592, %v15
    %v5594 = vpop.permute.xlu0 %5593
    %5596 = vset.pattern.permute.xlu0 7
    %5597 = vperm.xlu0 %5596, %v16
    %v5598 = vpop.permute.xlu0 %5597
    %v5600 = vsel %vm456, %v5582, 0.0
    %v5601 = vsel %vm457, %v5582, 0.0
    %v5602 = vsel %vm458, %v5586, 0.0
    %v5603 = vsel %vm459, %v5586, 0.0
    %v5604 = vsel %vm460, %v5590, 0.0
    %v5605 = vsel %vm461, %v5590, 0.0
    %v5606 = vsel %vm462, %v5594, 0.0
    %v5607 = vsel %vm463, %v5594, 0.0
    %v5608 = vsel %vm464, %v5598, 0.0
    %v5609 = vsel %vm465, %v5598, 0.0
    %v5620 = vrot.slane %v5601, 7
    %v5621 = vrot.slane %v5603, 7
    %v5622 = vrot.slane %v5605, 7
    %v5623 = vrot.slane %v5607, 7
    %v5624 = vrot.slane %v5609, 7
    %v5625 = vsel %vm2749, %v5600, %v5620
    %v5626 = vsel %vm2751, %v5600, %v5620
    %v5627 = vrot.slane %v5626, 1
    %v5628 = vsel %vm2754, %v5600, %v5620
    %v5629 = vrot.slane %v5628, 2
    %v5630 = vsel %vm2757, %v5600, %v5620
    %v5631 = vrot.slane %v5630, 3
    %v5632 = vsel %vm2760, %v5600, %v5620
    %v5633 = vrot.slane %v5632, 4
    %v5634 = vsel %vm2763, %v5600, %v5620
    %v5635 = vrot.slane %v5634, 5
    %v5636 = vsel %vm2766, %v5600, %v5620
    %v5637 = vrot.slane %v5636, 6
    %v5638 = vsel %vm2769, %v5620, %v5600
    %v5639 = vrot.slane %v5638, 7
    %v5640 = vsel %vm2749, %v5602, %v5621
    %v5641 = vsel %vm2751, %v5602, %v5621
    %v5642 = vrot.slane %v5641, 1
    %v5643 = vsel %vm2754, %v5602, %v5621
    %v5644 = vrot.slane %v5643, 2
    %v5645 = vsel %vm2757, %v5602, %v5621
    %v5646 = vrot.slane %v5645, 3
    %v5647 = vsel %vm2760, %v5602, %v5621
    %v5648 = vrot.slane %v5647, 4
    %v5649 = vsel %vm2763, %v5602, %v5621
    %v5650 = vrot.slane %v5649, 5
    %v5651 = vsel %vm2766, %v5602, %v5621
    %v5652 = vrot.slane %v5651, 6
    %v5653 = vsel %vm2769, %v5621, %v5602
    %v5654 = vrot.slane %v5653, 7
    %v5655 = vsel %vm2749, %v5604, %v5622
    %v5656 = vsel %vm2751, %v5604, %v5622
    %v5657 = vrot.slane %v5656, 1
    %v5658 = vsel %vm2754, %v5604, %v5622
    %v5659 = vrot.slane %v5658, 2
    %v5660 = vsel %vm2757, %v5604, %v5622
    %v5661 = vrot.slane %v5660, 3
    %v5662 = vsel %vm2760, %v5604, %v5622
    %v5663 = vrot.slane %v5662, 4
    %v5664 = vsel %vm2763, %v5604, %v5622
    %v5665 = vrot.slane %v5664, 5
    %v5666 = vsel %vm2766, %v5604, %v5622
    %v5667 = vrot.slane %v5666, 6
    %v5668 = vsel %vm2769, %v5622, %v5604
    %v5669 = vrot.slane %v5668, 7
    %v5670 = vsel %vm2749, %v5606, %v5623
    %v5671 = vsel %vm2751, %v5606, %v5623
    %v5672 = vrot.slane %v5671, 1
    %v5673 = vsel %vm2754, %v5606, %v5623
    %v5674 = vrot.slane %v5673, 2
    %v5675 = vsel %vm2757, %v5606, %v5623
    %v5676 = vrot.slane %v5675, 3
    %v5677 = vsel %vm2760, %v5606, %v5623
    %v5678 = vrot.slane %v5677, 4
    %v5679 = vsel %vm2763, %v5606, %v5623
    %v5680 = vrot.slane %v5679, 5
    %v5681 = vsel %vm2766, %v5606, %v5623
    %v5682 = vrot.slane %v5681, 6
    %v5683 = vsel %vm2769, %v5623, %v5606
    %v5684 = vrot.slane %v5683, 7
    %v5685 = vsel %vm2749, %v5608, %v5624
    %v5686 = vsel %vm2751, %v5608, %v5624
    %v5687 = vrot.slane %v5686, 1
    %v5688 = vsel %vm2754, %v5608, %v5624
    %v5689 = vrot.slane %v5688, 2
    %v5690 = vsel %vm2757, %v5608, %v5624
    %v5691 = vrot.slane %v5690, 3
    %v5692 = vsel %vm2760, %v5608, %v5624
    %v5693 = vrot.slane %v5692, 4
    %v5694 = vsel %vm2763, %v5608, %v5624
    %v5695 = vrot.slane %v5694, 5
    %v5696 = vsel %vm2766, %v5608, %v5624
    %v5697 = vrot.slane %v5696, 6
    %v5698 = vsel %vm2769, %v5624, %v5608
    %v5699 = vrot.slane %v5698, 7
    %v5740 = vsub.f32 %v262, %v5625
    %v5741 = vsub.f32 %v264, %v5627
    %v5742 = vsub.f32 %v266, %v5629
    %v5743 = vsub.f32 %v268, %v5631
    %v5744 = vsub.f32 %v270, %v5633
    %v5745 = vsub.f32 %v272, %v5635
    %v5746 = vsub.f32 %v274, %v5637
    %v5747 = vsub.f32 %v276, %v5639
    %v5748 = vsub.f32 %v278, %v5640
    %v5749 = vsub.f32 %v280, %v5642
    %v5750 = vsub.f32 %v282, %v5644
    %v5751 = vsub.f32 %v284, %v5646
    %v5752 = vsub.f32 %v286, %v5648
    %v5753 = vsub.f32 %v288, %v5650
    %v5754 = vsub.f32 %v290, %v5652
    %v5755 = vsub.f32 %v292, %v5654
    %v5756 = vsub.f32 %v294, %v5655
    %v5757 = vsub.f32 %v296, %v5657
    %v5758 = vsub.f32 %v298, %v5659
    %v5759 = vsub.f32 %v300, %v5661
    %v5760 = vsub.f32 %v302, %v5663
    %v5761 = vsub.f32 %v304, %v5665
    %v5762 = vsub.f32 %v306, %v5667
    %v5763 = vsub.f32 %v308, %v5669
    %v5764 = vsub.f32 %v310, %v5670
    %v5765 = vsub.f32 %v312, %v5672
    %v5766 = vsub.f32 %v314, %v5674
    %v5767 = vsub.f32 %v316, %v5676
    %v5768 = vsub.f32 %v318, %v5678
    %v5769 = vsub.f32 %v320, %v5680
    %v5770 = vsub.f32 %v322, %v5682
    %v5771 = vsub.f32 %v324, %v5684
    %v5772 = vsub.f32 %v326, %v5685
    %v5773 = vsub.f32 %v328, %v5687
    %v5774 = vsub.f32 %v330, %v5689
    %v5775 = vsub.f32 %v332, %v5691
    %v5776 = vsub.f32 %v334, %v5693
    %v5777 = vsub.f32 %v336, %v5695
    %v5778 = vsub.f32 %v338, %v5697
    %v5779 = vsub.f32 %v340, %v5699
    %v5790 = vrot.slane %v4971, 7
    %v5791 = vrot.slane %v4973, 7
    %v5792 = vrot.slane %v4975, 7
    %v5793 = vrot.slane %v4977, 7
    %v5794 = vrot.slane %v4979, 7
    %v5795 = vsel %vm2749, %v4970, %v5790
    %v5796 = vsel %vm2751, %v4970, %v5790
    %v5797 = vrot.slane %v5796, 1
    %v5798 = vsel %vm2754, %v4970, %v5790
    %v5799 = vrot.slane %v5798, 2
    %v5800 = vsel %vm2757, %v4970, %v5790
    %v5801 = vrot.slane %v5800, 3
    %v5802 = vsel %vm2760, %v4970, %v5790
    %v5803 = vrot.slane %v5802, 4
    %v5804 = vsel %vm2763, %v4970, %v5790
    %v5805 = vrot.slane %v5804, 5
    %v5806 = vsel %vm2766, %v4970, %v5790
    %v5807 = vrot.slane %v5806, 6
    %v5808 = vsel %vm2769, %v5790, %v4970
    %v5809 = vrot.slane %v5808, 7
    %v5810 = vsel %vm2749, %v4972, %v5791
    %v5811 = vsel %vm2751, %v4972, %v5791
    %v5812 = vrot.slane %v5811, 1
    %v5813 = vsel %vm2754, %v4972, %v5791
    %v5814 = vrot.slane %v5813, 2
    %v5815 = vsel %vm2757, %v4972, %v5791
    %v5816 = vrot.slane %v5815, 3
    %v5817 = vsel %vm2760, %v4972, %v5791
    %v5818 = vrot.slane %v5817, 4
    %v5819 = vsel %vm2763, %v4972, %v5791
    %v5820 = vrot.slane %v5819, 5
    %v5821 = vsel %vm2766, %v4972, %v5791
    %v5822 = vrot.slane %v5821, 6
    %v5823 = vsel %vm2769, %v5791, %v4972
    %v5824 = vrot.slane %v5823, 7
    %v5825 = vsel %vm2749, %v4974, %v5792
    %v5826 = vsel %vm2751, %v4974, %v5792
    %v5827 = vrot.slane %v5826, 1
    %v5828 = vsel %vm2754, %v4974, %v5792
    %v5829 = vrot.slane %v5828, 2
    %v5830 = vsel %vm2757, %v4974, %v5792
    %v5831 = vrot.slane %v5830, 3
    %v5832 = vsel %vm2760, %v4974, %v5792
    %v5833 = vrot.slane %v5832, 4
    %v5834 = vsel %vm2763, %v4974, %v5792
    %v5835 = vrot.slane %v5834, 5
    %v5836 = vsel %vm2766, %v4974, %v5792
    %v5837 = vrot.slane %v5836, 6
    %v5838 = vsel %vm2769, %v5792, %v4974
    %v5839 = vrot.slane %v5838, 7
    %v5840 = vsel %vm2749, %v4976, %v5793
    %v5841 = vsel %vm2751, %v4976, %v5793
    %v5842 = vrot.slane %v5841, 1
    %v5843 = vsel %vm2754, %v4976, %v5793
    %v5844 = vrot.slane %v5843, 2
    %v5845 = vsel %vm2757, %v4976, %v5793
    %v5846 = vrot.slane %v5845, 3
    %v5847 = vsel %vm2760, %v4976, %v5793
    %v5848 = vrot.slane %v5847, 4
    %v5849 = vsel %vm2763, %v4976, %v5793
    %v5850 = vrot.slane %v5849, 5
    %v5851 = vsel %vm2766, %v4976, %v5793
    %v5852 = vrot.slane %v5851, 6
    %v5853 = vsel %vm2769, %v5793, %v4976
    %v5854 = vrot.slane %v5853, 7
    %v5855 = vsel %vm2749, %v4978, %v5794
    %v5856 = vsel %vm2751, %v4978, %v5794
    %v5857 = vrot.slane %v5856, 1
    %v5858 = vsel %vm2754, %v4978, %v5794
    %v5859 = vrot.slane %v5858, 2
    %v5860 = vsel %vm2757, %v4978, %v5794
    %v5861 = vrot.slane %v5860, 3
    %v5862 = vsel %vm2760, %v4978, %v5794
    %v5863 = vrot.slane %v5862, 4
    %v5864 = vsel %vm2763, %v4978, %v5794
    %v5865 = vrot.slane %v5864, 5
    %v5866 = vsel %vm2766, %v4978, %v5794
    %v5867 = vrot.slane %v5866, 6
    %v5868 = vsel %vm2769, %v5794, %v4978
    %v5869 = vrot.slane %v5868, 7
    %v5910 = vsub.f32 %v2160, %v5795
    %v5911 = vsub.f32 %v2175, %v5797
    %v5912 = vsub.f32 %v2190, %v5799
    %v5913 = vsub.f32 %v2205, %v5801
    %v5914 = vsub.f32 %v2220, %v5803
    %v5915 = vsub.f32 %v2235, %v5805
    %v5916 = vsub.f32 %v2250, %v5807
    %v5917 = vsub.f32 %v2265, %v5809
    %v5918 = vsub.f32 %v2280, %v5810
    %v5919 = vsub.f32 %v2295, %v5812
    %v5920 = vsub.f32 %v2310, %v5814
    %v5921 = vsub.f32 %v2325, %v5816
    %v5922 = vsub.f32 %v2340, %v5818
    %v5923 = vsub.f32 %v2355, %v5820
    %v5924 = vsub.f32 %v2370, %v5822
    %v5925 = vsub.f32 %v2385, %v5824
    %v5926 = vsub.f32 %v2400, %v5825
    %v5927 = vsub.f32 %v2415, %v5827
    %v5928 = vsub.f32 %v2430, %v5829
    %v5929 = vsub.f32 %v2445, %v5831
    %v5930 = vsub.f32 %v2460, %v5833
    %v5931 = vsub.f32 %v2475, %v5835
    %v5932 = vsub.f32 %v2490, %v5837
    %v5933 = vsub.f32 %v2505, %v5839
    %v5934 = vsub.f32 %v2520, %v5840
    %v5935 = vsub.f32 %v2535, %v5842
    %v5936 = vsub.f32 %v2550, %v5844
    %v5937 = vsub.f32 %v2565, %v5846
    %v5938 = vsub.f32 %v2580, %v5848
    %v5939 = vsub.f32 %v2595, %v5850
    %v5940 = vsub.f32 %v2610, %v5852
    %v5941 = vsub.f32 %v2625, %v5854
    %v5942 = vsub.f32 %v2640, %v5855
    %v5943 = vsub.f32 %v2655, %v5857
    %v5944 = vsub.f32 %v2670, %v5859
    %v5945 = vsub.f32 %v2685, %v5861
    %v5946 = vsub.f32 %v2700, %v5863
    %v5947 = vsub.f32 %v2715, %v5865
    %v5948 = vsub.f32 %v2730, %v5867
    %v5949 = vsub.f32 %v2745, %v5869
    %5990 = vst [vmem:[#allocation1] ss:$9 sm:$0xff] %v5140
    %s5991 = scalar_lea.vmem [#allocation1], 1
    %5992 = vst [vmem:[%s5991] ss:$9 sm:$0xff] %v5141
    %s5993 = scalar_lea.vmem [#allocation1], 2
    %5994 = vst [vmem:[%s5993] ss:$9 sm:$0xff] %v5142
    %s5995 = scalar_lea.vmem [#allocation1], 3
    %5996 = vst [vmem:[%s5995] ss:$9 sm:$0xff] %v5143
    %s5997 = scalar_lea.vmem [#allocation1], 4
    %5998 = vst [vmem:[%s5997] ss:$9 sm:$0xff] %v5144
    %s5999 = scalar_lea.vmem [#allocation1], 5
    %6000 = vst [vmem:[%s5999] ss:$9 sm:$0xff] %v5145
    %s6001 = scalar_lea.vmem [#allocation1], 6
    %6002 = vst [vmem:[%s6001] ss:$9 sm:$0xff] %v5146
    %s6003 = scalar_lea.vmem [#allocation1], 7
    %6004 = vst [vmem:[%s6003] ss:$9 sm:$0xff] %v5147
    %v6005 = vld [vmem:[#allocation1] sm:$0xff]
    %v6006 = vld [vmem:[#allocation1 + $0x9] sm:$0xff]
    %6007 = vst [vmem:[#allocation1] ss:$9 sm:$0xff] %v5148
    %6008 = vst [vmem:[%s5991] ss:$9 sm:$0xff] %v5149
    %6009 = vst [vmem:[%s5993] ss:$9 sm:$0xff] %v5150
    %6010 = vst [vmem:[%s5995] ss:$9 sm:$0xff] %v5151
    %6011 = vst [vmem:[%s5997] ss:$9 sm:$0xff] %v5152
    %6012 = vst [vmem:[%s5999] ss:$9 sm:$0xff] %v5153
    %6013 = vst [vmem:[%s6001] ss:$9 sm:$0xff] %v5154
    %6014 = vst [vmem:[%s6003] ss:$9 sm:$0xff] %v5155
    %v6015 = vld [vmem:[#allocation1] sm:$0xff]
    %v6016 = vld [vmem:[#allocation1 + $0x9] sm:$0xff]
    %6017 = vst [vmem:[#allocation1] ss:$9 sm:$0xff] %v5156
    %6018 = vst [vmem:[%s5991] ss:$9 sm:$0xff] %v5157
    %6019 = vst [vmem:[%s5993] ss:$9 sm:$0xff] %v5158
    %6020 = vst [vmem:[%s5995] ss:$9 sm:$0xff] %v5159
    %6021 = vst [vmem:[%s5997] ss:$9 sm:$0xff] %v5160
    %6022 = vst [vmem:[%s5999] ss:$9 sm:$0xff] %v5161
    %6023 = vst [vmem:[%s6001] ss:$9 sm:$0xff] %v5162
    %6024 = vst [vmem:[%s6003] ss:$9 sm:$0xff] %v5163
    %v6025 = vld [vmem:[#allocation1] sm:$0xff]
    %v6026 = vld [vmem:[#allocation1 + $0x9] sm:$0xff]
    %6027 = vst [vmem:[#allocation1] ss:$9 sm:$0xff] %v5164
    %6028 = vst [vmem:[%s5991] ss:$9 sm:$0xff] %v5165
    %6029 = vst [vmem:[%s5993] ss:$9 sm:$0xff] %v5166
    %6030 = vst [vmem:[%s5995] ss:$9 sm:$0xff] %v5167
    %6031 = vst [vmem:[%s5997] ss:$9 sm:$0xff] %v5168
    %6032 = vst [vmem:[%s5999] ss:$9 sm:$0xff] %v5169
    %6033 = vst [vmem:[%s6001] ss:$9 sm:$0xff] %v5170
    %6034 = vst [vmem:[%s6003] ss:$9 sm:$0xff] %v5171
    %v6035 = vld [vmem:[#allocation1] sm:$0xff]
    %v6036 = vld [vmem:[#allocation1 + $0x9] sm:$0xff]
    %6037 = vst [vmem:[#allocation1] ss:$9 sm:$0xff] %v5172
    %6038 = vst [vmem:[%s5991] ss:$9 sm:$0xff] %v5173
    %6039 = vst [vmem:[%s5993] ss:$9 sm:$0xff] %v5174
    %6040 = vst [vmem:[%s5995] ss:$9 sm:$0xff] %v5175
    %6041 = vst [vmem:[%s5997] ss:$9 sm:$0xff] %v5176
    %6042 = vst [vmem:[%s5999] ss:$9 sm:$0xff] %v5177
    %6043 = vst [vmem:[%s6001] ss:$9 sm:$0xff] %v5178
    %6044 = vst [vmem:[%s6003] ss:$9 sm:$0xff] %v5179
    %v6045 = vld [vmem:[#allocation1] sm:$0xff]
    %v6046 = vld [vmem:[#allocation1 + $0x9] sm:$0xff]
    %v6057 = vmul.f32 %v4922, %v6005
    %v6058 = vmul.f32 %v4922, %v6006
    %v6059 = vmul.f32 %v4926, %v6015
    %v6060 = vmul.f32 %v4926, %v6016
    %v6061 = vmul.f32 %v4930, %v6025
    %v6062 = vmul.f32 %v4930, %v6026
    %v6063 = vmul.f32 %v4934, %v6035
    %v6064 = vmul.f32 %v4934, %v6036
    %v6065 = vmul.f32 %v4938, %v6045
    %v6066 = vmul.f32 %v4938, %v6046
    %6067 = vst [vmem:[#allocation1] ss:$9 sm:$0xff] %v5140
    %s6068 = scalar_lea.vmem [#allocation1], 1
    %6069 = vst [vmem:[%s6068] ss:$9 sm:$0xff] %v5141
    %s6070 = scalar_lea.vmem [#allocation1], 2
    %6071 = vst [vmem:[%s6070] ss:$9 sm:$0xff] %v5142
    %s6072 = scalar_lea.vmem [#allocation1], 3
    %6073 = vst [vmem:[%s6072] ss:$9 sm:$0xff] %v5143
    %s6074 = scalar_lea.vmem [#allocation1], 4
    %6075 = vst [vmem:[%s6074] ss:$9 sm:$0xff] %v5144
    %s6076 = scalar_lea.vmem [#allocation1], 5
    %6077 = vst [vmem:[%s6076] ss:$9 sm:$0xff] %v5145
    %s6078 = scalar_lea.vmem [#allocation1], 6
    %6079 = vst [vmem:[%s6078] ss:$9 sm:$0xff] %v5146
    %s6080 = scalar_lea.vmem [#allocation1], 7
    %6081 = vst [vmem:[%s6080] ss:$9 sm:$0xff] %v5147
    %v6082 = vld [vmem:[#allocation1] sm:$0xff]
    %v6083 = vld [vmem:[#allocation1 + $0x9] sm:$0xff]
    %6084 = vst [vmem:[#allocation1] ss:$9 sm:$0xff] %v5148
    %6085 = vst [vmem:[%s6068] ss:$9 sm:$0xff] %v5149
    %6086 = vst [vmem:[%s6070] ss:$9 sm:$0xff] %v5150
    %6087 = vst [vmem:[%s6072] ss:$9 sm:$0xff] %v5151
    %6088 = vst [vmem:[%s6074] ss:$9 sm:$0xff] %v5152
    %6089 = vst [vmem:[%s6076] ss:$9 sm:$0xff] %v5153
    %6090 = vst [vmem:[%s6078] ss:$9 sm:$0xff] %v5154
    %6091 = vst [vmem:[%s6080] ss:$9 sm:$0xff] %v5155
    %v6092 = vld [vmem:[#allocation1] sm:$0xff]
    %v6093 = vld [vmem:[#allocation1 + $0x9] sm:$0xff]
    %6094 = vst [vmem:[#allocation1] ss:$9 sm:$0xff] %v5156
    %6095 = vst [vmem:[%s6068] ss:$9 sm:$0xff] %v5157
    %6096 = vst [vmem:[%s6070] ss:$9 sm:$0xff] %v5158
    %6097 = vst [vmem:[%s6072] ss:$9 sm:$0xff] %v5159
    %6098 = vst [vmem:[%s6074] ss:$9 sm:$0xff] %v5160
    %6099 = vst [vmem:[%s6076] ss:$9 sm:$0xff] %v5161
    %6100 = vst [vmem:[%s6078] ss:$9 sm:$0xff] %v5162
    %6101 = vst [vmem:[%s6080] ss:$9 sm:$0xff] %v5163
    %v6102 = vld [vmem:[#allocation1] sm:$0xff]
    %v6103 = vld [vmem:[#allocation1 + $0x9] sm:$0xff]
    %6104 = vst [vmem:[#allocation1] ss:$9 sm:$0xff] %v5164
    %6105 = vst [vmem:[%s6068] ss:$9 sm:$0xff] %v5165
    %6106 = vst [vmem:[%s6070] ss:$9 sm:$0xff] %v5166
    %6107 = vst [vmem:[%s6072] ss:$9 sm:$0xff] %v5167
    %6108 = vst [vmem:[%s6074] ss:$9 sm:$0xff] %v5168
    %6109 = vst [vmem:[%s6076] ss:$9 sm:$0xff] %v5169
    %6110 = vst [vmem:[%s6078] ss:$9 sm:$0xff] %v5170
    %6111 = vst [vmem:[%s6080] ss:$9 sm:$0xff] %v5171
    %v6112 = vld [vmem:[#allocation1] sm:$0xff]
    %v6113 = vld [vmem:[#allocation1 + $0x9] sm:$0xff]
    %6114 = vst [vmem:[#allocation1] ss:$9 sm:$0xff] %v5172
    %6115 = vst [vmem:[%s6068] ss:$9 sm:$0xff] %v5173
    %6116 = vst [vmem:[%s6070] ss:$9 sm:$0xff] %v5174
    %6117 = vst [vmem:[%s6072] ss:$9 sm:$0xff] %v5175
    %6118 = vst [vmem:[%s6074] ss:$9 sm:$0xff] %v5176
    %6119 = vst [vmem:[%s6076] ss:$9 sm:$0xff] %v5177
    %6120 = vst [vmem:[%s6078] ss:$9 sm:$0xff] %v5178
    %6121 = vst [vmem:[%s6080] ss:$9 sm:$0xff] %v5179
    %v6122 = vld [vmem:[#allocation1] sm:$0xff]
    %v6123 = vld [vmem:[#allocation1 + $0x9] sm:$0xff]
    %v6134 = vmul.f32 %v6057, %v6082
    %v6135 = vmul.f32 %v6058, %v6083
    %v6136 = vmul.f32 %v6059, %v6092
    %v6137 = vmul.f32 %v6060, %v6093
    %v6138 = vmul.f32 %v6061, %v6102
    %v6139 = vmul.f32 %v6062, %v6103
    %v6140 = vmul.f32 %v6063, %v6112
    %v6141 = vmul.f32 %v6064, %v6113
    %v6142 = vmul.f32 %v6065, %v6122
    %v6143 = vmul.f32 %v6066, %v6123
    %vm6144 = vcmask 334848
    %v6145 = vsel %vm6144, %v6135, 0.0
    %v6146 = vadd.f32 %v6134, %v6145
    %v6147 = vadd.f32 %v6146, %v6136
    %v6148 = vsel %vm6144, %v6137, 0.0
    %v6149 = vadd.f32 %v6147, %v6148
    %v6150 = vadd.f32 %v6149, %v6138
    %v6151 = vsel %vm6144, %v6139, 0.0
    %v6152 = vadd.f32 %v6150, %v6151
    %v6153 = vadd.f32 %v6152, %v6140
    %v6154 = vsel %vm6144, %v6141, 0.0
    %v6155 = vadd.f32 %v6153, %v6154
    %v6156 = vadd.f32 %v6155, %v6142
    %v6157 = vsel %vm6144, %v6143, 0.0
    %v6158 = vadd.f32 %v6156, %v6157
    %6159 = vadd.xlane.f32.xlu0 %v6158
    %v6160 = vpop.xlane.xlu0 %6159
    %v6161 = vrot.slane %v6160, 4
    %v6162 = vadd.f32 %v6160, %v6161
    %v6163 = vrot.slane %v6162, 2
    %v6164 = vadd.f32 %v6162, %v6163
    %v6165 = vrot.slane %v6164, 1
    %v6166 = vadd.f32 %v6164, %v6165
    %s6167 = vtos %v6166
    %s6168 = smul.f32 %s6167, 0.5
    %6209 = vst [vmem:[#allocation1] ss:$9 sm:$0xff] %v5340
    %s6210 = scalar_lea.vmem [#allocation1], 1
    %6211 = vst [vmem:[%s6210] ss:$9 sm:$0xff] %v5341
    %s6212 = scalar_lea.vmem [#allocation1], 2
    %6213 = vst [vmem:[%s6212] ss:$9 sm:$0xff] %v5342
    %s6214 = scalar_lea.vmem [#allocation1], 3
    %6215 = vst [vmem:[%s6214] ss:$9 sm:$0xff] %v5343
    %s6216 = scalar_lea.vmem [#allocation1], 4
    %6217 = vst [vmem:[%s6216] ss:$9 sm:$0xff] %v5344
    %s6218 = scalar_lea.vmem [#allocation1], 5
    %6219 = vst [vmem:[%s6218] ss:$9 sm:$0xff] %v5345
    %s6220 = scalar_lea.vmem [#allocation1], 6
    %6221 = vst [vmem:[%s6220] ss:$9 sm:$0xff] %v5346
    %s6222 = scalar_lea.vmem [#allocation1], 7
    %6223 = vst [vmem:[%s6222] ss:$9 sm:$0xff] %v5347
    %v6224 = vld [vmem:[#allocation1] sm:$0xff]
    %v6225 = vld [vmem:[#allocation1 + $0x9] sm:$0xff]
    %6226 = vst [vmem:[#allocation1] ss:$9 sm:$0xff] %v5348
    %6227 = vst [vmem:[%s6210] ss:$9 sm:$0xff] %v5349
    %6228 = vst [vmem:[%s6212] ss:$9 sm:$0xff] %v5350
    %6229 = vst [vmem:[%s6214] ss:$9 sm:$0xff] %v5351
    %6230 = vst [vmem:[%s6216] ss:$9 sm:$0xff] %v5352
    %6231 = vst [vmem:[%s6218] ss:$9 sm:$0xff] %v5353
    %6232 = vst [vmem:[%s6220] ss:$9 sm:$0xff] %v5354
    %6233 = vst [vmem:[%s6222] ss:$9 sm:$0xff] %v5355
    %v6234 = vld [vmem:[#allocation1] sm:$0xff]
    %v6235 = vld [vmem:[#allocation1 + $0x9] sm:$0xff]
    %6236 = vst [vmem:[#allocation1] ss:$9 sm:$0xff] %v5356
    %6237 = vst [vmem:[%s6210] ss:$9 sm:$0xff] %v5357
    %6238 = vst [vmem:[%s6212] ss:$9 sm:$0xff] %v5358
    %6239 = vst [vmem:[%s6214] ss:$9 sm:$0xff] %v5359
    %6240 = vst [vmem:[%s6216] ss:$9 sm:$0xff] %v5360
    %6241 = vst [vmem:[%s6218] ss:$9 sm:$0xff] %v5361
    %6242 = vst [vmem:[%s6220] ss:$9 sm:$0xff] %v5362
    %6243 = vst [vmem:[%s6222] ss:$9 sm:$0xff] %v5363
    %v6244 = vld [vmem:[#allocation1] sm:$0xff]
    %v6245 = vld [vmem:[#allocation1 + $0x9] sm:$0xff]
    %6246 = vst [vmem:[#allocation1] ss:$9 sm:$0xff] %v5364
    %6247 = vst [vmem:[%s6210] ss:$9 sm:$0xff] %v5365
    %6248 = vst [vmem:[%s6212] ss:$9 sm:$0xff] %v5366
    %6249 = vst [vmem:[%s6214] ss:$9 sm:$0xff] %v5367
    %6250 = vst [vmem:[%s6216] ss:$9 sm:$0xff] %v5368
    %6251 = vst [vmem:[%s6218] ss:$9 sm:$0xff] %v5369
    %6252 = vst [vmem:[%s6220] ss:$9 sm:$0xff] %v5370
    %6253 = vst [vmem:[%s6222] ss:$9 sm:$0xff] %v5371
    %v6254 = vld [vmem:[#allocation1] sm:$0xff]
    %v6255 = vld [vmem:[#allocation1 + $0x9] sm:$0xff]
    %6256 = vst [vmem:[#allocation1] ss:$9 sm:$0xff] %v5372
    %6257 = vst [vmem:[%s6210] ss:$9 sm:$0xff] %v5373
    %6258 = vst [vmem:[%s6212] ss:$9 sm:$0xff] %v5374
    %6259 = vst [vmem:[%s6214] ss:$9 sm:$0xff] %v5375
    %6260 = vst [vmem:[%s6216] ss:$9 sm:$0xff] %v5376
    %6261 = vst [vmem:[%s6218] ss:$9 sm:$0xff] %v5377
    %6262 = vst [vmem:[%s6220] ss:$9 sm:$0xff] %v5378
    %6263 = vst [vmem:[%s6222] ss:$9 sm:$0xff] %v5379
    %v6264 = vld [vmem:[#allocation1] sm:$0xff]
    %v6265 = vld [vmem:[#allocation1 + $0x9] sm:$0xff]
    %v6276 = vmul.f32 %v4922, %v6224
    %v6277 = vmul.f32 %v4922, %v6225
    %v6278 = vmul.f32 %v4926, %v6234
    %v6279 = vmul.f32 %v4926, %v6235
    %v6280 = vmul.f32 %v4930, %v6244
    %v6281 = vmul.f32 %v4930, %v6245
    %v6282 = vmul.f32 %v4934, %v6254
    %v6283 = vmul.f32 %v4934, %v6255
    %v6284 = vmul.f32 %v4938, %v6264
    %v6285 = vmul.f32 %v4938, %v6265
    %6286 = vst [vmem:[#allocation1] ss:$9 sm:$0xff] %v5340
    %s6287 = scalar_lea.vmem [#allocation1], 1
    %6288 = vst [vmem:[%s6287] ss:$9 sm:$0xff] %v5341
    %s6289 = scalar_lea.vmem [#allocation1], 2
    %6290 = vst [vmem:[%s6289] ss:$9 sm:$0xff] %v5342
    %s6291 = scalar_lea.vmem [#allocation1], 3
    %6292 = vst [vmem:[%s6291] ss:$9 sm:$0xff] %v5343
    %s6293 = scalar_lea.vmem [#allocation1], 4
    %6294 = vst [vmem:[%s6293] ss:$9 sm:$0xff] %v5344
    %s6295 = scalar_lea.vmem [#allocation1], 5
    %6296 = vst [vmem:[%s6295] ss:$9 sm:$0xff] %v5345
    %s6297 = scalar_lea.vmem [#allocation1], 6
    %6298 = vst [vmem:[%s6297] ss:$9 sm:$0xff] %v5346
    %s6299 = scalar_lea.vmem [#allocation1], 7
    %6300 = vst [vmem:[%s6299] ss:$9 sm:$0xff] %v5347
    %v6301 = vld [vmem:[#allocation1] sm:$0xff]
    %v6302 = vld [vmem:[#allocation1 + $0x9] sm:$0xff]
    %6303 = vst [vmem:[#allocation1] ss:$9 sm:$0xff] %v5348
    %6304 = vst [vmem:[%s6287] ss:$9 sm:$0xff] %v5349
    %6305 = vst [vmem:[%s6289] ss:$9 sm:$0xff] %v5350
    %6306 = vst [vmem:[%s6291] ss:$9 sm:$0xff] %v5351
    %6307 = vst [vmem:[%s6293] ss:$9 sm:$0xff] %v5352
    %6308 = vst [vmem:[%s6295] ss:$9 sm:$0xff] %v5353
    %6309 = vst [vmem:[%s6297] ss:$9 sm:$0xff] %v5354
    %6310 = vst [vmem:[%s6299] ss:$9 sm:$0xff] %v5355
    %v6311 = vld [vmem:[#allocation1] sm:$0xff]
    %v6312 = vld [vmem:[#allocation1 + $0x9] sm:$0xff]
    %6313 = vst [vmem:[#allocation1] ss:$9 sm:$0xff] %v5356
    %6314 = vst [vmem:[%s6287] ss:$9 sm:$0xff] %v5357
    %6315 = vst [vmem:[%s6289] ss:$9 sm:$0xff] %v5358
    %6316 = vst [vmem:[%s6291] ss:$9 sm:$0xff] %v5359
    %6317 = vst [vmem:[%s6293] ss:$9 sm:$0xff] %v5360
    %6318 = vst [vmem:[%s6295] ss:$9 sm:$0xff] %v5361
    %6319 = vst [vmem:[%s6297] ss:$9 sm:$0xff] %v5362
    %6320 = vst [vmem:[%s6299] ss:$9 sm:$0xff] %v5363
    %v6321 = vld [vmem:[#allocation1] sm:$0xff]
    %v6322 = vld [vmem:[#allocation1 + $0x9] sm:$0xff]
    %6323 = vst [vmem:[#allocation1] ss:$9 sm:$0xff] %v5364
    %6324 = vst [vmem:[%s6287] ss:$9 sm:$0xff] %v5365
    %6325 = vst [vmem:[%s6289] ss:$9 sm:$0xff] %v5366
    %6326 = vst [vmem:[%s6291] ss:$9 sm:$0xff] %v5367
    %6327 = vst [vmem:[%s6293] ss:$9 sm:$0xff] %v5368
    %6328 = vst [vmem:[%s6295] ss:$9 sm:$0xff] %v5369
    %6329 = vst [vmem:[%s6297] ss:$9 sm:$0xff] %v5370
    %6330 = vst [vmem:[%s6299] ss:$9 sm:$0xff] %v5371
    %v6331 = vld [vmem:[#allocation1] sm:$0xff]
    %v6332 = vld [vmem:[#allocation1 + $0x9] sm:$0xff]
    %6333 = vst [vmem:[#allocation1] ss:$9 sm:$0xff] %v5372
    %6334 = vst [vmem:[%s6287] ss:$9 sm:$0xff] %v5373
    %6335 = vst [vmem:[%s6289] ss:$9 sm:$0xff] %v5374
    %6336 = vst [vmem:[%s6291] ss:$9 sm:$0xff] %v5375
    %6337 = vst [vmem:[%s6293] ss:$9 sm:$0xff] %v5376
    %6338 = vst [vmem:[%s6295] ss:$9 sm:$0xff] %v5377
    %6339 = vst [vmem:[%s6297] ss:$9 sm:$0xff] %v5378
    %6340 = vst [vmem:[%s6299] ss:$9 sm:$0xff] %v5379
    %v6341 = vld [vmem:[#allocation1] sm:$0xff]
    %v6342 = vld [vmem:[#allocation1 + $0x9] sm:$0xff]
    %v6353 = vmul.f32 %v6276, %v6301
    %v6354 = vmul.f32 %v6277, %v6302
    %v6355 = vmul.f32 %v6278, %v6311
    %v6356 = vmul.f32 %v6279, %v6312
    %v6357 = vmul.f32 %v6280, %v6321
    %v6358 = vmul.f32 %v6281, %v6322
    %v6359 = vmul.f32 %v6282, %v6331
    %v6360 = vmul.f32 %v6283, %v6332
    %v6361 = vmul.f32 %v6284, %v6341
    %v6362 = vmul.f32 %v6285, %v6342
    %v6363 = vsel %vm6144, %v6354, 0.0
    %v6364 = vadd.f32 %v6353, %v6363
    %v6365 = vadd.f32 %v6364, %v6355
    %v6366 = vsel %vm6144, %v6356, 0.0
    %v6367 = vadd.f32 %v6365, %v6366
    %v6368 = vadd.f32 %v6367, %v6357
    %v6369 = vsel %vm6144, %v6358, 0.0
    %v6370 = vadd.f32 %v6368, %v6369
    %v6371 = vadd.f32 %v6370, %v6359
    %v6372 = vsel %vm6144, %v6360, 0.0
    %v6373 = vadd.f32 %v6371, %v6372
    %v6374 = vadd.f32 %v6373, %v6361
    %v6375 = vsel %vm6144, %v6362, 0.0
    %v6376 = vadd.f32 %v6374, %v6375
    %6377 = vadd.xlane.f32.xlu0 %v6376
    %v6378 = vpop.xlane.xlu0 %6377
    %v6379 = vrot.slane %v6378, 4
    %v6380 = vadd.f32 %v6378, %v6379
    %v6381 = vrot.slane %v6380, 2
    %v6382 = vadd.f32 %v6380, %v6381
    %v6383 = vrot.slane %v6382, 1
    %v6384 = vadd.f32 %v6382, %v6383
    %s6385 = vtos %v6384
    %s6386 = smul.f32 %s6385, 0.5
    %6427 = vst [vmem:[#allocation1] ss:$9 sm:$0xff] %v5540
    %s6428 = scalar_lea.vmem [#allocation1], 1
    %6429 = vst [vmem:[%s6428] ss:$9 sm:$0xff] %v5541
    %s6430 = scalar_lea.vmem [#allocation1], 2
    %6431 = vst [vmem:[%s6430] ss:$9 sm:$0xff] %v5542
    %s6432 = scalar_lea.vmem [#allocation1], 3
    %6433 = vst [vmem:[%s6432] ss:$9 sm:$0xff] %v5543
    %s6434 = scalar_lea.vmem [#allocation1], 4
    %6435 = vst [vmem:[%s6434] ss:$9 sm:$0xff] %v5544
    %s6436 = scalar_lea.vmem [#allocation1], 5
    %6437 = vst [vmem:[%s6436] ss:$9 sm:$0xff] %v5545
    %s6438 = scalar_lea.vmem [#allocation1], 6
    %6439 = vst [vmem:[%s6438] ss:$9 sm:$0xff] %v5546
    %s6440 = scalar_lea.vmem [#allocation1], 7
    %6441 = vst [vmem:[%s6440] ss:$9 sm:$0xff] %v5547
    %v6442 = vld [vmem:[#allocation1] sm:$0xff]
    %v6443 = vld [vmem:[#allocation1 + $0x9] sm:$0xff]
    %6444 = vst [vmem:[#allocation1] ss:$9 sm:$0xff] %v5548
    %6445 = vst [vmem:[%s6428] ss:$9 sm:$0xff] %v5549
    %6446 = vst [vmem:[%s6430] ss:$9 sm:$0xff] %v5550
    %6447 = vst [vmem:[%s6432] ss:$9 sm:$0xff] %v5551
    %6448 = vst [vmem:[%s6434] ss:$9 sm:$0xff] %v5552
    %6449 = vst [vmem:[%s6436] ss:$9 sm:$0xff] %v5553
    %6450 = vst [vmem:[%s6438] ss:$9 sm:$0xff] %v5554
    %6451 = vst [vmem:[%s6440] ss:$9 sm:$0xff] %v5555
    %v6452 = vld [vmem:[#allocation1] sm:$0xff]
    %v6453 = vld [vmem:[#allocation1 + $0x9] sm:$0xff]
    %6454 = vst [vmem:[#allocation1] ss:$9 sm:$0xff] %v5556
    %6455 = vst [vmem:[%s6428] ss:$9 sm:$0xff] %v5557
    %6456 = vst [vmem:[%s6430] ss:$9 sm:$0xff] %v5558
    %6457 = vst [vmem:[%s6432] ss:$9 sm:$0xff] %v5559
    %6458 = vst [vmem:[%s6434] ss:$9 sm:$0xff] %v5560
    %6459 = vst [vmem:[%s6436] ss:$9 sm:$0xff] %v5561
    %6460 = vst [vmem:[%s6438] ss:$9 sm:$0xff] %v5562
    %6461 = vst [vmem:[%s6440] ss:$9 sm:$0xff] %v5563
    %v6462 = vld [vmem:[#allocation1] sm:$0xff]
    %v6463 = vld [vmem:[#allocation1 + $0x9] sm:$0xff]
    %6464 = vst [vmem:[#allocation1] ss:$9 sm:$0xff] %v5564
    %6465 = vst [vmem:[%s6428] ss:$9 sm:$0xff] %v5565
    %6466 = vst [vmem:[%s6430] ss:$9 sm:$0xff] %v5566
    %6467 = vst [vmem:[%s6432] ss:$9 sm:$0xff] %v5567
    %6468 = vst [vmem:[%s6434] ss:$9 sm:$0xff] %v5568
    %6469 = vst [vmem:[%s6436] ss:$9 sm:$0xff] %v5569
    %6470 = vst [vmem:[%s6438] ss:$9 sm:$0xff] %v5570
    %6471 = vst [vmem:[%s6440] ss:$9 sm:$0xff] %v5571
    %v6472 = vld [vmem:[#allocation1] sm:$0xff]
    %v6473 = vld [vmem:[#allocation1 + $0x9] sm:$0xff]
    %6474 = vst [vmem:[#allocation1] ss:$9 sm:$0xff] %v5572
    %6475 = vst [vmem:[%s6428] ss:$9 sm:$0xff] %v5573
    %6476 = vst [vmem:[%s6430] ss:$9 sm:$0xff] %v5574
    %6477 = vst [vmem:[%s6432] ss:$9 sm:$0xff] %v5575
    %6478 = vst [vmem:[%s6434] ss:$9 sm:$0xff] %v5576
    %6479 = vst [vmem:[%s6436] ss:$9 sm:$0xff] %v5577
    %6480 = vst [vmem:[%s6438] ss:$9 sm:$0xff] %v5578
    %6481 = vst [vmem:[%s6440] ss:$9 sm:$0xff] %v5579
    %v6482 = vld [vmem:[#allocation1] sm:$0xff]
    %v6483 = vld [vmem:[#allocation1 + $0x9] sm:$0xff]
    %v6494 = vmul.f32 %v4922, %v6442
    %v6495 = vmul.f32 %v4922, %v6443
    %v6496 = vmul.f32 %v4926, %v6452
    %v6497 = vmul.f32 %v4926, %v6453
    %v6498 = vmul.f32 %v4930, %v6462
    %v6499 = vmul.f32 %v4930, %v6463
    %v6500 = vmul.f32 %v4934, %v6472
    %v6501 = vmul.f32 %v4934, %v6473
    %v6502 = vmul.f32 %v4938, %v6482
    %v6503 = vmul.f32 %v4938, %v6483
    %6504 = vst [vmem:[#allocation1] ss:$9 sm:$0xff] %v5540
    %s6505 = scalar_lea.vmem [#allocation1], 1
    %6506 = vst [vmem:[%s6505] ss:$9 sm:$0xff] %v5541
    %s6507 = scalar_lea.vmem [#allocation1], 2
    %6508 = vst [vmem:[%s6507] ss:$9 sm:$0xff] %v5542
    %s6509 = scalar_lea.vmem [#allocation1], 3
    %6510 = vst [vmem:[%s6509] ss:$9 sm:$0xff] %v5543
    %s6511 = scalar_lea.vmem [#allocation1], 4
    %6512 = vst [vmem:[%s6511] ss:$9 sm:$0xff] %v5544
    %s6513 = scalar_lea.vmem [#allocation1], 5
    %6514 = vst [vmem:[%s6513] ss:$9 sm:$0xff] %v5545
    %s6515 = scalar_lea.vmem [#allocation1], 6
    %6516 = vst [vmem:[%s6515] ss:$9 sm:$0xff] %v5546
    %s6517 = scalar_lea.vmem [#allocation1], 7
    %6518 = vst [vmem:[%s6517] ss:$9 sm:$0xff] %v5547
    %v6519 = vld [vmem:[#allocation1] sm:$0xff]
    %v6520 = vld [vmem:[#allocation1 + $0x9] sm:$0xff]
    %6521 = vst [vmem:[#allocation1] ss:$9 sm:$0xff] %v5548
    %6522 = vst [vmem:[%s6505] ss:$9 sm:$0xff] %v5549
    %6523 = vst [vmem:[%s6507] ss:$9 sm:$0xff] %v5550
    %6524 = vst [vmem:[%s6509] ss:$9 sm:$0xff] %v5551
    %6525 = vst [vmem:[%s6511] ss:$9 sm:$0xff] %v5552
    %6526 = vst [vmem:[%s6513] ss:$9 sm:$0xff] %v5553
    %6527 = vst [vmem:[%s6515] ss:$9 sm:$0xff] %v5554
    %6528 = vst [vmem:[%s6517] ss:$9 sm:$0xff] %v5555
    %v6529 = vld [vmem:[#allocation1] sm:$0xff]
    %v6530 = vld [vmem:[#allocation1 + $0x9] sm:$0xff]
    %6531 = vst [vmem:[#allocation1] ss:$9 sm:$0xff] %v5556
    %6532 = vst [vmem:[%s6505] ss:$9 sm:$0xff] %v5557
    %6533 = vst [vmem:[%s6507] ss:$9 sm:$0xff] %v5558
    %6534 = vst [vmem:[%s6509] ss:$9 sm:$0xff] %v5559
    %6535 = vst [vmem:[%s6511] ss:$9 sm:$0xff] %v5560
    %6536 = vst [vmem:[%s6513] ss:$9 sm:$0xff] %v5561
    %6537 = vst [vmem:[%s6515] ss:$9 sm:$0xff] %v5562
    %6538 = vst [vmem:[%s6517] ss:$9 sm:$0xff] %v5563
    %v6539 = vld [vmem:[#allocation1] sm:$0xff]
    %v6540 = vld [vmem:[#allocation1 + $0x9] sm:$0xff]
    %6541 = vst [vmem:[#allocation1] ss:$9 sm:$0xff] %v5564
    %6542 = vst [vmem:[%s6505] ss:$9 sm:$0xff] %v5565
    %6543 = vst [vmem:[%s6507] ss:$9 sm:$0xff] %v5566
    %6544 = vst [vmem:[%s6509] ss:$9 sm:$0xff] %v5567
    %6545 = vst [vmem:[%s6511] ss:$9 sm:$0xff] %v5568
    %6546 = vst [vmem:[%s6513] ss:$9 sm:$0xff] %v5569
    %6547 = vst [vmem:[%s6515] ss:$9 sm:$0xff] %v5570
    %6548 = vst [vmem:[%s6517] ss:$9 sm:$0xff] %v5571
    %v6549 = vld [vmem:[#allocation1] sm:$0xff]
    %v6550 = vld [vmem:[#allocation1 + $0x9] sm:$0xff]
    %6551 = vst [vmem:[#allocation1] ss:$9 sm:$0xff] %v5572
    %6552 = vst [vmem:[%s6505] ss:$9 sm:$0xff] %v5573
    %6553 = vst [vmem:[%s6507] ss:$9 sm:$0xff] %v5574
    %6554 = vst [vmem:[%s6509] ss:$9 sm:$0xff] %v5575
    %6555 = vst [vmem:[%s6511] ss:$9 sm:$0xff] %v5576
    %6556 = vst [vmem:[%s6513] ss:$9 sm:$0xff] %v5577
    %6557 = vst [vmem:[%s6515] ss:$9 sm:$0xff] %v5578
    %6558 = vst [vmem:[%s6517] ss:$9 sm:$0xff] %v5579
    %v6559 = vld [vmem:[#allocation1] sm:$0xff]
    %v6560 = vld [vmem:[#allocation1 + $0x9] sm:$0xff]
    %v6571 = vmul.f32 %v6494, %v6519
    %v6572 = vmul.f32 %v6495, %v6520
    %v6573 = vmul.f32 %v6496, %v6529
    %v6574 = vmul.f32 %v6497, %v6530
    %v6575 = vmul.f32 %v6498, %v6539
    %v6576 = vmul.f32 %v6499, %v6540
    %v6577 = vmul.f32 %v6500, %v6549
    %v6578 = vmul.f32 %v6501, %v6550
    %v6579 = vmul.f32 %v6502, %v6559
    %v6580 = vmul.f32 %v6503, %v6560
    %v6581 = vsel %vm6144, %v6572, 0.0
    %v6582 = vadd.f32 %v6571, %v6581
    %v6583 = vadd.f32 %v6582, %v6573
    %v6584 = vsel %vm6144, %v6574, 0.0
    %v6585 = vadd.f32 %v6583, %v6584
    %v6586 = vadd.f32 %v6585, %v6575
    %v6587 = vsel %vm6144, %v6576, 0.0
    %v6588 = vadd.f32 %v6586, %v6587
    %v6589 = vadd.f32 %v6588, %v6577
    %v6590 = vsel %vm6144, %v6578, 0.0
    %v6591 = vadd.f32 %v6589, %v6590
    %v6592 = vadd.f32 %v6591, %v6579
    %v6593 = vsel %vm6144, %v6580, 0.0
    %v6594 = vadd.f32 %v6592, %v6593
    %6595 = vadd.xlane.f32.xlu0 %v6594
    %v6596 = vpop.xlane.xlu0 %6595
    %v6597 = vrot.slane %v6596, 4
    %v6598 = vadd.f32 %v6596, %v6597
    %v6599 = vrot.slane %v6598, 2
    %v6600 = vadd.f32 %v6598, %v6599
    %v6601 = vrot.slane %v6600, 1
    %v6602 = vadd.f32 %v6600, %v6601
    %s6603 = vtos %v6602
    %s6604 = smul.f32 %s6603, 0.5
    %6645 = vst [vmem:[#allocation1] ss:$9 sm:$0xff] %v5740
    %s6646 = scalar_lea.vmem [#allocation1], 1
    %6647 = vst [vmem:[%s6646] ss:$9 sm:$0xff] %v5741
    %s6648 = scalar_lea.vmem [#allocation1], 2
    %6649 = vst [vmem:[%s6648] ss:$9 sm:$0xff] %v5742
    %s6650 = scalar_lea.vmem [#allocation1], 3
    %6651 = vst [vmem:[%s6650] ss:$9 sm:$0xff] %v5743
    %s6652 = scalar_lea.vmem [#allocation1], 4
    %6653 = vst [vmem:[%s6652] ss:$9 sm:$0xff] %v5744
    %s6654 = scalar_lea.vmem [#allocation1], 5
    %6655 = vst [vmem:[%s6654] ss:$9 sm:$0xff] %v5745
    %s6656 = scalar_lea.vmem [#allocation1], 6
    %6657 = vst [vmem:[%s6656] ss:$9 sm:$0xff] %v5746
    %s6658 = scalar_lea.vmem [#allocation1], 7
    %6659 = vst [vmem:[%s6658] ss:$9 sm:$0xff] %v5747
    %v6660 = vld [vmem:[#allocation1] sm:$0xff]
    %v6661 = vld [vmem:[#allocation1 + $0x9] sm:$0xff]
    %6662 = vst [vmem:[#allocation1] ss:$9 sm:$0xff] %v5748
    %6663 = vst [vmem:[%s6646] ss:$9 sm:$0xff] %v5749
    %6664 = vst [vmem:[%s6648] ss:$9 sm:$0xff] %v5750
    %6665 = vst [vmem:[%s6650] ss:$9 sm:$0xff] %v5751
    %6666 = vst [vmem:[%s6652] ss:$9 sm:$0xff] %v5752
    %6667 = vst [vmem:[%s6654] ss:$9 sm:$0xff] %v5753
    %6668 = vst [vmem:[%s6656] ss:$9 sm:$0xff] %v5754
    %6669 = vst [vmem:[%s6658] ss:$9 sm:$0xff] %v5755
    %v6670 = vld [vmem:[#allocation1] sm:$0xff]
    %v6671 = vld [vmem:[#allocation1 + $0x9] sm:$0xff]
    %6672 = vst [vmem:[#allocation1] ss:$9 sm:$0xff] %v5756
    %6673 = vst [vmem:[%s6646] ss:$9 sm:$0xff] %v5757
    %6674 = vst [vmem:[%s6648] ss:$9 sm:$0xff] %v5758
    %6675 = vst [vmem:[%s6650] ss:$9 sm:$0xff] %v5759
    %6676 = vst [vmem:[%s6652] ss:$9 sm:$0xff] %v5760
    %6677 = vst [vmem:[%s6654] ss:$9 sm:$0xff] %v5761
    %6678 = vst [vmem:[%s6656] ss:$9 sm:$0xff] %v5762
    %6679 = vst [vmem:[%s6658] ss:$9 sm:$0xff] %v5763
    %v6680 = vld [vmem:[#allocation1] sm:$0xff]
    %v6681 = vld [vmem:[#allocation1 + $0x9] sm:$0xff]
    %6682 = vst [vmem:[#allocation1] ss:$9 sm:$0xff] %v5764
    %6683 = vst [vmem:[%s6646] ss:$9 sm:$0xff] %v5765
    %6684 = vst [vmem:[%s6648] ss:$9 sm:$0xff] %v5766
    %6685 = vst [vmem:[%s6650] ss:$9 sm:$0xff] %v5767
    %6686 = vst [vmem:[%s6652] ss:$9 sm:$0xff] %v5768
    %6687 = vst [vmem:[%s6654] ss:$9 sm:$0xff] %v5769
    %6688 = vst [vmem:[%s6656] ss:$9 sm:$0xff] %v5770
    %6689 = vst [vmem:[%s6658] ss:$9 sm:$0xff] %v5771
    %v6690 = vld [vmem:[#allocation1] sm:$0xff]
    %v6691 = vld [vmem:[#allocation1 + $0x9] sm:$0xff]
    %6692 = vst [vmem:[#allocation1] ss:$9 sm:$0xff] %v5772
    %6693 = vst [vmem:[%s6646] ss:$9 sm:$0xff] %v5773
    %6694 = vst [vmem:[%s6648] ss:$9 sm:$0xff] %v5774
    %6695 = vst [vmem:[%s6650] ss:$9 sm:$0xff] %v5775
    %6696 = vst [vmem:[%s6652] ss:$9 sm:$0xff] %v5776
    %6697 = vst [vmem:[%s6654] ss:$9 sm:$0xff] %v5777
    %6698 = vst [vmem:[%s6656] ss:$9 sm:$0xff] %v5778
    %6699 = vst [vmem:[%s6658] ss:$9 sm:$0xff] %v5779
    %v6700 = vld [vmem:[#allocation1] sm:$0xff]
    %v6701 = vld [vmem:[#allocation1 + $0x9] sm:$0xff]
    %v6712 = vmul.f32 %v4922, %v6660
    %v6713 = vmul.f32 %v4922, %v6661
    %v6714 = vmul.f32 %v4926, %v6670
    %v6715 = vmul.f32 %v4926, %v6671
    %v6716 = vmul.f32 %v4930, %v6680
    %v6717 = vmul.f32 %v4930, %v6681
    %v6718 = vmul.f32 %v4934, %v6690
    %v6719 = vmul.f32 %v4934, %v6691
    %v6720 = vmul.f32 %v4938, %v6700
    %v6721 = vmul.f32 %v4938, %v6701
    %6722 = vst [vmem:[#allocation1] ss:$9 sm:$0xff] %v5740
    %s6723 = scalar_lea.vmem [#allocation1], 1
    %6724 = vst [vmem:[%s6723] ss:$9 sm:$0xff] %v5741
    %s6725 = scalar_lea.vmem [#allocation1], 2
    %6726 = vst [vmem:[%s6725] ss:$9 sm:$0xff] %v5742
    %s6727 = scalar_lea.vmem [#allocation1], 3
    %6728 = vst [vmem:[%s6727] ss:$9 sm:$0xff] %v5743
    %s6729 = scalar_lea.vmem [#allocation1], 4
    %6730 = vst [vmem:[%s6729] ss:$9 sm:$0xff] %v5744
    %s6731 = scalar_lea.vmem [#allocation1], 5
    %6732 = vst [vmem:[%s6731] ss:$9 sm:$0xff] %v5745
    %s6733 = scalar_lea.vmem [#allocation1], 6
    %6734 = vst [vmem:[%s6733] ss:$9 sm:$0xff] %v5746
    %s6735 = scalar_lea.vmem [#allocation1], 7
    %6736 = vst [vmem:[%s6735] ss:$9 sm:$0xff] %v5747
    %v6737 = vld [vmem:[#allocation1] sm:$0xff]
    %v6738 = vld [vmem:[#allocation1 + $0x9] sm:$0xff]
    %6739 = vst [vmem:[#allocation1] ss:$9 sm:$0xff] %v5748
    %6740 = vst [vmem:[%s6723] ss:$9 sm:$0xff] %v5749
    %6741 = vst [vmem:[%s6725] ss:$9 sm:$0xff] %v5750
    %6742 = vst [vmem:[%s6727] ss:$9 sm:$0xff] %v5751
    %6743 = vst [vmem:[%s6729] ss:$9 sm:$0xff] %v5752
    %6744 = vst [vmem:[%s6731] ss:$9 sm:$0xff] %v5753
    %6745 = vst [vmem:[%s6733] ss:$9 sm:$0xff] %v5754
    %6746 = vst [vmem:[%s6735] ss:$9 sm:$0xff] %v5755
    %v6747 = vld [vmem:[#allocation1] sm:$0xff]
    %v6748 = vld [vmem:[#allocation1 + $0x9] sm:$0xff]
    %6749 = vst [vmem:[#allocation1] ss:$9 sm:$0xff] %v5756
    %6750 = vst [vmem:[%s6723] ss:$9 sm:$0xff] %v5757
    %6751 = vst [vmem:[%s6725] ss:$9 sm:$0xff] %v5758
    %6752 = vst [vmem:[%s6727] ss:$9 sm:$0xff] %v5759
    %6753 = vst [vmem:[%s6729] ss:$9 sm:$0xff] %v5760
    %6754 = vst [vmem:[%s6731] ss:$9 sm:$0xff] %v5761
    %6755 = vst [vmem:[%s6733] ss:$9 sm:$0xff] %v5762
    %6756 = vst [vmem:[%s6735] ss:$9 sm:$0xff] %v5763
    %v6757 = vld [vmem:[#allocation1] sm:$0xff]
    %v6758 = vld [vmem:[#allocation1 + $0x9] sm:$0xff]
    %6759 = vst [vmem:[#allocation1] ss:$9 sm:$0xff] %v5764
    %6760 = vst [vmem:[%s6723] ss:$9 sm:$0xff] %v5765
    %6761 = vst [vmem:[%s6725] ss:$9 sm:$0xff] %v5766
    %6762 = vst [vmem:[%s6727] ss:$9 sm:$0xff] %v5767
    %6763 = vst [vmem:[%s6729] ss:$9 sm:$0xff] %v5768
    %6764 = vst [vmem:[%s6731] ss:$9 sm:$0xff] %v5769
    %6765 = vst [vmem:[%s6733] ss:$9 sm:$0xff] %v5770
    %6766 = vst [vmem:[%s6735] ss:$9 sm:$0xff] %v5771
    %v6767 = vld [vmem:[#allocation1] sm:$0xff]
    %v6768 = vld [vmem:[#allocation1 + $0x9] sm:$0xff]
    %6769 = vst [vmem:[#allocation1] ss:$9 sm:$0xff] %v5772
    %6770 = vst [vmem:[%s6723] ss:$9 sm:$0xff] %v5773
    %6771 = vst [vmem:[%s6725] ss:$9 sm:$0xff] %v5774
    %6772 = vst [vmem:[%s6727] ss:$9 sm:$0xff] %v5775
    %6773 = vst [vmem:[%s6729] ss:$9 sm:$0xff] %v5776
    %6774 = vst [vmem:[%s6731] ss:$9 sm:$0xff] %v5777
    %6775 = vst [vmem:[%s6733] ss:$9 sm:$0xff] %v5778
    %6776 = vst [vmem:[%s6735] ss:$9 sm:$0xff] %v5779
    %v6777 = vld [vmem:[#allocation1] sm:$0xff]
    %v6778 = vld [vmem:[#allocation1 + $0x9] sm:$0xff]
    %v6789 = vmul.f32 %v6712, %v6737
    %v6790 = vmul.f32 %v6713, %v6738
    %v6791 = vmul.f32 %v6714, %v6747
    %v6792 = vmul.f32 %v6715, %v6748
    %v6793 = vmul.f32 %v6716, %v6757
    %v6794 = vmul.f32 %v6717, %v6758
    %v6795 = vmul.f32 %v6718, %v6767
    %v6796 = vmul.f32 %v6719, %v6768
    %v6797 = vmul.f32 %v6720, %v6777
    %v6798 = vmul.f32 %v6721, %v6778
    %v6799 = vsel %vm6144, %v6790, 0.0
    %v6800 = vadd.f32 %v6789, %v6799
    %v6801 = vadd.f32 %v6800, %v6791
    %v6802 = vsel %vm6144, %v6792, 0.0
    %v6803 = vadd.f32 %v6801, %v6802
    %v6804 = vadd.f32 %v6803, %v6793
    %v6805 = vsel %vm6144, %v6794, 0.0
    %v6806 = vadd.f32 %v6804, %v6805
    %v6807 = vadd.f32 %v6806, %v6795
    %v6808 = vsel %vm6144, %v6796, 0.0
    %v6809 = vadd.f32 %v6807, %v6808
    %v6810 = vadd.f32 %v6809, %v6797
    %v6811 = vsel %vm6144, %v6798, 0.0
    %v6812 = vadd.f32 %v6810, %v6811
    %6813 = vadd.xlane.f32.xlu0 %v6812
    %v6814 = vpop.xlane.xlu0 %6813
    %v6815 = vrot.slane %v6814, 4
    %v6816 = vadd.f32 %v6814, %v6815
    %v6817 = vrot.slane %v6816, 2
    %v6818 = vadd.f32 %v6816, %v6817
    %v6819 = vrot.slane %v6818, 1
    %v6820 = vadd.f32 %v6818, %v6819
    %s6821 = vtos %v6820
    %s6822 = smul.f32 %s6821, 0.5
    %v6823 = vmul.f32 %v5910, %v5910
    %v6824 = vmul.f32 %v5911, %v5911
    %v6825 = vmul.f32 %v5912, %v5912
    %v6826 = vmul.f32 %v5913, %v5913
    %v6827 = vmul.f32 %v5914, %v5914
    %v6828 = vmul.f32 %v5915, %v5915
    %v6829 = vmul.f32 %v5916, %v5916
    %v6830 = vmul.f32 %v5917, %v5917
    %v6831 = vmul.f32 %v5918, %v5918
    %v6832 = vmul.f32 %v5919, %v5919
    %v6833 = vmul.f32 %v5920, %v5920
    %v6834 = vmul.f32 %v5921, %v5921
    %v6835 = vmul.f32 %v5922, %v5922
    %v6836 = vmul.f32 %v5923, %v5923
    %v6837 = vmul.f32 %v5924, %v5924
    %v6838 = vmul.f32 %v5925, %v5925
    %v6839 = vmul.f32 %v5926, %v5926
    %v6840 = vmul.f32 %v5927, %v5927
    %v6841 = vmul.f32 %v5928, %v5928
    %v6842 = vmul.f32 %v5929, %v5929
    %v6843 = vmul.f32 %v5930, %v5930
    %v6844 = vmul.f32 %v5931, %v5931
    %v6845 = vmul.f32 %v5932, %v5932
    %v6846 = vmul.f32 %v5933, %v5933
    %v6847 = vmul.f32 %v5934, %v5934
    %v6848 = vmul.f32 %v5935, %v5935
    %v6849 = vmul.f32 %v5936, %v5936
    %v6850 = vmul.f32 %v5937, %v5937
    %v6851 = vmul.f32 %v5938, %v5938
    %v6852 = vmul.f32 %v5939, %v5939
    %v6853 = vmul.f32 %v5940, %v5940
    %v6854 = vmul.f32 %v5941, %v5941
    %v6855 = vmul.f32 %v5942, %v5942
    %v6856 = vmul.f32 %v5943, %v5943
    %v6857 = vmul.f32 %v5944, %v5944
    %v6858 = vmul.f32 %v5945, %v5945
    %v6859 = vmul.f32 %v5946, %v5946
    %v6860 = vmul.f32 %v5947, %v5947
    %v6861 = vmul.f32 %v5948, %v5948
    %v6862 = vmul.f32 %v5949, %v5949
    %6903 = vst [vmem:[#allocation1] ss:$9 sm:$0xff] %v6823
    %s6904 = scalar_lea.vmem [#allocation1], 1
    %6905 = vst [vmem:[%s6904] ss:$9 sm:$0xff] %v6824
    %s6906 = scalar_lea.vmem [#allocation1], 2
    %6907 = vst [vmem:[%s6906] ss:$9 sm:$0xff] %v6825
    %s6908 = scalar_lea.vmem [#allocation1], 3
    %6909 = vst [vmem:[%s6908] ss:$9 sm:$0xff] %v6826
    %s6910 = scalar_lea.vmem [#allocation1], 4
    %6911 = vst [vmem:[%s6910] ss:$9 sm:$0xff] %v6827
    %s6912 = scalar_lea.vmem [#allocation1], 5
    %6913 = vst [vmem:[%s6912] ss:$9 sm:$0xff] %v6828
    %s6914 = scalar_lea.vmem [#allocation1], 6
    %6915 = vst [vmem:[%s6914] ss:$9 sm:$0xff] %v6829
    %s6916 = scalar_lea.vmem [#allocation1], 7
    %6917 = vst [vmem:[%s6916] ss:$9 sm:$0xff] %v6830
    %v6918 = vld [vmem:[#allocation1] sm:$0xff]
    %v6919 = vld [vmem:[#allocation1 + $0x9] sm:$0xff]
    %6920 = vst [vmem:[#allocation1] ss:$9 sm:$0xff] %v6831
    %6921 = vst [vmem:[%s6904] ss:$9 sm:$0xff] %v6832
    %6922 = vst [vmem:[%s6906] ss:$9 sm:$0xff] %v6833
    %6923 = vst [vmem:[%s6908] ss:$9 sm:$0xff] %v6834
    %6924 = vst [vmem:[%s6910] ss:$9 sm:$0xff] %v6835
    %6925 = vst [vmem:[%s6912] ss:$9 sm:$0xff] %v6836
    %6926 = vst [vmem:[%s6914] ss:$9 sm:$0xff] %v6837
    %6927 = vst [vmem:[%s6916] ss:$9 sm:$0xff] %v6838
    %v6928 = vld [vmem:[#allocation1] sm:$0xff]
    %v6929 = vld [vmem:[#allocation1 + $0x9] sm:$0xff]
    %6930 = vst [vmem:[#allocation1] ss:$9 sm:$0xff] %v6839
    %6931 = vst [vmem:[%s6904] ss:$9 sm:$0xff] %v6840
    %6932 = vst [vmem:[%s6906] ss:$9 sm:$0xff] %v6841
    %6933 = vst [vmem:[%s6908] ss:$9 sm:$0xff] %v6842
    %6934 = vst [vmem:[%s6910] ss:$9 sm:$0xff] %v6843
    %6935 = vst [vmem:[%s6912] ss:$9 sm:$0xff] %v6844
    %6936 = vst [vmem:[%s6914] ss:$9 sm:$0xff] %v6845
    %6937 = vst [vmem:[%s6916] ss:$9 sm:$0xff] %v6846
    %v6938 = vld [vmem:[#allocation1] sm:$0xff]
    %v6939 = vld [vmem:[#allocation1 + $0x9] sm:$0xff]
    %6940 = vst [vmem:[#allocation1] ss:$9 sm:$0xff] %v6847
    %6941 = vst [vmem:[%s6904] ss:$9 sm:$0xff] %v6848
    %6942 = vst [vmem:[%s6906] ss:$9 sm:$0xff] %v6849
    %6943 = vst [vmem:[%s6908] ss:$9 sm:$0xff] %v6850
    %6944 = vst [vmem:[%s6910] ss:$9 sm:$0xff] %v6851
    %6945 = vst [vmem:[%s6912] ss:$9 sm:$0xff] %v6852
    %6946 = vst [vmem:[%s6914] ss:$9 sm:$0xff] %v6853
    %6947 = vst [vmem:[%s6916] ss:$9 sm:$0xff] %v6854
    %v6948 = vld [vmem:[#allocation1] sm:$0xff]
    %v6949 = vld [vmem:[#allocation1 + $0x9] sm:$0xff]
    %6950 = vst [vmem:[#allocation1] ss:$9 sm:$0xff] %v6855
    %6951 = vst [vmem:[%s6904] ss:$9 sm:$0xff] %v6856
    %6952 = vst [vmem:[%s6906] ss:$9 sm:$0xff] %v6857
    %6953 = vst [vmem:[%s6908] ss:$9 sm:$0xff] %v6858
    %6954 = vst [vmem:[%s6910] ss:$9 sm:$0xff] %v6859
    %6955 = vst [vmem:[%s6912] ss:$9 sm:$0xff] %v6860
    %6956 = vst [vmem:[%s6914] ss:$9 sm:$0xff] %v6861
    %6957 = vst [vmem:[%s6916] ss:$9 sm:$0xff] %v6862
    %v6958 = vld [vmem:[#allocation1] sm:$0xff]
    %v6959 = vld [vmem:[#allocation1 + $0x9] sm:$0xff]
    %v6970 = vmul.f32 %v4940, %v6918
    %v6971 = vmul.f32 %v4941, %v6919
    %v6972 = vmul.f32 %v4942, %v6928
    %v6973 = vmul.f32 %v4943, %v6929
    %v6974 = vmul.f32 %v4944, %v6938
    %v6975 = vmul.f32 %v4945, %v6939
    %v6976 = vmul.f32 %v4946, %v6948
    %v6977 = vmul.f32 %v4947, %v6949
    %v6978 = vmul.f32 %v4948, %v6958
    %v6979 = vmul.f32 %v4949, %v6959
    %v6980 = vsel %vm6144, %v6971, 0.0
    %v6981 = vadd.f32 %v6970, %v6980
    %v6982 = vadd.f32 %v6981, %v6972
    %v6983 = vsel %vm6144, %v6973, 0.0
    %v6984 = vadd.f32 %v6982, %v6983
    %v6985 = vadd.f32 %v6984, %v6974
    %v6986 = vsel %vm6144, %v6975, 0.0
    %v6987 = vadd.f32 %v6985, %v6986
    %v6988 = vadd.f32 %v6987, %v6976
    %v6989 = vsel %vm6144, %v6977, 0.0
    %v6990 = vadd.f32 %v6988, %v6989
    %v6991 = vadd.f32 %v6990, %v6978
    %v6992 = vsel %vm6144, %v6979, 0.0
    %v6993 = vadd.f32 %v6991, %v6992
    %6994 = vadd.xlane.f32.xlu0 %v6993
    %v6995 = vpop.xlane.xlu0 %6994
    %v6996 = vrot.slane %v6995, 4
    %v6997 = vadd.f32 %v6995, %v6996
    %v6998 = vrot.slane %v6997, 2
    %v6999 = vadd.f32 %v6997, %v6998
    %v7000 = vrot.slane %v6999, 1
    %v7001 = vadd.f32 %v6999, %v7000
    %s7002 = vtos %v7001
    %s7003 = smul.f32 %s7002, 0.5
    %vm7004 = vcmp.eq.s32.totalorder %v422, 0
    %v7005 = vstv %s6168
    %v7006 = vsel %vm7004, %v7005, 0.0
    %vm7007 = vcmp.eq.s32.totalorder %v422, 1
    %v7008 = vstv %s6386
    %v7009 = vsel %vm7007, %v7008, 0.0
    %v7010 = vadd.f32 %v7006, %v7009
    %vm7011 = vcmp.eq.s32.totalorder %v422, 2
    %v7012 = vstv %s6604
    %v7013 = vsel %vm7011, %v7012, 0.0
    %v7014 = vadd.f32 %v7010, %v7013
    %vm7015 = vcmp.eq.s32.totalorder %v422, 3
    %v7016 = vstv %s6822
    %v7017 = vsel %vm7015, %v7016, 0.0
    %v7018 = vadd.f32 %v7014, %v7017
    %vm7019 = vcmp.eq.s32.totalorder %v422, 4
    %v7020 = vstv %s7003
    %v7021 = vsel %vm7019, %v7020, 0.0
    %v7022 = vadd.f32 %v7018, %v7021
    %vm7023 = vcmask 57344
    %7024 = vst.msk [vmem:[#allocation2] sm:$0x1] %vm7023, %v7022
    // Predicated region
    $region10: #{tpu_custom_call.1} parent=1 // pred_check
      _
    $region11: #{tpu_custom_call.1} parent=1 // pred_check_branch
      %7026 = sbr.rel (0) target = $region13
    $region12: #{tpu_custom_call.1} parent=1 // pred_region
      %7028 = vsyncadd [#allocation3], 0
      %s7030 = sshll.u32 [#allocation2], 4
      %s7031 = int_to_ptr.vmem [resolvable:$true] %s7030
      %s7032 = sshll.u32 %s2, 4
      %s7033 = int_to_ptr.hbm [resolvable:$true] %s7032
      %7035 = dma.vmem_to_hbm [thread:$0]  %s7031, 16, %s7033, [#allocation3]
    $region13: #{tpu_custom_call.1} parent=1 // pred_fallthru
      _
    // Predicated region
    $region14: #{tpu_custom_call.1} parent=1 // pred_check
      _
    $region15: #{tpu_custom_call.1} parent=1 // pred_check_branch
      %7037 = sbr.rel (0) target = $region17
    $region16: #{tpu_custom_call.1} parent=1 // pred_region
      %7039 = dma.done [#allocation3], 16
    $region17: #{tpu_custom_call.1} parent=1 // pred_fallthru
      _
    %7040 = vsyncpa [#allocation3], 1

</llo_original>
